<compile_context>
chip_gen: v7x
topology: tpu7x:2x2x1
jax: 0.10.0
libtpu: 0.0.40
codegen_flags: <defaults>
</compile_context>

<pallas_src>
import math
from functools import partial

import jax
import jax.numpy as jnp
from jax.experimental import pallas as pl
from jax.experimental.pallas import tpu as pltpu


# -----------------------------------------------------------------------------
# Config (matches the MarianConfig fields used by the reference module)
# -----------------------------------------------------------------------------
class Config:
    vocab_size = 64
    d_model = 32
    encoder_attention_heads = 4
    decoder_attention_heads = 4
    encoder_ffn_dim = 64
    decoder_layers = 2
    max_position_embeddings = 32
    pad_token_id = 0
    layer_norm_eps = 1e-5
    qkv_bias = True
    dropout = 0.0
    attention_dropout = 0.0
    activation_dropout = 0.0


CFG = Config()
LANE = 128
NEG = -1e9
VMEM_SPEC = pl.BlockSpec(memory_space=pltpu.MemorySpace.VMEM)


# -----------------------------------------------------------------------------
# Weight-slab packer: every parameter becomes a (rows, 128) block starting at
# lane 0, rows padded to a multiple of 8, so every in-kernel slice is a
# sublane-aligned, lane-0-based static slice (plain sub-tile loads).
# -----------------------------------------------------------------------------
class _SlabPacker:
    def __init__(self):
        self._blocks = []
        self._offsets = {}
        self._row = 0

    def add(self, name, arr):
        arr = jnp.asarray(arr, jnp.float32)
        if arr.ndim == 1:
            arr = arr.reshape(1, -1)
        r, c = arr.shape
        assert c <= LANE, f"{name}: {c} > {LANE} lanes"
        r_pad = -(-r // 8) * 8
        block = jnp.zeros((r_pad, LANE), jnp.float32).at[:r, :c].set(arr)
        self._offsets[name] = (self._row, r, c)
        self._blocks.append(block)
        self._row += r_pad

    def finish(self):
        return jnp.concatenate(self._blocks, axis=0), dict(self._offsets)


# -----------------------------------------------------------------------------
# Fused decoder kernel (single program, everything VMEM resident)
# -----------------------------------------------------------------------------
def _layer_norm(h, g, b, eps):
    mu = jnp.mean(h, axis=-1, keepdims=True)
    var = jnp.mean((h - mu) ** 2, axis=-1, keepdims=True)
    return (h - mu) * jax.lax.rsqrt(var + eps) * g + b


def fused_decoder_kernel(
    data_ref, w_ref, logits_ref,
    *, w_off, d_off, num_layers, self_heads, cross_heads,
    B, T, T_enc, D, V, P, eps,
):
    BT = B * T
    BTe = B * T_enc
    VT = V + P

    def w(name):
        r0, r, c = w_off[name]
        return w_ref[r0:r0 + r, 0:c]

    oh_r0, enc_r0, sm_r0, cm_r0 = d_off
    onehot = data_ref[oh_r0:oh_r0 + BT, 0:VT]           # (BT, V+P)
    enc = data_ref[enc_r0:enc_r0 + BTe, 0:D]            # (BTe, D)
    self_mask = data_ref[sm_r0:sm_r0 + BT, 0:BT]        # (BT, BT)  block-diag
    cross_mask = data_ref[cm_r0:cm_r0 + BT, 0:BTe]      # (BT, BTe) block-diag

    # ---- embeddings: token gather + positional add as ONE one-hot matmul ----
    x = jnp.dot(onehot, w("emb"), preferred_element_type=jnp.float32)   # (BT, D)
    x = _layer_norm(x, w("emb_ln_g"), w("emb_ln_b"), eps)

    def attention(prefix, x_q, x_kv, mask, num_heads):
        # Q-scale folded into wq/bq; out_proj folded per head into wvo/bvo.
        out = None
        for h in range(num_heads):                      # static unroll (H = 4)
            qh = jnp.dot(x_q, w(f"{prefix}_wq{h}"),
                         preferred_element_type=jnp.float32) + w(f"{prefix}_bq{h}")
            kh = jnp.dot(x_kv, w(f"{prefix}_wk{h}"),
                         preferred_element_type=jnp.float32) + w(f"{prefix}_bk{h}")
            voh = jnp.dot(x_kv, w(f"{prefix}_wvo{h}"),
                          preferred_element_type=jnp.float32) + w(f"{prefix}_bvo{h}")
            # scores = q @ k^T : last-dim contraction, no transpose materialized
            s = jax.lax.dot_general(
                qh, kh, (((1,), (1,)), ((), ())),
                preferred_element_type=jnp.float32) + mask              # (Nq, Nk)
            s = s - jnp.max(s, axis=-1, keepdims=True)
            e = jnp.exp(s)
            p = e / jnp.sum(e, axis=-1, keepdims=True)                  # exact softmax
            oh_ = jnp.dot(p, voh, preferred_element_type=jnp.float32)   # (Nq, D)
            out = oh_ if out is None else out + oh_
        return out + w(f"{prefix}_bo")

    # ---- decoder layers (static unroll over num_layers = 2) ----
    for L in range(num_layers):
        sa = attention(f"sa{L}", x, x, self_mask, self_heads)
        x = _layer_norm(x + sa, w(f"sa{L}_ln_g"), w(f"sa{L}_ln_b"), eps)

        ca = attention(f"ca{L}", x, enc, cross_mask, cross_heads)
        x = _layer_norm(x + ca, w(f"ca{L}_ln_g"), w(f"ca{L}_ln_b"), eps)

        h1 = jnp.dot(x, w(f"ffn{L}_w1"),
                     preferred_element_type=jnp.float32) + w(f"ffn{L}_b1")
        h1 = 0.5 * h1 * (1.0 + jax.lax.erf(h1 * (1.0 / math.sqrt(2.0))))  # exact GELU
        ff = jnp.dot(h1, w(f"ffn{L}_w2"),
                     preferred_element_type=jnp.float32) + w(f"ffn{L}_b2")
        x = _layer_norm(x + ff, w(f"fin{L}_ln_g"), w(f"fin{L}_ln_b"), eps)

    # ---- LM head: lane-dense (BT, 128) store; real vocab sliced in glue ----
    logits_ref[...] = jnp.dot(x, w("lm_head"), preferred_element_type=jnp.float32)


# -----------------------------------------------------------------------------
# Wrapper
# -----------------------------------------------------------------------------
def marian_decoder_forward(input_ids, encoder_states, self_mask, cross_mask,
                           wslab, *, w_off, cfg):
    B, T = input_ids.shape
    _, T_enc, D = encoder_states.shape
    V = cfg.vocab_size
    P = cfg.max_position_embeddings
    BT, BTe = B * T, B * T_enc
    V_pad = pl.cdiv(V, LANE) * LANE
    assert V + P <= LANE  # TODO(synk): larger vocab needs a different gather path

    # --- build the single lane-dense data slab (one DMA for everything) -----
    ids_flat = input_ids.reshape(BT)
    tok_oh = jax.nn.one_hot(ids_flat, V, dtype=jnp.float32)                  # (BT, V)
    pos_oh = jnp.tile(jax.nn.one_hot(jnp.arange(T), P, dtype=jnp.float32),
                      (B, 1))                                                # (BT, P)
    onehot = jnp.concatenate([tok_oh, pos_oh], axis=1)                       # (BT, V+P)

    enc2d = encoder_states.reshape(BTe, D).astype(jnp.float32)

    def block_mask(m, S):
        # (B, T, S) additive mask -> (BT, B*S) block-diagonal additive mask.
        # Off-diagonal blocks are -1e9 so each query row only attends within
        # its own batch element (exactly reproduces per-batch softmax).
        m = m.astype(jnp.float32)
        rows = []
        for b in range(B):
            cols = [m[b] if bb == b else jnp.full((T, S), NEG, jnp.float32)
                    for bb in range(B)]
            rows.append(jnp.concatenate(cols, axis=1))
        return jnp.concatenate(rows, axis=0)

    smask = block_mask(self_mask, T)       # (BT, BT)
    cmask = block_mask(cross_mask, T_enc)  # (BT, BTe)

    def pad_block(a):
        r, c = a.shape
        return jnp.pad(a, ((0, (-r) % 8), (0, LANE - c)))

    blocks = [pad_block(onehot), pad_block(enc2d), pad_block(smask), pad_block(cmask)]
    d_off = []
    row = 0
    for blk in blocks:
        d_off.append(row)
        row += blk.shape[0]
    data_slab = jnp.concatenate(blocks, axis=0)                              # (rows, 128)

    kernel = partial(
        fused_decoder_kernel,
        w_off=w_off, d_off=tuple(d_off),
        num_layers=cfg.decoder_layers,
        self_heads=cfg.encoder_attention_heads,    # matches the reference module
        cross_heads=cfg.decoder_attention_heads,
        B=B, T=T, T_enc=T_enc, D=D, V=V, P=P, eps=cfg.layer_norm_eps,
    )

    logits_pad = pl.pallas_call(
        kernel,
        out_shape=jax.ShapeDtypeStruct((BT, V_pad), jnp.float32),
        in_specs=[VMEM_SPEC, VMEM_SPEC],
        out_specs=VMEM_SPEC,
    )(data_slab, wslab)

    return logits_pad[:, :V].reshape(B, T, V)


# -----------------------------------------------------------------------------
# Deterministic parameter init (Linear weights stored as (in, out) = W^T)
# -----------------------------------------------------------------------------
def init_params(key, cfg):
    def nrm(k, shape, scale=0.02):
        return (scale * jax.random.normal(k, shape)).astype(jnp.float32)

    keys = iter(jax.random.split(key, 256))
    D, F, V = cfg.d_model, cfg.encoder_ffn_dim, cfg.vocab_size

    def attn_params():
        return {
            "wq": nrm(next(keys), (D, D)), "bq": nrm(next(keys), (1, D)),
            "wk": nrm(next(keys), (D, D)), "bk": nrm(next(keys), (1, D)),
            "wv": nrm(next(keys), (D, D)), "bv": nrm(next(keys), (1, D)),
            "wo": nrm(next(keys), (D, D)), "bo": nrm(next(keys), (1, D)),
        }

    word_emb = nrm(next(keys), (V, D))
    word_emb = word_emb.at[cfg.pad_token_id].set(0.0)  # padding_idx semantics

    params = {
        "word_emb": word_emb,
        "pos_emb": nrm(next(keys), (cfg.max_position_embeddings, D)),
        "emb_ln_g": jnp.ones((1, D), jnp.float32),
        "emb_ln_b": jnp.zeros((1, D), jnp.float32),
        "layers": [],
        "lm_head": nrm(next(keys), (D, V)),
    }
    for _ in range(cfg.decoder_layers):
        params["layers"].append({
            "self_attn": attn_params(),
            "cross_attn": attn_params(),
            "sa_ln_g": jnp.ones((1, D), jnp.float32),
            "sa_ln_b": jnp.zeros((1, D), jnp.float32),
            "ca_ln_g": jnp.ones((1, D), jnp.float32),
            "ca_ln_b": jnp.zeros((1, D), jnp.float32),
            "w1": nrm(next(keys), (D, F)), "b1": nrm(next(keys), (1, F)),
            "w2": nrm(next(keys), (F, D)), "b2": nrm(next(keys), (1, D)),
            "final_ln_g": jnp.ones((1, D), jnp.float32),
            "final_ln_b": jnp.zeros((1, D), jnp.float32),
        })
    return params


def prepare_packed_params(params, cfg):
    """Pack every parameter into ONE lane-dense (rows, 128) f32 slab.
    Per-head Q/K weights are pre-sliced (Q-scale folded in); the out-projection
    is folded per head into the V projection: W_vo_h = W_v[:,h] @ W_o[h,:]."""
    D, V = cfg.d_model, cfg.vocab_size
    V_pad = pl.cdiv(V, LANE) * LANE
    packer = _SlabPacker()

    # token + positional embedding tables stacked (one-hot matmul consumes both)
    packer.add("emb", jnp.concatenate([params["word_emb"], params["pos_emb"]], axis=0))
    packer.add("emb_ln_g", params["emb_ln_g"])
    packer.add("emb_ln_b", params["emb_ln_b"])

    def add_attention(prefix, p, num_heads):
        hd = D // num_heads
        scale = hd ** -0.5
        for h in range(num_heads):
            sl = slice(h * hd, (h + 1) * hd)
            packer.add(f"{prefix}_wq{h}", p["wq"][:, sl] * scale)
            packer.add(f"{prefix}_bq{h}", p["bq"][:, sl] * scale)
            packer.add(f"{prefix}_wk{h}", p["wk"][:, sl])
            packer.add(f"{prefix}_bk{h}", p["bk"][:, sl])
            packer.add(f"{prefix}_wvo{h}", p["wv"][:, sl] @ p["wo"][sl, :])
            packer.add(f"{prefix}_bvo{h}", p["bv"][:, sl] @ p["wo"][sl, :])
        packer.add(f"{prefix}_bo", p["bo"])

    for L, lp in enumerate(params["layers"]):
        add_attention(f"sa{L}", lp["self_attn"], cfg.encoder_attention_heads)
        packer.add(f"sa{L}_ln_g", lp["sa_ln_g"])
        packer.add(f"sa{L}_ln_b", lp["sa_ln_b"])
        add_attention(f"ca{L}", lp["cross_attn"], cfg.decoder_attention_heads)
        packer.add(f"ca{L}_ln_g", lp["ca_ln_g"])
        packer.add(f"ca{L}_ln_b", lp["ca_ln_b"])
        packer.add(f"ffn{L}_w1", lp["w1"])
        packer.add(f"ffn{L}_b1", lp["b1"])
        packer.add(f"ffn{L}_w2", lp["w2"])
        packer.add(f"ffn{L}_b2", lp["b2"])
        packer.add(f"fin{L}_ln_g", lp["final_ln_g"])
        packer.add(f"fin{L}_ln_b", lp["final_ln_b"])

    lm_pad = jnp.zeros((D, V_pad), jnp.float32).at[:, :V].set(params["lm_head"])
    packer.add("lm_head", lm_pad)
    return packer.finish()


# -----------------------------------------------------------------------------
if __name__ == "__main__":
    cfg = CFG
    B, T_dec, T_enc = 2, 8, 8

    root = jax.random.PRNGKey(0)
    k_par, k_ids, k_enc = jax.random.split(root, 3)

    params = init_params(k_par, cfg)
    wslab, w_off = prepare_packed_params(params, cfg)

    input_ids = jax.random.randint(k_ids, (B, T_dec), 1, cfg.vocab_size, dtype=jnp.int32)
    encoder_states = (0.1 * jax.random.normal(
        k_enc, (B, T_enc, cfg.d_model))).astype(jnp.float32)

    # Causal self-attention mask (broadcast over heads), additive like PyTorch.
    causal = jnp.where(
        jnp.arange(T_dec)[:, None] >= jnp.arange(T_dec)[None, :], 0.0, NEG
    ).astype(jnp.float32)
    self_mask = jnp.broadcast_to(causal, (B, T_dec, T_dec)).astype(jnp.float32)
    cross_mask = jnp.zeros((B, T_dec, T_enc), jnp.float32)

    fwd = jax.jit(partial(marian_decoder_forward, cfg=cfg, w_off=w_off))
    logits = fwd(input_ids, encoder_states, self_mask, cross_mask, wslab)
    jax.block_until_ready(logits)

    assert logits.shape == (B, T_dec, cfg.vocab_size)
    assert bool(jnp.all(jnp.isfinite(logits)))
    print("KERNEL_OK")
</pallas_src>

<mosaic_0001>
module attributes {stable_mosaic.version = 11 : i64} {
  func.func @fused_decoder_kernel(%arg0: memref<64x128xf32, #tpu.memory_space<vmem>>, %arg1: memref<2416x128xf32, #tpu.memory_space<vmem>>, %arg2: memref<16x128xf32, #tpu.memory_space<vmem>>) attributes {dimension_semantics = [], scalar_prefetch = 0 : i64, scratch_operands = 0 : i64, tpu.core_type = #tpu.core_type<tc>} {
    %c0 = arith.constant 0 : index
    %c0_0 = arith.constant 0 : index
    %0 = vector.load %arg0[%c0, %c0_0] : memref<64x128xf32, #tpu.memory_space<vmem>>, vector<16x96xf32>
    %c16 = arith.constant 16 : index
    %c0_1 = arith.constant 0 : index
    %1 = vector.load %arg0[%c16, %c0_1] : memref<64x128xf32, #tpu.memory_space<vmem>>, vector<16x32xf32>
    %c32 = arith.constant 32 : index
    %c0_2 = arith.constant 0 : index
    %2 = vector.load %arg0[%c32, %c0_2] : memref<64x128xf32, #tpu.memory_space<vmem>>, vector<16x16xf32>
    %c48 = arith.constant 48 : index
    %c0_3 = arith.constant 0 : index
    %3 = vector.load %arg0[%c48, %c0_3] : memref<64x128xf32, #tpu.memory_space<vmem>>, vector<16x16xf32>
    %c0_4 = arith.constant 0 : index
    %c0_5 = arith.constant 0 : index
    %4 = vector.load %arg1[%c0_4, %c0_5] : memref<2416x128xf32, #tpu.memory_space<vmem>>, vector<96x32xf32>
    %cst = arith.constant dense<0.000000e+00> : vector<16x32xf32>
    %5 = tpu.matmul %0, %4, %cst {dimension_numbers = #tpu.dot_dimension_numbers<[1], [0], [0], [1], [0, 0, 1, 1], [], []>} : vector<16x96xf32>, vector<96x32xf32>, vector<16x32xf32> -> vector<16x32xf32>
    %c96 = arith.constant 96 : index
    %c0_6 = arith.constant 0 : index
    %6 = vector.load %arg1[%c96, %c0_6] : memref<2416x128xf32, #tpu.memory_space<vmem>>, vector<1x32xf32>
    %c104 = arith.constant 104 : index
    %c0_7 = arith.constant 0 : index
    %7 = vector.load %arg1[%c104, %c0_7] : memref<2416x128xf32, #tpu.memory_space<vmem>>, vector<1x32xf32>
    %cst_8 = arith.constant dense<0.000000e+00> : vector<16xf32>
    %8 = vector.multi_reduction <add>, %5, %cst_8 [1] : vector<16x32xf32> to vector<16xf32>
    %9 = vector.shape_cast %8 : vector<16xf32> to vector<16x1xf32>
    %cst_9 = arith.constant 3.200000e+01 : f32
    %10 = vector.broadcast %cst_9 : f32 to vector<16x1xf32>
    %11 = arith.divf %9, %10 : vector<16x1xf32>
    %12 = vector.broadcast %11 : vector<16x1xf32> to vector<16x32xf32>
    %13 = arith.subf %5, %12 : vector<16x32xf32>
    %14 = arith.mulf %13, %13 : vector<16x32xf32>
    %cst_10 = arith.constant dense<0.000000e+00> : vector<16xf32>
    %15 = vector.multi_reduction <add>, %14, %cst_10 [1] : vector<16x32xf32> to vector<16xf32>
    %16 = vector.shape_cast %15 : vector<16xf32> to vector<16x1xf32>
    %cst_11 = arith.constant 3.200000e+01 : f32
    %17 = vector.broadcast %cst_11 : f32 to vector<16x1xf32>
    %18 = arith.divf %16, %17 : vector<16x1xf32>
    %19 = vector.broadcast %11 : vector<16x1xf32> to vector<16x32xf32>
    %20 = arith.subf %5, %19 : vector<16x32xf32>
    %cst_12 = arith.constant 9.99999974E-6 : f32
    %21 = vector.broadcast %cst_12 : f32 to vector<16x1xf32>
    %22 = arith.addf %18, %21 : vector<16x1xf32>
    %23 = math.rsqrt %22 : vector<16x1xf32>
    %24 = vector.broadcast %23 : vector<16x1xf32> to vector<16x32xf32>
    %25 = arith.mulf %20, %24 : vector<16x32xf32>
    %26 = vector.broadcast %6 : vector<1x32xf32> to vector<16x32xf32>
    %27 = arith.mulf %25, %26 : vector<16x32xf32>
    %28 = vector.broadcast %7 : vector<1x32xf32> to vector<16x32xf32>
    %29 = arith.addf %27, %28 : vector<16x32xf32>
    %c112 = arith.constant 112 : index
    %c0_13 = arith.constant 0 : index
    %30 = vector.load %arg1[%c112, %c0_13] : memref<2416x128xf32, #tpu.memory_space<vmem>>, vector<32x8xf32>
    %cst_14 = arith.constant dense<0.000000e+00> : vector<16x8xf32>
    %31 = tpu.matmul %29, %30, %cst_14 {dimension_numbers = #tpu.dot_dimension_numbers<[1], [0], [0], [1], [0, 0, 1, 1], [], []>} : vector<16x32xf32>, vector<32x8xf32>, vector<16x8xf32> -> vector<16x8xf32>
    %c144 = arith.constant 144 : index
    %c0_15 = arith.constant 0 : index
    %32 = vector.load %arg1[%c144, %c0_15] : memref<2416x128xf32, #tpu.memory_space<vmem>>, vector<1x8xf32>
    %33 = vector.broadcast %32 : vector<1x8xf32> to vector<16x8xf32>
    %34 = arith.addf %31, %33 : vector<16x8xf32>
    %c152 = arith.constant 152 : index
    %c0_16 = arith.constant 0 : index
    %35 = vector.load %arg1[%c152, %c0_16] : memref<2416x128xf32, #tpu.memory_space<vmem>>, vector<32x8xf32>
    %cst_17 = arith.constant dense<0.000000e+00> : vector<16x8xf32>
    %36 = tpu.matmul %29, %35, %cst_17 {dimension_numbers = #tpu.dot_dimension_numbers<[1], [0], [0], [1], [0, 0, 1, 1], [], []>} : vector<16x32xf32>, vector<32x8xf32>, vector<16x8xf32> -> vector<16x8xf32>
    %c184 = arith.constant 184 : index
    %c0_18 = arith.constant 0 : index
    %37 = vector.load %arg1[%c184, %c0_18] : memref<2416x128xf32, #tpu.memory_space<vmem>>, vector<1x8xf32>
    %38 = vector.broadcast %37 : vector<1x8xf32> to vector<16x8xf32>
    %39 = arith.addf %36, %38 : vector<16x8xf32>
    %c192 = arith.constant 192 : index
    %c0_19 = arith.constant 0 : index
    %40 = vector.load %arg1[%c192, %c0_19] : memref<2416x128xf32, #tpu.memory_space<vmem>>, vector<32x32xf32>
    %cst_20 = arith.constant dense<0.000000e+00> : vector<16x32xf32>
    %41 = tpu.matmul %29, %40, %cst_20 {dimension_numbers = #tpu.dot_dimension_numbers<[1], [0], [0], [1], [0, 0, 1, 1], [], []>} : vector<16x32xf32>, vector<32x32xf32>, vector<16x32xf32> -> vector<16x32xf32>
    %c224 = arith.constant 224 : index
    %c0_21 = arith.constant 0 : index
    %42 = vector.load %arg1[%c224, %c0_21] : memref<2416x128xf32, #tpu.memory_space<vmem>>, vector<1x32xf32>
    %43 = vector.broadcast %42 : vector<1x32xf32> to vector<16x32xf32>
    %44 = arith.addf %41, %43 : vector<16x32xf32>
    %cst_22 = arith.constant dense<0.000000e+00> : vector<16x16xf32>
    %45 = tpu.matmul %34, %39, %cst_22 {dimension_numbers = #tpu.dot_dimension_numbers<[1], [1], [0], [0], [0, 0, 1, 0], [], []>} : vector<16x8xf32>, vector<16x8xf32>, vector<16x16xf32> -> vector<16x16xf32>
    %46 = arith.addf %45, %2 : vector<16x16xf32>
    %cst_23 = arith.constant dense<0xFF800000> : vector<16xf32>
    %47 = vector.multi_reduction <maximumf>, %46, %cst_23 [1] : vector<16x16xf32> to vector<16xf32>
    %48 = vector.shape_cast %47 : vector<16xf32> to vector<16x1xf32>
    %49 = vector.broadcast %48 : vector<16x1xf32> to vector<16x16xf32>
    %50 = arith.subf %46, %49 : vector<16x16xf32>
    %51 = math.exp %50 : vector<16x16xf32>
    %cst_24 = arith.constant dense<0.000000e+00> : vector<16xf32>
    %52 = vector.multi_reduction <add>, %51, %cst_24 [1] : vector<16x16xf32> to vector<16xf32>
    %53 = vector.shape_cast %52 : vector<16xf32> to vector<16x1xf32>
    %54 = vector.broadcast %53 : vector<16x1xf32> to vector<16x16xf32>
    %55 = arith.divf %51, %54 : vector<16x16xf32>
    %cst_25 = arith.constant dense<0.000000e+00> : vector<16x32xf32>
    %56 = tpu.matmul %55, %44, %cst_25 {dimension_numbers = #tpu.dot_dimension_numbers<[1], [0], [0], [1], [0, 0, 1, 1], [], []>} : vector<16x16xf32>, vector<16x32xf32>, vector<16x32xf32> -> vector<16x32xf32>
    %c232 = arith.constant 232 : index
    %c0_26 = arith.constant 0 : index
    %57 = vector.load %arg1[%c232, %c0_26] : memref<2416x128xf32, #tpu.memory_space<vmem>>, vector<32x8xf32>
    %cst_27 = arith.constant dense<0.000000e+00> : vector<16x8xf32>
    %58 = tpu.matmul %29, %57, %cst_27 {dimension_numbers = #tpu.dot_dimension_numbers<[1], [0], [0], [1], [0, 0, 1, 1], [], []>} : vector<16x32xf32>, vector<32x8xf32>, vector<16x8xf32> -> vector<16x8xf32>
    %c264 = arith.constant 264 : index
    %c0_28 = arith.constant 0 : index
    %59 = vector.load %arg1[%c264, %c0_28] : memref<2416x128xf32, #tpu.memory_space<vmem>>, vector<1x8xf32>
    %60 = vector.broadcast %59 : vector<1x8xf32> to vector<16x8xf32>
    %61 = arith.addf %58, %60 : vector<16x8xf32>
    %c272 = arith.constant 272 : index
    %c0_29 = arith.constant 0 : index
    %62 = vector.load %arg1[%c272, %c0_29] : memref<2416x128xf32, #tpu.memory_space<vmem>>, vector<32x8xf32>
    %cst_30 = arith.constant dense<0.000000e+00> : vector<16x8xf32>
    %63 = tpu.matmul %29, %62, %cst_30 {dimension_numbers = #tpu.dot_dimension_numbers<[1], [0], [0], [1], [0, 0, 1, 1], [], []>} : vector<16x32xf32>, vector<32x8xf32>, vector<16x8xf32> -> vector<16x8xf32>
    %c304 = arith.constant 304 : index
    %c0_31 = arith.constant 0 : index
    %64 = vector.load %arg1[%c304, %c0_31] : memref<2416x128xf32, #tpu.memory_space<vmem>>, vector<1x8xf32>
    %65 = vector.broadcast %64 : vector<1x8xf32> to vector<16x8xf32>
    %66 = arith.addf %63, %65 : vector<16x8xf32>
    %c312 = arith.constant 312 : index
    %c0_32 = arith.constant 0 : index
    %67 = vector.load %arg1[%c312, %c0_32] : memref<2416x128xf32, #tpu.memory_space<vmem>>, vector<32x32xf32>
    %cst_33 = arith.constant dense<0.000000e+00> : vector<16x32xf32>
    %68 = tpu.matmul %29, %67, %cst_33 {dimension_numbers = #tpu.dot_dimension_numbers<[1], [0], [0], [1], [0, 0, 1, 1], [], []>} : vector<16x32xf32>, vector<32x32xf32>, vector<16x32xf32> -> vector<16x32xf32>
    %c344 = arith.constant 344 : index
    %c0_34 = arith.constant 0 : index
    %69 = vector.load %arg1[%c344, %c0_34] : memref<2416x128xf32, #tpu.memory_space<vmem>>, vector<1x32xf32>
    %70 = vector.broadcast %69 : vector<1x32xf32> to vector<16x32xf32>
    %71 = arith.addf %68, %70 : vector<16x32xf32>
    %cst_35 = arith.constant dense<0.000000e+00> : vector<16x16xf32>
    %72 = tpu.matmul %61, %66, %cst_35 {dimension_numbers = #tpu.dot_dimension_numbers<[1], [1], [0], [0], [0, 0, 1, 0], [], []>} : vector<16x8xf32>, vector<16x8xf32>, vector<16x16xf32> -> vector<16x16xf32>
    %73 = arith.addf %72, %2 : vector<16x16xf32>
    %cst_36 = arith.constant dense<0xFF800000> : vector<16xf32>
    %74 = vector.multi_reduction <maximumf>, %73, %cst_36 [1] : vector<16x16xf32> to vector<16xf32>
    %75 = vector.shape_cast %74 : vector<16xf32> to vector<16x1xf32>
    %76 = vector.broadcast %75 : vector<16x1xf32> to vector<16x16xf32>
    %77 = arith.subf %73, %76 : vector<16x16xf32>
    %78 = math.exp %77 : vector<16x16xf32>
    %cst_37 = arith.constant dense<0.000000e+00> : vector<16xf32>
    %79 = vector.multi_reduction <add>, %78, %cst_37 [1] : vector<16x16xf32> to vector<16xf32>
    %80 = vector.shape_cast %79 : vector<16xf32> to vector<16x1xf32>
    %81 = vector.broadcast %80 : vector<16x1xf32> to vector<16x16xf32>
    %82 = arith.divf %78, %81 : vector<16x16xf32>
    %cst_38 = arith.constant dense<0.000000e+00> : vector<16x32xf32>
    %83 = tpu.matmul %82, %71, %cst_38 {dimension_numbers = #tpu.dot_dimension_numbers<[1], [0], [0], [1], [0, 0, 1, 1], [], []>} : vector<16x16xf32>, vector<16x32xf32>, vector<16x32xf32> -> vector<16x32xf32>
    %84 = arith.addf %56, %83 : vector<16x32xf32>
    %c352 = arith.constant 352 : index
    %c0_39 = arith.constant 0 : index
    %85 = vector.load %arg1[%c352, %c0_39] : memref<2416x128xf32, #tpu.memory_space<vmem>>, vector<32x8xf32>
    %cst_40 = arith.constant dense<0.000000e+00> : vector<16x8xf32>
    %86 = tpu.matmul %29, %85, %cst_40 {dimension_numbers = #tpu.dot_dimension_numbers<[1], [0], [0], [1], [0, 0, 1, 1], [], []>} : vector<16x32xf32>, vector<32x8xf32>, vector<16x8xf32> -> vector<16x8xf32>
    %c384 = arith.constant 384 : index
    %c0_41 = arith.constant 0 : index
    %87 = vector.load %arg1[%c384, %c0_41] : memref<2416x128xf32, #tpu.memory_space<vmem>>, vector<1x8xf32>
    %88 = vector.broadcast %87 : vector<1x8xf32> to vector<16x8xf32>
    %89 = arith.addf %86, %88 : vector<16x8xf32>
    %c392 = arith.constant 392 : index
    %c0_42 = arith.constant 0 : index
    %90 = vector.load %arg1[%c392, %c0_42] : memref<2416x128xf32, #tpu.memory_space<vmem>>, vector<32x8xf32>
    %cst_43 = arith.constant dense<0.000000e+00> : vector<16x8xf32>
    %91 = tpu.matmul %29, %90, %cst_43 {dimension_numbers = #tpu.dot_dimension_numbers<[1], [0], [0], [1], [0, 0, 1, 1], [], []>} : vector<16x32xf32>, vector<32x8xf32>, vector<16x8xf32> -> vector<16x8xf32>
    %c424 = arith.constant 424 : index
    %c0_44 = arith.constant 0 : index
    %92 = vector.load %arg1[%c424, %c0_44] : memref<2416x128xf32, #tpu.memory_space<vmem>>, vector<1x8xf32>
    %93 = vector.broadcast %92 : vector<1x8xf32> to vector<16x8xf32>
    %94 = arith.addf %91, %93 : vector<16x8xf32>
    %c432 = arith.constant 432 : index
    %c0_45 = arith.constant 0 : index
    %95 = vector.load %arg1[%c432, %c0_45] : memref<2416x128xf32, #tpu.memory_space<vmem>>, vector<32x32xf32>
    %cst_46 = arith.constant dense<0.000000e+00> : vector<16x32xf32>
    %96 = tpu.matmul %29, %95, %cst_46 {dimension_numbers = #tpu.dot_dimension_numbers<[1], [0], [0], [1], [0, 0, 1, 1], [], []>} : vector<16x32xf32>, vector<32x32xf32>, vector<16x32xf32> -> vector<16x32xf32>
    %c464 = arith.constant 464 : index
    %c0_47 = arith.constant 0 : index
    %97 = vector.load %arg1[%c464, %c0_47] : memref<2416x128xf32, #tpu.memory_space<vmem>>, vector<1x32xf32>
    %98 = vector.broadcast %97 : vector<1x32xf32> to vector<16x32xf32>
    %99 = arith.addf %96, %98 : vector<16x32xf32>
    %cst_48 = arith.constant dense<0.000000e+00> : vector<16x16xf32>
    %100 = tpu.matmul %89, %94, %cst_48 {dimension_numbers = #tpu.dot_dimension_numbers<[1], [1], [0], [0], [0, 0, 1, 0], [], []>} : vector<16x8xf32>, vector<16x8xf32>, vector<16x16xf32> -> vector<16x16xf32>
    %101 = arith.addf %100, %2 : vector<16x16xf32>
    %cst_49 = arith.constant dense<0xFF800000> : vector<16xf32>
    %102 = vector.multi_reduction <maximumf>, %101, %cst_49 [1] : vector<16x16xf32> to vector<16xf32>
    %103 = vector.shape_cast %102 : vector<16xf32> to vector<16x1xf32>
    %104 = vector.broadcast %103 : vector<16x1xf32> to vector<16x16xf32>
    %105 = arith.subf %101, %104 : vector<16x16xf32>
    %106 = math.exp %105 : vector<16x16xf32>
    %cst_50 = arith.constant dense<0.000000e+00> : vector<16xf32>
    %107 = vector.multi_reduction <add>, %106, %cst_50 [1] : vector<16x16xf32> to vector<16xf32>
    %108 = vector.shape_cast %107 : vector<16xf32> to vector<16x1xf32>
    %109 = vector.broadcast %108 : vector<16x1xf32> to vector<16x16xf32>
    %110 = arith.divf %106, %109 : vector<16x16xf32>
    %cst_51 = arith.constant dense<0.000000e+00> : vector<16x32xf32>
    %111 = tpu.matmul %110, %99, %cst_51 {dimension_numbers = #tpu.dot_dimension_numbers<[1], [0], [0], [1], [0, 0, 1, 1], [], []>} : vector<16x16xf32>, vector<16x32xf32>, vector<16x32xf32> -> vector<16x32xf32>
    %112 = arith.addf %84, %111 : vector<16x32xf32>
    %c472 = arith.constant 472 : index
    %c0_52 = arith.constant 0 : index
    %113 = vector.load %arg1[%c472, %c0_52] : memref<2416x128xf32, #tpu.memory_space<vmem>>, vector<32x8xf32>
    %cst_53 = arith.constant dense<0.000000e+00> : vector<16x8xf32>
    %114 = tpu.matmul %29, %113, %cst_53 {dimension_numbers = #tpu.dot_dimension_numbers<[1], [0], [0], [1], [0, 0, 1, 1], [], []>} : vector<16x32xf32>, vector<32x8xf32>, vector<16x8xf32> -> vector<16x8xf32>
    %c504 = arith.constant 504 : index
    %c0_54 = arith.constant 0 : index
    %115 = vector.load %arg1[%c504, %c0_54] : memref<2416x128xf32, #tpu.memory_space<vmem>>, vector<1x8xf32>
    %116 = vector.broadcast %115 : vector<1x8xf32> to vector<16x8xf32>
    %117 = arith.addf %114, %116 : vector<16x8xf32>
    %c512 = arith.constant 512 : index
    %c0_55 = arith.constant 0 : index
    %118 = vector.load %arg1[%c512, %c0_55] : memref<2416x128xf32, #tpu.memory_space<vmem>>, vector<32x8xf32>
    %cst_56 = arith.constant dense<0.000000e+00> : vector<16x8xf32>
    %119 = tpu.matmul %29, %118, %cst_56 {dimension_numbers = #tpu.dot_dimension_numbers<[1], [0], [0], [1], [0, 0, 1, 1], [], []>} : vector<16x32xf32>, vector<32x8xf32>, vector<16x8xf32> -> vector<16x8xf32>
    %c544 = arith.constant 544 : index
    %c0_57 = arith.constant 0 : index
    %120 = vector.load %arg1[%c544, %c0_57] : memref<2416x128xf32, #tpu.memory_space<vmem>>, vector<1x8xf32>
    %121 = vector.broadcast %120 : vector<1x8xf32> to vector<16x8xf32>
    %122 = arith.addf %119, %121 : vector<16x8xf32>
    %c552 = arith.constant 552 : index
    %c0_58 = arith.constant 0 : index
    %123 = vector.load %arg1[%c552, %c0_58] : memref<2416x128xf32, #tpu.memory_space<vmem>>, vector<32x32xf32>
    %cst_59 = arith.constant dense<0.000000e+00> : vector<16x32xf32>
    %124 = tpu.matmul %29, %123, %cst_59 {dimension_numbers = #tpu.dot_dimension_numbers<[1], [0], [0], [1], [0, 0, 1, 1], [], []>} : vector<16x32xf32>, vector<32x32xf32>, vector<16x32xf32> -> vector<16x32xf32>
    %c584 = arith.constant 584 : index
    %c0_60 = arith.constant 0 : index
    %125 = vector.load %arg1[%c584, %c0_60] : memref<2416x128xf32, #tpu.memory_space<vmem>>, vector<1x32xf32>
    %126 = vector.broadcast %125 : vector<1x32xf32> to vector<16x32xf32>
    %127 = arith.addf %124, %126 : vector<16x32xf32>
    %cst_61 = arith.constant dense<0.000000e+00> : vector<16x16xf32>
    %128 = tpu.matmul %117, %122, %cst_61 {dimension_numbers = #tpu.dot_dimension_numbers<[1], [1], [0], [0], [0, 0, 1, 0], [], []>} : vector<16x8xf32>, vector<16x8xf32>, vector<16x16xf32> -> vector<16x16xf32>
    %129 = arith.addf %128, %2 : vector<16x16xf32>
    %cst_62 = arith.constant dense<0xFF800000> : vector<16xf32>
    %130 = vector.multi_reduction <maximumf>, %129, %cst_62 [1] : vector<16x16xf32> to vector<16xf32>
    %131 = vector.shape_cast %130 : vector<16xf32> to vector<16x1xf32>
    %132 = vector.broadcast %131 : vector<16x1xf32> to vector<16x16xf32>
    %133 = arith.subf %129, %132 : vector<16x16xf32>
    %134 = math.exp %133 : vector<16x16xf32>
    %cst_63 = arith.constant dense<0.000000e+00> : vector<16xf32>
    %135 = vector.multi_reduction <add>, %134, %cst_63 [1] : vector<16x16xf32> to vector<16xf32>
    %136 = vector.shape_cast %135 : vector<16xf32> to vector<16x1xf32>
    %137 = vector.broadcast %136 : vector<16x1xf32> to vector<16x16xf32>
    %138 = arith.divf %134, %137 : vector<16x16xf32>
    %cst_64 = arith.constant dense<0.000000e+00> : vector<16x32xf32>
    %139 = tpu.matmul %138, %127, %cst_64 {dimension_numbers = #tpu.dot_dimension_numbers<[1], [0], [0], [1], [0, 0, 1, 1], [], []>} : vector<16x16xf32>, vector<16x32xf32>, vector<16x32xf32> -> vector<16x32xf32>
    %140 = arith.addf %112, %139 : vector<16x32xf32>
    %c592 = arith.constant 592 : index
    %c0_65 = arith.constant 0 : index
    %141 = vector.load %arg1[%c592, %c0_65] : memref<2416x128xf32, #tpu.memory_space<vmem>>, vector<1x32xf32>
    %142 = vector.broadcast %141 : vector<1x32xf32> to vector<16x32xf32>
    %143 = arith.addf %140, %142 : vector<16x32xf32>
    %144 = arith.addf %29, %143 : vector<16x32xf32>
    %c600 = arith.constant 600 : index
    %c0_66 = arith.constant 0 : index
    %145 = vector.load %arg1[%c600, %c0_66] : memref<2416x128xf32, #tpu.memory_space<vmem>>, vector<1x32xf32>
    %c608 = arith.constant 608 : index
    %c0_67 = arith.constant 0 : index
    %146 = vector.load %arg1[%c608, %c0_67] : memref<2416x128xf32, #tpu.memory_space<vmem>>, vector<1x32xf32>
    %cst_68 = arith.constant dense<0.000000e+00> : vector<16xf32>
    %147 = vector.multi_reduction <add>, %144, %cst_68 [1] : vector<16x32xf32> to vector<16xf32>
    %148 = vector.shape_cast %147 : vector<16xf32> to vector<16x1xf32>
    %cst_69 = arith.constant 3.200000e+01 : f32
    %149 = vector.broadcast %cst_69 : f32 to vector<16x1xf32>
    %150 = arith.divf %148, %149 : vector<16x1xf32>
    %151 = vector.broadcast %150 : vector<16x1xf32> to vector<16x32xf32>
    %152 = arith.subf %144, %151 : vector<16x32xf32>
    %153 = arith.mulf %152, %152 : vector<16x32xf32>
    %cst_70 = arith.constant dense<0.000000e+00> : vector<16xf32>
    %154 = vector.multi_reduction <add>, %153, %cst_70 [1] : vector<16x32xf32> to vector<16xf32>
    %155 = vector.shape_cast %154 : vector<16xf32> to vector<16x1xf32>
    %cst_71 = arith.constant 3.200000e+01 : f32
    %156 = vector.broadcast %cst_71 : f32 to vector<16x1xf32>
    %157 = arith.divf %155, %156 : vector<16x1xf32>
    %158 = vector.broadcast %150 : vector<16x1xf32> to vector<16x32xf32>
    %159 = arith.subf %144, %158 : vector<16x32xf32>
    %cst_72 = arith.constant 9.99999974E-6 : f32
    %160 = vector.broadcast %cst_72 : f32 to vector<16x1xf32>
    %161 = arith.addf %157, %160 : vector<16x1xf32>
    %162 = math.rsqrt %161 : vector<16x1xf32>
    %163 = vector.broadcast %162 : vector<16x1xf32> to vector<16x32xf32>
    %164 = arith.mulf %159, %163 : vector<16x32xf32>
    %165 = vector.broadcast %145 : vector<1x32xf32> to vector<16x32xf32>
    %166 = arith.mulf %164, %165 : vector<16x32xf32>
    %167 = vector.broadcast %146 : vector<1x32xf32> to vector<16x32xf32>
    %168 = arith.addf %166, %167 : vector<16x32xf32>
    %c616 = arith.constant 616 : index
    %c0_73 = arith.constant 0 : index
    %169 = vector.load %arg1[%c616, %c0_73] : memref<2416x128xf32, #tpu.memory_space<vmem>>, vector<32x8xf32>
    %cst_74 = arith.constant dense<0.000000e+00> : vector<16x8xf32>
    %170 = tpu.matmul %168, %169, %cst_74 {dimension_numbers = #tpu.dot_dimension_numbers<[1], [0], [0], [1], [0, 0, 1, 1], [], []>} : vector<16x32xf32>, vector<32x8xf32>, vector<16x8xf32> -> vector<16x8xf32>
    %c648 = arith.constant 648 : index
    %c0_75 = arith.constant 0 : index
    %171 = vector.load %arg1[%c648, %c0_75] : memref<2416x128xf32, #tpu.memory_space<vmem>>, vector<1x8xf32>
    %172 = vector.broadcast %171 : vector<1x8xf32> to vector<16x8xf32>
    %173 = arith.addf %170, %172 : vector<16x8xf32>
    %c656 = arith.constant 656 : index
    %c0_76 = arith.constant 0 : index
    %174 = vector.load %arg1[%c656, %c0_76] : memref<2416x128xf32, #tpu.memory_space<vmem>>, vector<32x8xf32>
    %cst_77 = arith.constant dense<0.000000e+00> : vector<16x8xf32>
    %175 = tpu.matmul %1, %174, %cst_77 {dimension_numbers = #tpu.dot_dimension_numbers<[1], [0], [0], [1], [0, 0, 1, 1], [], []>} : vector<16x32xf32>, vector<32x8xf32>, vector<16x8xf32> -> vector<16x8xf32>
    %c688 = arith.constant 688 : index
    %c0_78 = arith.constant 0 : index
    %176 = vector.load %arg1[%c688, %c0_78] : memref<2416x128xf32, #tpu.memory_space<vmem>>, vector<1x8xf32>
    %177 = vector.broadcast %176 : vector<1x8xf32> to vector<16x8xf32>
    %178 = arith.addf %175, %177 : vector<16x8xf32>
    %c696 = arith.constant 696 : index
    %c0_79 = arith.constant 0 : index
    %179 = vector.load %arg1[%c696, %c0_79] : memref<2416x128xf32, #tpu.memory_space<vmem>>, vector<32x32xf32>
    %cst_80 = arith.constant dense<0.000000e+00> : vector<16x32xf32>
    %180 = tpu.matmul %1, %179, %cst_80 {dimension_numbers = #tpu.dot_dimension_numbers<[1], [0], [0], [1], [0, 0, 1, 1], [], []>} : vector<16x32xf32>, vector<32x32xf32>, vector<16x32xf32> -> vector<16x32xf32>
    %c728 = arith.constant 728 : index
    %c0_81 = arith.constant 0 : index
    %181 = vector.load %arg1[%c728, %c0_81] : memref<2416x128xf32, #tpu.memory_space<vmem>>, vector<1x32xf32>
    %182 = vector.broadcast %181 : vector<1x32xf32> to vector<16x32xf32>
    %183 = arith.addf %180, %182 : vector<16x32xf32>
    %cst_82 = arith.constant dense<0.000000e+00> : vector<16x16xf32>
    %184 = tpu.matmul %173, %178, %cst_82 {dimension_numbers = #tpu.dot_dimension_numbers<[1], [1], [0], [0], [0, 0, 1, 0], [], []>} : vector<16x8xf32>, vector<16x8xf32>, vector<16x16xf32> -> vector<16x16xf32>
    %185 = arith.addf %184, %3 : vector<16x16xf32>
    %cst_83 = arith.constant dense<0xFF800000> : vector<16xf32>
    %186 = vector.multi_reduction <maximumf>, %185, %cst_83 [1] : vector<16x16xf32> to vector<16xf32>
    %187 = vector.shape_cast %186 : vector<16xf32> to vector<16x1xf32>
    %188 = vector.broadcast %187 : vector<16x1xf32> to vector<16x16xf32>
    %189 = arith.subf %185, %188 : vector<16x16xf32>
    %190 = math.exp %189 : vector<16x16xf32>
    %cst_84 = arith.constant dense<0.000000e+00> : vector<16xf32>
    %191 = vector.multi_reduction <add>, %190, %cst_84 [1] : vector<16x16xf32> to vector<16xf32>
    %192 = vector.shape_cast %191 : vector<16xf32> to vector<16x1xf32>
    %193 = vector.broadcast %192 : vector<16x1xf32> to vector<16x16xf32>
    %194 = arith.divf %190, %193 : vector<16x16xf32>
    %cst_85 = arith.constant dense<0.000000e+00> : vector<16x32xf32>
    %195 = tpu.matmul %194, %183, %cst_85 {dimension_numbers = #tpu.dot_dimension_numbers<[1], [0], [0], [1], [0, 0, 1, 1], [], []>} : vector<16x16xf32>, vector<16x32xf32>, vector<16x32xf32> -> vector<16x32xf32>
    %c736 = arith.constant 736 : index
    %c0_86 = arith.constant 0 : index
    %196 = vector.load %arg1[%c736, %c0_86] : memref<2416x128xf32, #tpu.memory_space<vmem>>, vector<32x8xf32>
    %cst_87 = arith.constant dense<0.000000e+00> : vector<16x8xf32>
    %197 = tpu.matmul %168, %196, %cst_87 {dimension_numbers = #tpu.dot_dimension_numbers<[1], [0], [0], [1], [0, 0, 1, 1], [], []>} : vector<16x32xf32>, vector<32x8xf32>, vector<16x8xf32> -> vector<16x8xf32>
    %c768 = arith.constant 768 : index
    %c0_88 = arith.constant 0 : index
    %198 = vector.load %arg1[%c768, %c0_88] : memref<2416x128xf32, #tpu.memory_space<vmem>>, vector<1x8xf32>
    %199 = vector.broadcast %198 : vector<1x8xf32> to vector<16x8xf32>
    %200 = arith.addf %197, %199 : vector<16x8xf32>
    %c776 = arith.constant 776 : index
    %c0_89 = arith.constant 0 : index
    %201 = vector.load %arg1[%c776, %c0_89] : memref<2416x128xf32, #tpu.memory_space<vmem>>, vector<32x8xf32>
    %cst_90 = arith.constant dense<0.000000e+00> : vector<16x8xf32>
    %202 = tpu.matmul %1, %201, %cst_90 {dimension_numbers = #tpu.dot_dimension_numbers<[1], [0], [0], [1], [0, 0, 1, 1], [], []>} : vector<16x32xf32>, vector<32x8xf32>, vector<16x8xf32> -> vector<16x8xf32>
    %c808 = arith.constant 808 : index
    %c0_91 = arith.constant 0 : index
    %203 = vector.load %arg1[%c808, %c0_91] : memref<2416x128xf32, #tpu.memory_space<vmem>>, vector<1x8xf32>
    %204 = vector.broadcast %203 : vector<1x8xf32> to vector<16x8xf32>
    %205 = arith.addf %202, %204 : vector<16x8xf32>
    %c816 = arith.constant 816 : index
    %c0_92 = arith.constant 0 : index
    %206 = vector.load %arg1[%c816, %c0_92] : memref<2416x128xf32, #tpu.memory_space<vmem>>, vector<32x32xf32>
    %cst_93 = arith.constant dense<0.000000e+00> : vector<16x32xf32>
    %207 = tpu.matmul %1, %206, %cst_93 {dimension_numbers = #tpu.dot_dimension_numbers<[1], [0], [0], [1], [0, 0, 1, 1], [], []>} : vector<16x32xf32>, vector<32x32xf32>, vector<16x32xf32> -> vector<16x32xf32>
    %c848 = arith.constant 848 : index
    %c0_94 = arith.constant 0 : index
    %208 = vector.load %arg1[%c848, %c0_94] : memref<2416x128xf32, #tpu.memory_space<vmem>>, vector<1x32xf32>
    %209 = vector.broadcast %208 : vector<1x32xf32> to vector<16x32xf32>
    %210 = arith.addf %207, %209 : vector<16x32xf32>
    %cst_95 = arith.constant dense<0.000000e+00> : vector<16x16xf32>
    %211 = tpu.matmul %200, %205, %cst_95 {dimension_numbers = #tpu.dot_dimension_numbers<[1], [1], [0], [0], [0, 0, 1, 0], [], []>} : vector<16x8xf32>, vector<16x8xf32>, vector<16x16xf32> -> vector<16x16xf32>
    %212 = arith.addf %211, %3 : vector<16x16xf32>
    %cst_96 = arith.constant dense<0xFF800000> : vector<16xf32>
    %213 = vector.multi_reduction <maximumf>, %212, %cst_96 [1] : vector<16x16xf32> to vector<16xf32>
    %214 = vector.shape_cast %213 : vector<16xf32> to vector<16x1xf32>
    %215 = vector.broadcast %214 : vector<16x1xf32> to vector<16x16xf32>
    %216 = arith.subf %212, %215 : vector<16x16xf32>
    %217 = math.exp %216 : vector<16x16xf32>
    %cst_97 = arith.constant dense<0.000000e+00> : vector<16xf32>
    %218 = vector.multi_reduction <add>, %217, %cst_97 [1] : vector<16x16xf32> to vector<16xf32>
    %219 = vector.shape_cast %218 : vector<16xf32> to vector<16x1xf32>
    %220 = vector.broadcast %219 : vector<16x1xf32> to vector<16x16xf32>
    %221 = arith.divf %217, %220 : vector<16x16xf32>
    %cst_98 = arith.constant dense<0.000000e+00> : vector<16x32xf32>
    %222 = tpu.matmul %221, %210, %cst_98 {dimension_numbers = #tpu.dot_dimension_numbers<[1], [0], [0], [1], [0, 0, 1, 1], [], []>} : vector<16x16xf32>, vector<16x32xf32>, vector<16x32xf32> -> vector<16x32xf32>
    %223 = arith.addf %195, %222 : vector<16x32xf32>
    %c856 = arith.constant 856 : index
    %c0_99 = arith.constant 0 : index
    %224 = vector.load %arg1[%c856, %c0_99] : memref<2416x128xf32, #tpu.memory_space<vmem>>, vector<32x8xf32>
    %cst_100 = arith.constant dense<0.000000e+00> : vector<16x8xf32>
    %225 = tpu.matmul %168, %224, %cst_100 {dimension_numbers = #tpu.dot_dimension_numbers<[1], [0], [0], [1], [0, 0, 1, 1], [], []>} : vector<16x32xf32>, vector<32x8xf32>, vector<16x8xf32> -> vector<16x8xf32>
    %c888 = arith.constant 888 : index
    %c0_101 = arith.constant 0 : index
    %226 = vector.load %arg1[%c888, %c0_101] : memref<2416x128xf32, #tpu.memory_space<vmem>>, vector<1x8xf32>
    %227 = vector.broadcast %226 : vector<1x8xf32> to vector<16x8xf32>
    %228 = arith.addf %225, %227 : vector<16x8xf32>
    %c896 = arith.constant 896 : index
    %c0_102 = arith.constant 0 : index
    %229 = vector.load %arg1[%c896, %c0_102] : memref<2416x128xf32, #tpu.memory_space<vmem>>, vector<32x8xf32>
    %cst_103 = arith.constant dense<0.000000e+00> : vector<16x8xf32>
    %230 = tpu.matmul %1, %229, %cst_103 {dimension_numbers = #tpu.dot_dimension_numbers<[1], [0], [0], [1], [0, 0, 1, 1], [], []>} : vector<16x32xf32>, vector<32x8xf32>, vector<16x8xf32> -> vector<16x8xf32>
    %c928 = arith.constant 928 : index
    %c0_104 = arith.constant 0 : index
    %231 = vector.load %arg1[%c928, %c0_104] : memref<2416x128xf32, #tpu.memory_space<vmem>>, vector<1x8xf32>
    %232 = vector.broadcast %231 : vector<1x8xf32> to vector<16x8xf32>
    %233 = arith.addf %230, %232 : vector<16x8xf32>
    %c936 = arith.constant 936 : index
    %c0_105 = arith.constant 0 : index
    %234 = vector.load %arg1[%c936, %c0_105] : memref<2416x128xf32, #tpu.memory_space<vmem>>, vector<32x32xf32>
    %cst_106 = arith.constant dense<0.000000e+00> : vector<16x32xf32>
    %235 = tpu.matmul %1, %234, %cst_106 {dimension_numbers = #tpu.dot_dimension_numbers<[1], [0], [0], [1], [0, 0, 1, 1], [], []>} : vector<16x32xf32>, vector<32x32xf32>, vector<16x32xf32> -> vector<16x32xf32>
    %c968 = arith.constant 968 : index
    %c0_107 = arith.constant 0 : index
    %236 = vector.load %arg1[%c968, %c0_107] : memref<2416x128xf32, #tpu.memory_space<vmem>>, vector<1x32xf32>
    %237 = vector.broadcast %236 : vector<1x32xf32> to vector<16x32xf32>
    %238 = arith.addf %235, %237 : vector<16x32xf32>
    %cst_108 = arith.constant dense<0.000000e+00> : vector<16x16xf32>
    %239 = tpu.matmul %228, %233, %cst_108 {dimension_numbers = #tpu.dot_dimension_numbers<[1], [1], [0], [0], [0, 0, 1, 0], [], []>} : vector<16x8xf32>, vector<16x8xf32>, vector<16x16xf32> -> vector<16x16xf32>
    %240 = arith.addf %239, %3 : vector<16x16xf32>
    %cst_109 = arith.constant dense<0xFF800000> : vector<16xf32>
    %241 = vector.multi_reduction <maximumf>, %240, %cst_109 [1] : vector<16x16xf32> to vector<16xf32>
    %242 = vector.shape_cast %241 : vector<16xf32> to vector<16x1xf32>
    %243 = vector.broadcast %242 : vector<16x1xf32> to vector<16x16xf32>
    %244 = arith.subf %240, %243 : vector<16x16xf32>
    %245 = math.exp %244 : vector<16x16xf32>
    %cst_110 = arith.constant dense<0.000000e+00> : vector<16xf32>
    %246 = vector.multi_reduction <add>, %245, %cst_110 [1] : vector<16x16xf32> to vector<16xf32>
    %247 = vector.shape_cast %246 : vector<16xf32> to vector<16x1xf32>
    %248 = vector.broadcast %247 : vector<16x1xf32> to vector<16x16xf32>
    %249 = arith.divf %245, %248 : vector<16x16xf32>
    %cst_111 = arith.constant dense<0.000000e+00> : vector<16x32xf32>
    %250 = tpu.matmul %249, %238, %cst_111 {dimension_numbers = #tpu.dot_dimension_numbers<[1], [0], [0], [1], [0, 0, 1, 1], [], []>} : vector<16x16xf32>, vector<16x32xf32>, vector<16x32xf32> -> vector<16x32xf32>
    %251 = arith.addf %223, %250 : vector<16x32xf32>
    %c976 = arith.constant 976 : index
    %c0_112 = arith.constant 0 : index
    %252 = vector.load %arg1[%c976, %c0_112] : memref<2416x128xf32, #tpu.memory_space<vmem>>, vector<32x8xf32>
    %cst_113 = arith.constant dense<0.000000e+00> : vector<16x8xf32>
    %253 = tpu.matmul %168, %252, %cst_113 {dimension_numbers = #tpu.dot_dimension_numbers<[1], [0], [0], [1], [0, 0, 1, 1], [], []>} : vector<16x32xf32>, vector<32x8xf32>, vector<16x8xf32> -> vector<16x8xf32>
    %c1008 = arith.constant 1008 : index
    %c0_114 = arith.constant 0 : index
    %254 = vector.load %arg1[%c1008, %c0_114] : memref<2416x128xf32, #tpu.memory_space<vmem>>, vector<1x8xf32>
    %255 = vector.broadcast %254 : vector<1x8xf32> to vector<16x8xf32>
    %256 = arith.addf %253, %255 : vector<16x8xf32>
    %c1016 = arith.constant 1016 : index
    %c0_115 = arith.constant 0 : index
    %257 = vector.load %arg1[%c1016, %c0_115] : memref<2416x128xf32, #tpu.memory_space<vmem>>, vector<32x8xf32>
    %cst_116 = arith.constant dense<0.000000e+00> : vector<16x8xf32>
    %258 = tpu.matmul %1, %257, %cst_116 {dimension_numbers = #tpu.dot_dimension_numbers<[1], [0], [0], [1], [0, 0, 1, 1], [], []>} : vector<16x32xf32>, vector<32x8xf32>, vector<16x8xf32> -> vector<16x8xf32>
    %c1048 = arith.constant 1048 : index
    %c0_117 = arith.constant 0 : index
    %259 = vector.load %arg1[%c1048, %c0_117] : memref<2416x128xf32, #tpu.memory_space<vmem>>, vector<1x8xf32>
    %260 = vector.broadcast %259 : vector<1x8xf32> to vector<16x8xf32>
    %261 = arith.addf %258, %260 : vector<16x8xf32>
    %c1056 = arith.constant 1056 : index
    %c0_118 = arith.constant 0 : index
    %262 = vector.load %arg1[%c1056, %c0_118] : memref<2416x128xf32, #tpu.memory_space<vmem>>, vector<32x32xf32>
    %cst_119 = arith.constant dense<0.000000e+00> : vector<16x32xf32>
    %263 = tpu.matmul %1, %262, %cst_119 {dimension_numbers = #tpu.dot_dimension_numbers<[1], [0], [0], [1], [0, 0, 1, 1], [], []>} : vector<16x32xf32>, vector<32x32xf32>, vector<16x32xf32> -> vector<16x32xf32>
    %c1088 = arith.constant 1088 : index
    %c0_120 = arith.constant 0 : index
    %264 = vector.load %arg1[%c1088, %c0_120] : memref<2416x128xf32, #tpu.memory_space<vmem>>, vector<1x32xf32>
    %265 = vector.broadcast %264 : vector<1x32xf32> to vector<16x32xf32>
    %266 = arith.addf %263, %265 : vector<16x32xf32>
    %cst_121 = arith.constant dense<0.000000e+00> : vector<16x16xf32>
    %267 = tpu.matmul %256, %261, %cst_121 {dimension_numbers = #tpu.dot_dimension_numbers<[1], [1], [0], [0], [0, 0, 1, 0], [], []>} : vector<16x8xf32>, vector<16x8xf32>, vector<16x16xf32> -> vector<16x16xf32>
    %268 = arith.addf %267, %3 : vector<16x16xf32>
    %cst_122 = arith.constant dense<0xFF800000> : vector<16xf32>
    %269 = vector.multi_reduction <maximumf>, %268, %cst_122 [1] : vector<16x16xf32> to vector<16xf32>
    %270 = vector.shape_cast %269 : vector<16xf32> to vector<16x1xf32>
    %271 = vector.broadcast %270 : vector<16x1xf32> to vector<16x16xf32>
    %272 = arith.subf %268, %271 : vector<16x16xf32>
    %273 = math.exp %272 : vector<16x16xf32>
    %cst_123 = arith.constant dense<0.000000e+00> : vector<16xf32>
    %274 = vector.multi_reduction <add>, %273, %cst_123 [1] : vector<16x16xf32> to vector<16xf32>
    %275 = vector.shape_cast %274 : vector<16xf32> to vector<16x1xf32>
    %276 = vector.broadcast %275 : vector<16x1xf32> to vector<16x16xf32>
    %277 = arith.divf %273, %276 : vector<16x16xf32>
    %cst_124 = arith.constant dense<0.000000e+00> : vector<16x32xf32>
    %278 = tpu.matmul %277, %266, %cst_124 {dimension_numbers = #tpu.dot_dimension_numbers<[1], [0], [0], [1], [0, 0, 1, 1], [], []>} : vector<16x16xf32>, vector<16x32xf32>, vector<16x32xf32> -> vector<16x32xf32>
    %279 = arith.addf %251, %278 : vector<16x32xf32>
    %c1096 = arith.constant 1096 : index
    %c0_125 = arith.constant 0 : index
    %280 = vector.load %arg1[%c1096, %c0_125] : memref<2416x128xf32, #tpu.memory_space<vmem>>, vector<1x32xf32>
    %281 = vector.broadcast %280 : vector<1x32xf32> to vector<16x32xf32>
    %282 = arith.addf %279, %281 : vector<16x32xf32>
    %283 = arith.addf %168, %282 : vector<16x32xf32>
    %c1104 = arith.constant 1104 : index
    %c0_126 = arith.constant 0 : index
    %284 = vector.load %arg1[%c1104, %c0_126] : memref<2416x128xf32, #tpu.memory_space<vmem>>, vector<1x32xf32>
    %c1112 = arith.constant 1112 : index
    %c0_127 = arith.constant 0 : index
    %285 = vector.load %arg1[%c1112, %c0_127] : memref<2416x128xf32, #tpu.memory_space<vmem>>, vector<1x32xf32>
    %cst_128 = arith.constant dense<0.000000e+00> : vector<16xf32>
    %286 = vector.multi_reduction <add>, %283, %cst_128 [1] : vector<16x32xf32> to vector<16xf32>
    %287 = vector.shape_cast %286 : vector<16xf32> to vector<16x1xf32>
    %cst_129 = arith.constant 3.200000e+01 : f32
    %288 = vector.broadcast %cst_129 : f32 to vector<16x1xf32>
    %289 = arith.divf %287, %288 : vector<16x1xf32>
    %290 = vector.broadcast %289 : vector<16x1xf32> to vector<16x32xf32>
    %291 = arith.subf %283, %290 : vector<16x32xf32>
    %292 = arith.mulf %291, %291 : vector<16x32xf32>
    %cst_130 = arith.constant dense<0.000000e+00> : vector<16xf32>
    %293 = vector.multi_reduction <add>, %292, %cst_130 [1] : vector<16x32xf32> to vector<16xf32>
    %294 = vector.shape_cast %293 : vector<16xf32> to vector<16x1xf32>
    %cst_131 = arith.constant 3.200000e+01 : f32
    %295 = vector.broadcast %cst_131 : f32 to vector<16x1xf32>
    %296 = arith.divf %294, %295 : vector<16x1xf32>
    %297 = vector.broadcast %289 : vector<16x1xf32> to vector<16x32xf32>
    %298 = arith.subf %283, %297 : vector<16x32xf32>
    %cst_132 = arith.constant 9.99999974E-6 : f32
    %299 = vector.broadcast %cst_132 : f32 to vector<16x1xf32>
    %300 = arith.addf %296, %299 : vector<16x1xf32>
    %301 = math.rsqrt %300 : vector<16x1xf32>
    %302 = vector.broadcast %301 : vector<16x1xf32> to vector<16x32xf32>
    %303 = arith.mulf %298, %302 : vector<16x32xf32>
    %304 = vector.broadcast %284 : vector<1x32xf32> to vector<16x32xf32>
    %305 = arith.mulf %303, %304 : vector<16x32xf32>
    %306 = vector.broadcast %285 : vector<1x32xf32> to vector<16x32xf32>
    %307 = arith.addf %305, %306 : vector<16x32xf32>
    %c1120 = arith.constant 1120 : index
    %c0_133 = arith.constant 0 : index
    %308 = vector.load %arg1[%c1120, %c0_133] : memref<2416x128xf32, #tpu.memory_space<vmem>>, vector<32x64xf32>
    %cst_134 = arith.constant dense<0.000000e+00> : vector<16x64xf32>
    %309 = tpu.matmul %307, %308, %cst_134 {dimension_numbers = #tpu.dot_dimension_numbers<[1], [0], [0], [1], [0, 0, 1, 1], [], []>} : vector<16x32xf32>, vector<32x64xf32>, vector<16x64xf32> -> vector<16x64xf32>
    %c1152 = arith.constant 1152 : index
    %c0_135 = arith.constant 0 : index
    %310 = vector.load %arg1[%c1152, %c0_135] : memref<2416x128xf32, #tpu.memory_space<vmem>>, vector<1x64xf32>
    %311 = vector.broadcast %310 : vector<1x64xf32> to vector<16x64xf32>
    %312 = arith.addf %309, %311 : vector<16x64xf32>
    %cst_136 = arith.constant 5.000000e-01 : f32
    %313 = vector.broadcast %cst_136 : f32 to vector<16x64xf32>
    %314 = arith.mulf %313, %312 : vector<16x64xf32>
    %cst_137 = arith.constant 0.707106769 : f32
    %315 = vector.broadcast %cst_137 : f32 to vector<16x64xf32>
    %316 = arith.mulf %312, %315 : vector<16x64xf32>
    %317 = math.erf %316 : vector<16x64xf32>
    %cst_138 = arith.constant 1.000000e+00 : f32
    %318 = vector.broadcast %cst_138 : f32 to vector<16x64xf32>
    %319 = arith.addf %318, %317 : vector<16x64xf32>
    %320 = arith.mulf %314, %319 : vector<16x64xf32>
    %c1160 = arith.constant 1160 : index
    %c0_139 = arith.constant 0 : index
    %321 = vector.load %arg1[%c1160, %c0_139] : memref<2416x128xf32, #tpu.memory_space<vmem>>, vector<64x32xf32>
    %cst_140 = arith.constant dense<0.000000e+00> : vector<16x32xf32>
    %322 = tpu.matmul %320, %321, %cst_140 {dimension_numbers = #tpu.dot_dimension_numbers<[1], [0], [0], [1], [0, 0, 1, 1], [], []>} : vector<16x64xf32>, vector<64x32xf32>, vector<16x32xf32> -> vector<16x32xf32>
    %c1224 = arith.constant 1224 : index
    %c0_141 = arith.constant 0 : index
    %323 = vector.load %arg1[%c1224, %c0_141] : memref<2416x128xf32, #tpu.memory_space<vmem>>, vector<1x32xf32>
    %324 = vector.broadcast %323 : vector<1x32xf32> to vector<16x32xf32>
    %325 = arith.addf %322, %324 : vector<16x32xf32>
    %326 = arith.addf %307, %325 : vector<16x32xf32>
    %c1232 = arith.constant 1232 : index
    %c0_142 = arith.constant 0 : index
    %327 = vector.load %arg1[%c1232, %c0_142] : memref<2416x128xf32, #tpu.memory_space<vmem>>, vector<1x32xf32>
    %c1240 = arith.constant 1240 : index
    %c0_143 = arith.constant 0 : index
    %328 = vector.load %arg1[%c1240, %c0_143] : memref<2416x128xf32, #tpu.memory_space<vmem>>, vector<1x32xf32>
    %cst_144 = arith.constant dense<0.000000e+00> : vector<16xf32>
    %329 = vector.multi_reduction <add>, %326, %cst_144 [1] : vector<16x32xf32> to vector<16xf32>
    %330 = vector.shape_cast %329 : vector<16xf32> to vector<16x1xf32>
    %cst_145 = arith.constant 3.200000e+01 : f32
    %331 = vector.broadcast %cst_145 : f32 to vector<16x1xf32>
    %332 = arith.divf %330, %331 : vector<16x1xf32>
    %333 = vector.broadcast %332 : vector<16x1xf32> to vector<16x32xf32>
    %334 = arith.subf %326, %333 : vector<16x32xf32>
    %335 = arith.mulf %334, %334 : vector<16x32xf32>
    %cst_146 = arith.constant dense<0.000000e+00> : vector<16xf32>
    %336 = vector.multi_reduction <add>, %335, %cst_146 [1] : vector<16x32xf32> to vector<16xf32>
    %337 = vector.shape_cast %336 : vector<16xf32> to vector<16x1xf32>
    %cst_147 = arith.constant 3.200000e+01 : f32
    %338 = vector.broadcast %cst_147 : f32 to vector<16x1xf32>
    %339 = arith.divf %337, %338 : vector<16x1xf32>
    %340 = vector.broadcast %332 : vector<16x1xf32> to vector<16x32xf32>
    %341 = arith.subf %326, %340 : vector<16x32xf32>
    %cst_148 = arith.constant 9.99999974E-6 : f32
    %342 = vector.broadcast %cst_148 : f32 to vector<16x1xf32>
    %343 = arith.addf %339, %342 : vector<16x1xf32>
    %344 = math.rsqrt %343 : vector<16x1xf32>
    %345 = vector.broadcast %344 : vector<16x1xf32> to vector<16x32xf32>
    %346 = arith.mulf %341, %345 : vector<16x32xf32>
    %347 = vector.broadcast %327 : vector<1x32xf32> to vector<16x32xf32>
    %348 = arith.mulf %346, %347 : vector<16x32xf32>
    %349 = vector.broadcast %328 : vector<1x32xf32> to vector<16x32xf32>
    %350 = arith.addf %348, %349 : vector<16x32xf32>
    %c1248 = arith.constant 1248 : index
    %c0_149 = arith.constant 0 : index
    %351 = vector.load %arg1[%c1248, %c0_149] : memref<2416x128xf32, #tpu.memory_space<vmem>>, vector<32x8xf32>
    %cst_150 = arith.constant dense<0.000000e+00> : vector<16x8xf32>
    %352 = tpu.matmul %350, %351, %cst_150 {dimension_numbers = #tpu.dot_dimension_numbers<[1], [0], [0], [1], [0, 0, 1, 1], [], []>} : vector<16x32xf32>, vector<32x8xf32>, vector<16x8xf32> -> vector<16x8xf32>
    %c1280 = arith.constant 1280 : index
    %c0_151 = arith.constant 0 : index
    %353 = vector.load %arg1[%c1280, %c0_151] : memref<2416x128xf32, #tpu.memory_space<vmem>>, vector<1x8xf32>
    %354 = vector.broadcast %353 : vector<1x8xf32> to vector<16x8xf32>
    %355 = arith.addf %352, %354 : vector<16x8xf32>
    %c1288 = arith.constant 1288 : index
    %c0_152 = arith.constant 0 : index
    %356 = vector.load %arg1[%c1288, %c0_152] : memref<2416x128xf32, #tpu.memory_space<vmem>>, vector<32x8xf32>
    %cst_153 = arith.constant dense<0.000000e+00> : vector<16x8xf32>
    %357 = tpu.matmul %350, %356, %cst_153 {dimension_numbers = #tpu.dot_dimension_numbers<[1], [0], [0], [1], [0, 0, 1, 1], [], []>} : vector<16x32xf32>, vector<32x8xf32>, vector<16x8xf32> -> vector<16x8xf32>
    %c1320 = arith.constant 1320 : index
    %c0_154 = arith.constant 0 : index
    %358 = vector.load %arg1[%c1320, %c0_154] : memref<2416x128xf32, #tpu.memory_space<vmem>>, vector<1x8xf32>
    %359 = vector.broadcast %358 : vector<1x8xf32> to vector<16x8xf32>
    %360 = arith.addf %357, %359 : vector<16x8xf32>
    %c1328 = arith.constant 1328 : index
    %c0_155 = arith.constant 0 : index
    %361 = vector.load %arg1[%c1328, %c0_155] : memref<2416x128xf32, #tpu.memory_space<vmem>>, vector<32x32xf32>
    %cst_156 = arith.constant dense<0.000000e+00> : vector<16x32xf32>
    %362 = tpu.matmul %350, %361, %cst_156 {dimension_numbers = #tpu.dot_dimension_numbers<[1], [0], [0], [1], [0, 0, 1, 1], [], []>} : vector<16x32xf32>, vector<32x32xf32>, vector<16x32xf32> -> vector<16x32xf32>
    %c1360 = arith.constant 1360 : index
    %c0_157 = arith.constant 0 : index
    %363 = vector.load %arg1[%c1360, %c0_157] : memref<2416x128xf32, #tpu.memory_space<vmem>>, vector<1x32xf32>
    %364 = vector.broadcast %363 : vector<1x32xf32> to vector<16x32xf32>
    %365 = arith.addf %362, %364 : vector<16x32xf32>
    %cst_158 = arith.constant dense<0.000000e+00> : vector<16x16xf32>
    %366 = tpu.matmul %355, %360, %cst_158 {dimension_numbers = #tpu.dot_dimension_numbers<[1], [1], [0], [0], [0, 0, 1, 0], [], []>} : vector<16x8xf32>, vector<16x8xf32>, vector<16x16xf32> -> vector<16x16xf32>
    %367 = arith.addf %366, %2 : vector<16x16xf32>
    %cst_159 = arith.constant dense<0xFF800000> : vector<16xf32>
    %368 = vector.multi_reduction <maximumf>, %367, %cst_159 [1] : vector<16x16xf32> to vector<16xf32>
    %369 = vector.shape_cast %368 : vector<16xf32> to vector<16x1xf32>
    %370 = vector.broadcast %369 : vector<16x1xf32> to vector<16x16xf32>
    %371 = arith.subf %367, %370 : vector<16x16xf32>
    %372 = math.exp %371 : vector<16x16xf32>
    %cst_160 = arith.constant dense<0.000000e+00> : vector<16xf32>
    %373 = vector.multi_reduction <add>, %372, %cst_160 [1] : vector<16x16xf32> to vector<16xf32>
    %374 = vector.shape_cast %373 : vector<16xf32> to vector<16x1xf32>
    %375 = vector.broadcast %374 : vector<16x1xf32> to vector<16x16xf32>
    %376 = arith.divf %372, %375 : vector<16x16xf32>
    %cst_161 = arith.constant dense<0.000000e+00> : vector<16x32xf32>
    %377 = tpu.matmul %376, %365, %cst_161 {dimension_numbers = #tpu.dot_dimension_numbers<[1], [0], [0], [1], [0, 0, 1, 1], [], []>} : vector<16x16xf32>, vector<16x32xf32>, vector<16x32xf32> -> vector<16x32xf32>
    %c1368 = arith.constant 1368 : index
    %c0_162 = arith.constant 0 : index
    %378 = vector.load %arg1[%c1368, %c0_162] : memref<2416x128xf32, #tpu.memory_space<vmem>>, vector<32x8xf32>
    %cst_163 = arith.constant dense<0.000000e+00> : vector<16x8xf32>
    %379 = tpu.matmul %350, %378, %cst_163 {dimension_numbers = #tpu.dot_dimension_numbers<[1], [0], [0], [1], [0, 0, 1, 1], [], []>} : vector<16x32xf32>, vector<32x8xf32>, vector<16x8xf32> -> vector<16x8xf32>
    %c1400 = arith.constant 1400 : index
    %c0_164 = arith.constant 0 : index
    %380 = vector.load %arg1[%c1400, %c0_164] : memref<2416x128xf32, #tpu.memory_space<vmem>>, vector<1x8xf32>
    %381 = vector.broadcast %380 : vector<1x8xf32> to vector<16x8xf32>
    %382 = arith.addf %379, %381 : vector<16x8xf32>
    %c1408 = arith.constant 1408 : index
    %c0_165 = arith.constant 0 : index
    %383 = vector.load %arg1[%c1408, %c0_165] : memref<2416x128xf32, #tpu.memory_space<vmem>>, vector<32x8xf32>
    %cst_166 = arith.constant dense<0.000000e+00> : vector<16x8xf32>
    %384 = tpu.matmul %350, %383, %cst_166 {dimension_numbers = #tpu.dot_dimension_numbers<[1], [0], [0], [1], [0, 0, 1, 1], [], []>} : vector<16x32xf32>, vector<32x8xf32>, vector<16x8xf32> -> vector<16x8xf32>
    %c1440 = arith.constant 1440 : index
    %c0_167 = arith.constant 0 : index
    %385 = vector.load %arg1[%c1440, %c0_167] : memref<2416x128xf32, #tpu.memory_space<vmem>>, vector<1x8xf32>
    %386 = vector.broadcast %385 : vector<1x8xf32> to vector<16x8xf32>
    %387 = arith.addf %384, %386 : vector<16x8xf32>
    %c1448 = arith.constant 1448 : index
    %c0_168 = arith.constant 0 : index
    %388 = vector.load %arg1[%c1448, %c0_168] : memref<2416x128xf32, #tpu.memory_space<vmem>>, vector<32x32xf32>
    %cst_169 = arith.constant dense<0.000000e+00> : vector<16x32xf32>
    %389 = tpu.matmul %350, %388, %cst_169 {dimension_numbers = #tpu.dot_dimension_numbers<[1], [0], [0], [1], [0, 0, 1, 1], [], []>} : vector<16x32xf32>, vector<32x32xf32>, vector<16x32xf32> -> vector<16x32xf32>
    %c1480 = arith.constant 1480 : index
    %c0_170 = arith.constant 0 : index
    %390 = vector.load %arg1[%c1480, %c0_170] : memref<2416x128xf32, #tpu.memory_space<vmem>>, vector<1x32xf32>
    %391 = vector.broadcast %390 : vector<1x32xf32> to vector<16x32xf32>
    %392 = arith.addf %389, %391 : vector<16x32xf32>
    %cst_171 = arith.constant dense<0.000000e+00> : vector<16x16xf32>
    %393 = tpu.matmul %382, %387, %cst_171 {dimension_numbers = #tpu.dot_dimension_numbers<[1], [1], [0], [0], [0, 0, 1, 0], [], []>} : vector<16x8xf32>, vector<16x8xf32>, vector<16x16xf32> -> vector<16x16xf32>
    %394 = arith.addf %393, %2 : vector<16x16xf32>
    %cst_172 = arith.constant dense<0xFF800000> : vector<16xf32>
    %395 = vector.multi_reduction <maximumf>, %394, %cst_172 [1] : vector<16x16xf32> to vector<16xf32>
    %396 = vector.shape_cast %395 : vector<16xf32> to vector<16x1xf32>
    %397 = vector.broadcast %396 : vector<16x1xf32> to vector<16x16xf32>
    %398 = arith.subf %394, %397 : vector<16x16xf32>
    %399 = math.exp %398 : vector<16x16xf32>
    %cst_173 = arith.constant dense<0.000000e+00> : vector<16xf32>
    %400 = vector.multi_reduction <add>, %399, %cst_173 [1] : vector<16x16xf32> to vector<16xf32>
    %401 = vector.shape_cast %400 : vector<16xf32> to vector<16x1xf32>
    %402 = vector.broadcast %401 : vector<16x1xf32> to vector<16x16xf32>
    %403 = arith.divf %399, %402 : vector<16x16xf32>
    %cst_174 = arith.constant dense<0.000000e+00> : vector<16x32xf32>
    %404 = tpu.matmul %403, %392, %cst_174 {dimension_numbers = #tpu.dot_dimension_numbers<[1], [0], [0], [1], [0, 0, 1, 1], [], []>} : vector<16x16xf32>, vector<16x32xf32>, vector<16x32xf32> -> vector<16x32xf32>
    %405 = arith.addf %377, %404 : vector<16x32xf32>
    %c1488 = arith.constant 1488 : index
    %c0_175 = arith.constant 0 : index
    %406 = vector.load %arg1[%c1488, %c0_175] : memref<2416x128xf32, #tpu.memory_space<vmem>>, vector<32x8xf32>
    %cst_176 = arith.constant dense<0.000000e+00> : vector<16x8xf32>
    %407 = tpu.matmul %350, %406, %cst_176 {dimension_numbers = #tpu.dot_dimension_numbers<[1], [0], [0], [1], [0, 0, 1, 1], [], []>} : vector<16x32xf32>, vector<32x8xf32>, vector<16x8xf32> -> vector<16x8xf32>
    %c1520 = arith.constant 1520 : index
    %c0_177 = arith.constant 0 : index
    %408 = vector.load %arg1[%c1520, %c0_177] : memref<2416x128xf32, #tpu.memory_space<vmem>>, vector<1x8xf32>
    %409 = vector.broadcast %408 : vector<1x8xf32> to vector<16x8xf32>
    %410 = arith.addf %407, %409 : vector<16x8xf32>
    %c1528 = arith.constant 1528 : index
    %c0_178 = arith.constant 0 : index
    %411 = vector.load %arg1[%c1528, %c0_178] : memref<2416x128xf32, #tpu.memory_space<vmem>>, vector<32x8xf32>
    %cst_179 = arith.constant dense<0.000000e+00> : vector<16x8xf32>
    %412 = tpu.matmul %350, %411, %cst_179 {dimension_numbers = #tpu.dot_dimension_numbers<[1], [0], [0], [1], [0, 0, 1, 1], [], []>} : vector<16x32xf32>, vector<32x8xf32>, vector<16x8xf32> -> vector<16x8xf32>
    %c1560 = arith.constant 1560 : index
    %c0_180 = arith.constant 0 : index
    %413 = vector.load %arg1[%c1560, %c0_180] : memref<2416x128xf32, #tpu.memory_space<vmem>>, vector<1x8xf32>
    %414 = vector.broadcast %413 : vector<1x8xf32> to vector<16x8xf32>
    %415 = arith.addf %412, %414 : vector<16x8xf32>
    %c1568 = arith.constant 1568 : index
    %c0_181 = arith.constant 0 : index
    %416 = vector.load %arg1[%c1568, %c0_181] : memref<2416x128xf32, #tpu.memory_space<vmem>>, vector<32x32xf32>
    %cst_182 = arith.constant dense<0.000000e+00> : vector<16x32xf32>
    %417 = tpu.matmul %350, %416, %cst_182 {dimension_numbers = #tpu.dot_dimension_numbers<[1], [0], [0], [1], [0, 0, 1, 1], [], []>} : vector<16x32xf32>, vector<32x32xf32>, vector<16x32xf32> -> vector<16x32xf32>
    %c1600 = arith.constant 1600 : index
    %c0_183 = arith.constant 0 : index
    %418 = vector.load %arg1[%c1600, %c0_183] : memref<2416x128xf32, #tpu.memory_space<vmem>>, vector<1x32xf32>
    %419 = vector.broadcast %418 : vector<1x32xf32> to vector<16x32xf32>
    %420 = arith.addf %417, %419 : vector<16x32xf32>
    %cst_184 = arith.constant dense<0.000000e+00> : vector<16x16xf32>
    %421 = tpu.matmul %410, %415, %cst_184 {dimension_numbers = #tpu.dot_dimension_numbers<[1], [1], [0], [0], [0, 0, 1, 0], [], []>} : vector<16x8xf32>, vector<16x8xf32>, vector<16x16xf32> -> vector<16x16xf32>
    %422 = arith.addf %421, %2 : vector<16x16xf32>
    %cst_185 = arith.constant dense<0xFF800000> : vector<16xf32>
    %423 = vector.multi_reduction <maximumf>, %422, %cst_185 [1] : vector<16x16xf32> to vector<16xf32>
    %424 = vector.shape_cast %423 : vector<16xf32> to vector<16x1xf32>
    %425 = vector.broadcast %424 : vector<16x1xf32> to vector<16x16xf32>
    %426 = arith.subf %422, %425 : vector<16x16xf32>
    %427 = math.exp %426 : vector<16x16xf32>
    %cst_186 = arith.constant dense<0.000000e+00> : vector<16xf32>
    %428 = vector.multi_reduction <add>, %427, %cst_186 [1] : vector<16x16xf32> to vector<16xf32>
    %429 = vector.shape_cast %428 : vector<16xf32> to vector<16x1xf32>
    %430 = vector.broadcast %429 : vector<16x1xf32> to vector<16x16xf32>
    %431 = arith.divf %427, %430 : vector<16x16xf32>
    %cst_187 = arith.constant dense<0.000000e+00> : vector<16x32xf32>
    %432 = tpu.matmul %431, %420, %cst_187 {dimension_numbers = #tpu.dot_dimension_numbers<[1], [0], [0], [1], [0, 0, 1, 1], [], []>} : vector<16x16xf32>, vector<16x32xf32>, vector<16x32xf32> -> vector<16x32xf32>
    %433 = arith.addf %405, %432 : vector<16x32xf32>
    %c1608 = arith.constant 1608 : index
    %c0_188 = arith.constant 0 : index
    %434 = vector.load %arg1[%c1608, %c0_188] : memref<2416x128xf32, #tpu.memory_space<vmem>>, vector<32x8xf32>
    %cst_189 = arith.constant dense<0.000000e+00> : vector<16x8xf32>
    %435 = tpu.matmul %350, %434, %cst_189 {dimension_numbers = #tpu.dot_dimension_numbers<[1], [0], [0], [1], [0, 0, 1, 1], [], []>} : vector<16x32xf32>, vector<32x8xf32>, vector<16x8xf32> -> vector<16x8xf32>
    %c1640 = arith.constant 1640 : index
    %c0_190 = arith.constant 0 : index
    %436 = vector.load %arg1[%c1640, %c0_190] : memref<2416x128xf32, #tpu.memory_space<vmem>>, vector<1x8xf32>
    %437 = vector.broadcast %436 : vector<1x8xf32> to vector<16x8xf32>
    %438 = arith.addf %435, %437 : vector<16x8xf32>
    %c1648 = arith.constant 1648 : index
    %c0_191 = arith.constant 0 : index
    %439 = vector.load %arg1[%c1648, %c0_191] : memref<2416x128xf32, #tpu.memory_space<vmem>>, vector<32x8xf32>
    %cst_192 = arith.constant dense<0.000000e+00> : vector<16x8xf32>
    %440 = tpu.matmul %350, %439, %cst_192 {dimension_numbers = #tpu.dot_dimension_numbers<[1], [0], [0], [1], [0, 0, 1, 1], [], []>} : vector<16x32xf32>, vector<32x8xf32>, vector<16x8xf32> -> vector<16x8xf32>
    %c1680 = arith.constant 1680 : index
    %c0_193 = arith.constant 0 : index
    %441 = vector.load %arg1[%c1680, %c0_193] : memref<2416x128xf32, #tpu.memory_space<vmem>>, vector<1x8xf32>
    %442 = vector.broadcast %441 : vector<1x8xf32> to vector<16x8xf32>
    %443 = arith.addf %440, %442 : vector<16x8xf32>
    %c1688 = arith.constant 1688 : index
    %c0_194 = arith.constant 0 : index
    %444 = vector.load %arg1[%c1688, %c0_194] : memref<2416x128xf32, #tpu.memory_space<vmem>>, vector<32x32xf32>
    %cst_195 = arith.constant dense<0.000000e+00> : vector<16x32xf32>
    %445 = tpu.matmul %350, %444, %cst_195 {dimension_numbers = #tpu.dot_dimension_numbers<[1], [0], [0], [1], [0, 0, 1, 1], [], []>} : vector<16x32xf32>, vector<32x32xf32>, vector<16x32xf32> -> vector<16x32xf32>
    %c1720 = arith.constant 1720 : index
    %c0_196 = arith.constant 0 : index
    %446 = vector.load %arg1[%c1720, %c0_196] : memref<2416x128xf32, #tpu.memory_space<vmem>>, vector<1x32xf32>
    %447 = vector.broadcast %446 : vector<1x32xf32> to vector<16x32xf32>
    %448 = arith.addf %445, %447 : vector<16x32xf32>
    %cst_197 = arith.constant dense<0.000000e+00> : vector<16x16xf32>
    %449 = tpu.matmul %438, %443, %cst_197 {dimension_numbers = #tpu.dot_dimension_numbers<[1], [1], [0], [0], [0, 0, 1, 0], [], []>} : vector<16x8xf32>, vector<16x8xf32>, vector<16x16xf32> -> vector<16x16xf32>
    %450 = arith.addf %449, %2 : vector<16x16xf32>
    %cst_198 = arith.constant dense<0xFF800000> : vector<16xf32>
    %451 = vector.multi_reduction <maximumf>, %450, %cst_198 [1] : vector<16x16xf32> to vector<16xf32>
    %452 = vector.shape_cast %451 : vector<16xf32> to vector<16x1xf32>
    %453 = vector.broadcast %452 : vector<16x1xf32> to vector<16x16xf32>
    %454 = arith.subf %450, %453 : vector<16x16xf32>
    %455 = math.exp %454 : vector<16x16xf32>
    %cst_199 = arith.constant dense<0.000000e+00> : vector<16xf32>
    %456 = vector.multi_reduction <add>, %455, %cst_199 [1] : vector<16x16xf32> to vector<16xf32>
    %457 = vector.shape_cast %456 : vector<16xf32> to vector<16x1xf32>
    %458 = vector.broadcast %457 : vector<16x1xf32> to vector<16x16xf32>
    %459 = arith.divf %455, %458 : vector<16x16xf32>
    %cst_200 = arith.constant dense<0.000000e+00> : vector<16x32xf32>
    %460 = tpu.matmul %459, %448, %cst_200 {dimension_numbers = #tpu.dot_dimension_numbers<[1], [0], [0], [1], [0, 0, 1, 1], [], []>} : vector<16x16xf32>, vector<16x32xf32>, vector<16x32xf32> -> vector<16x32xf32>
    %461 = arith.addf %433, %460 : vector<16x32xf32>
    %c1728 = arith.constant 1728 : index
    %c0_201 = arith.constant 0 : index
    %462 = vector.load %arg1[%c1728, %c0_201] : memref<2416x128xf32, #tpu.memory_space<vmem>>, vector<1x32xf32>
    %463 = vector.broadcast %462 : vector<1x32xf32> to vector<16x32xf32>
    %464 = arith.addf %461, %463 : vector<16x32xf32>
    %465 = arith.addf %350, %464 : vector<16x32xf32>
    %c1736 = arith.constant 1736 : index
    %c0_202 = arith.constant 0 : index
    %466 = vector.load %arg1[%c1736, %c0_202] : memref<2416x128xf32, #tpu.memory_space<vmem>>, vector<1x32xf32>
    %c1744 = arith.constant 1744 : index
    %c0_203 = arith.constant 0 : index
    %467 = vector.load %arg1[%c1744, %c0_203] : memref<2416x128xf32, #tpu.memory_space<vmem>>, vector<1x32xf32>
    %cst_204 = arith.constant dense<0.000000e+00> : vector<16xf32>
    %468 = vector.multi_reduction <add>, %465, %cst_204 [1] : vector<16x32xf32> to vector<16xf32>
    %469 = vector.shape_cast %468 : vector<16xf32> to vector<16x1xf32>
    %cst_205 = arith.constant 3.200000e+01 : f32
    %470 = vector.broadcast %cst_205 : f32 to vector<16x1xf32>
    %471 = arith.divf %469, %470 : vector<16x1xf32>
    %472 = vector.broadcast %471 : vector<16x1xf32> to vector<16x32xf32>
    %473 = arith.subf %465, %472 : vector<16x32xf32>
    %474 = arith.mulf %473, %473 : vector<16x32xf32>
    %cst_206 = arith.constant dense<0.000000e+00> : vector<16xf32>
    %475 = vector.multi_reduction <add>, %474, %cst_206 [1] : vector<16x32xf32> to vector<16xf32>
    %476 = vector.shape_cast %475 : vector<16xf32> to vector<16x1xf32>
    %cst_207 = arith.constant 3.200000e+01 : f32
    %477 = vector.broadcast %cst_207 : f32 to vector<16x1xf32>
    %478 = arith.divf %476, %477 : vector<16x1xf32>
    %479 = vector.broadcast %471 : vector<16x1xf32> to vector<16x32xf32>
    %480 = arith.subf %465, %479 : vector<16x32xf32>
    %cst_208 = arith.constant 9.99999974E-6 : f32
    %481 = vector.broadcast %cst_208 : f32 to vector<16x1xf32>
    %482 = arith.addf %478, %481 : vector<16x1xf32>
    %483 = math.rsqrt %482 : vector<16x1xf32>
    %484 = vector.broadcast %483 : vector<16x1xf32> to vector<16x32xf32>
    %485 = arith.mulf %480, %484 : vector<16x32xf32>
    %486 = vector.broadcast %466 : vector<1x32xf32> to vector<16x32xf32>
    %487 = arith.mulf %485, %486 : vector<16x32xf32>
    %488 = vector.broadcast %467 : vector<1x32xf32> to vector<16x32xf32>
    %489 = arith.addf %487, %488 : vector<16x32xf32>
    %c1752 = arith.constant 1752 : index
    %c0_209 = arith.constant 0 : index
    %490 = vector.load %arg1[%c1752, %c0_209] : memref<2416x128xf32, #tpu.memory_space<vmem>>, vector<32x8xf32>
    %cst_210 = arith.constant dense<0.000000e+00> : vector<16x8xf32>
    %491 = tpu.matmul %489, %490, %cst_210 {dimension_numbers = #tpu.dot_dimension_numbers<[1], [0], [0], [1], [0, 0, 1, 1], [], []>} : vector<16x32xf32>, vector<32x8xf32>, vector<16x8xf32> -> vector<16x8xf32>
    %c1784 = arith.constant 1784 : index
    %c0_211 = arith.constant 0 : index
    %492 = vector.load %arg1[%c1784, %c0_211] : memref<2416x128xf32, #tpu.memory_space<vmem>>, vector<1x8xf32>
    %493 = vector.broadcast %492 : vector<1x8xf32> to vector<16x8xf32>
    %494 = arith.addf %491, %493 : vector<16x8xf32>
    %c1792 = arith.constant 1792 : index
    %c0_212 = arith.constant 0 : index
    %495 = vector.load %arg1[%c1792, %c0_212] : memref<2416x128xf32, #tpu.memory_space<vmem>>, vector<32x8xf32>
    %cst_213 = arith.constant dense<0.000000e+00> : vector<16x8xf32>
    %496 = tpu.matmul %1, %495, %cst_213 {dimension_numbers = #tpu.dot_dimension_numbers<[1], [0], [0], [1], [0, 0, 1, 1], [], []>} : vector<16x32xf32>, vector<32x8xf32>, vector<16x8xf32> -> vector<16x8xf32>
    %c1824 = arith.constant 1824 : index
    %c0_214 = arith.constant 0 : index
    %497 = vector.load %arg1[%c1824, %c0_214] : memref<2416x128xf32, #tpu.memory_space<vmem>>, vector<1x8xf32>
    %498 = vector.broadcast %497 : vector<1x8xf32> to vector<16x8xf32>
    %499 = arith.addf %496, %498 : vector<16x8xf32>
    %c1832 = arith.constant 1832 : index
    %c0_215 = arith.constant 0 : index
    %500 = vector.load %arg1[%c1832, %c0_215] : memref<2416x128xf32, #tpu.memory_space<vmem>>, vector<32x32xf32>
    %cst_216 = arith.constant dense<0.000000e+00> : vector<16x32xf32>
    %501 = tpu.matmul %1, %500, %cst_216 {dimension_numbers = #tpu.dot_dimension_numbers<[1], [0], [0], [1], [0, 0, 1, 1], [], []>} : vector<16x32xf32>, vector<32x32xf32>, vector<16x32xf32> -> vector<16x32xf32>
    %c1864 = arith.constant 1864 : index
    %c0_217 = arith.constant 0 : index
    %502 = vector.load %arg1[%c1864, %c0_217] : memref<2416x128xf32, #tpu.memory_space<vmem>>, vector<1x32xf32>
    %503 = vector.broadcast %502 : vector<1x32xf32> to vector<16x32xf32>
    %504 = arith.addf %501, %503 : vector<16x32xf32>
    %cst_218 = arith.constant dense<0.000000e+00> : vector<16x16xf32>
    %505 = tpu.matmul %494, %499, %cst_218 {dimension_numbers = #tpu.dot_dimension_numbers<[1], [1], [0], [0], [0, 0, 1, 0], [], []>} : vector<16x8xf32>, vector<16x8xf32>, vector<16x16xf32> -> vector<16x16xf32>
    %506 = arith.addf %505, %3 : vector<16x16xf32>
    %cst_219 = arith.constant dense<0xFF800000> : vector<16xf32>
    %507 = vector.multi_reduction <maximumf>, %506, %cst_219 [1] : vector<16x16xf32> to vector<16xf32>
    %508 = vector.shape_cast %507 : vector<16xf32> to vector<16x1xf32>
    %509 = vector.broadcast %508 : vector<16x1xf32> to vector<16x16xf32>
    %510 = arith.subf %506, %509 : vector<16x16xf32>
    %511 = math.exp %510 : vector<16x16xf32>
    %cst_220 = arith.constant dense<0.000000e+00> : vector<16xf32>
    %512 = vector.multi_reduction <add>, %511, %cst_220 [1] : vector<16x16xf32> to vector<16xf32>
    %513 = vector.shape_cast %512 : vector<16xf32> to vector<16x1xf32>
    %514 = vector.broadcast %513 : vector<16x1xf32> to vector<16x16xf32>
    %515 = arith.divf %511, %514 : vector<16x16xf32>
    %cst_221 = arith.constant dense<0.000000e+00> : vector<16x32xf32>
    %516 = tpu.matmul %515, %504, %cst_221 {dimension_numbers = #tpu.dot_dimension_numbers<[1], [0], [0], [1], [0, 0, 1, 1], [], []>} : vector<16x16xf32>, vector<16x32xf32>, vector<16x32xf32> -> vector<16x32xf32>
    %c1872 = arith.constant 1872 : index
    %c0_222 = arith.constant 0 : index
    %517 = vector.load %arg1[%c1872, %c0_222] : memref<2416x128xf32, #tpu.memory_space<vmem>>, vector<32x8xf32>
    %cst_223 = arith.constant dense<0.000000e+00> : vector<16x8xf32>
    %518 = tpu.matmul %489, %517, %cst_223 {dimension_numbers = #tpu.dot_dimension_numbers<[1], [0], [0], [1], [0, 0, 1, 1], [], []>} : vector<16x32xf32>, vector<32x8xf32>, vector<16x8xf32> -> vector<16x8xf32>
    %c1904 = arith.constant 1904 : index
    %c0_224 = arith.constant 0 : index
    %519 = vector.load %arg1[%c1904, %c0_224] : memref<2416x128xf32, #tpu.memory_space<vmem>>, vector<1x8xf32>
    %520 = vector.broadcast %519 : vector<1x8xf32> to vector<16x8xf32>
    %521 = arith.addf %518, %520 : vector<16x8xf32>
    %c1912 = arith.constant 1912 : index
    %c0_225 = arith.constant 0 : index
    %522 = vector.load %arg1[%c1912, %c0_225] : memref<2416x128xf32, #tpu.memory_space<vmem>>, vector<32x8xf32>
    %cst_226 = arith.constant dense<0.000000e+00> : vector<16x8xf32>
    %523 = tpu.matmul %1, %522, %cst_226 {dimension_numbers = #tpu.dot_dimension_numbers<[1], [0], [0], [1], [0, 0, 1, 1], [], []>} : vector<16x32xf32>, vector<32x8xf32>, vector<16x8xf32> -> vector<16x8xf32>
    %c1944 = arith.constant 1944 : index
    %c0_227 = arith.constant 0 : index
    %524 = vector.load %arg1[%c1944, %c0_227] : memref<2416x128xf32, #tpu.memory_space<vmem>>, vector<1x8xf32>
    %525 = vector.broadcast %524 : vector<1x8xf32> to vector<16x8xf32>
    %526 = arith.addf %523, %525 : vector<16x8xf32>
    %c1952 = arith.constant 1952 : index
    %c0_228 = arith.constant 0 : index
    %527 = vector.load %arg1[%c1952, %c0_228] : memref<2416x128xf32, #tpu.memory_space<vmem>>, vector<32x32xf32>
    %cst_229 = arith.constant dense<0.000000e+00> : vector<16x32xf32>
    %528 = tpu.matmul %1, %527, %cst_229 {dimension_numbers = #tpu.dot_dimension_numbers<[1], [0], [0], [1], [0, 0, 1, 1], [], []>} : vector<16x32xf32>, vector<32x32xf32>, vector<16x32xf32> -> vector<16x32xf32>
    %c1984 = arith.constant 1984 : index
    %c0_230 = arith.constant 0 : index
    %529 = vector.load %arg1[%c1984, %c0_230] : memref<2416x128xf32, #tpu.memory_space<vmem>>, vector<1x32xf32>
    %530 = vector.broadcast %529 : vector<1x32xf32> to vector<16x32xf32>
    %531 = arith.addf %528, %530 : vector<16x32xf32>
    %cst_231 = arith.constant dense<0.000000e+00> : vector<16x16xf32>
    %532 = tpu.matmul %521, %526, %cst_231 {dimension_numbers = #tpu.dot_dimension_numbers<[1], [1], [0], [0], [0, 0, 1, 0], [], []>} : vector<16x8xf32>, vector<16x8xf32>, vector<16x16xf32> -> vector<16x16xf32>
    %533 = arith.addf %532, %3 : vector<16x16xf32>
    %cst_232 = arith.constant dense<0xFF800000> : vector<16xf32>
    %534 = vector.multi_reduction <maximumf>, %533, %cst_232 [1] : vector<16x16xf32> to vector<16xf32>
    %535 = vector.shape_cast %534 : vector<16xf32> to vector<16x1xf32>
    %536 = vector.broadcast %535 : vector<16x1xf32> to vector<16x16xf32>
    %537 = arith.subf %533, %536 : vector<16x16xf32>
    %538 = math.exp %537 : vector<16x16xf32>
    %cst_233 = arith.constant dense<0.000000e+00> : vector<16xf32>
    %539 = vector.multi_reduction <add>, %538, %cst_233 [1] : vector<16x16xf32> to vector<16xf32>
    %540 = vector.shape_cast %539 : vector<16xf32> to vector<16x1xf32>
    %541 = vector.broadcast %540 : vector<16x1xf32> to vector<16x16xf32>
    %542 = arith.divf %538, %541 : vector<16x16xf32>
    %cst_234 = arith.constant dense<0.000000e+00> : vector<16x32xf32>
    %543 = tpu.matmul %542, %531, %cst_234 {dimension_numbers = #tpu.dot_dimension_numbers<[1], [0], [0], [1], [0, 0, 1, 1], [], []>} : vector<16x16xf32>, vector<16x32xf32>, vector<16x32xf32> -> vector<16x32xf32>
    %544 = arith.addf %516, %543 : vector<16x32xf32>
    %c1992 = arith.constant 1992 : index
    %c0_235 = arith.constant 0 : index
    %545 = vector.load %arg1[%c1992, %c0_235] : memref<2416x128xf32, #tpu.memory_space<vmem>>, vector<32x8xf32>
    %cst_236 = arith.constant dense<0.000000e+00> : vector<16x8xf32>
    %546 = tpu.matmul %489, %545, %cst_236 {dimension_numbers = #tpu.dot_dimension_numbers<[1], [0], [0], [1], [0, 0, 1, 1], [], []>} : vector<16x32xf32>, vector<32x8xf32>, vector<16x8xf32> -> vector<16x8xf32>
    %c2024 = arith.constant 2024 : index
    %c0_237 = arith.constant 0 : index
    %547 = vector.load %arg1[%c2024, %c0_237] : memref<2416x128xf32, #tpu.memory_space<vmem>>, vector<1x8xf32>
    %548 = vector.broadcast %547 : vector<1x8xf32> to vector<16x8xf32>
    %549 = arith.addf %546, %548 : vector<16x8xf32>
    %c2032 = arith.constant 2032 : index
    %c0_238 = arith.constant 0 : index
    %550 = vector.load %arg1[%c2032, %c0_238] : memref<2416x128xf32, #tpu.memory_space<vmem>>, vector<32x8xf32>
    %cst_239 = arith.constant dense<0.000000e+00> : vector<16x8xf32>
    %551 = tpu.matmul %1, %550, %cst_239 {dimension_numbers = #tpu.dot_dimension_numbers<[1], [0], [0], [1], [0, 0, 1, 1], [], []>} : vector<16x32xf32>, vector<32x8xf32>, vector<16x8xf32> -> vector<16x8xf32>
    %c2064 = arith.constant 2064 : index
    %c0_240 = arith.constant 0 : index
    %552 = vector.load %arg1[%c2064, %c0_240] : memref<2416x128xf32, #tpu.memory_space<vmem>>, vector<1x8xf32>
    %553 = vector.broadcast %552 : vector<1x8xf32> to vector<16x8xf32>
    %554 = arith.addf %551, %553 : vector<16x8xf32>
    %c2072 = arith.constant 2072 : index
    %c0_241 = arith.constant 0 : index
    %555 = vector.load %arg1[%c2072, %c0_241] : memref<2416x128xf32, #tpu.memory_space<vmem>>, vector<32x32xf32>
    %cst_242 = arith.constant dense<0.000000e+00> : vector<16x32xf32>
    %556 = tpu.matmul %1, %555, %cst_242 {dimension_numbers = #tpu.dot_dimension_numbers<[1], [0], [0], [1], [0, 0, 1, 1], [], []>} : vector<16x32xf32>, vector<32x32xf32>, vector<16x32xf32> -> vector<16x32xf32>
    %c2104 = arith.constant 2104 : index
    %c0_243 = arith.constant 0 : index
    %557 = vector.load %arg1[%c2104, %c0_243] : memref<2416x128xf32, #tpu.memory_space<vmem>>, vector<1x32xf32>
    %558 = vector.broadcast %557 : vector<1x32xf32> to vector<16x32xf32>
    %559 = arith.addf %556, %558 : vector<16x32xf32>
    %cst_244 = arith.constant dense<0.000000e+00> : vector<16x16xf32>
    %560 = tpu.matmul %549, %554, %cst_244 {dimension_numbers = #tpu.dot_dimension_numbers<[1], [1], [0], [0], [0, 0, 1, 0], [], []>} : vector<16x8xf32>, vector<16x8xf32>, vector<16x16xf32> -> vector<16x16xf32>
    %561 = arith.addf %560, %3 : vector<16x16xf32>
    %cst_245 = arith.constant dense<0xFF800000> : vector<16xf32>
    %562 = vector.multi_reduction <maximumf>, %561, %cst_245 [1] : vector<16x16xf32> to vector<16xf32>
    %563 = vector.shape_cast %562 : vector<16xf32> to vector<16x1xf32>
    %564 = vector.broadcast %563 : vector<16x1xf32> to vector<16x16xf32>
    %565 = arith.subf %561, %564 : vector<16x16xf32>
    %566 = math.exp %565 : vector<16x16xf32>
    %cst_246 = arith.constant dense<0.000000e+00> : vector<16xf32>
    %567 = vector.multi_reduction <add>, %566, %cst_246 [1] : vector<16x16xf32> to vector<16xf32>
    %568 = vector.shape_cast %567 : vector<16xf32> to vector<16x1xf32>
    %569 = vector.broadcast %568 : vector<16x1xf32> to vector<16x16xf32>
    %570 = arith.divf %566, %569 : vector<16x16xf32>
    %cst_247 = arith.constant dense<0.000000e+00> : vector<16x32xf32>
    %571 = tpu.matmul %570, %559, %cst_247 {dimension_numbers = #tpu.dot_dimension_numbers<[1], [0], [0], [1], [0, 0, 1, 1], [], []>} : vector<16x16xf32>, vector<16x32xf32>, vector<16x32xf32> -> vector<16x32xf32>
    %572 = arith.addf %544, %571 : vector<16x32xf32>
    %c2112 = arith.constant 2112 : index
    %c0_248 = arith.constant 0 : index
    %573 = vector.load %arg1[%c2112, %c0_248] : memref<2416x128xf32, #tpu.memory_space<vmem>>, vector<32x8xf32>
    %cst_249 = arith.constant dense<0.000000e+00> : vector<16x8xf32>
    %574 = tpu.matmul %489, %573, %cst_249 {dimension_numbers = #tpu.dot_dimension_numbers<[1], [0], [0], [1], [0, 0, 1, 1], [], []>} : vector<16x32xf32>, vector<32x8xf32>, vector<16x8xf32> -> vector<16x8xf32>
    %c2144 = arith.constant 2144 : index
    %c0_250 = arith.constant 0 : index
    %575 = vector.load %arg1[%c2144, %c0_250] : memref<2416x128xf32, #tpu.memory_space<vmem>>, vector<1x8xf32>
    %576 = vector.broadcast %575 : vector<1x8xf32> to vector<16x8xf32>
    %577 = arith.addf %574, %576 : vector<16x8xf32>
    %c2152 = arith.constant 2152 : index
    %c0_251 = arith.constant 0 : index
    %578 = vector.load %arg1[%c2152, %c0_251] : memref<2416x128xf32, #tpu.memory_space<vmem>>, vector<32x8xf32>
    %cst_252 = arith.constant dense<0.000000e+00> : vector<16x8xf32>
    %579 = tpu.matmul %1, %578, %cst_252 {dimension_numbers = #tpu.dot_dimension_numbers<[1], [0], [0], [1], [0, 0, 1, 1], [], []>} : vector<16x32xf32>, vector<32x8xf32>, vector<16x8xf32> -> vector<16x8xf32>
    %c2184 = arith.constant 2184 : index
    %c0_253 = arith.constant 0 : index
    %580 = vector.load %arg1[%c2184, %c0_253] : memref<2416x128xf32, #tpu.memory_space<vmem>>, vector<1x8xf32>
    %581 = vector.broadcast %580 : vector<1x8xf32> to vector<16x8xf32>
    %582 = arith.addf %579, %581 : vector<16x8xf32>
    %c2192 = arith.constant 2192 : index
    %c0_254 = arith.constant 0 : index
    %583 = vector.load %arg1[%c2192, %c0_254] : memref<2416x128xf32, #tpu.memory_space<vmem>>, vector<32x32xf32>
    %cst_255 = arith.constant dense<0.000000e+00> : vector<16x32xf32>
    %584 = tpu.matmul %1, %583, %cst_255 {dimension_numbers = #tpu.dot_dimension_numbers<[1], [0], [0], [1], [0, 0, 1, 1], [], []>} : vector<16x32xf32>, vector<32x32xf32>, vector<16x32xf32> -> vector<16x32xf32>
    %c2224 = arith.constant 2224 : index
    %c0_256 = arith.constant 0 : index
    %585 = vector.load %arg1[%c2224, %c0_256] : memref<2416x128xf32, #tpu.memory_space<vmem>>, vector<1x32xf32>
    %586 = vector.broadcast %585 : vector<1x32xf32> to vector<16x32xf32>
    %587 = arith.addf %584, %586 : vector<16x32xf32>
    %cst_257 = arith.constant dense<0.000000e+00> : vector<16x16xf32>
    %588 = tpu.matmul %577, %582, %cst_257 {dimension_numbers = #tpu.dot_dimension_numbers<[1], [1], [0], [0], [0, 0, 1, 0], [], []>} : vector<16x8xf32>, vector<16x8xf32>, vector<16x16xf32> -> vector<16x16xf32>
    %589 = arith.addf %588, %3 : vector<16x16xf32>
    %cst_258 = arith.constant dense<0xFF800000> : vector<16xf32>
    %590 = vector.multi_reduction <maximumf>, %589, %cst_258 [1] : vector<16x16xf32> to vector<16xf32>
    %591 = vector.shape_cast %590 : vector<16xf32> to vector<16x1xf32>
    %592 = vector.broadcast %591 : vector<16x1xf32> to vector<16x16xf32>
    %593 = arith.subf %589, %592 : vector<16x16xf32>
    %594 = math.exp %593 : vector<16x16xf32>
    %cst_259 = arith.constant dense<0.000000e+00> : vector<16xf32>
    %595 = vector.multi_reduction <add>, %594, %cst_259 [1] : vector<16x16xf32> to vector<16xf32>
    %596 = vector.shape_cast %595 : vector<16xf32> to vector<16x1xf32>
    %597 = vector.broadcast %596 : vector<16x1xf32> to vector<16x16xf32>
    %598 = arith.divf %594, %597 : vector<16x16xf32>
    %cst_260 = arith.constant dense<0.000000e+00> : vector<16x32xf32>
    %599 = tpu.matmul %598, %587, %cst_260 {dimension_numbers = #tpu.dot_dimension_numbers<[1], [0], [0], [1], [0, 0, 1, 1], [], []>} : vector<16x16xf32>, vector<16x32xf32>, vector<16x32xf32> -> vector<16x32xf32>
    %600 = arith.addf %572, %599 : vector<16x32xf32>
    %c2232 = arith.constant 2232 : index
    %c0_261 = arith.constant 0 : index
    %601 = vector.load %arg1[%c2232, %c0_261] : memref<2416x128xf32, #tpu.memory_space<vmem>>, vector<1x32xf32>
    %602 = vector.broadcast %601 : vector<1x32xf32> to vector<16x32xf32>
    %603 = arith.addf %600, %602 : vector<16x32xf32>
    %604 = arith.addf %489, %603 : vector<16x32xf32>
    %c2240 = arith.constant 2240 : index
    %c0_262 = arith.constant 0 : index
    %605 = vector.load %arg1[%c2240, %c0_262] : memref<2416x128xf32, #tpu.memory_space<vmem>>, vector<1x32xf32>
    %c2248 = arith.constant 2248 : index
    %c0_263 = arith.constant 0 : index
    %606 = vector.load %arg1[%c2248, %c0_263] : memref<2416x128xf32, #tpu.memory_space<vmem>>, vector<1x32xf32>
    %cst_264 = arith.constant dense<0.000000e+00> : vector<16xf32>
    %607 = vector.multi_reduction <add>, %604, %cst_264 [1] : vector<16x32xf32> to vector<16xf32>
    %608 = vector.shape_cast %607 : vector<16xf32> to vector<16x1xf32>
    %cst_265 = arith.constant 3.200000e+01 : f32
    %609 = vector.broadcast %cst_265 : f32 to vector<16x1xf32>
    %610 = arith.divf %608, %609 : vector<16x1xf32>
    %611 = vector.broadcast %610 : vector<16x1xf32> to vector<16x32xf32>
    %612 = arith.subf %604, %611 : vector<16x32xf32>
    %613 = arith.mulf %612, %612 : vector<16x32xf32>
    %cst_266 = arith.constant dense<0.000000e+00> : vector<16xf32>
    %614 = vector.multi_reduction <add>, %613, %cst_266 [1] : vector<16x32xf32> to vector<16xf32>
    %615 = vector.shape_cast %614 : vector<16xf32> to vector<16x1xf32>
    %cst_267 = arith.constant 3.200000e+01 : f32
    %616 = vector.broadcast %cst_267 : f32 to vector<16x1xf32>
    %617 = arith.divf %615, %616 : vector<16x1xf32>
    %618 = vector.broadcast %610 : vector<16x1xf32> to vector<16x32xf32>
    %619 = arith.subf %604, %618 : vector<16x32xf32>
    %cst_268 = arith.constant 9.99999974E-6 : f32
    %620 = vector.broadcast %cst_268 : f32 to vector<16x1xf32>
    %621 = arith.addf %617, %620 : vector<16x1xf32>
    %622 = math.rsqrt %621 : vector<16x1xf32>
    %623 = vector.broadcast %622 : vector<16x1xf32> to vector<16x32xf32>
    %624 = arith.mulf %619, %623 : vector<16x32xf32>
    %625 = vector.broadcast %605 : vector<1x32xf32> to vector<16x32xf32>
    %626 = arith.mulf %624, %625 : vector<16x32xf32>
    %627 = vector.broadcast %606 : vector<1x32xf32> to vector<16x32xf32>
    %628 = arith.addf %626, %627 : vector<16x32xf32>
    %c2256 = arith.constant 2256 : index
    %c0_269 = arith.constant 0 : index
    %629 = vector.load %arg1[%c2256, %c0_269] : memref<2416x128xf32, #tpu.memory_space<vmem>>, vector<32x64xf32>
    %cst_270 = arith.constant dense<0.000000e+00> : vector<16x64xf32>
    %630 = tpu.matmul %628, %629, %cst_270 {dimension_numbers = #tpu.dot_dimension_numbers<[1], [0], [0], [1], [0, 0, 1, 1], [], []>} : vector<16x32xf32>, vector<32x64xf32>, vector<16x64xf32> -> vector<16x64xf32>
    %c2288 = arith.constant 2288 : index
    %c0_271 = arith.constant 0 : index
    %631 = vector.load %arg1[%c2288, %c0_271] : memref<2416x128xf32, #tpu.memory_space<vmem>>, vector<1x64xf32>
    %632 = vector.broadcast %631 : vector<1x64xf32> to vector<16x64xf32>
    %633 = arith.addf %630, %632 : vector<16x64xf32>
    %cst_272 = arith.constant 5.000000e-01 : f32
    %634 = vector.broadcast %cst_272 : f32 to vector<16x64xf32>
    %635 = arith.mulf %634, %633 : vector<16x64xf32>
    %cst_273 = arith.constant 0.707106769 : f32
    %636 = vector.broadcast %cst_273 : f32 to vector<16x64xf32>
    %637 = arith.mulf %633, %636 : vector<16x64xf32>
    %638 = math.erf %637 : vector<16x64xf32>
    %cst_274 = arith.constant 1.000000e+00 : f32
    %639 = vector.broadcast %cst_274 : f32 to vector<16x64xf32>
    %640 = arith.addf %639, %638 : vector<16x64xf32>
    %641 = arith.mulf %635, %640 : vector<16x64xf32>
    %c2296 = arith.constant 2296 : index
    %c0_275 = arith.constant 0 : index
    %642 = vector.load %arg1[%c2296, %c0_275] : memref<2416x128xf32, #tpu.memory_space<vmem>>, vector<64x32xf32>
    %cst_276 = arith.constant dense<0.000000e+00> : vector<16x32xf32>
    %643 = tpu.matmul %641, %642, %cst_276 {dimension_numbers = #tpu.dot_dimension_numbers<[1], [0], [0], [1], [0, 0, 1, 1], [], []>} : vector<16x64xf32>, vector<64x32xf32>, vector<16x32xf32> -> vector<16x32xf32>
    %c2360 = arith.constant 2360 : index
    %c0_277 = arith.constant 0 : index
    %644 = vector.load %arg1[%c2360, %c0_277] : memref<2416x128xf32, #tpu.memory_space<vmem>>, vector<1x32xf32>
    %645 = vector.broadcast %644 : vector<1x32xf32> to vector<16x32xf32>
    %646 = arith.addf %643, %645 : vector<16x32xf32>
    %647 = arith.addf %628, %646 : vector<16x32xf32>
    %c2368 = arith.constant 2368 : index
    %c0_278 = arith.constant 0 : index
    %648 = vector.load %arg1[%c2368, %c0_278] : memref<2416x128xf32, #tpu.memory_space<vmem>>, vector<1x32xf32>
    %c2376 = arith.constant 2376 : index
    %c0_279 = arith.constant 0 : index
    %649 = vector.load %arg1[%c2376, %c0_279] : memref<2416x128xf32, #tpu.memory_space<vmem>>, vector<1x32xf32>
    %cst_280 = arith.constant dense<0.000000e+00> : vector<16xf32>
    %650 = vector.multi_reduction <add>, %647, %cst_280 [1] : vector<16x32xf32> to vector<16xf32>
    %651 = vector.shape_cast %650 : vector<16xf32> to vector<16x1xf32>
    %cst_281 = arith.constant 3.200000e+01 : f32
    %652 = vector.broadcast %cst_281 : f32 to vector<16x1xf32>
    %653 = arith.divf %651, %652 : vector<16x1xf32>
    %654 = vector.broadcast %653 : vector<16x1xf32> to vector<16x32xf32>
    %655 = arith.subf %647, %654 : vector<16x32xf32>
    %656 = arith.mulf %655, %655 : vector<16x32xf32>
    %cst_282 = arith.constant dense<0.000000e+00> : vector<16xf32>
    %657 = vector.multi_reduction <add>, %656, %cst_282 [1] : vector<16x32xf32> to vector<16xf32>
    %658 = vector.shape_cast %657 : vector<16xf32> to vector<16x1xf32>
    %cst_283 = arith.constant 3.200000e+01 : f32
    %659 = vector.broadcast %cst_283 : f32 to vector<16x1xf32>
    %660 = arith.divf %658, %659 : vector<16x1xf32>
    %661 = vector.broadcast %653 : vector<16x1xf32> to vector<16x32xf32>
    %662 = arith.subf %647, %661 : vector<16x32xf32>
    %cst_284 = arith.constant 9.99999974E-6 : f32
    %663 = vector.broadcast %cst_284 : f32 to vector<16x1xf32>
    %664 = arith.addf %660, %663 : vector<16x1xf32>
    %665 = math.rsqrt %664 : vector<16x1xf32>
    %666 = vector.broadcast %665 : vector<16x1xf32> to vector<16x32xf32>
    %667 = arith.mulf %662, %666 : vector<16x32xf32>
    %668 = vector.broadcast %648 : vector<1x32xf32> to vector<16x32xf32>
    %669 = arith.mulf %667, %668 : vector<16x32xf32>
    %670 = vector.broadcast %649 : vector<1x32xf32> to vector<16x32xf32>
    %671 = arith.addf %669, %670 : vector<16x32xf32>
    %c2384 = arith.constant 2384 : index
    %c0_285 = arith.constant 0 : index
    %672 = vector.load %arg1[%c2384, %c0_285] : memref<2416x128xf32, #tpu.memory_space<vmem>>, vector<32x128xf32>
    %cst_286 = arith.constant dense<0.000000e+00> : vector<16x128xf32>
    %673 = tpu.matmul %671, %672, %cst_286 {dimension_numbers = #tpu.dot_dimension_numbers<[1], [0], [0], [1], [0, 0, 1, 1], [], []>} : vector<16x32xf32>, vector<32x128xf32>, vector<16x128xf32> -> vector<16x128xf32>
    %c0_287 = arith.constant 0 : index
    %c0_288 = arith.constant 0 : index
    %674 = vector.load %arg2[%c0_287, %c0_288] : memref<16x128xf32, #tpu.memory_space<vmem>>, vector<16x128xf32>
    tpu.vector_store %arg2[%c0_287, %c0_288], %673 {strides = array<i32>} : memref<16x128xf32, #tpu.memory_space<vmem>>, vector<16x128xf32>,
    return
  }
}

</mosaic_0001>

<llo_original>
// kernel: eq.1
$region0: #{eq.1}
  %s0 = inlined_call_operand.hbm [shape: s32[2,8], index: 0, kind: input, shape index: {}]
  %s1 = inlined_call_operand.vmem [shape: s32[16], index: 1, kind: output, shape index: {}]
  $region1: #{eq.1} parent=0
    #allocation0 [shape = 'u8[1024]{0}', space=vmem, size = 0x400, scoped, tag = 'operand span for operand 0']
    #allocation1 [shape = 's32[1]{0}', space=sflag, size = 0x4, scoped, tag = 'scoped memory for eq.1']
    #allocation2 [shape = 'u8[4096]{0}', space=vmem, size = 0x1000, scoped, tag = 'scoped mem for output reshape']
    #allocation3 [shape = 'u8[4096]{0}', space=vmem, size = 0x1000, scoped, tag = 'scoped mem for input reshape']
    %2 = vsyncpa [#allocation1], 0
    %s4 = ssub.s32 32, 32
    %5 = vsyncadd [#allocation1], %s4
    %s7 = sshll.u32 [#allocation0], 4
    %s8 = int_to_ptr.vmem [resolvable:$true] %s7
    %10 = dma.hbm_to_vmem [thread:$0]  %s0, 32, %s8, [#allocation1]
    %11 = dma.done [#allocation1], 32
    %s13 = sshllo.u32 0, 2
    %v14 = vld [vmem:[#allocation0] sm:%s13]
    %15 = vst [vmem:[#allocation3] sm:%s13] %v14
    %v16 = vld [vmem:[#allocation3] sm:$0x1]
    %vm17 = vcmask 64512
    %18 = vst.msk [vmem:[#allocation2] sm:$0x1] %vm17, %v16
    %s19 = scalar_lea.vmem [#allocation3], 1
    %v20 = vld [vmem:[%s19] sm:$0x1]
    %21 = vrot.lane.b32.xlu0 %v20, 8
    %v22 = vpop.permute.xlu0 %21
    %vm23 = vcmask 130112
    %24 = vst.msk [vmem:[#allocation2] sm:$0x1] %vm23, %v22
    %s26 = sshllo.u32 0, 1
    %v28 = vld [vmem:[#allocation2] sm:%s26]
    %s29 = sshllo.u32 0, 1
    %30 = vst [vmem:[%s1] sm:%s29] %v28
    %31 = vsyncpa [#allocation1], 1

// kernel: marian_decoder_forward.1
$region0: #{marian_decoder_forward.1}
  #allocation0 [shape = 'u32[]', space=smem, size = 0x4, offset = 0x4, fixed_abs, tag = 'smem constant byte address 0x4 - core index']
  #allocation1 [shape = 'u32[144,128]{1,0:T(1,128)}', space=vmem, size = 0x12000, scoped, tag = 'internal scratch']
  %s0 = inlined_call_operand.vmem [shape: f32[64,128], index: 0, kind: input, shape index: {}]
  %s1 = inlined_call_operand.hbm [shape: f32[2416,128], index: 1, kind: input, shape index: {}]
  %s2 = inlined_call_operand.vmem [shape: f32[16,128], index: 2, kind: output, shape index: {}]
  %s3 = sld [smem:[#allocation0]]
  $region22: #{marian_decoder_forward.1} parent=0
    _
  %s5 = ssub.s32 1, %s3
  %s6 = scalar_select 0, %s5, %s3
  $region1: #{marian_decoder_forward.1} parent=0
    #allocation2 [shape = 'u8[1236992]{0}', space=vmem, size = 0x12e000, scoped, tag = 'input window, operand 1, single buffered']
    #allocation3 [shape = 's32[1]{0}', space=sflag, size = 0x4, scoped, tag = 'scoped memory for marian_decoder_forward.1']
    %7 = vsyncpa [#allocation3], 0
    // Predicated region
    $region2: #{marian_decoder_forward.1} parent=1 // pred_check
      _
    $region3: #{marian_decoder_forward.1} parent=1 // pred_check_branch
      %9 = sbr.rel (0) target = $region5
    $region4: #{marian_decoder_forward.1} parent=1 // pred_region
      _
    $region5: #{marian_decoder_forward.1} parent=1 // pred_fallthru
      _
    // Predicated region
    $region6: #{marian_decoder_forward.1} parent=1 // pred_check
      _
    $region7: #{marian_decoder_forward.1} parent=1 // pred_check_branch
      %11 = sbr.rel (0) target = $region9
    $region8: #{marian_decoder_forward.1} parent=1 // pred_region
      %s13 = ssub.s32 38656, 38656
      %14 = vsyncadd [#allocation3], %s13
      %s15 = sshll.u32 [#allocation2], 4
      %s16 = int_to_ptr.vmem [resolvable:$true] %s15
      %21 = dma.hbm_to_vmem [thread:$0]  %s1, 38656, %s16, [#allocation3], 128, 128, 8
    $region9: #{marian_decoder_forward.1} parent=1 // pred_fallthru
      _
    // Predicated region
    $region10: #{marian_decoder_forward.1} parent=1 // pred_check
      _
    $region11: #{marian_decoder_forward.1} parent=1 // pred_check_branch
      %23 = sbr.rel (0) target = $region13
    $region12: #{marian_decoder_forward.1} parent=1 // pred_region
      %24 = dma.done [#allocation3], 38656
    $region13: #{marian_decoder_forward.1} parent=1 // pred_fallthru
      _
    %v25 = vld [vmem:[%s0] sm:$0xff]
    %v26 = vld [vmem:[%s0 + $0x8] sm:$0xff]
    %v27 = vld [vmem:[%s0 + $0x10] sm:$0xff]
    %v28 = vld [vmem:[%s0 + $0x18] sm:$0xff]
    %v29 = vld [vmem:[%s0 + $0x20] sm:$0xff]
    %v30 = vld [vmem:[%s0 + $0x28] sm:$0xff]
    %v31 = vld [vmem:[%s0 + $0x30] sm:$0xff]
    %v32 = vld [vmem:[%s0 + $0x38] sm:$0xff]
    %v33 = vld [vmem:[#allocation2] sm:$0xff]
    %v34 = vld [vmem:[#allocation2 + $0x8] sm:$0xff]
    %v35 = vld [vmem:[#allocation2 + $0x10] sm:$0xff]
    %v36 = vld [vmem:[#allocation2 + $0x18] sm:$0xff]
    %v37 = vld [vmem:[#allocation2 + $0x20] sm:$0xff]
    %v38 = vld [vmem:[#allocation2 + $0x28] sm:$0xff]
    %v39 = vld [vmem:[#allocation2 + $0x30] sm:$0xff]
    %v40 = vld [vmem:[#allocation2 + $0x38] sm:$0xff]
    %v41 = vld [vmem:[#allocation2 + $0x40] sm:$0xff]
    %v42 = vld [vmem:[#allocation2 + $0x48] sm:$0xff]
    %v43 = vld [vmem:[#allocation2 + $0x50] sm:$0xff]
    %v44 = vld [vmem:[#allocation2 + $0x58] sm:$0xff]
    %vm45 = vcmask 785408
    %v47 = vsel %vm45, %v25, 0
    %v50 = vsel %vm45, %v26, 0
    %52 = vmatprep.subr.mxu0 0.0
    %53 = vmatpush1.msra.mxu0 %v33
    %54 = vmatprep.subr.mxu0 0.0
    %55 = vmatpush1.msra.mxu0 %v34
    %56 = vmatprep.subr.mxu0 0.0
    %57 = vmatpush1.msra.mxu0 %v35
    %58 = vmatprep.subr.mxu0 0.0
    %59 = vmatpush1.msra.mxu0 %v36
    %60 = vmatprep.subr.mxu0 0.0
    %61 = vmatpush1.msra.mxu0 %v37
    %62 = vmatprep.subr.mxu0 0.0
    %63 = vmatpush1.msra.mxu0 %v38
    %64 = vmatprep.subr.mxu0 0.0
    %65 = vmatpush1.msra.mxu0 %v39
    %66 = vmatprep.subr.mxu0 0.0
    %67 = vmatpush1.msra.mxu0 %v40
    %68 = vmatprep.subr.mxu0 0.0
    %69 = vmatpush1.msra.mxu0 %v41
    %70 = vmatprep.subr.mxu0 0.0
    %71 = vmatpush1.msra.mxu0 %v42
    %72 = vmatprep.subr.mxu0 0.0
    %73 = vmatpush1.msra.mxu0 %v43
    %74 = vmatprep.subr.mxu0 0.0
    %75 = vmatpush1.msra.mxu0 %v44
    %76 = vmatprep.subr.mxu0 0.0
    %77 = vmatpush1.msra.mxu0 0.0
    %78 = vmatprep.subr.mxu0 0.0
    %79 = vmatpush1.msra.mxu0 0.0
    %80 = vmatprep.subr.mxu0 0.0
    %81 = vmatpush1.msra.mxu0 0.0
    %82 = vmatprep.subr.mxu0 0.0
    %83 = vmatpush1.msra.mxu0 0.0
    %84 = vmatprep.subr.mxu0 0.0
    %85 = vmatpush1.msra.mxu0 0.0
    %86 = vmatprep.subr.mxu0 0.0
    %87 = vmatpush1.msra.mxu0 0.0
    %88 = vmatprep.subr.mxu0 0.0
    %89 = vmatpush1.msra.mxu0 0.0
    %90 = vmatprep.subr.mxu0 0.0
    %91 = vmatpush1.msra.mxu0 0.0
    %92 = vmatprep.subr.mxu0 0.0
    %93 = vmatpush1.msra.mxu0 0.0
    %94 = vmatprep.subr.mxu0 0.0
    %95 = vmatpush1.msra.mxu0 0.0
    %96 = vmatprep.subr.mxu0 0.0
    %97 = vmatpush1.msra.mxu0 0.0
    %98 = vmatprep.subr.mxu0 0.0
    %99 = vmatpush1.msra.mxu0 0.0
    %100 = vmatprep.subr.mxu0 0.0
    %101 = vmatpush1.msra.mxu0 0.0
    %102 = vmatprep.subr.mxu0 0.0
    %103 = vmatpush1.msra.mxu0 0.0
    %104 = vmatprep.subr.mxu0 0.0
    %105 = vmatpush1.msra.mxu0 0.0
    %106 = vmatprep.subr.mxu0 0.0
    %107 = vmatpush1.msra.mxu0 0.0
    %108 = vmatprep.subr.mxu0 0.0
    %109 = vmatpush1.msra.mxu0 0.0
    %110 = vmatprep.subr.mxu0 0.0
    %111 = vmatpush1.msra.mxu0 0.0
    %112 = vmatprep.subr.mxu0 0.0
    %113 = vmatpush1.msra.mxu0 0.0
    %114 = vmatprep.subr.mxu0 0.0
    %115 = vmatpush1.msra.mxu0 0.0
    %116 = vmatprep.mubr.f32.mxu0 0.0
    %117 = vmatmul.mubr.f32.gmra.mrb[0].mxu0 %v47
    %v118 = vpop.f32.mrb[0].mxu0
    %v119 = vadd.f32 0.0, %v118
    %v120 = vpop.f32.mrb[0].mxu0
    %121 = vmatprep.mubr.f32.mxu0 0.0
    %122 = vmatmul.mubr.f32.gmra.mrb[0].mxu0 %v50
    %v123 = vpop.f32.mrb[0].mxu0
    %v124 = vadd.f32 0.0, %v123
    %v125 = vpop.f32.mrb[0].mxu0
    %126 = vdwg.mxu0
    %v127 = vld [vmem:[#allocation2 + $0x60] sm:$0x1]
    %v128 = vld [vmem:[#allocation2 + $0x68] sm:$0x1]
    %vm129 = vcmask 261120
    %v130 = vsel %vm129, %v119, 0.0
    %131 = vadd.xlane.f32.xlu0 %v130
    %v132 = vpop.xlane.xlu0 %131
    %v133 = vsel %vm129, %v124, 0.0
    %134 = vadd.xlane.f32.xlu0 %v133
    %v135 = vpop.xlane.xlu0 %134
    %v136 = vrcp.pop 32.0
    %v137 = vmul.f32 %v132, %v136
    %v138 = vmul.f32 %v135, %v136
    %v139 = vsub.f32 %v119, %v137
    %v140 = vsub.f32 %v124, %v138
    %v141 = vmul.f32 %v139, %v139
    %v142 = vmul.f32 %v140, %v140
    %v143 = vsel %vm129, %v141, 0.0
    %144 = vadd.xlane.f32.xlu0 %v143
    %v145 = vpop.xlane.xlu0 %144
    %v146 = vsel %vm129, %v142, 0.0
    %147 = vadd.xlane.f32.xlu0 %v146
    %v148 = vpop.xlane.xlu0 %147
    %v149 = vmul.f32 %v145, %v136
    %v150 = vmul.f32 %v148, %v136
    %v151 = vadd.f32 %v149, 1e-05
    %v152 = vadd.f32 %v150, 1e-05
    %v153 = vrsqrt.pop %v151
    %v154 = vrsqrt.pop %v152
    %v155 = vmul.f32 %v139, %v153
    %v156 = vmul.f32 %v140, %v154
    %v157 = vlaneseq
    %v158 = vshrl.u32 %v157, 7
    %v159 = vsub.s32 0, %v158
    %v160 = vrot.slane %v127, %v159
    %v161 = vmul.f32 %v155, %v160
    %v162 = vmul.f32 %v156, %v160
    %v163 = vlaneseq
    %v164 = vshrl.u32 %v163, 7
    %v165 = vsub.s32 0, %v164
    %v166 = vrot.slane %v128, %v165
    %v167 = vadd.f32 %v161, %v166
    %v168 = vadd.f32 %v162, %v166
    %v169 = vld [vmem:[#allocation2 + $0x70] sm:$0xff]
    %v170 = vld [vmem:[#allocation2 + $0x78] sm:$0xff]
    %v171 = vld [vmem:[#allocation2 + $0x80] sm:$0xff]
    %v172 = vld [vmem:[#allocation2 + $0x88] sm:$0xff]
    %v173 = vld [vmem:[#allocation2 + $0x90] sm:$0x1]
    %v174 = vlaneseq
    %v175 = vshrl.u32 %v174, 7
    %v176 = vsub.s32 0, %v175
    %v177 = vrot.slane %v173, %v176
    %v179 = vsel %vm129, %v167, 0
    %v182 = vsel %vm129, %v168, 0
    %184 = vmatprep.subr.mxu0 0.0
    %185 = vmatpush1.msra.mxu0 %v169
    %186 = vmatprep.subr.mxu0 0.0
    %187 = vmatpush1.msra.mxu0 %v170
    %188 = vmatprep.subr.mxu0 0.0
    %189 = vmatpush1.msra.mxu0 %v171
    %190 = vmatprep.subr.mxu0 0.0
    %191 = vmatpush1.msra.mxu0 %v172
    %192 = vmatprep.subr.mxu0 0.0
    %193 = vmatpush1.msra.mxu0 0.0
    %194 = vmatprep.subr.mxu0 0.0
    %195 = vmatpush1.msra.mxu0 0.0
    %196 = vmatprep.subr.mxu0 0.0
    %197 = vmatpush1.msra.mxu0 0.0
    %198 = vmatprep.subr.mxu0 0.0
    %199 = vmatpush1.msra.mxu0 0.0
    %200 = vmatprep.subr.mxu0 0.0
    %201 = vmatpush1.msra.mxu0 0.0
    %202 = vmatprep.subr.mxu0 0.0
    %203 = vmatpush1.msra.mxu0 0.0
    %204 = vmatprep.subr.mxu0 0.0
    %205 = vmatpush1.msra.mxu0 0.0
    %206 = vmatprep.subr.mxu0 0.0
    %207 = vmatpush1.msra.mxu0 0.0
    %208 = vmatprep.subr.mxu0 0.0
    %209 = vmatpush1.msra.mxu0 0.0
    %210 = vmatprep.subr.mxu0 0.0
    %211 = vmatpush1.msra.mxu0 0.0
    %212 = vmatprep.subr.mxu0 0.0
    %213 = vmatpush1.msra.mxu0 0.0
    %214 = vmatprep.subr.mxu0 0.0
    %215 = vmatpush1.msra.mxu0 0.0
    %216 = vmatprep.subr.mxu0 0.0
    %217 = vmatpush1.msra.mxu0 0.0
    %218 = vmatprep.subr.mxu0 0.0
    %219 = vmatpush1.msra.mxu0 0.0
    %220 = vmatprep.subr.mxu0 0.0
    %221 = vmatpush1.msra.mxu0 0.0
    %222 = vmatprep.subr.mxu0 0.0
    %223 = vmatpush1.msra.mxu0 0.0
    %224 = vmatprep.subr.mxu0 0.0
    %225 = vmatpush1.msra.mxu0 0.0
    %226 = vmatprep.subr.mxu0 0.0
    %227 = vmatpush1.msra.mxu0 0.0
    %228 = vmatprep.subr.mxu0 0.0
    %229 = vmatpush1.msra.mxu0 0.0
    %230 = vmatprep.subr.mxu0 0.0
    %231 = vmatpush1.msra.mxu0 0.0
    %232 = vmatprep.subr.mxu0 0.0
    %233 = vmatpush1.msra.mxu0 0.0
    %234 = vmatprep.subr.mxu0 0.0
    %235 = vmatpush1.msra.mxu0 0.0
    %236 = vmatprep.subr.mxu0 0.0
    %237 = vmatpush1.msra.mxu0 0.0
    %238 = vmatprep.subr.mxu0 0.0
    %239 = vmatpush1.msra.mxu0 0.0
    %240 = vmatprep.subr.mxu0 0.0
    %241 = vmatpush1.msra.mxu0 0.0
    %242 = vmatprep.subr.mxu0 0.0
    %243 = vmatpush1.msra.mxu0 0.0
    %244 = vmatprep.subr.mxu0 0.0
    %245 = vmatpush1.msra.mxu0 0.0
    %246 = vmatprep.subr.mxu0 0.0
    %247 = vmatpush1.msra.mxu0 0.0
    %248 = vmatprep.mubr.f32.mxu0 0.0
    %249 = vmatmul.mubr.f32.gmra.mrb[0].mxu0 %v179
    %v250 = vpop.f32.mrb[0].mxu0
    %v251 = vadd.f32 %v177, %v250
    %v252 = vpop.f32.mrb[0].mxu0
    %253 = vmatprep.mubr.f32.mxu0 0.0
    %254 = vmatmul.mubr.f32.gmra.mrb[0].mxu0 %v182
    %v255 = vpop.f32.mrb[0].mxu0
    %v256 = vadd.f32 %v177, %v255
    %v257 = vpop.f32.mrb[0].mxu0
    %258 = vdwg.mxu0
    %v259 = vld [vmem:[#allocation2 + $0x98] sm:$0xff]
    %v260 = vld [vmem:[#allocation2 + $0xa0] sm:$0xff]
    %v261 = vld [vmem:[#allocation2 + $0xa8] sm:$0xff]
    %v262 = vld [vmem:[#allocation2 + $0xb0] sm:$0xff]
    %v263 = vld [vmem:[#allocation2 + $0xb8] sm:$0x1]
    %v264 = vlaneseq
    %v265 = vshrl.u32 %v264, 7
    %v266 = vsub.s32 0, %v265
    %v267 = vrot.slane %v263, %v266
    %268 = vmatprep.subr.mxu0 0.0
    %269 = vmatpush1.msra.mxu0 %v259
    %270 = vmatprep.subr.mxu0 0.0
    %271 = vmatpush1.msra.mxu0 %v260
    %272 = vmatprep.subr.mxu0 0.0
    %273 = vmatpush1.msra.mxu0 %v261
    %274 = vmatprep.subr.mxu0 0.0
    %275 = vmatpush1.msra.mxu0 %v262
    %276 = vmatprep.subr.mxu0 0.0
    %277 = vmatpush1.msra.mxu0 0.0
    %278 = vmatprep.subr.mxu0 0.0
    %279 = vmatpush1.msra.mxu0 0.0
    %280 = vmatprep.subr.mxu0 0.0
    %281 = vmatpush1.msra.mxu0 0.0
    %282 = vmatprep.subr.mxu0 0.0
    %283 = vmatpush1.msra.mxu0 0.0
    %284 = vmatprep.subr.mxu0 0.0
    %285 = vmatpush1.msra.mxu0 0.0
    %286 = vmatprep.subr.mxu0 0.0
    %287 = vmatpush1.msra.mxu0 0.0
    %288 = vmatprep.subr.mxu0 0.0
    %289 = vmatpush1.msra.mxu0 0.0
    %290 = vmatprep.subr.mxu0 0.0
    %291 = vmatpush1.msra.mxu0 0.0
    %292 = vmatprep.subr.mxu0 0.0
    %293 = vmatpush1.msra.mxu0 0.0
    %294 = vmatprep.subr.mxu0 0.0
    %295 = vmatpush1.msra.mxu0 0.0
    %296 = vmatprep.subr.mxu0 0.0
    %297 = vmatpush1.msra.mxu0 0.0
    %298 = vmatprep.subr.mxu0 0.0
    %299 = vmatpush1.msra.mxu0 0.0
    %300 = vmatprep.subr.mxu0 0.0
    %301 = vmatpush1.msra.mxu0 0.0
    %302 = vmatprep.subr.mxu0 0.0
    %303 = vmatpush1.msra.mxu0 0.0
    %304 = vmatprep.subr.mxu0 0.0
    %305 = vmatpush1.msra.mxu0 0.0
    %306 = vmatprep.subr.mxu0 0.0
    %307 = vmatpush1.msra.mxu0 0.0
    %308 = vmatprep.subr.mxu0 0.0
    %309 = vmatpush1.msra.mxu0 0.0
    %310 = vmatprep.subr.mxu0 0.0
    %311 = vmatpush1.msra.mxu0 0.0
    %312 = vmatprep.subr.mxu0 0.0
    %313 = vmatpush1.msra.mxu0 0.0
    %314 = vmatprep.subr.mxu0 0.0
    %315 = vmatpush1.msra.mxu0 0.0
    %316 = vmatprep.subr.mxu0 0.0
    %317 = vmatpush1.msra.mxu0 0.0
    %318 = vmatprep.subr.mxu0 0.0
    %319 = vmatpush1.msra.mxu0 0.0
    %320 = vmatprep.subr.mxu0 0.0
    %321 = vmatpush1.msra.mxu0 0.0
    %322 = vmatprep.subr.mxu0 0.0
    %323 = vmatpush1.msra.mxu0 0.0
    %324 = vmatprep.subr.mxu0 0.0
    %325 = vmatpush1.msra.mxu0 0.0
    %326 = vmatprep.subr.mxu0 0.0
    %327 = vmatpush1.msra.mxu0 0.0
    %328 = vmatprep.subr.mxu0 0.0
    %329 = vmatpush1.msra.mxu0 0.0
    %330 = vmatprep.subr.mxu0 0.0
    %331 = vmatpush1.msra.mxu0 0.0
    %332 = vmatprep.mubr.f32.mxu0 0.0
    %333 = vmatmul.mubr.f32.gmra.mrb[0].mxu0 %v179
    %v334 = vpop.f32.mrb[0].mxu0
    %v335 = vadd.f32 %v267, %v334
    %v336 = vpop.f32.mrb[0].mxu0
    %337 = vmatprep.mubr.f32.mxu0 0.0
    %338 = vmatmul.mubr.f32.gmra.mrb[0].mxu0 %v182
    %v339 = vpop.f32.mrb[0].mxu0
    %v340 = vadd.f32 %v267, %v339
    %v341 = vpop.f32.mrb[0].mxu0
    %342 = vdwg.mxu0
    %v343 = vld [vmem:[#allocation2 + $0xc0] sm:$0xff]
    %v344 = vld [vmem:[#allocation2 + $0xc8] sm:$0xff]
    %v345 = vld [vmem:[#allocation2 + $0xd0] sm:$0xff]
    %v346 = vld [vmem:[#allocation2 + $0xd8] sm:$0xff]
    %v347 = vld [vmem:[#allocation2 + $0xe0] sm:$0x1]
    %v348 = vlaneseq
    %v349 = vshrl.u32 %v348, 7
    %v350 = vsub.s32 0, %v349
    %v351 = vrot.slane %v347, %v350
    %352 = vmatprep.subr.mxu0 0.0
    %353 = vmatpush1.msra.mxu0 %v343
    %354 = vmatprep.subr.mxu0 0.0
    %355 = vmatpush1.msra.mxu0 %v344
    %356 = vmatprep.subr.mxu0 0.0
    %357 = vmatpush1.msra.mxu0 %v345
    %358 = vmatprep.subr.mxu0 0.0
    %359 = vmatpush1.msra.mxu0 %v346
    %360 = vmatprep.subr.mxu0 0.0
    %361 = vmatpush1.msra.mxu0 0.0
    %362 = vmatprep.subr.mxu0 0.0
    %363 = vmatpush1.msra.mxu0 0.0
    %364 = vmatprep.subr.mxu0 0.0
    %365 = vmatpush1.msra.mxu0 0.0
    %366 = vmatprep.subr.mxu0 0.0
    %367 = vmatpush1.msra.mxu0 0.0
    %368 = vmatprep.subr.mxu0 0.0
    %369 = vmatpush1.msra.mxu0 0.0
    %370 = vmatprep.subr.mxu0 0.0
    %371 = vmatpush1.msra.mxu0 0.0
    %372 = vmatprep.subr.mxu0 0.0
    %373 = vmatpush1.msra.mxu0 0.0
    %374 = vmatprep.subr.mxu0 0.0
    %375 = vmatpush1.msra.mxu0 0.0
    %376 = vmatprep.subr.mxu0 0.0
    %377 = vmatpush1.msra.mxu0 0.0
    %378 = vmatprep.subr.mxu0 0.0
    %379 = vmatpush1.msra.mxu0 0.0
    %380 = vmatprep.subr.mxu0 0.0
    %381 = vmatpush1.msra.mxu0 0.0
    %382 = vmatprep.subr.mxu0 0.0
    %383 = vmatpush1.msra.mxu0 0.0
    %384 = vmatprep.subr.mxu0 0.0
    %385 = vmatpush1.msra.mxu0 0.0
    %386 = vmatprep.subr.mxu0 0.0
    %387 = vmatpush1.msra.mxu0 0.0
    %388 = vmatprep.subr.mxu0 0.0
    %389 = vmatpush1.msra.mxu0 0.0
    %390 = vmatprep.subr.mxu0 0.0
    %391 = vmatpush1.msra.mxu0 0.0
    %392 = vmatprep.subr.mxu0 0.0
    %393 = vmatpush1.msra.mxu0 0.0
    %394 = vmatprep.subr.mxu0 0.0
    %395 = vmatpush1.msra.mxu0 0.0
    %396 = vmatprep.subr.mxu0 0.0
    %397 = vmatpush1.msra.mxu0 0.0
    %398 = vmatprep.subr.mxu0 0.0
    %399 = vmatpush1.msra.mxu0 0.0
    %400 = vmatprep.subr.mxu0 0.0
    %401 = vmatpush1.msra.mxu0 0.0
    %402 = vmatprep.subr.mxu0 0.0
    %403 = vmatpush1.msra.mxu0 0.0
    %404 = vmatprep.subr.mxu0 0.0
    %405 = vmatpush1.msra.mxu0 0.0
    %406 = vmatprep.subr.mxu0 0.0
    %407 = vmatpush1.msra.mxu0 0.0
    %408 = vmatprep.subr.mxu0 0.0
    %409 = vmatpush1.msra.mxu0 0.0
    %410 = vmatprep.subr.mxu0 0.0
    %411 = vmatpush1.msra.mxu0 0.0
    %412 = vmatprep.subr.mxu0 0.0
    %413 = vmatpush1.msra.mxu0 0.0
    %414 = vmatprep.subr.mxu0 0.0
    %415 = vmatpush1.msra.mxu0 0.0
    %416 = vmatprep.mubr.f32.mxu0 0.0
    %417 = vmatmul.mubr.f32.gmra.mrb[0].mxu0 %v179
    %v418 = vpop.f32.mrb[0].mxu0
    %v419 = vadd.f32 %v351, %v418
    %v420 = vpop.f32.mrb[0].mxu0
    %421 = vmatprep.mubr.f32.mxu0 0.0
    %422 = vmatmul.mubr.f32.gmra.mrb[0].mxu0 %v182
    %v423 = vpop.f32.mrb[0].mxu0
    %v424 = vadd.f32 %v351, %v423
    %v425 = vpop.f32.mrb[0].mxu0
    %426 = vdwg.mxu0
    %vm427 = vcmask 64512
    %v429 = vsel %vm427, %v251, 0
    %v432 = vsel %vm427, %v256, 0
    %v435 = vsel %vm427, %v335, 0
    %v438 = vsel %vm427, %v340, 0
    %440 = vmatprep.subr.mxu0 0.0
    %441 = vmatpush1.xpose.msra.mxu0 %v435
    %442 = vmatprep.subr.mxu0 0.0
    %443 = vmatpush1.xpose.msra.mxu0 %v438
    %444 = vmatprep.subr.mxu0 0.0
    %445 = vmatpush1.xpose.msra.mxu0 0.0
    %446 = vmatprep.subr.mxu0 0.0
    %447 = vmatpush1.xpose.msra.mxu0 0.0
    %448 = vmatprep.subr.mxu0 0.0
    %449 = vmatpush1.xpose.msra.mxu0 0.0
    %450 = vmatprep.subr.mxu0 0.0
    %451 = vmatpush1.xpose.msra.mxu0 0.0
    %452 = vmatprep.subr.mxu0 0.0
    %453 = vmatpush1.xpose.msra.mxu0 0.0
    %454 = vmatprep.subr.mxu0 0.0
    %455 = vmatpush1.xpose.msra.mxu0 0.0
    %456 = vmatprep.subr.mxu0 0.0
    %457 = vmatpush1.xpose.msra.mxu0 0.0
    %458 = vmatprep.subr.mxu0 0.0
    %459 = vmatpush1.xpose.msra.mxu0 0.0
    %460 = vmatprep.subr.mxu0 0.0
    %461 = vmatpush1.xpose.msra.mxu0 0.0
    %462 = vmatprep.subr.mxu0 0.0
    %463 = vmatpush1.xpose.msra.mxu0 0.0
    %464 = vmatprep.subr.mxu0 0.0
    %465 = vmatpush1.xpose.msra.mxu0 0.0
    %466 = vmatprep.subr.mxu0 0.0
    %467 = vmatpush1.xpose.msra.mxu0 0.0
    %468 = vmatprep.subr.mxu0 0.0
    %469 = vmatpush1.xpose.msra.mxu0 0.0
    %470 = vmatprep.subr.mxu0 0.0
    %471 = vmatpush1.xpose.msra.mxu0 0.0
    %472 = vmatprep.subr.mxu0 0.0
    %473 = vmatpush1.xpose.msra.mxu0 0.0
    %474 = vmatprep.subr.mxu0 0.0
    %475 = vmatpush1.xpose.msra.mxu0 0.0
    %476 = vmatprep.subr.mxu0 0.0
    %477 = vmatpush1.xpose.msra.mxu0 0.0
    %478 = vmatprep.subr.mxu0 0.0
    %479 = vmatpush1.xpose.msra.mxu0 0.0
    %480 = vmatprep.subr.mxu0 0.0
    %481 = vmatpush1.xpose.msra.mxu0 0.0
    %482 = vmatprep.subr.mxu0 0.0
    %483 = vmatpush1.xpose.msra.mxu0 0.0
    %484 = vmatprep.subr.mxu0 0.0
    %485 = vmatpush1.xpose.msra.mxu0 0.0
    %486 = vmatprep.subr.mxu0 0.0
    %487 = vmatpush1.xpose.msra.mxu0 0.0
    %488 = vmatprep.subr.mxu0 0.0
    %489 = vmatpush1.xpose.msra.mxu0 0.0
    %490 = vmatprep.subr.mxu0 0.0
    %491 = vmatpush1.xpose.msra.mxu0 0.0
    %492 = vmatprep.subr.mxu0 0.0
    %493 = vmatpush1.xpose.msra.mxu0 0.0
    %494 = vmatprep.subr.mxu0 0.0
    %495 = vmatpush1.xpose.msra.mxu0 0.0
    %496 = vmatprep.subr.mxu0 0.0
    %497 = vmatpush1.xpose.msra.mxu0 0.0
    %498 = vmatprep.subr.mxu0 0.0
    %499 = vmatpush1.xpose.msra.mxu0 0.0
    %500 = vmatprep.subr.mxu0 0.0
    %501 = vmatpush1.xpose.msra.mxu0 0.0
    %502 = vmatprep.subr.mxu0 0.0
    %503 = vmatpush1.xpose.msra.mxu0 0.0
    %504 = vmatprep.mubr.f32.mxu0 0.0
    %505 = vmatmul.mubr.f32.gmra.mrb[0].mxu0 %v429
    %v506 = vpop.f32.mrb[0].mxu0
    %v507 = vadd.f32 %v29, %v506
    %v508 = vpop.f32.mrb[0].mxu0
    %509 = vmatprep.mubr.f32.mxu0 0.0
    %510 = vmatmul.mubr.f32.gmra.mrb[0].mxu0 %v432
    %v511 = vpop.f32.mrb[0].mxu0
    %v512 = vadd.f32 %v30, %v511
    %v513 = vpop.f32.mrb[0].mxu0
    %514 = vdwg.mxu0
    %vm515 = vcmask 130048
    %v516 = vsel %vm515, %v507, -inf
    %517 = vmax.xlane.f32.xlu0 %v516
    %v518 = vpop.xlane.xlu0 %517
    %v519 = vsel %vm515, %v512, -inf
    %520 = vmax.xlane.f32.xlu0 %v519
    %v521 = vpop.xlane.xlu0 %520
    %v522 = vsub.f32 %v507, %v518
    %v523 = vsub.f32 %v512, %v521
    %v524 = vmul.f32 %v522, 1.442695
    %v525 = vpow.pop %v524
    %v526 = vmul.f32 %v523, 1.442695
    %v527 = vpow.pop %v526
    %v528 = vsel %vm515, %v525, 0.0
    %529 = vadd.xlane.f32.xlu0 %v528
    %v530 = vpop.xlane.xlu0 %529
    %v531 = vsel %vm515, %v527, 0.0
    %532 = vadd.xlane.f32.xlu0 %v531
    %v533 = vpop.xlane.xlu0 %532
    %v534 = vrcp.pop %v530
    %v535 = vmul.f32 %v525, %v534
    %v536 = vrcp.pop %v533
    %v537 = vmul.f32 %v527, %v536
    %v538 = vld [vmem:[#allocation2 + $0xe8] sm:$0xff]
    %v539 = vld [vmem:[#allocation2 + $0xf0] sm:$0xff]
    %v540 = vld [vmem:[#allocation2 + $0xf8] sm:$0xff]
    %v541 = vld [vmem:[#allocation2 + $0x100] sm:$0xff]
    %v542 = vld [vmem:[#allocation2 + $0x108] sm:$0x1]
    %v543 = vlaneseq
    %v544 = vshrl.u32 %v543, 7
    %v545 = vsub.s32 0, %v544
    %v546 = vrot.slane %v542, %v545
    %547 = vmatprep.subr.mxu0 0.0
    %548 = vmatpush1.msra.mxu0 %v538
    %549 = vmatprep.subr.mxu0 0.0
    %550 = vmatpush1.msra.mxu0 %v539
    %551 = vmatprep.subr.mxu0 0.0
    %552 = vmatpush1.msra.mxu0 %v540
    %553 = vmatprep.subr.mxu0 0.0
    %554 = vmatpush1.msra.mxu0 %v541
    %555 = vmatprep.subr.mxu0 0.0
    %556 = vmatpush1.msra.mxu0 0.0
    %557 = vmatprep.subr.mxu0 0.0
    %558 = vmatpush1.msra.mxu0 0.0
    %559 = vmatprep.subr.mxu0 0.0
    %560 = vmatpush1.msra.mxu0 0.0
    %561 = vmatprep.subr.mxu0 0.0
    %562 = vmatpush1.msra.mxu0 0.0
    %563 = vmatprep.subr.mxu0 0.0
    %564 = vmatpush1.msra.mxu0 0.0
    %565 = vmatprep.subr.mxu0 0.0
    %566 = vmatpush1.msra.mxu0 0.0
    %567 = vmatprep.subr.mxu0 0.0
    %568 = vmatpush1.msra.mxu0 0.0
    %569 = vmatprep.subr.mxu0 0.0
    %570 = vmatpush1.msra.mxu0 0.0
    %571 = vmatprep.subr.mxu0 0.0
    %572 = vmatpush1.msra.mxu0 0.0
    %573 = vmatprep.subr.mxu0 0.0
    %574 = vmatpush1.msra.mxu0 0.0
    %575 = vmatprep.subr.mxu0 0.0
    %576 = vmatpush1.msra.mxu0 0.0
    %577 = vmatprep.subr.mxu0 0.0
    %578 = vmatpush1.msra.mxu0 0.0
    %579 = vmatprep.subr.mxu0 0.0
    %580 = vmatpush1.msra.mxu0 0.0
    %581 = vmatprep.subr.mxu0 0.0
    %582 = vmatpush1.msra.mxu0 0.0
    %583 = vmatprep.subr.mxu0 0.0
    %584 = vmatpush1.msra.mxu0 0.0
    %585 = vmatprep.subr.mxu0 0.0
    %586 = vmatpush1.msra.mxu0 0.0
    %587 = vmatprep.subr.mxu0 0.0
    %588 = vmatpush1.msra.mxu0 0.0
    %589 = vmatprep.subr.mxu0 0.0
    %590 = vmatpush1.msra.mxu0 0.0
    %591 = vmatprep.subr.mxu0 0.0
    %592 = vmatpush1.msra.mxu0 0.0
    %593 = vmatprep.subr.mxu0 0.0
    %594 = vmatpush1.msra.mxu0 0.0
    %595 = vmatprep.subr.mxu0 0.0
    %596 = vmatpush1.msra.mxu0 0.0
    %597 = vmatprep.subr.mxu0 0.0
    %598 = vmatpush1.msra.mxu0 0.0
    %599 = vmatprep.subr.mxu0 0.0
    %600 = vmatpush1.msra.mxu0 0.0
    %601 = vmatprep.subr.mxu0 0.0
    %602 = vmatpush1.msra.mxu0 0.0
    %603 = vmatprep.subr.mxu0 0.0
    %604 = vmatpush1.msra.mxu0 0.0
    %605 = vmatprep.subr.mxu0 0.0
    %606 = vmatpush1.msra.mxu0 0.0
    %607 = vmatprep.subr.mxu0 0.0
    %608 = vmatpush1.msra.mxu0 0.0
    %609 = vmatprep.subr.mxu0 0.0
    %610 = vmatpush1.msra.mxu0 0.0
    %611 = vmatprep.mubr.f32.mxu0 0.0
    %612 = vmatmul.mubr.f32.gmra.mrb[0].mxu0 %v179
    %v613 = vpop.f32.mrb[0].mxu0
    %v614 = vadd.f32 %v546, %v613
    %v615 = vpop.f32.mrb[0].mxu0
    %616 = vmatprep.mubr.f32.mxu0 0.0
    %617 = vmatmul.mubr.f32.gmra.mrb[0].mxu0 %v182
    %v618 = vpop.f32.mrb[0].mxu0
    %v619 = vadd.f32 %v546, %v618
    %v620 = vpop.f32.mrb[0].mxu0
    %621 = vdwg.mxu0
    %v622 = vld [vmem:[#allocation2 + $0x110] sm:$0xff]
    %v623 = vld [vmem:[#allocation2 + $0x118] sm:$0xff]
    %v624 = vld [vmem:[#allocation2 + $0x120] sm:$0xff]
    %v625 = vld [vmem:[#allocation2 + $0x128] sm:$0xff]
    %v626 = vld [vmem:[#allocation2 + $0x130] sm:$0x1]
    %v627 = vlaneseq
    %v628 = vshrl.u32 %v627, 7
    %v629 = vsub.s32 0, %v628
    %v630 = vrot.slane %v626, %v629
    %631 = vmatprep.subr.mxu0 0.0
    %632 = vmatpush1.msra.mxu0 %v622
    %633 = vmatprep.subr.mxu0 0.0
    %634 = vmatpush1.msra.mxu0 %v623
    %635 = vmatprep.subr.mxu0 0.0
    %636 = vmatpush1.msra.mxu0 %v624
    %637 = vmatprep.subr.mxu0 0.0
    %638 = vmatpush1.msra.mxu0 %v625
    %639 = vmatprep.subr.mxu0 0.0
    %640 = vmatpush1.msra.mxu0 0.0
    %641 = vmatprep.subr.mxu0 0.0
    %642 = vmatpush1.msra.mxu0 0.0
    %643 = vmatprep.subr.mxu0 0.0
    %644 = vmatpush1.msra.mxu0 0.0
    %645 = vmatprep.subr.mxu0 0.0
    %646 = vmatpush1.msra.mxu0 0.0
    %647 = vmatprep.subr.mxu0 0.0
    %648 = vmatpush1.msra.mxu0 0.0
    %649 = vmatprep.subr.mxu0 0.0
    %650 = vmatpush1.msra.mxu0 0.0
    %651 = vmatprep.subr.mxu0 0.0
    %652 = vmatpush1.msra.mxu0 0.0
    %653 = vmatprep.subr.mxu0 0.0
    %654 = vmatpush1.msra.mxu0 0.0
    %655 = vmatprep.subr.mxu0 0.0
    %656 = vmatpush1.msra.mxu0 0.0
    %657 = vmatprep.subr.mxu0 0.0
    %658 = vmatpush1.msra.mxu0 0.0
    %659 = vmatprep.subr.mxu0 0.0
    %660 = vmatpush1.msra.mxu0 0.0
    %661 = vmatprep.subr.mxu0 0.0
    %662 = vmatpush1.msra.mxu0 0.0
    %663 = vmatprep.subr.mxu0 0.0
    %664 = vmatpush1.msra.mxu0 0.0
    %665 = vmatprep.subr.mxu0 0.0
    %666 = vmatpush1.msra.mxu0 0.0
    %667 = vmatprep.subr.mxu0 0.0
    %668 = vmatpush1.msra.mxu0 0.0
    %669 = vmatprep.subr.mxu0 0.0
    %670 = vmatpush1.msra.mxu0 0.0
    %671 = vmatprep.subr.mxu0 0.0
    %672 = vmatpush1.msra.mxu0 0.0
    %673 = vmatprep.subr.mxu0 0.0
    %674 = vmatpush1.msra.mxu0 0.0
    %675 = vmatprep.subr.mxu0 0.0
    %676 = vmatpush1.msra.mxu0 0.0
    %677 = vmatprep.subr.mxu0 0.0
    %678 = vmatpush1.msra.mxu0 0.0
    %679 = vmatprep.subr.mxu0 0.0
    %680 = vmatpush1.msra.mxu0 0.0
    %681 = vmatprep.subr.mxu0 0.0
    %682 = vmatpush1.msra.mxu0 0.0
    %683 = vmatprep.subr.mxu0 0.0
    %684 = vmatpush1.msra.mxu0 0.0
    %685 = vmatprep.subr.mxu0 0.0
    %686 = vmatpush1.msra.mxu0 0.0
    %687 = vmatprep.subr.mxu0 0.0
    %688 = vmatpush1.msra.mxu0 0.0
    %689 = vmatprep.subr.mxu0 0.0
    %690 = vmatpush1.msra.mxu0 0.0
    %691 = vmatprep.subr.mxu0 0.0
    %692 = vmatpush1.msra.mxu0 0.0
    %693 = vmatprep.subr.mxu0 0.0
    %694 = vmatpush1.msra.mxu0 0.0
    %695 = vmatprep.mubr.f32.mxu0 0.0
    %696 = vmatmul.mubr.f32.gmra.mrb[0].mxu0 %v179
    %v697 = vpop.f32.mrb[0].mxu0
    %v698 = vadd.f32 %v630, %v697
    %v699 = vpop.f32.mrb[0].mxu0
    %700 = vmatprep.mubr.f32.mxu0 0.0
    %701 = vmatmul.mubr.f32.gmra.mrb[0].mxu0 %v182
    %v702 = vpop.f32.mrb[0].mxu0
    %v703 = vadd.f32 %v630, %v702
    %v704 = vpop.f32.mrb[0].mxu0
    %705 = vdwg.mxu0
    %v706 = vld [vmem:[#allocation2 + $0x138] sm:$0xff]
    %v707 = vld [vmem:[#allocation2 + $0x140] sm:$0xff]
    %v708 = vld [vmem:[#allocation2 + $0x148] sm:$0xff]
    %v709 = vld [vmem:[#allocation2 + $0x150] sm:$0xff]
    %v710 = vld [vmem:[#allocation2 + $0x158] sm:$0x1]
    %v711 = vlaneseq
    %v712 = vshrl.u32 %v711, 7
    %v713 = vsub.s32 0, %v712
    %v714 = vrot.slane %v710, %v713
    %715 = vmatprep.subr.mxu0 0.0
    %716 = vmatpush1.msra.mxu0 %v706
    %717 = vmatprep.subr.mxu0 0.0
    %718 = vmatpush1.msra.mxu0 %v707
    %719 = vmatprep.subr.mxu0 0.0
    %720 = vmatpush1.msra.mxu0 %v708
    %721 = vmatprep.subr.mxu0 0.0
    %722 = vmatpush1.msra.mxu0 %v709
    %723 = vmatprep.subr.mxu0 0.0
    %724 = vmatpush1.msra.mxu0 0.0
    %725 = vmatprep.subr.mxu0 0.0
    %726 = vmatpush1.msra.mxu0 0.0
    %727 = vmatprep.subr.mxu0 0.0
    %728 = vmatpush1.msra.mxu0 0.0
    %729 = vmatprep.subr.mxu0 0.0
    %730 = vmatpush1.msra.mxu0 0.0
    %731 = vmatprep.subr.mxu0 0.0
    %732 = vmatpush1.msra.mxu0 0.0
    %733 = vmatprep.subr.mxu0 0.0
    %734 = vmatpush1.msra.mxu0 0.0
    %735 = vmatprep.subr.mxu0 0.0
    %736 = vmatpush1.msra.mxu0 0.0
    %737 = vmatprep.subr.mxu0 0.0
    %738 = vmatpush1.msra.mxu0 0.0
    %739 = vmatprep.subr.mxu0 0.0
    %740 = vmatpush1.msra.mxu0 0.0
    %741 = vmatprep.subr.mxu0 0.0
    %742 = vmatpush1.msra.mxu0 0.0
    %743 = vmatprep.subr.mxu0 0.0
    %744 = vmatpush1.msra.mxu0 0.0
    %745 = vmatprep.subr.mxu0 0.0
    %746 = vmatpush1.msra.mxu0 0.0
    %747 = vmatprep.subr.mxu0 0.0
    %748 = vmatpush1.msra.mxu0 0.0
    %749 = vmatprep.subr.mxu0 0.0
    %750 = vmatpush1.msra.mxu0 0.0
    %751 = vmatprep.subr.mxu0 0.0
    %752 = vmatpush1.msra.mxu0 0.0
    %753 = vmatprep.subr.mxu0 0.0
    %754 = vmatpush1.msra.mxu0 0.0
    %755 = vmatprep.subr.mxu0 0.0
    %756 = vmatpush1.msra.mxu0 0.0
    %757 = vmatprep.subr.mxu0 0.0
    %758 = vmatpush1.msra.mxu0 0.0
    %759 = vmatprep.subr.mxu0 0.0
    %760 = vmatpush1.msra.mxu0 0.0
    %761 = vmatprep.subr.mxu0 0.0
    %762 = vmatpush1.msra.mxu0 0.0
    %763 = vmatprep.subr.mxu0 0.0
    %764 = vmatpush1.msra.mxu0 0.0
    %765 = vmatprep.subr.mxu0 0.0
    %766 = vmatpush1.msra.mxu0 0.0
    %767 = vmatprep.subr.mxu0 0.0
    %768 = vmatpush1.msra.mxu0 0.0
    %769 = vmatprep.subr.mxu0 0.0
    %770 = vmatpush1.msra.mxu0 0.0
    %771 = vmatprep.subr.mxu0 0.0
    %772 = vmatpush1.msra.mxu0 0.0
    %773 = vmatprep.subr.mxu0 0.0
    %774 = vmatpush1.msra.mxu0 0.0
    %775 = vmatprep.subr.mxu0 0.0
    %776 = vmatpush1.msra.mxu0 0.0
    %777 = vmatprep.subr.mxu0 0.0
    %778 = vmatpush1.msra.mxu0 0.0
    %779 = vmatprep.mubr.f32.mxu0 0.0
    %780 = vmatmul.mubr.f32.gmra.mrb[0].mxu0 %v179
    %v781 = vpop.f32.mrb[0].mxu0
    %v782 = vadd.f32 %v714, %v781
    %v783 = vpop.f32.mrb[0].mxu0
    %784 = vmatprep.mubr.f32.mxu0 0.0
    %785 = vmatmul.mubr.f32.gmra.mrb[0].mxu0 %v182
    %v786 = vpop.f32.mrb[0].mxu0
    %v787 = vadd.f32 %v714, %v786
    %v788 = vpop.f32.mrb[0].mxu0
    %789 = vdwg.mxu0
    %v791 = vsel %vm427, %v614, 0
    %v794 = vsel %vm427, %v619, 0
    %v797 = vsel %vm427, %v698, 0
    %v800 = vsel %vm427, %v703, 0
    %802 = vmatprep.subr.mxu0 0.0
    %803 = vmatpush1.xpose.msra.mxu0 %v797
    %804 = vmatprep.subr.mxu0 0.0
    %805 = vmatpush1.xpose.msra.mxu0 %v800
    %806 = vmatprep.subr.mxu0 0.0
    %807 = vmatpush1.xpose.msra.mxu0 0.0
    %808 = vmatprep.subr.mxu0 0.0
    %809 = vmatpush1.xpose.msra.mxu0 0.0
    %810 = vmatprep.subr.mxu0 0.0
    %811 = vmatpush1.xpose.msra.mxu0 0.0
    %812 = vmatprep.subr.mxu0 0.0
    %813 = vmatpush1.xpose.msra.mxu0 0.0
    %814 = vmatprep.subr.mxu0 0.0
    %815 = vmatpush1.xpose.msra.mxu0 0.0
    %816 = vmatprep.subr.mxu0 0.0
    %817 = vmatpush1.xpose.msra.mxu0 0.0
    %818 = vmatprep.subr.mxu0 0.0
    %819 = vmatpush1.xpose.msra.mxu0 0.0
    %820 = vmatprep.subr.mxu0 0.0
    %821 = vmatpush1.xpose.msra.mxu0 0.0
    %822 = vmatprep.subr.mxu0 0.0
    %823 = vmatpush1.xpose.msra.mxu0 0.0
    %824 = vmatprep.subr.mxu0 0.0
    %825 = vmatpush1.xpose.msra.mxu0 0.0
    %826 = vmatprep.subr.mxu0 0.0
    %827 = vmatpush1.xpose.msra.mxu0 0.0
    %828 = vmatprep.subr.mxu0 0.0
    %829 = vmatpush1.xpose.msra.mxu0 0.0
    %830 = vmatprep.subr.mxu0 0.0
    %831 = vmatpush1.xpose.msra.mxu0 0.0
    %832 = vmatprep.subr.mxu0 0.0
    %833 = vmatpush1.xpose.msra.mxu0 0.0
    %834 = vmatprep.subr.mxu0 0.0
    %835 = vmatpush1.xpose.msra.mxu0 0.0
    %836 = vmatprep.subr.mxu0 0.0
    %837 = vmatpush1.xpose.msra.mxu0 0.0
    %838 = vmatprep.subr.mxu0 0.0
    %839 = vmatpush1.xpose.msra.mxu0 0.0
    %840 = vmatprep.subr.mxu0 0.0
    %841 = vmatpush1.xpose.msra.mxu0 0.0
    %842 = vmatprep.subr.mxu0 0.0
    %843 = vmatpush1.xpose.msra.mxu0 0.0
    %844 = vmatprep.subr.mxu0 0.0
    %845 = vmatpush1.xpose.msra.mxu0 0.0
    %846 = vmatprep.subr.mxu0 0.0
    %847 = vmatpush1.xpose.msra.mxu0 0.0
    %848 = vmatprep.subr.mxu0 0.0
    %849 = vmatpush1.xpose.msra.mxu0 0.0
    %850 = vmatprep.subr.mxu0 0.0
    %851 = vmatpush1.xpose.msra.mxu0 0.0
    %852 = vmatprep.subr.mxu0 0.0
    %853 = vmatpush1.xpose.msra.mxu0 0.0
    %854 = vmatprep.subr.mxu0 0.0
    %855 = vmatpush1.xpose.msra.mxu0 0.0
    %856 = vmatprep.subr.mxu0 0.0
    %857 = vmatpush1.xpose.msra.mxu0 0.0
    %858 = vmatprep.subr.mxu0 0.0
    %859 = vmatpush1.xpose.msra.mxu0 0.0
    %860 = vmatprep.subr.mxu0 0.0
    %861 = vmatpush1.xpose.msra.mxu0 0.0
    %862 = vmatprep.subr.mxu0 0.0
    %863 = vmatpush1.xpose.msra.mxu0 0.0
    %864 = vmatprep.subr.mxu0 0.0
    %865 = vmatpush1.xpose.msra.mxu0 0.0
    %866 = vmatprep.mubr.f32.mxu0 0.0
    %867 = vmatmul.mubr.f32.gmra.mrb[0].mxu0 %v791
    %v868 = vpop.f32.mrb[0].mxu0
    %v869 = vadd.f32 %v29, %v868
    %v870 = vpop.f32.mrb[0].mxu0
    %871 = vmatprep.mubr.f32.mxu0 0.0
    %872 = vmatmul.mubr.f32.gmra.mrb[0].mxu0 %v794
    %v873 = vpop.f32.mrb[0].mxu0
    %v874 = vadd.f32 %v30, %v873
    %v875 = vpop.f32.mrb[0].mxu0
    %876 = vdwg.mxu0
    %v877 = vsel %vm515, %v869, -inf
    %878 = vmax.xlane.f32.xlu0 %v877
    %v879 = vpop.xlane.xlu0 %878
    %v880 = vsel %vm515, %v874, -inf
    %881 = vmax.xlane.f32.xlu0 %v880
    %v882 = vpop.xlane.xlu0 %881
    %v883 = vsub.f32 %v869, %v879
    %v884 = vsub.f32 %v874, %v882
    %v885 = vmul.f32 %v883, 1.442695
    %v886 = vpow.pop %v885
    %v887 = vmul.f32 %v884, 1.442695
    %v888 = vpow.pop %v887
    %v889 = vsel %vm515, %v886, 0.0
    %890 = vadd.xlane.f32.xlu0 %v889
    %v891 = vpop.xlane.xlu0 %890
    %v892 = vsel %vm515, %v888, 0.0
    %893 = vadd.xlane.f32.xlu0 %v892
    %v894 = vpop.xlane.xlu0 %893
    %v895 = vrcp.pop %v891
    %v896 = vmul.f32 %v886, %v895
    %v897 = vrcp.pop %v894
    %v898 = vmul.f32 %v888, %v897
    %v900 = vsel %vm515, %v896, 0
    %v903 = vsel %vm515, %v898, 0
    %905 = vmatprep.subr.mxu0 0.0
    %906 = vmatpush1.msra.mxu0 %v782
    %907 = vmatprep.subr.mxu0 0.0
    %908 = vmatpush1.msra.mxu0 %v787
    %909 = vmatprep.subr.mxu0 0.0
    %910 = vmatpush1.msra.mxu0 0.0
    %911 = vmatprep.subr.mxu0 0.0
    %912 = vmatpush1.msra.mxu0 0.0
    %913 = vmatprep.subr.mxu0 0.0
    %914 = vmatpush1.msra.mxu0 0.0
    %915 = vmatprep.subr.mxu0 0.0
    %916 = vmatpush1.msra.mxu0 0.0
    %917 = vmatprep.subr.mxu0 0.0
    %918 = vmatpush1.msra.mxu0 0.0
    %919 = vmatprep.subr.mxu0 0.0
    %920 = vmatpush1.msra.mxu0 0.0
    %921 = vmatprep.subr.mxu0 0.0
    %922 = vmatpush1.msra.mxu0 0.0
    %923 = vmatprep.subr.mxu0 0.0
    %924 = vmatpush1.msra.mxu0 0.0
    %925 = vmatprep.subr.mxu0 0.0
    %926 = vmatpush1.msra.mxu0 0.0
    %927 = vmatprep.subr.mxu0 0.0
    %928 = vmatpush1.msra.mxu0 0.0
    %929 = vmatprep.subr.mxu0 0.0
    %930 = vmatpush1.msra.mxu0 0.0
    %931 = vmatprep.subr.mxu0 0.0
    %932 = vmatpush1.msra.mxu0 0.0
    %933 = vmatprep.subr.mxu0 0.0
    %934 = vmatpush1.msra.mxu0 0.0
    %935 = vmatprep.subr.mxu0 0.0
    %936 = vmatpush1.msra.mxu0 0.0
    %937 = vmatprep.subr.mxu0 0.0
    %938 = vmatpush1.msra.mxu0 0.0
    %939 = vmatprep.subr.mxu0 0.0
    %940 = vmatpush1.msra.mxu0 0.0
    %941 = vmatprep.subr.mxu0 0.0
    %942 = vmatpush1.msra.mxu0 0.0
    %943 = vmatprep.subr.mxu0 0.0
    %944 = vmatpush1.msra.mxu0 0.0
    %945 = vmatprep.subr.mxu0 0.0
    %946 = vmatpush1.msra.mxu0 0.0
    %947 = vmatprep.subr.mxu0 0.0
    %948 = vmatpush1.msra.mxu0 0.0
    %949 = vmatprep.subr.mxu0 0.0
    %950 = vmatpush1.msra.mxu0 0.0
    %951 = vmatprep.subr.mxu0 0.0
    %952 = vmatpush1.msra.mxu0 0.0
    %953 = vmatprep.subr.mxu0 0.0
    %954 = vmatpush1.msra.mxu0 0.0
    %955 = vmatprep.subr.mxu0 0.0
    %956 = vmatpush1.msra.mxu0 0.0
    %957 = vmatprep.subr.mxu0 0.0
    %958 = vmatpush1.msra.mxu0 0.0
    %959 = vmatprep.subr.mxu0 0.0
    %960 = vmatpush1.msra.mxu0 0.0
    %961 = vmatprep.subr.mxu0 0.0
    %962 = vmatpush1.msra.mxu0 0.0
    %963 = vmatprep.subr.mxu0 0.0
    %964 = vmatpush1.msra.mxu0 0.0
    %965 = vmatprep.subr.mxu0 0.0
    %966 = vmatpush1.msra.mxu0 0.0
    %967 = vmatprep.subr.mxu0 0.0
    %968 = vmatpush1.msra.mxu0 0.0
    %969 = vmatprep.mubr.f32.mxu0 0.0
    %970 = vmatmul.mubr.f32.gmra.mrb[0].mxu0 %v900
    %v971 = vpop.f32.mrb[0].mxu0
    %v972 = vadd.f32 0.0, %v971
    %v973 = vpop.f32.mrb[0].mxu0
    %974 = vmatprep.mubr.f32.mxu0 0.0
    %975 = vmatmul.mubr.f32.gmra.mrb[0].mxu0 %v903
    %v976 = vpop.f32.mrb[0].mxu0
    %v977 = vadd.f32 0.0, %v976
    %v978 = vpop.f32.mrb[0].mxu0
    %979 = vdwg.mxu0
    %v981 = vsel %vm515, %v535, 0
    %v984 = vsel %vm515, %v537, 0
    %986 = vmatprep.subr.mxu0 0.0
    %987 = vmatpush1.msra.mxu0 %v419
    %988 = vmatprep.subr.mxu0 0.0
    %989 = vmatpush1.msra.mxu0 %v424
    %990 = vmatprep.subr.mxu0 0.0
    %991 = vmatpush1.msra.mxu0 0.0
    %992 = vmatprep.subr.mxu0 0.0
    %993 = vmatpush1.msra.mxu0 0.0
    %994 = vmatprep.subr.mxu0 0.0
    %995 = vmatpush1.msra.mxu0 0.0
    %996 = vmatprep.subr.mxu0 0.0
    %997 = vmatpush1.msra.mxu0 0.0
    %998 = vmatprep.subr.mxu0 0.0
    %999 = vmatpush1.msra.mxu0 0.0
    %1000 = vmatprep.subr.mxu0 0.0
    %1001 = vmatpush1.msra.mxu0 0.0
    %1002 = vmatprep.subr.mxu0 0.0
    %1003 = vmatpush1.msra.mxu0 0.0
    %1004 = vmatprep.subr.mxu0 0.0
    %1005 = vmatpush1.msra.mxu0 0.0
    %1006 = vmatprep.subr.mxu0 0.0
    %1007 = vmatpush1.msra.mxu0 0.0
    %1008 = vmatprep.subr.mxu0 0.0
    %1009 = vmatpush1.msra.mxu0 0.0
    %1010 = vmatprep.subr.mxu0 0.0
    %1011 = vmatpush1.msra.mxu0 0.0
    %1012 = vmatprep.subr.mxu0 0.0
    %1013 = vmatpush1.msra.mxu0 0.0
    %1014 = vmatprep.subr.mxu0 0.0
    %1015 = vmatpush1.msra.mxu0 0.0
    %1016 = vmatprep.subr.mxu0 0.0
    %1017 = vmatpush1.msra.mxu0 0.0
    %1018 = vmatprep.subr.mxu0 0.0
    %1019 = vmatpush1.msra.mxu0 0.0
    %1020 = vmatprep.subr.mxu0 0.0
    %1021 = vmatpush1.msra.mxu0 0.0
    %1022 = vmatprep.subr.mxu0 0.0
    %1023 = vmatpush1.msra.mxu0 0.0
    %1024 = vmatprep.subr.mxu0 0.0
    %1025 = vmatpush1.msra.mxu0 0.0
    %1026 = vmatprep.subr.mxu0 0.0
    %1027 = vmatpush1.msra.mxu0 0.0
    %1028 = vmatprep.subr.mxu0 0.0
    %1029 = vmatpush1.msra.mxu0 0.0
    %1030 = vmatprep.subr.mxu0 0.0
    %1031 = vmatpush1.msra.mxu0 0.0
    %1032 = vmatprep.subr.mxu0 0.0
    %1033 = vmatpush1.msra.mxu0 0.0
    %1034 = vmatprep.subr.mxu0 0.0
    %1035 = vmatpush1.msra.mxu0 0.0
    %1036 = vmatprep.subr.mxu0 0.0
    %1037 = vmatpush1.msra.mxu0 0.0
    %1038 = vmatprep.subr.mxu0 0.0
    %1039 = vmatpush1.msra.mxu0 0.0
    %1040 = vmatprep.subr.mxu0 0.0
    %1041 = vmatpush1.msra.mxu0 0.0
    %1042 = vmatprep.subr.mxu0 0.0
    %1043 = vmatpush1.msra.mxu0 0.0
    %1044 = vmatprep.subr.mxu0 0.0
    %1045 = vmatpush1.msra.mxu0 0.0
    %1046 = vmatprep.subr.mxu0 0.0
    %1047 = vmatpush1.msra.mxu0 0.0
    %1048 = vmatprep.subr.mxu0 0.0
    %1049 = vmatpush1.msra.mxu0 0.0
    %1050 = vmatprep.mubr.f32.mxu0 0.0
    %1051 = vmatmul.mubr.f32.gmra.mrb[0].mxu0 %v981
    %v1052 = vpop.f32.mrb[0].mxu0
    %v1053 = vadd.f32 %v972, %v1052
    %v1054 = vpop.f32.mrb[0].mxu0
    %1055 = vmatprep.mubr.f32.mxu0 0.0
    %1056 = vmatmul.mubr.f32.gmra.mrb[0].mxu0 %v984
    %v1057 = vpop.f32.mrb[0].mxu0
    %v1058 = vadd.f32 %v977, %v1057
    %v1059 = vpop.f32.mrb[0].mxu0
    %1060 = vdwg.mxu0
    %v1061 = vld [vmem:[#allocation2 + $0x160] sm:$0xff]
    %v1062 = vld [vmem:[#allocation2 + $0x168] sm:$0xff]
    %v1063 = vld [vmem:[#allocation2 + $0x170] sm:$0xff]
    %v1064 = vld [vmem:[#allocation2 + $0x178] sm:$0xff]
    %v1065 = vld [vmem:[#allocation2 + $0x180] sm:$0x1]
    %v1066 = vlaneseq
    %v1067 = vshrl.u32 %v1066, 7
    %v1068 = vsub.s32 0, %v1067
    %v1069 = vrot.slane %v1065, %v1068
    %1070 = vmatprep.subr.mxu0 0.0
    %1071 = vmatpush1.msra.mxu0 %v1061
    %1072 = vmatprep.subr.mxu0 0.0
    %1073 = vmatpush1.msra.mxu0 %v1062
    %1074 = vmatprep.subr.mxu0 0.0
    %1075 = vmatpush1.msra.mxu0 %v1063
    %1076 = vmatprep.subr.mxu0 0.0
    %1077 = vmatpush1.msra.mxu0 %v1064
    %1078 = vmatprep.subr.mxu0 0.0
    %1079 = vmatpush1.msra.mxu0 0.0
    %1080 = vmatprep.subr.mxu0 0.0
    %1081 = vmatpush1.msra.mxu0 0.0
    %1082 = vmatprep.subr.mxu0 0.0
    %1083 = vmatpush1.msra.mxu0 0.0
    %1084 = vmatprep.subr.mxu0 0.0
    %1085 = vmatpush1.msra.mxu0 0.0
    %1086 = vmatprep.subr.mxu0 0.0
    %1087 = vmatpush1.msra.mxu0 0.0
    %1088 = vmatprep.subr.mxu0 0.0
    %1089 = vmatpush1.msra.mxu0 0.0
    %1090 = vmatprep.subr.mxu0 0.0
    %1091 = vmatpush1.msra.mxu0 0.0
    %1092 = vmatprep.subr.mxu0 0.0
    %1093 = vmatpush1.msra.mxu0 0.0
    %1094 = vmatprep.subr.mxu0 0.0
    %1095 = vmatpush1.msra.mxu0 0.0
    %1096 = vmatprep.subr.mxu0 0.0
    %1097 = vmatpush1.msra.mxu0 0.0
    %1098 = vmatprep.subr.mxu0 0.0
    %1099 = vmatpush1.msra.mxu0 0.0
    %1100 = vmatprep.subr.mxu0 0.0
    %1101 = vmatpush1.msra.mxu0 0.0
    %1102 = vmatprep.subr.mxu0 0.0
    %1103 = vmatpush1.msra.mxu0 0.0
    %1104 = vmatprep.subr.mxu0 0.0
    %1105 = vmatpush1.msra.mxu0 0.0
    %1106 = vmatprep.subr.mxu0 0.0
    %1107 = vmatpush1.msra.mxu0 0.0
    %1108 = vmatprep.subr.mxu0 0.0
    %1109 = vmatpush1.msra.mxu0 0.0
    %1110 = vmatprep.subr.mxu0 0.0
    %1111 = vmatpush1.msra.mxu0 0.0
    %1112 = vmatprep.subr.mxu0 0.0
    %1113 = vmatpush1.msra.mxu0 0.0
    %1114 = vmatprep.subr.mxu0 0.0
    %1115 = vmatpush1.msra.mxu0 0.0
    %1116 = vmatprep.subr.mxu0 0.0
    %1117 = vmatpush1.msra.mxu0 0.0
    %1118 = vmatprep.subr.mxu0 0.0
    %1119 = vmatpush1.msra.mxu0 0.0
    %1120 = vmatprep.subr.mxu0 0.0
    %1121 = vmatpush1.msra.mxu0 0.0
    %1122 = vmatprep.subr.mxu0 0.0
    %1123 = vmatpush1.msra.mxu0 0.0
    %1124 = vmatprep.subr.mxu0 0.0
    %1125 = vmatpush1.msra.mxu0 0.0
    %1126 = vmatprep.subr.mxu0 0.0
    %1127 = vmatpush1.msra.mxu0 0.0
    %1128 = vmatprep.subr.mxu0 0.0
    %1129 = vmatpush1.msra.mxu0 0.0
    %1130 = vmatprep.subr.mxu0 0.0
    %1131 = vmatpush1.msra.mxu0 0.0
    %1132 = vmatprep.subr.mxu0 0.0
    %1133 = vmatpush1.msra.mxu0 0.0
    %1134 = vmatprep.mubr.f32.mxu0 0.0
    %1135 = vmatmul.mubr.f32.gmra.mrb[0].mxu0 %v179
    %v1136 = vpop.f32.mrb[0].mxu0
    %v1137 = vadd.f32 %v1069, %v1136
    %v1138 = vpop.f32.mrb[0].mxu0
    %1139 = vmatprep.mubr.f32.mxu0 0.0
    %1140 = vmatmul.mubr.f32.gmra.mrb[0].mxu0 %v182
    %v1141 = vpop.f32.mrb[0].mxu0
    %v1142 = vadd.f32 %v1069, %v1141
    %v1143 = vpop.f32.mrb[0].mxu0
    %1144 = vdwg.mxu0
    %v1145 = vld [vmem:[#allocation2 + $0x188] sm:$0xff]
    %v1146 = vld [vmem:[#allocation2 + $0x190] sm:$0xff]
    %v1147 = vld [vmem:[#allocation2 + $0x198] sm:$0xff]
    %v1148 = vld [vmem:[#allocation2 + $0x1a0] sm:$0xff]
    %v1149 = vld [vmem:[#allocation2 + $0x1a8] sm:$0x1]
    %v1150 = vlaneseq
    %v1151 = vshrl.u32 %v1150, 7
    %v1152 = vsub.s32 0, %v1151
    %v1153 = vrot.slane %v1149, %v1152
    %1154 = vmatprep.subr.mxu0 0.0
    %1155 = vmatpush1.msra.mxu0 %v1145
    %1156 = vmatprep.subr.mxu0 0.0
    %1157 = vmatpush1.msra.mxu0 %v1146
    %1158 = vmatprep.subr.mxu0 0.0
    %1159 = vmatpush1.msra.mxu0 %v1147
    %1160 = vmatprep.subr.mxu0 0.0
    %1161 = vmatpush1.msra.mxu0 %v1148
    %1162 = vmatprep.subr.mxu0 0.0
    %1163 = vmatpush1.msra.mxu0 0.0
    %1164 = vmatprep.subr.mxu0 0.0
    %1165 = vmatpush1.msra.mxu0 0.0
    %1166 = vmatprep.subr.mxu0 0.0
    %1167 = vmatpush1.msra.mxu0 0.0
    %1168 = vmatprep.subr.mxu0 0.0
    %1169 = vmatpush1.msra.mxu0 0.0
    %1170 = vmatprep.subr.mxu0 0.0
    %1171 = vmatpush1.msra.mxu0 0.0
    %1172 = vmatprep.subr.mxu0 0.0
    %1173 = vmatpush1.msra.mxu0 0.0
    %1174 = vmatprep.subr.mxu0 0.0
    %1175 = vmatpush1.msra.mxu0 0.0
    %1176 = vmatprep.subr.mxu0 0.0
    %1177 = vmatpush1.msra.mxu0 0.0
    %1178 = vmatprep.subr.mxu0 0.0
    %1179 = vmatpush1.msra.mxu0 0.0
    %1180 = vmatprep.subr.mxu0 0.0
    %1181 = vmatpush1.msra.mxu0 0.0
    %1182 = vmatprep.subr.mxu0 0.0
    %1183 = vmatpush1.msra.mxu0 0.0
    %1184 = vmatprep.subr.mxu0 0.0
    %1185 = vmatpush1.msra.mxu0 0.0
    %1186 = vmatprep.subr.mxu0 0.0
    %1187 = vmatpush1.msra.mxu0 0.0
    %1188 = vmatprep.subr.mxu0 0.0
    %1189 = vmatpush1.msra.mxu0 0.0
    %1190 = vmatprep.subr.mxu0 0.0
    %1191 = vmatpush1.msra.mxu0 0.0
    %1192 = vmatprep.subr.mxu0 0.0
    %1193 = vmatpush1.msra.mxu0 0.0
    %1194 = vmatprep.subr.mxu0 0.0
    %1195 = vmatpush1.msra.mxu0 0.0
    %1196 = vmatprep.subr.mxu0 0.0
    %1197 = vmatpush1.msra.mxu0 0.0
    %1198 = vmatprep.subr.mxu0 0.0
    %1199 = vmatpush1.msra.mxu0 0.0
    %1200 = vmatprep.subr.mxu0 0.0
    %1201 = vmatpush1.msra.mxu0 0.0
    %1202 = vmatprep.subr.mxu0 0.0
    %1203 = vmatpush1.msra.mxu0 0.0
    %1204 = vmatprep.subr.mxu0 0.0
    %1205 = vmatpush1.msra.mxu0 0.0
    %1206 = vmatprep.subr.mxu0 0.0
    %1207 = vmatpush1.msra.mxu0 0.0
    %1208 = vmatprep.subr.mxu0 0.0
    %1209 = vmatpush1.msra.mxu0 0.0
    %1210 = vmatprep.subr.mxu0 0.0
    %1211 = vmatpush1.msra.mxu0 0.0
    %1212 = vmatprep.subr.mxu0 0.0
    %1213 = vmatpush1.msra.mxu0 0.0
    %1214 = vmatprep.subr.mxu0 0.0
    %1215 = vmatpush1.msra.mxu0 0.0
    %1216 = vmatprep.subr.mxu0 0.0
    %1217 = vmatpush1.msra.mxu0 0.0
    %1218 = vmatprep.mubr.f32.mxu0 0.0
    %1219 = vmatmul.mubr.f32.gmra.mrb[0].mxu0 %v179
    %v1220 = vpop.f32.mrb[0].mxu0
    %v1221 = vadd.f32 %v1153, %v1220
    %v1222 = vpop.f32.mrb[0].mxu0
    %1223 = vmatprep.mubr.f32.mxu0 0.0
    %1224 = vmatmul.mubr.f32.gmra.mrb[0].mxu0 %v182
    %v1225 = vpop.f32.mrb[0].mxu0
    %v1226 = vadd.f32 %v1153, %v1225
    %v1227 = vpop.f32.mrb[0].mxu0
    %1228 = vdwg.mxu0
    %v1229 = vld [vmem:[#allocation2 + $0x1b0] sm:$0xff]
    %v1230 = vld [vmem:[#allocation2 + $0x1b8] sm:$0xff]
    %v1231 = vld [vmem:[#allocation2 + $0x1c0] sm:$0xff]
    %v1232 = vld [vmem:[#allocation2 + $0x1c8] sm:$0xff]
    %v1233 = vld [vmem:[#allocation2 + $0x1d0] sm:$0x1]
    %v1234 = vlaneseq
    %v1235 = vshrl.u32 %v1234, 7
    %v1236 = vsub.s32 0, %v1235
    %v1237 = vrot.slane %v1233, %v1236
    %1238 = vmatprep.subr.mxu0 0.0
    %1239 = vmatpush1.msra.mxu0 %v1229
    %1240 = vmatprep.subr.mxu0 0.0
    %1241 = vmatpush1.msra.mxu0 %v1230
    %1242 = vmatprep.subr.mxu0 0.0
    %1243 = vmatpush1.msra.mxu0 %v1231
    %1244 = vmatprep.subr.mxu0 0.0
    %1245 = vmatpush1.msra.mxu0 %v1232
    %1246 = vmatprep.subr.mxu0 0.0
    %1247 = vmatpush1.msra.mxu0 0.0
    %1248 = vmatprep.subr.mxu0 0.0
    %1249 = vmatpush1.msra.mxu0 0.0
    %1250 = vmatprep.subr.mxu0 0.0
    %1251 = vmatpush1.msra.mxu0 0.0
    %1252 = vmatprep.subr.mxu0 0.0
    %1253 = vmatpush1.msra.mxu0 0.0
    %1254 = vmatprep.subr.mxu0 0.0
    %1255 = vmatpush1.msra.mxu0 0.0
    %1256 = vmatprep.subr.mxu0 0.0
    %1257 = vmatpush1.msra.mxu0 0.0
    %1258 = vmatprep.subr.mxu0 0.0
    %1259 = vmatpush1.msra.mxu0 0.0
    %1260 = vmatprep.subr.mxu0 0.0
    %1261 = vmatpush1.msra.mxu0 0.0
    %1262 = vmatprep.subr.mxu0 0.0
    %1263 = vmatpush1.msra.mxu0 0.0
    %1264 = vmatprep.subr.mxu0 0.0
    %1265 = vmatpush1.msra.mxu0 0.0
    %1266 = vmatprep.subr.mxu0 0.0
    %1267 = vmatpush1.msra.mxu0 0.0
    %1268 = vmatprep.subr.mxu0 0.0
    %1269 = vmatpush1.msra.mxu0 0.0
    %1270 = vmatprep.subr.mxu0 0.0
    %1271 = vmatpush1.msra.mxu0 0.0
    %1272 = vmatprep.subr.mxu0 0.0
    %1273 = vmatpush1.msra.mxu0 0.0
    %1274 = vmatprep.subr.mxu0 0.0
    %1275 = vmatpush1.msra.mxu0 0.0
    %1276 = vmatprep.subr.mxu0 0.0
    %1277 = vmatpush1.msra.mxu0 0.0
    %1278 = vmatprep.subr.mxu0 0.0
    %1279 = vmatpush1.msra.mxu0 0.0
    %1280 = vmatprep.subr.mxu0 0.0
    %1281 = vmatpush1.msra.mxu0 0.0
    %1282 = vmatprep.subr.mxu0 0.0
    %1283 = vmatpush1.msra.mxu0 0.0
    %1284 = vmatprep.subr.mxu0 0.0
    %1285 = vmatpush1.msra.mxu0 0.0
    %1286 = vmatprep.subr.mxu0 0.0
    %1287 = vmatpush1.msra.mxu0 0.0
    %1288 = vmatprep.subr.mxu0 0.0
    %1289 = vmatpush1.msra.mxu0 0.0
    %1290 = vmatprep.subr.mxu0 0.0
    %1291 = vmatpush1.msra.mxu0 0.0
    %1292 = vmatprep.subr.mxu0 0.0
    %1293 = vmatpush1.msra.mxu0 0.0
    %1294 = vmatprep.subr.mxu0 0.0
    %1295 = vmatpush1.msra.mxu0 0.0
    %1296 = vmatprep.subr.mxu0 0.0
    %1297 = vmatpush1.msra.mxu0 0.0
    %1298 = vmatprep.subr.mxu0 0.0
    %1299 = vmatpush1.msra.mxu0 0.0
    %1300 = vmatprep.subr.mxu0 0.0
    %1301 = vmatpush1.msra.mxu0 0.0
    %1302 = vmatprep.mubr.f32.mxu0 0.0
    %1303 = vmatmul.mubr.f32.gmra.mrb[0].mxu0 %v179
    %v1304 = vpop.f32.mrb[0].mxu0
    %v1305 = vadd.f32 %v1237, %v1304
    %v1306 = vpop.f32.mrb[0].mxu0
    %1307 = vmatprep.mubr.f32.mxu0 0.0
    %1308 = vmatmul.mubr.f32.gmra.mrb[0].mxu0 %v182
    %v1309 = vpop.f32.mrb[0].mxu0
    %v1310 = vadd.f32 %v1237, %v1309
    %v1311 = vpop.f32.mrb[0].mxu0
    %1312 = vdwg.mxu0
    %v1314 = vsel %vm427, %v1137, 0
    %v1317 = vsel %vm427, %v1142, 0
    %v1320 = vsel %vm427, %v1221, 0
    %v1323 = vsel %vm427, %v1226, 0
    %1325 = vmatprep.subr.mxu0 0.0
    %1326 = vmatpush1.xpose.msra.mxu0 %v1320
    %1327 = vmatprep.subr.mxu0 0.0
    %1328 = vmatpush1.xpose.msra.mxu0 %v1323
    %1329 = vmatprep.subr.mxu0 0.0
    %1330 = vmatpush1.xpose.msra.mxu0 0.0
    %1331 = vmatprep.subr.mxu0 0.0
    %1332 = vmatpush1.xpose.msra.mxu0 0.0
    %1333 = vmatprep.subr.mxu0 0.0
    %1334 = vmatpush1.xpose.msra.mxu0 0.0
    %1335 = vmatprep.subr.mxu0 0.0
    %1336 = vmatpush1.xpose.msra.mxu0 0.0
    %1337 = vmatprep.subr.mxu0 0.0
    %1338 = vmatpush1.xpose.msra.mxu0 0.0
    %1339 = vmatprep.subr.mxu0 0.0
    %1340 = vmatpush1.xpose.msra.mxu0 0.0
    %1341 = vmatprep.subr.mxu0 0.0
    %1342 = vmatpush1.xpose.msra.mxu0 0.0
    %1343 = vmatprep.subr.mxu0 0.0
    %1344 = vmatpush1.xpose.msra.mxu0 0.0
    %1345 = vmatprep.subr.mxu0 0.0
    %1346 = vmatpush1.xpose.msra.mxu0 0.0
    %1347 = vmatprep.subr.mxu0 0.0
    %1348 = vmatpush1.xpose.msra.mxu0 0.0
    %1349 = vmatprep.subr.mxu0 0.0
    %1350 = vmatpush1.xpose.msra.mxu0 0.0
    %1351 = vmatprep.subr.mxu0 0.0
    %1352 = vmatpush1.xpose.msra.mxu0 0.0
    %1353 = vmatprep.subr.mxu0 0.0
    %1354 = vmatpush1.xpose.msra.mxu0 0.0
    %1355 = vmatprep.subr.mxu0 0.0
    %1356 = vmatpush1.xpose.msra.mxu0 0.0
    %1357 = vmatprep.subr.mxu0 0.0
    %1358 = vmatpush1.xpose.msra.mxu0 0.0
    %1359 = vmatprep.subr.mxu0 0.0
    %1360 = vmatpush1.xpose.msra.mxu0 0.0
    %1361 = vmatprep.subr.mxu0 0.0
    %1362 = vmatpush1.xpose.msra.mxu0 0.0
    %1363 = vmatprep.subr.mxu0 0.0
    %1364 = vmatpush1.xpose.msra.mxu0 0.0
    %1365 = vmatprep.subr.mxu0 0.0
    %1366 = vmatpush1.xpose.msra.mxu0 0.0
    %1367 = vmatprep.subr.mxu0 0.0
    %1368 = vmatpush1.xpose.msra.mxu0 0.0
    %1369 = vmatprep.subr.mxu0 0.0
    %1370 = vmatpush1.xpose.msra.mxu0 0.0
    %1371 = vmatprep.subr.mxu0 0.0
    %1372 = vmatpush1.xpose.msra.mxu0 0.0
    %1373 = vmatprep.subr.mxu0 0.0
    %1374 = vmatpush1.xpose.msra.mxu0 0.0
    %1375 = vmatprep.subr.mxu0 0.0
    %1376 = vmatpush1.xpose.msra.mxu0 0.0
    %1377 = vmatprep.subr.mxu0 0.0
    %1378 = vmatpush1.xpose.msra.mxu0 0.0
    %1379 = vmatprep.subr.mxu0 0.0
    %1380 = vmatpush1.xpose.msra.mxu0 0.0
    %1381 = vmatprep.subr.mxu0 0.0
    %1382 = vmatpush1.xpose.msra.mxu0 0.0
    %1383 = vmatprep.subr.mxu0 0.0
    %1384 = vmatpush1.xpose.msra.mxu0 0.0
    %1385 = vmatprep.subr.mxu0 0.0
    %1386 = vmatpush1.xpose.msra.mxu0 0.0
    %1387 = vmatprep.subr.mxu0 0.0
    %1388 = vmatpush1.xpose.msra.mxu0 0.0
    %1389 = vmatprep.mubr.f32.mxu0 0.0
    %1390 = vmatmul.mubr.f32.gmra.mrb[0].mxu0 %v1314
    %v1391 = vpop.f32.mrb[0].mxu0
    %v1392 = vadd.f32 %v29, %v1391
    %v1393 = vpop.f32.mrb[0].mxu0
    %1394 = vmatprep.mubr.f32.mxu0 0.0
    %1395 = vmatmul.mubr.f32.gmra.mrb[0].mxu0 %v1317
    %v1396 = vpop.f32.mrb[0].mxu0
    %v1397 = vadd.f32 %v30, %v1396
    %v1398 = vpop.f32.mrb[0].mxu0
    %1399 = vdwg.mxu0
    %v1400 = vsel %vm515, %v1392, -inf
    %1401 = vmax.xlane.f32.xlu0 %v1400
    %v1402 = vpop.xlane.xlu0 %1401
    %v1403 = vsel %vm515, %v1397, -inf
    %1404 = vmax.xlane.f32.xlu0 %v1403
    %v1405 = vpop.xlane.xlu0 %1404
    %v1406 = vsub.f32 %v1392, %v1402
    %v1407 = vsub.f32 %v1397, %v1405
    %v1408 = vmul.f32 %v1406, 1.442695
    %v1409 = vpow.pop %v1408
    %v1410 = vmul.f32 %v1407, 1.442695
    %v1411 = vpow.pop %v1410
    %v1412 = vsel %vm515, %v1409, 0.0
    %1413 = vadd.xlane.f32.xlu0 %v1412
    %v1414 = vpop.xlane.xlu0 %1413
    %v1415 = vsel %vm515, %v1411, 0.0
    %1416 = vadd.xlane.f32.xlu0 %v1415
    %v1417 = vpop.xlane.xlu0 %1416
    %v1418 = vrcp.pop %v1414
    %v1419 = vmul.f32 %v1409, %v1418
    %v1420 = vrcp.pop %v1417
    %v1421 = vmul.f32 %v1411, %v1420
    %v1423 = vsel %vm515, %v1419, 0
    %v1426 = vsel %vm515, %v1421, 0
    %1428 = vmatprep.subr.mxu0 0.0
    %1429 = vmatpush1.msra.mxu0 %v1305
    %1430 = vmatprep.subr.mxu0 0.0
    %1431 = vmatpush1.msra.mxu0 %v1310
    %1432 = vmatprep.subr.mxu0 0.0
    %1433 = vmatpush1.msra.mxu0 0.0
    %1434 = vmatprep.subr.mxu0 0.0
    %1435 = vmatpush1.msra.mxu0 0.0
    %1436 = vmatprep.subr.mxu0 0.0
    %1437 = vmatpush1.msra.mxu0 0.0
    %1438 = vmatprep.subr.mxu0 0.0
    %1439 = vmatpush1.msra.mxu0 0.0
    %1440 = vmatprep.subr.mxu0 0.0
    %1441 = vmatpush1.msra.mxu0 0.0
    %1442 = vmatprep.subr.mxu0 0.0
    %1443 = vmatpush1.msra.mxu0 0.0
    %1444 = vmatprep.subr.mxu0 0.0
    %1445 = vmatpush1.msra.mxu0 0.0
    %1446 = vmatprep.subr.mxu0 0.0
    %1447 = vmatpush1.msra.mxu0 0.0
    %1448 = vmatprep.subr.mxu0 0.0
    %1449 = vmatpush1.msra.mxu0 0.0
    %1450 = vmatprep.subr.mxu0 0.0
    %1451 = vmatpush1.msra.mxu0 0.0
    %1452 = vmatprep.subr.mxu0 0.0
    %1453 = vmatpush1.msra.mxu0 0.0
    %1454 = vmatprep.subr.mxu0 0.0
    %1455 = vmatpush1.msra.mxu0 0.0
    %1456 = vmatprep.subr.mxu0 0.0
    %1457 = vmatpush1.msra.mxu0 0.0
    %1458 = vmatprep.subr.mxu0 0.0
    %1459 = vmatpush1.msra.mxu0 0.0
    %1460 = vmatprep.subr.mxu0 0.0
    %1461 = vmatpush1.msra.mxu0 0.0
    %1462 = vmatprep.subr.mxu0 0.0
    %1463 = vmatpush1.msra.mxu0 0.0
    %1464 = vmatprep.subr.mxu0 0.0
    %1465 = vmatpush1.msra.mxu0 0.0
    %1466 = vmatprep.subr.mxu0 0.0
    %1467 = vmatpush1.msra.mxu0 0.0
    %1468 = vmatprep.subr.mxu0 0.0
    %1469 = vmatpush1.msra.mxu0 0.0
    %1470 = vmatprep.subr.mxu0 0.0
    %1471 = vmatpush1.msra.mxu0 0.0
    %1472 = vmatprep.subr.mxu0 0.0
    %1473 = vmatpush1.msra.mxu0 0.0
    %1474 = vmatprep.subr.mxu0 0.0
    %1475 = vmatpush1.msra.mxu0 0.0
    %1476 = vmatprep.subr.mxu0 0.0
    %1477 = vmatpush1.msra.mxu0 0.0
    %1478 = vmatprep.subr.mxu0 0.0
    %1479 = vmatpush1.msra.mxu0 0.0
    %1480 = vmatprep.subr.mxu0 0.0
    %1481 = vmatpush1.msra.mxu0 0.0
    %1482 = vmatprep.subr.mxu0 0.0
    %1483 = vmatpush1.msra.mxu0 0.0
    %1484 = vmatprep.subr.mxu0 0.0
    %1485 = vmatpush1.msra.mxu0 0.0
    %1486 = vmatprep.subr.mxu0 0.0
    %1487 = vmatpush1.msra.mxu0 0.0
    %1488 = vmatprep.subr.mxu0 0.0
    %1489 = vmatpush1.msra.mxu0 0.0
    %1490 = vmatprep.subr.mxu0 0.0
    %1491 = vmatpush1.msra.mxu0 0.0
    %1492 = vmatprep.mubr.f32.mxu0 0.0
    %1493 = vmatmul.mubr.f32.gmra.mrb[0].mxu0 %v1423
    %v1494 = vpop.f32.mrb[0].mxu0
    %v1495 = vadd.f32 0.0, %v1494
    %v1496 = vpop.f32.mrb[0].mxu0
    %1497 = vmatprep.mubr.f32.mxu0 0.0
    %1498 = vmatmul.mubr.f32.gmra.mrb[0].mxu0 %v1426
    %v1499 = vpop.f32.mrb[0].mxu0
    %v1500 = vadd.f32 0.0, %v1499
    %v1501 = vpop.f32.mrb[0].mxu0
    %1502 = vdwg.mxu0
    %v1503 = vadd.f32 %v1053, %v1495
    %v1504 = vadd.f32 %v1058, %v1500
    %v1505 = vld [vmem:[#allocation2 + $0x1d8] sm:$0xff]
    %v1506 = vld [vmem:[#allocation2 + $0x1e0] sm:$0xff]
    %v1507 = vld [vmem:[#allocation2 + $0x1e8] sm:$0xff]
    %v1508 = vld [vmem:[#allocation2 + $0x1f0] sm:$0xff]
    %v1509 = vld [vmem:[#allocation2 + $0x1f8] sm:$0x1]
    %v1510 = vlaneseq
    %v1511 = vshrl.u32 %v1510, 7
    %v1512 = vsub.s32 0, %v1511
    %v1513 = vrot.slane %v1509, %v1512
    %1514 = vmatprep.subr.mxu0 0.0
    %1515 = vmatpush1.msra.mxu0 %v1505
    %1516 = vmatprep.subr.mxu0 0.0
    %1517 = vmatpush1.msra.mxu0 %v1506
    %1518 = vmatprep.subr.mxu0 0.0
    %1519 = vmatpush1.msra.mxu0 %v1507
    %1520 = vmatprep.subr.mxu0 0.0
    %1521 = vmatpush1.msra.mxu0 %v1508
    %1522 = vmatprep.subr.mxu0 0.0
    %1523 = vmatpush1.msra.mxu0 0.0
    %1524 = vmatprep.subr.mxu0 0.0
    %1525 = vmatpush1.msra.mxu0 0.0
    %1526 = vmatprep.subr.mxu0 0.0
    %1527 = vmatpush1.msra.mxu0 0.0
    %1528 = vmatprep.subr.mxu0 0.0
    %1529 = vmatpush1.msra.mxu0 0.0
    %1530 = vmatprep.subr.mxu0 0.0
    %1531 = vmatpush1.msra.mxu0 0.0
    %1532 = vmatprep.subr.mxu0 0.0
    %1533 = vmatpush1.msra.mxu0 0.0
    %1534 = vmatprep.subr.mxu0 0.0
    %1535 = vmatpush1.msra.mxu0 0.0
    %1536 = vmatprep.subr.mxu0 0.0
    %1537 = vmatpush1.msra.mxu0 0.0
    %1538 = vmatprep.subr.mxu0 0.0
    %1539 = vmatpush1.msra.mxu0 0.0
    %1540 = vmatprep.subr.mxu0 0.0
    %1541 = vmatpush1.msra.mxu0 0.0
    %1542 = vmatprep.subr.mxu0 0.0
    %1543 = vmatpush1.msra.mxu0 0.0
    %1544 = vmatprep.subr.mxu0 0.0
    %1545 = vmatpush1.msra.mxu0 0.0
    %1546 = vmatprep.subr.mxu0 0.0
    %1547 = vmatpush1.msra.mxu0 0.0
    %1548 = vmatprep.subr.mxu0 0.0
    %1549 = vmatpush1.msra.mxu0 0.0
    %1550 = vmatprep.subr.mxu0 0.0
    %1551 = vmatpush1.msra.mxu0 0.0
    %1552 = vmatprep.subr.mxu0 0.0
    %1553 = vmatpush1.msra.mxu0 0.0
    %1554 = vmatprep.subr.mxu0 0.0
    %1555 = vmatpush1.msra.mxu0 0.0
    %1556 = vmatprep.subr.mxu0 0.0
    %1557 = vmatpush1.msra.mxu0 0.0
    %1558 = vmatprep.subr.mxu0 0.0
    %1559 = vmatpush1.msra.mxu0 0.0
    %1560 = vmatprep.subr.mxu0 0.0
    %1561 = vmatpush1.msra.mxu0 0.0
    %1562 = vmatprep.subr.mxu0 0.0
    %1563 = vmatpush1.msra.mxu0 0.0
    %1564 = vmatprep.subr.mxu0 0.0
    %1565 = vmatpush1.msra.mxu0 0.0
    %1566 = vmatprep.subr.mxu0 0.0
    %1567 = vmatpush1.msra.mxu0 0.0
    %1568 = vmatprep.subr.mxu0 0.0
    %1569 = vmatpush1.msra.mxu0 0.0
    %1570 = vmatprep.subr.mxu0 0.0
    %1571 = vmatpush1.msra.mxu0 0.0
    %1572 = vmatprep.subr.mxu0 0.0
    %1573 = vmatpush1.msra.mxu0 0.0
    %1574 = vmatprep.subr.mxu0 0.0
    %1575 = vmatpush1.msra.mxu0 0.0
    %1576 = vmatprep.subr.mxu0 0.0
    %1577 = vmatpush1.msra.mxu0 0.0
    %1578 = vmatprep.mubr.f32.mxu0 0.0
    %1579 = vmatmul.mubr.f32.gmra.mrb[0].mxu0 %v179
    %v1580 = vpop.f32.mrb[0].mxu0
    %v1581 = vadd.f32 %v1513, %v1580
    %v1582 = vpop.f32.mrb[0].mxu0
    %1583 = vmatprep.mubr.f32.mxu0 0.0
    %1584 = vmatmul.mubr.f32.gmra.mrb[0].mxu0 %v182
    %v1585 = vpop.f32.mrb[0].mxu0
    %v1586 = vadd.f32 %v1513, %v1585
    %v1587 = vpop.f32.mrb[0].mxu0
    %1588 = vdwg.mxu0
    %v1589 = vld [vmem:[#allocation2 + $0x200] sm:$0xff]
    %v1590 = vld [vmem:[#allocation2 + $0x208] sm:$0xff]
    %v1591 = vld [vmem:[#allocation2 + $0x210] sm:$0xff]
    %v1592 = vld [vmem:[#allocation2 + $0x218] sm:$0xff]
    %v1593 = vld [vmem:[#allocation2 + $0x220] sm:$0x1]
    %v1594 = vlaneseq
    %v1595 = vshrl.u32 %v1594, 7
    %v1596 = vsub.s32 0, %v1595
    %v1597 = vrot.slane %v1593, %v1596
    %1598 = vmatprep.subr.mxu0 0.0
    %1599 = vmatpush1.msra.mxu0 %v1589
    %1600 = vmatprep.subr.mxu0 0.0
    %1601 = vmatpush1.msra.mxu0 %v1590
    %1602 = vmatprep.subr.mxu0 0.0
    %1603 = vmatpush1.msra.mxu0 %v1591
    %1604 = vmatprep.subr.mxu0 0.0
    %1605 = vmatpush1.msra.mxu0 %v1592
    %1606 = vmatprep.subr.mxu0 0.0
    %1607 = vmatpush1.msra.mxu0 0.0
    %1608 = vmatprep.subr.mxu0 0.0
    %1609 = vmatpush1.msra.mxu0 0.0
    %1610 = vmatprep.subr.mxu0 0.0
    %1611 = vmatpush1.msra.mxu0 0.0
    %1612 = vmatprep.subr.mxu0 0.0
    %1613 = vmatpush1.msra.mxu0 0.0
    %1614 = vmatprep.subr.mxu0 0.0
    %1615 = vmatpush1.msra.mxu0 0.0
    %1616 = vmatprep.subr.mxu0 0.0
    %1617 = vmatpush1.msra.mxu0 0.0
    %1618 = vmatprep.subr.mxu0 0.0
    %1619 = vmatpush1.msra.mxu0 0.0
    %1620 = vmatprep.subr.mxu0 0.0
    %1621 = vmatpush1.msra.mxu0 0.0
    %1622 = vmatprep.subr.mxu0 0.0
    %1623 = vmatpush1.msra.mxu0 0.0
    %1624 = vmatprep.subr.mxu0 0.0
    %1625 = vmatpush1.msra.mxu0 0.0
    %1626 = vmatprep.subr.mxu0 0.0
    %1627 = vmatpush1.msra.mxu0 0.0
    %1628 = vmatprep.subr.mxu0 0.0
    %1629 = vmatpush1.msra.mxu0 0.0
    %1630 = vmatprep.subr.mxu0 0.0
    %1631 = vmatpush1.msra.mxu0 0.0
    %1632 = vmatprep.subr.mxu0 0.0
    %1633 = vmatpush1.msra.mxu0 0.0
    %1634 = vmatprep.subr.mxu0 0.0
    %1635 = vmatpush1.msra.mxu0 0.0
    %1636 = vmatprep.subr.mxu0 0.0
    %1637 = vmatpush1.msra.mxu0 0.0
    %1638 = vmatprep.subr.mxu0 0.0
    %1639 = vmatpush1.msra.mxu0 0.0
    %1640 = vmatprep.subr.mxu0 0.0
    %1641 = vmatpush1.msra.mxu0 0.0
    %1642 = vmatprep.subr.mxu0 0.0
    %1643 = vmatpush1.msra.mxu0 0.0
    %1644 = vmatprep.subr.mxu0 0.0
    %1645 = vmatpush1.msra.mxu0 0.0
    %1646 = vmatprep.subr.mxu0 0.0
    %1647 = vmatpush1.msra.mxu0 0.0
    %1648 = vmatprep.subr.mxu0 0.0
    %1649 = vmatpush1.msra.mxu0 0.0
    %1650 = vmatprep.subr.mxu0 0.0
    %1651 = vmatpush1.msra.mxu0 0.0
    %1652 = vmatprep.subr.mxu0 0.0
    %1653 = vmatpush1.msra.mxu0 0.0
    %1654 = vmatprep.subr.mxu0 0.0
    %1655 = vmatpush1.msra.mxu0 0.0
    %1656 = vmatprep.subr.mxu0 0.0
    %1657 = vmatpush1.msra.mxu0 0.0
    %1658 = vmatprep.subr.mxu0 0.0
    %1659 = vmatpush1.msra.mxu0 0.0
    %1660 = vmatprep.subr.mxu0 0.0
    %1661 = vmatpush1.msra.mxu0 0.0
    %1662 = vmatprep.mubr.f32.mxu0 0.0
    %1663 = vmatmul.mubr.f32.gmra.mrb[0].mxu0 %v179
    %v1664 = vpop.f32.mrb[0].mxu0
    %v1665 = vadd.f32 %v1597, %v1664
    %v1666 = vpop.f32.mrb[0].mxu0
    %1667 = vmatprep.mubr.f32.mxu0 0.0
    %1668 = vmatmul.mubr.f32.gmra.mrb[0].mxu0 %v182
    %v1669 = vpop.f32.mrb[0].mxu0
    %v1670 = vadd.f32 %v1597, %v1669
    %v1671 = vpop.f32.mrb[0].mxu0
    %1672 = vdwg.mxu0
    %v1673 = vld [vmem:[#allocation2 + $0x228] sm:$0xff]
    %v1674 = vld [vmem:[#allocation2 + $0x230] sm:$0xff]
    %v1675 = vld [vmem:[#allocation2 + $0x238] sm:$0xff]
    %v1676 = vld [vmem:[#allocation2 + $0x240] sm:$0xff]
    %v1677 = vld [vmem:[#allocation2 + $0x248] sm:$0x1]
    %v1678 = vlaneseq
    %v1679 = vshrl.u32 %v1678, 7
    %v1680 = vsub.s32 0, %v1679
    %v1681 = vrot.slane %v1677, %v1680
    %1682 = vmatprep.subr.mxu0 0.0
    %1683 = vmatpush1.msra.mxu0 %v1673
    %1684 = vmatprep.subr.mxu0 0.0
    %1685 = vmatpush1.msra.mxu0 %v1674
    %1686 = vmatprep.subr.mxu0 0.0
    %1687 = vmatpush1.msra.mxu0 %v1675
    %1688 = vmatprep.subr.mxu0 0.0
    %1689 = vmatpush1.msra.mxu0 %v1676
    %1690 = vmatprep.subr.mxu0 0.0
    %1691 = vmatpush1.msra.mxu0 0.0
    %1692 = vmatprep.subr.mxu0 0.0
    %1693 = vmatpush1.msra.mxu0 0.0
    %1694 = vmatprep.subr.mxu0 0.0
    %1695 = vmatpush1.msra.mxu0 0.0
    %1696 = vmatprep.subr.mxu0 0.0
    %1697 = vmatpush1.msra.mxu0 0.0
    %1698 = vmatprep.subr.mxu0 0.0
    %1699 = vmatpush1.msra.mxu0 0.0
    %1700 = vmatprep.subr.mxu0 0.0
    %1701 = vmatpush1.msra.mxu0 0.0
    %1702 = vmatprep.subr.mxu0 0.0
    %1703 = vmatpush1.msra.mxu0 0.0
    %1704 = vmatprep.subr.mxu0 0.0
    %1705 = vmatpush1.msra.mxu0 0.0
    %1706 = vmatprep.subr.mxu0 0.0
    %1707 = vmatpush1.msra.mxu0 0.0
    %1708 = vmatprep.subr.mxu0 0.0
    %1709 = vmatpush1.msra.mxu0 0.0
    %1710 = vmatprep.subr.mxu0 0.0
    %1711 = vmatpush1.msra.mxu0 0.0
    %1712 = vmatprep.subr.mxu0 0.0
    %1713 = vmatpush1.msra.mxu0 0.0
    %1714 = vmatprep.subr.mxu0 0.0
    %1715 = vmatpush1.msra.mxu0 0.0
    %1716 = vmatprep.subr.mxu0 0.0
    %1717 = vmatpush1.msra.mxu0 0.0
    %1718 = vmatprep.subr.mxu0 0.0
    %1719 = vmatpush1.msra.mxu0 0.0
    %1720 = vmatprep.subr.mxu0 0.0
    %1721 = vmatpush1.msra.mxu0 0.0
    %1722 = vmatprep.subr.mxu0 0.0
    %1723 = vmatpush1.msra.mxu0 0.0
    %1724 = vmatprep.subr.mxu0 0.0
    %1725 = vmatpush1.msra.mxu0 0.0
    %1726 = vmatprep.subr.mxu0 0.0
    %1727 = vmatpush1.msra.mxu0 0.0
    %1728 = vmatprep.subr.mxu0 0.0
    %1729 = vmatpush1.msra.mxu0 0.0
    %1730 = vmatprep.subr.mxu0 0.0
    %1731 = vmatpush1.msra.mxu0 0.0
    %1732 = vmatprep.subr.mxu0 0.0
    %1733 = vmatpush1.msra.mxu0 0.0
    %1734 = vmatprep.subr.mxu0 0.0
    %1735 = vmatpush1.msra.mxu0 0.0
    %1736 = vmatprep.subr.mxu0 0.0
    %1737 = vmatpush1.msra.mxu0 0.0
    %1738 = vmatprep.subr.mxu0 0.0
    %1739 = vmatpush1.msra.mxu0 0.0
    %1740 = vmatprep.subr.mxu0 0.0
    %1741 = vmatpush1.msra.mxu0 0.0
    %1742 = vmatprep.subr.mxu0 0.0
    %1743 = vmatpush1.msra.mxu0 0.0
    %1744 = vmatprep.subr.mxu0 0.0
    %1745 = vmatpush1.msra.mxu0 0.0
    %1746 = vmatprep.mubr.f32.mxu0 0.0
    %1747 = vmatmul.mubr.f32.gmra.mrb[0].mxu0 %v179
    %v1748 = vpop.f32.mrb[0].mxu0
    %v1749 = vadd.f32 %v1681, %v1748
    %v1750 = vpop.f32.mrb[0].mxu0
    %1751 = vmatprep.mubr.f32.mxu0 0.0
    %1752 = vmatmul.mubr.f32.gmra.mrb[0].mxu0 %v182
    %v1753 = vpop.f32.mrb[0].mxu0
    %v1754 = vadd.f32 %v1681, %v1753
    %v1755 = vpop.f32.mrb[0].mxu0
    %1756 = vdwg.mxu0
    %v1758 = vsel %vm427, %v1581, 0
    %v1761 = vsel %vm427, %v1586, 0
    %v1764 = vsel %vm427, %v1665, 0
    %v1767 = vsel %vm427, %v1670, 0
    %1769 = vmatprep.subr.mxu0 0.0
    %1770 = vmatpush1.xpose.msra.mxu0 %v1764
    %1771 = vmatprep.subr.mxu0 0.0
    %1772 = vmatpush1.xpose.msra.mxu0 %v1767
    %1773 = vmatprep.subr.mxu0 0.0
    %1774 = vmatpush1.xpose.msra.mxu0 0.0
    %1775 = vmatprep.subr.mxu0 0.0
    %1776 = vmatpush1.xpose.msra.mxu0 0.0
    %1777 = vmatprep.subr.mxu0 0.0
    %1778 = vmatpush1.xpose.msra.mxu0 0.0
    %1779 = vmatprep.subr.mxu0 0.0
    %1780 = vmatpush1.xpose.msra.mxu0 0.0
    %1781 = vmatprep.subr.mxu0 0.0
    %1782 = vmatpush1.xpose.msra.mxu0 0.0
    %1783 = vmatprep.subr.mxu0 0.0
    %1784 = vmatpush1.xpose.msra.mxu0 0.0
    %1785 = vmatprep.subr.mxu0 0.0
    %1786 = vmatpush1.xpose.msra.mxu0 0.0
    %1787 = vmatprep.subr.mxu0 0.0
    %1788 = vmatpush1.xpose.msra.mxu0 0.0
    %1789 = vmatprep.subr.mxu0 0.0
    %1790 = vmatpush1.xpose.msra.mxu0 0.0
    %1791 = vmatprep.subr.mxu0 0.0
    %1792 = vmatpush1.xpose.msra.mxu0 0.0
    %1793 = vmatprep.subr.mxu0 0.0
    %1794 = vmatpush1.xpose.msra.mxu0 0.0
    %1795 = vmatprep.subr.mxu0 0.0
    %1796 = vmatpush1.xpose.msra.mxu0 0.0
    %1797 = vmatprep.subr.mxu0 0.0
    %1798 = vmatpush1.xpose.msra.mxu0 0.0
    %1799 = vmatprep.subr.mxu0 0.0
    %1800 = vmatpush1.xpose.msra.mxu0 0.0
    %1801 = vmatprep.subr.mxu0 0.0
    %1802 = vmatpush1.xpose.msra.mxu0 0.0
    %1803 = vmatprep.subr.mxu0 0.0
    %1804 = vmatpush1.xpose.msra.mxu0 0.0
    %1805 = vmatprep.subr.mxu0 0.0
    %1806 = vmatpush1.xpose.msra.mxu0 0.0
    %1807 = vmatprep.subr.mxu0 0.0
    %1808 = vmatpush1.xpose.msra.mxu0 0.0
    %1809 = vmatprep.subr.mxu0 0.0
    %1810 = vmatpush1.xpose.msra.mxu0 0.0
    %1811 = vmatprep.subr.mxu0 0.0
    %1812 = vmatpush1.xpose.msra.mxu0 0.0
    %1813 = vmatprep.subr.mxu0 0.0
    %1814 = vmatpush1.xpose.msra.mxu0 0.0
    %1815 = vmatprep.subr.mxu0 0.0
    %1816 = vmatpush1.xpose.msra.mxu0 0.0
    %1817 = vmatprep.subr.mxu0 0.0
    %1818 = vmatpush1.xpose.msra.mxu0 0.0
    %1819 = vmatprep.subr.mxu0 0.0
    %1820 = vmatpush1.xpose.msra.mxu0 0.0
    %1821 = vmatprep.subr.mxu0 0.0
    %1822 = vmatpush1.xpose.msra.mxu0 0.0
    %1823 = vmatprep.subr.mxu0 0.0
    %1824 = vmatpush1.xpose.msra.mxu0 0.0
    %1825 = vmatprep.subr.mxu0 0.0
    %1826 = vmatpush1.xpose.msra.mxu0 0.0
    %1827 = vmatprep.subr.mxu0 0.0
    %1828 = vmatpush1.xpose.msra.mxu0 0.0
    %1829 = vmatprep.subr.mxu0 0.0
    %1830 = vmatpush1.xpose.msra.mxu0 0.0
    %1831 = vmatprep.subr.mxu0 0.0
    %1832 = vmatpush1.xpose.msra.mxu0 0.0
    %1833 = vmatprep.mubr.f32.mxu0 0.0
    %1834 = vmatmul.mubr.f32.gmra.mrb[0].mxu0 %v1758
    %v1835 = vpop.f32.mrb[0].mxu0
    %v1836 = vadd.f32 %v29, %v1835
    %v1837 = vpop.f32.mrb[0].mxu0
    %1838 = vmatprep.mubr.f32.mxu0 0.0
    %1839 = vmatmul.mubr.f32.gmra.mrb[0].mxu0 %v1761
    %v1840 = vpop.f32.mrb[0].mxu0
    %v1841 = vadd.f32 %v30, %v1840
    %v1842 = vpop.f32.mrb[0].mxu0
    %1843 = vdwg.mxu0
    %v1844 = vsel %vm515, %v1836, -inf
    %1845 = vmax.xlane.f32.xlu0 %v1844
    %v1846 = vpop.xlane.xlu0 %1845
    %v1847 = vsel %vm515, %v1841, -inf
    %1848 = vmax.xlane.f32.xlu0 %v1847
    %v1849 = vpop.xlane.xlu0 %1848
    %v1850 = vsub.f32 %v1836, %v1846
    %v1851 = vsub.f32 %v1841, %v1849
    %v1852 = vmul.f32 %v1850, 1.442695
    %v1853 = vpow.pop %v1852
    %v1854 = vmul.f32 %v1851, 1.442695
    %v1855 = vpow.pop %v1854
    %v1856 = vsel %vm515, %v1853, 0.0
    %1857 = vadd.xlane.f32.xlu0 %v1856
    %v1858 = vpop.xlane.xlu0 %1857
    %v1859 = vsel %vm515, %v1855, 0.0
    %1860 = vadd.xlane.f32.xlu0 %v1859
    %v1861 = vpop.xlane.xlu0 %1860
    %v1862 = vrcp.pop %v1858
    %v1863 = vmul.f32 %v1853, %v1862
    %v1864 = vrcp.pop %v1861
    %v1865 = vmul.f32 %v1855, %v1864
    %v1867 = vsel %vm515, %v1863, 0
    %v1870 = vsel %vm515, %v1865, 0
    %1872 = vmatprep.subr.mxu0 0.0
    %1873 = vmatpush1.msra.mxu0 %v1749
    %1874 = vmatprep.subr.mxu0 0.0
    %1875 = vmatpush1.msra.mxu0 %v1754
    %1876 = vmatprep.subr.mxu0 0.0
    %1877 = vmatpush1.msra.mxu0 0.0
    %1878 = vmatprep.subr.mxu0 0.0
    %1879 = vmatpush1.msra.mxu0 0.0
    %1880 = vmatprep.subr.mxu0 0.0
    %1881 = vmatpush1.msra.mxu0 0.0
    %1882 = vmatprep.subr.mxu0 0.0
    %1883 = vmatpush1.msra.mxu0 0.0
    %1884 = vmatprep.subr.mxu0 0.0
    %1885 = vmatpush1.msra.mxu0 0.0
    %1886 = vmatprep.subr.mxu0 0.0
    %1887 = vmatpush1.msra.mxu0 0.0
    %1888 = vmatprep.subr.mxu0 0.0
    %1889 = vmatpush1.msra.mxu0 0.0
    %1890 = vmatprep.subr.mxu0 0.0
    %1891 = vmatpush1.msra.mxu0 0.0
    %1892 = vmatprep.subr.mxu0 0.0
    %1893 = vmatpush1.msra.mxu0 0.0
    %1894 = vmatprep.subr.mxu0 0.0
    %1895 = vmatpush1.msra.mxu0 0.0
    %1896 = vmatprep.subr.mxu0 0.0
    %1897 = vmatpush1.msra.mxu0 0.0
    %1898 = vmatprep.subr.mxu0 0.0
    %1899 = vmatpush1.msra.mxu0 0.0
    %1900 = vmatprep.subr.mxu0 0.0
    %1901 = vmatpush1.msra.mxu0 0.0
    %1902 = vmatprep.subr.mxu0 0.0
    %1903 = vmatpush1.msra.mxu0 0.0
    %1904 = vmatprep.subr.mxu0 0.0
    %1905 = vmatpush1.msra.mxu0 0.0
    %1906 = vmatprep.subr.mxu0 0.0
    %1907 = vmatpush1.msra.mxu0 0.0
    %1908 = vmatprep.subr.mxu0 0.0
    %1909 = vmatpush1.msra.mxu0 0.0
    %1910 = vmatprep.subr.mxu0 0.0
    %1911 = vmatpush1.msra.mxu0 0.0
    %1912 = vmatprep.subr.mxu0 0.0
    %1913 = vmatpush1.msra.mxu0 0.0
    %1914 = vmatprep.subr.mxu0 0.0
    %1915 = vmatpush1.msra.mxu0 0.0
    %1916 = vmatprep.subr.mxu0 0.0
    %1917 = vmatpush1.msra.mxu0 0.0
    %1918 = vmatprep.subr.mxu0 0.0
    %1919 = vmatpush1.msra.mxu0 0.0
    %1920 = vmatprep.subr.mxu0 0.0
    %1921 = vmatpush1.msra.mxu0 0.0
    %1922 = vmatprep.subr.mxu0 0.0
    %1923 = vmatpush1.msra.mxu0 0.0
    %1924 = vmatprep.subr.mxu0 0.0
    %1925 = vmatpush1.msra.mxu0 0.0
    %1926 = vmatprep.subr.mxu0 0.0
    %1927 = vmatpush1.msra.mxu0 0.0
    %1928 = vmatprep.subr.mxu0 0.0
    %1929 = vmatpush1.msra.mxu0 0.0
    %1930 = vmatprep.subr.mxu0 0.0
    %1931 = vmatpush1.msra.mxu0 0.0
    %1932 = vmatprep.subr.mxu0 0.0
    %1933 = vmatpush1.msra.mxu0 0.0
    %1934 = vmatprep.subr.mxu0 0.0
    %1935 = vmatpush1.msra.mxu0 0.0
    %1936 = vmatprep.mubr.f32.mxu0 0.0
    %1937 = vmatmul.mubr.f32.gmra.mrb[0].mxu0 %v1867
    %v1938 = vpop.f32.mrb[0].mxu0
    %v1939 = vadd.f32 0.0, %v1938
    %v1940 = vpop.f32.mrb[0].mxu0
    %1941 = vmatprep.mubr.f32.mxu0 0.0
    %1942 = vmatmul.mubr.f32.gmra.mrb[0].mxu0 %v1870
    %v1943 = vpop.f32.mrb[0].mxu0
    %v1944 = vadd.f32 0.0, %v1943
    %v1945 = vpop.f32.mrb[0].mxu0
    %1946 = vdwg.mxu0
    %v1947 = vadd.f32 %v1503, %v1939
    %v1948 = vadd.f32 %v1504, %v1944
    %v1949 = vld [vmem:[#allocation2 + $0x250] sm:$0x1]
    %v1950 = vlaneseq
    %v1951 = vshrl.u32 %v1950, 7
    %v1952 = vsub.s32 0, %v1951
    %v1953 = vrot.slane %v1949, %v1952
    %v1954 = vadd.f32 %v1947, %v1953
    %v1955 = vadd.f32 %v1948, %v1953
    %v1956 = vadd.f32 %v167, %v1954
    %v1957 = vadd.f32 %v168, %v1955
    %v1958 = vld [vmem:[#allocation2 + $0x258] sm:$0x1]
    %v1959 = vld [vmem:[#allocation2 + $0x260] sm:$0x1]
    %v1960 = vsel %vm129, %v1956, 0.0
    %1961 = vadd.xlane.f32.xlu0 %v1960
    %v1962 = vpop.xlane.xlu0 %1961
    %v1963 = vsel %vm129, %v1957, 0.0
    %1964 = vadd.xlane.f32.xlu0 %v1963
    %v1965 = vpop.xlane.xlu0 %1964
    %v1966 = vmul.f32 %v1962, %v136
    %v1967 = vmul.f32 %v1965, %v136
    %v1968 = vsub.f32 %v1956, %v1966
    %v1969 = vsub.f32 %v1957, %v1967
    %v1970 = vmul.f32 %v1968, %v1968
    %v1971 = vmul.f32 %v1969, %v1969
    %v1972 = vsel %vm129, %v1970, 0.0
    %1973 = vadd.xlane.f32.xlu0 %v1972
    %v1974 = vpop.xlane.xlu0 %1973
    %v1975 = vsel %vm129, %v1971, 0.0
    %1976 = vadd.xlane.f32.xlu0 %v1975
    %v1977 = vpop.xlane.xlu0 %1976
    %v1978 = vmul.f32 %v1974, %v136
    %v1979 = vmul.f32 %v1977, %v136
    %v1980 = vadd.f32 %v1978, 1e-05
    %v1981 = vadd.f32 %v1979, 1e-05
    %v1982 = vrsqrt.pop %v1980
    %v1983 = vrsqrt.pop %v1981
    %v1984 = vmul.f32 %v1968, %v1982
    %v1985 = vmul.f32 %v1969, %v1983
    %v1986 = vlaneseq
    %v1987 = vshrl.u32 %v1986, 7
    %v1988 = vsub.s32 0, %v1987
    %v1989 = vrot.slane %v1958, %v1988
    %v1990 = vmul.f32 %v1984, %v1989
    %v1991 = vmul.f32 %v1985, %v1989
    %v1992 = vlaneseq
    %v1993 = vshrl.u32 %v1992, 7
    %v1994 = vsub.s32 0, %v1993
    %v1995 = vrot.slane %v1959, %v1994
    %v1996 = vadd.f32 %v1990, %v1995
    %v1997 = vadd.f32 %v1991, %v1995
    %v1998 = vld [vmem:[#allocation2 + $0x268] sm:$0xff]
    %v1999 = vld [vmem:[#allocation2 + $0x270] sm:$0xff]
    %v2000 = vld [vmem:[#allocation2 + $0x278] sm:$0xff]
    %v2001 = vld [vmem:[#allocation2 + $0x280] sm:$0xff]
    %v2002 = vld [vmem:[#allocation2 + $0x288] sm:$0x1]
    %v2003 = vlaneseq
    %v2004 = vshrl.u32 %v2003, 7
    %v2005 = vsub.s32 0, %v2004
    %v2006 = vrot.slane %v2002, %v2005
    %v2008 = vsel %vm129, %v1996, 0
    %v2011 = vsel %vm129, %v1997, 0
    %2013 = vmatprep.subr.mxu0 0.0
    %2014 = vmatpush1.msra.mxu0 %v1998
    %2015 = vmatprep.subr.mxu0 0.0
    %2016 = vmatpush1.msra.mxu0 %v1999
    %2017 = vmatprep.subr.mxu0 0.0
    %2018 = vmatpush1.msra.mxu0 %v2000
    %2019 = vmatprep.subr.mxu0 0.0
    %2020 = vmatpush1.msra.mxu0 %v2001
    %2021 = vmatprep.subr.mxu0 0.0
    %2022 = vmatpush1.msra.mxu0 0.0
    %2023 = vmatprep.subr.mxu0 0.0
    %2024 = vmatpush1.msra.mxu0 0.0
    %2025 = vmatprep.subr.mxu0 0.0
    %2026 = vmatpush1.msra.mxu0 0.0
    %2027 = vmatprep.subr.mxu0 0.0
    %2028 = vmatpush1.msra.mxu0 0.0
    %2029 = vmatprep.subr.mxu0 0.0
    %2030 = vmatpush1.msra.mxu0 0.0
    %2031 = vmatprep.subr.mxu0 0.0
    %2032 = vmatpush1.msra.mxu0 0.0
    %2033 = vmatprep.subr.mxu0 0.0
    %2034 = vmatpush1.msra.mxu0 0.0
    %2035 = vmatprep.subr.mxu0 0.0
    %2036 = vmatpush1.msra.mxu0 0.0
    %2037 = vmatprep.subr.mxu0 0.0
    %2038 = vmatpush1.msra.mxu0 0.0
    %2039 = vmatprep.subr.mxu0 0.0
    %2040 = vmatpush1.msra.mxu0 0.0
    %2041 = vmatprep.subr.mxu0 0.0
    %2042 = vmatpush1.msra.mxu0 0.0
    %2043 = vmatprep.subr.mxu0 0.0
    %2044 = vmatpush1.msra.mxu0 0.0
    %2045 = vmatprep.subr.mxu0 0.0
    %2046 = vmatpush1.msra.mxu0 0.0
    %2047 = vmatprep.subr.mxu0 0.0
    %2048 = vmatpush1.msra.mxu0 0.0
    %2049 = vmatprep.subr.mxu0 0.0
    %2050 = vmatpush1.msra.mxu0 0.0
    %2051 = vmatprep.subr.mxu0 0.0
    %2052 = vmatpush1.msra.mxu0 0.0
    %2053 = vmatprep.subr.mxu0 0.0
    %2054 = vmatpush1.msra.mxu0 0.0
    %2055 = vmatprep.subr.mxu0 0.0
    %2056 = vmatpush1.msra.mxu0 0.0
    %2057 = vmatprep.subr.mxu0 0.0
    %2058 = vmatpush1.msra.mxu0 0.0
    %2059 = vmatprep.subr.mxu0 0.0
    %2060 = vmatpush1.msra.mxu0 0.0
    %2061 = vmatprep.subr.mxu0 0.0
    %2062 = vmatpush1.msra.mxu0 0.0
    %2063 = vmatprep.subr.mxu0 0.0
    %2064 = vmatpush1.msra.mxu0 0.0
    %2065 = vmatprep.subr.mxu0 0.0
    %2066 = vmatpush1.msra.mxu0 0.0
    %2067 = vmatprep.subr.mxu0 0.0
    %2068 = vmatpush1.msra.mxu0 0.0
    %2069 = vmatprep.subr.mxu0 0.0
    %2070 = vmatpush1.msra.mxu0 0.0
    %2071 = vmatprep.subr.mxu0 0.0
    %2072 = vmatpush1.msra.mxu0 0.0
    %2073 = vmatprep.subr.mxu0 0.0
    %2074 = vmatpush1.msra.mxu0 0.0
    %2075 = vmatprep.subr.mxu0 0.0
    %2076 = vmatpush1.msra.mxu0 0.0
    %2077 = vmatprep.mubr.f32.mxu0 0.0
    %2078 = vmatmul.mubr.f32.gmra.mrb[0].mxu0 %v2008
    %v2079 = vpop.f32.mrb[0].mxu0
    %v2080 = vadd.f32 %v2006, %v2079
    %v2081 = vpop.f32.mrb[0].mxu0
    %2082 = vmatprep.mubr.f32.mxu0 0.0
    %2083 = vmatmul.mubr.f32.gmra.mrb[0].mxu0 %v2011
    %v2084 = vpop.f32.mrb[0].mxu0
    %v2085 = vadd.f32 %v2006, %v2084
    %v2086 = vpop.f32.mrb[0].mxu0
    %2087 = vdwg.mxu0
    %v2088 = vld [vmem:[#allocation2 + $0x290] sm:$0xff]
    %v2089 = vld [vmem:[#allocation2 + $0x298] sm:$0xff]
    %v2090 = vld [vmem:[#allocation2 + $0x2a0] sm:$0xff]
    %v2091 = vld [vmem:[#allocation2 + $0x2a8] sm:$0xff]
    %v2092 = vld [vmem:[#allocation2 + $0x2b0] sm:$0x1]
    %v2093 = vlaneseq
    %v2094 = vshrl.u32 %v2093, 7
    %v2095 = vsub.s32 0, %v2094
    %v2096 = vrot.slane %v2092, %v2095
    %v2098 = vsel %vm129, %v27, 0
    %v2101 = vsel %vm129, %v28, 0
    %2103 = vmatprep.subr.mxu0 0.0
    %2104 = vmatpush1.msra.mxu0 %v2088
    %2105 = vmatprep.subr.mxu0 0.0
    %2106 = vmatpush1.msra.mxu0 %v2089
    %2107 = vmatprep.subr.mxu0 0.0
    %2108 = vmatpush1.msra.mxu0 %v2090
    %2109 = vmatprep.subr.mxu0 0.0
    %2110 = vmatpush1.msra.mxu0 %v2091
    %2111 = vmatprep.subr.mxu0 0.0
    %2112 = vmatpush1.msra.mxu0 0.0
    %2113 = vmatprep.subr.mxu0 0.0
    %2114 = vmatpush1.msra.mxu0 0.0
    %2115 = vmatprep.subr.mxu0 0.0
    %2116 = vmatpush1.msra.mxu0 0.0
    %2117 = vmatprep.subr.mxu0 0.0
    %2118 = vmatpush1.msra.mxu0 0.0
    %2119 = vmatprep.subr.mxu0 0.0
    %2120 = vmatpush1.msra.mxu0 0.0
    %2121 = vmatprep.subr.mxu0 0.0
    %2122 = vmatpush1.msra.mxu0 0.0
    %2123 = vmatprep.subr.mxu0 0.0
    %2124 = vmatpush1.msra.mxu0 0.0
    %2125 = vmatprep.subr.mxu0 0.0
    %2126 = vmatpush1.msra.mxu0 0.0
    %2127 = vmatprep.subr.mxu0 0.0
    %2128 = vmatpush1.msra.mxu0 0.0
    %2129 = vmatprep.subr.mxu0 0.0
    %2130 = vmatpush1.msra.mxu0 0.0
    %2131 = vmatprep.subr.mxu0 0.0
    %2132 = vmatpush1.msra.mxu0 0.0
    %2133 = vmatprep.subr.mxu0 0.0
    %2134 = vmatpush1.msra.mxu0 0.0
    %2135 = vmatprep.subr.mxu0 0.0
    %2136 = vmatpush1.msra.mxu0 0.0
    %2137 = vmatprep.subr.mxu0 0.0
    %2138 = vmatpush1.msra.mxu0 0.0
    %2139 = vmatprep.subr.mxu0 0.0
    %2140 = vmatpush1.msra.mxu0 0.0
    %2141 = vmatprep.subr.mxu0 0.0
    %2142 = vmatpush1.msra.mxu0 0.0
    %2143 = vmatprep.subr.mxu0 0.0
    %2144 = vmatpush1.msra.mxu0 0.0
    %2145 = vmatprep.subr.mxu0 0.0
    %2146 = vmatpush1.msra.mxu0 0.0
    %2147 = vmatprep.subr.mxu0 0.0
    %2148 = vmatpush1.msra.mxu0 0.0
    %2149 = vmatprep.subr.mxu0 0.0
    %2150 = vmatpush1.msra.mxu0 0.0
    %2151 = vmatprep.subr.mxu0 0.0
    %2152 = vmatpush1.msra.mxu0 0.0
    %2153 = vmatprep.subr.mxu0 0.0
    %2154 = vmatpush1.msra.mxu0 0.0
    %2155 = vmatprep.subr.mxu0 0.0
    %2156 = vmatpush1.msra.mxu0 0.0
    %2157 = vmatprep.subr.mxu0 0.0
    %2158 = vmatpush1.msra.mxu0 0.0
    %2159 = vmatprep.subr.mxu0 0.0
    %2160 = vmatpush1.msra.mxu0 0.0
    %2161 = vmatprep.subr.mxu0 0.0
    %2162 = vmatpush1.msra.mxu0 0.0
    %2163 = vmatprep.subr.mxu0 0.0
    %2164 = vmatpush1.msra.mxu0 0.0
    %2165 = vmatprep.subr.mxu0 0.0
    %2166 = vmatpush1.msra.mxu0 0.0
    %2167 = vmatprep.mubr.f32.mxu0 0.0
    %2168 = vmatmul.mubr.f32.gmra.mrb[0].mxu0 %v2098
    %v2169 = vpop.f32.mrb[0].mxu0
    %v2170 = vadd.f32 %v2096, %v2169
    %v2171 = vpop.f32.mrb[0].mxu0
    %2172 = vmatprep.mubr.f32.mxu0 0.0
    %2173 = vmatmul.mubr.f32.gmra.mrb[0].mxu0 %v2101
    %v2174 = vpop.f32.mrb[0].mxu0
    %v2175 = vadd.f32 %v2096, %v2174
    %v2176 = vpop.f32.mrb[0].mxu0
    %2177 = vdwg.mxu0
    %v2178 = vld [vmem:[#allocation2 + $0x2b8] sm:$0xff]
    %v2179 = vld [vmem:[#allocation2 + $0x2c0] sm:$0xff]
    %v2180 = vld [vmem:[#allocation2 + $0x2c8] sm:$0xff]
    %v2181 = vld [vmem:[#allocation2 + $0x2d0] sm:$0xff]
    %v2182 = vld [vmem:[#allocation2 + $0x2d8] sm:$0x1]
    %v2183 = vlaneseq
    %v2184 = vshrl.u32 %v2183, 7
    %v2185 = vsub.s32 0, %v2184
    %v2186 = vrot.slane %v2182, %v2185
    %2187 = vmatprep.subr.mxu0 0.0
    %2188 = vmatpush1.msra.mxu0 %v2178
    %2189 = vmatprep.subr.mxu0 0.0
    %2190 = vmatpush1.msra.mxu0 %v2179
    %2191 = vmatprep.subr.mxu0 0.0
    %2192 = vmatpush1.msra.mxu0 %v2180
    %2193 = vmatprep.subr.mxu0 0.0
    %2194 = vmatpush1.msra.mxu0 %v2181
    %2195 = vmatprep.subr.mxu0 0.0
    %2196 = vmatpush1.msra.mxu0 0.0
    %2197 = vmatprep.subr.mxu0 0.0
    %2198 = vmatpush1.msra.mxu0 0.0
    %2199 = vmatprep.subr.mxu0 0.0
    %2200 = vmatpush1.msra.mxu0 0.0
    %2201 = vmatprep.subr.mxu0 0.0
    %2202 = vmatpush1.msra.mxu0 0.0
    %2203 = vmatprep.subr.mxu0 0.0
    %2204 = vmatpush1.msra.mxu0 0.0
    %2205 = vmatprep.subr.mxu0 0.0
    %2206 = vmatpush1.msra.mxu0 0.0
    %2207 = vmatprep.subr.mxu0 0.0
    %2208 = vmatpush1.msra.mxu0 0.0
    %2209 = vmatprep.subr.mxu0 0.0
    %2210 = vmatpush1.msra.mxu0 0.0
    %2211 = vmatprep.subr.mxu0 0.0
    %2212 = vmatpush1.msra.mxu0 0.0
    %2213 = vmatprep.subr.mxu0 0.0
    %2214 = vmatpush1.msra.mxu0 0.0
    %2215 = vmatprep.subr.mxu0 0.0
    %2216 = vmatpush1.msra.mxu0 0.0
    %2217 = vmatprep.subr.mxu0 0.0
    %2218 = vmatpush1.msra.mxu0 0.0
    %2219 = vmatprep.subr.mxu0 0.0
    %2220 = vmatpush1.msra.mxu0 0.0
    %2221 = vmatprep.subr.mxu0 0.0
    %2222 = vmatpush1.msra.mxu0 0.0
    %2223 = vmatprep.subr.mxu0 0.0
    %2224 = vmatpush1.msra.mxu0 0.0
    %2225 = vmatprep.subr.mxu0 0.0
    %2226 = vmatpush1.msra.mxu0 0.0
    %2227 = vmatprep.subr.mxu0 0.0
    %2228 = vmatpush1.msra.mxu0 0.0
    %2229 = vmatprep.subr.mxu0 0.0
    %2230 = vmatpush1.msra.mxu0 0.0
    %2231 = vmatprep.subr.mxu0 0.0
    %2232 = vmatpush1.msra.mxu0 0.0
    %2233 = vmatprep.subr.mxu0 0.0
    %2234 = vmatpush1.msra.mxu0 0.0
    %2235 = vmatprep.subr.mxu0 0.0
    %2236 = vmatpush1.msra.mxu0 0.0
    %2237 = vmatprep.subr.mxu0 0.0
    %2238 = vmatpush1.msra.mxu0 0.0
    %2239 = vmatprep.subr.mxu0 0.0
    %2240 = vmatpush1.msra.mxu0 0.0
    %2241 = vmatprep.subr.mxu0 0.0
    %2242 = vmatpush1.msra.mxu0 0.0
    %2243 = vmatprep.subr.mxu0 0.0
    %2244 = vmatpush1.msra.mxu0 0.0
    %2245 = vmatprep.subr.mxu0 0.0
    %2246 = vmatpush1.msra.mxu0 0.0
    %2247 = vmatprep.subr.mxu0 0.0
    %2248 = vmatpush1.msra.mxu0 0.0
    %2249 = vmatprep.subr.mxu0 0.0
    %2250 = vmatpush1.msra.mxu0 0.0
    %2251 = vmatprep.mubr.f32.mxu0 0.0
    %2252 = vmatmul.mubr.f32.gmra.mrb[0].mxu0 %v2098
    %v2253 = vpop.f32.mrb[0].mxu0
    %v2254 = vadd.f32 %v2186, %v2253
    %v2255 = vpop.f32.mrb[0].mxu0
    %2256 = vmatprep.mubr.f32.mxu0 0.0
    %2257 = vmatmul.mubr.f32.gmra.mrb[0].mxu0 %v2101
    %v2258 = vpop.f32.mrb[0].mxu0
    %v2259 = vadd.f32 %v2186, %v2258
    %v2260 = vpop.f32.mrb[0].mxu0
    %2261 = vdwg.mxu0
    %v2263 = vsel %vm427, %v2080, 0
    %v2266 = vsel %vm427, %v2085, 0
    %v2269 = vsel %vm427, %v2170, 0
    %v2272 = vsel %vm427, %v2175, 0
    %2274 = vmatprep.subr.mxu0 0.0
    %2275 = vmatpush1.xpose.msra.mxu0 %v2269
    %2276 = vmatprep.subr.mxu0 0.0
    %2277 = vmatpush1.xpose.msra.mxu0 %v2272
    %2278 = vmatprep.subr.mxu0 0.0
    %2279 = vmatpush1.xpose.msra.mxu0 0.0
    %2280 = vmatprep.subr.mxu0 0.0
    %2281 = vmatpush1.xpose.msra.mxu0 0.0
    %2282 = vmatprep.subr.mxu0 0.0
    %2283 = vmatpush1.xpose.msra.mxu0 0.0
    %2284 = vmatprep.subr.mxu0 0.0
    %2285 = vmatpush1.xpose.msra.mxu0 0.0
    %2286 = vmatprep.subr.mxu0 0.0
    %2287 = vmatpush1.xpose.msra.mxu0 0.0
    %2288 = vmatprep.subr.mxu0 0.0
    %2289 = vmatpush1.xpose.msra.mxu0 0.0
    %2290 = vmatprep.subr.mxu0 0.0
    %2291 = vmatpush1.xpose.msra.mxu0 0.0
    %2292 = vmatprep.subr.mxu0 0.0
    %2293 = vmatpush1.xpose.msra.mxu0 0.0
    %2294 = vmatprep.subr.mxu0 0.0
    %2295 = vmatpush1.xpose.msra.mxu0 0.0
    %2296 = vmatprep.subr.mxu0 0.0
    %2297 = vmatpush1.xpose.msra.mxu0 0.0
    %2298 = vmatprep.subr.mxu0 0.0
    %2299 = vmatpush1.xpose.msra.mxu0 0.0
    %2300 = vmatprep.subr.mxu0 0.0
    %2301 = vmatpush1.xpose.msra.mxu0 0.0
    %2302 = vmatprep.subr.mxu0 0.0
    %2303 = vmatpush1.xpose.msra.mxu0 0.0
    %2304 = vmatprep.subr.mxu0 0.0
    %2305 = vmatpush1.xpose.msra.mxu0 0.0
    %2306 = vmatprep.subr.mxu0 0.0
    %2307 = vmatpush1.xpose.msra.mxu0 0.0
    %2308 = vmatprep.subr.mxu0 0.0
    %2309 = vmatpush1.xpose.msra.mxu0 0.0
    %2310 = vmatprep.subr.mxu0 0.0
    %2311 = vmatpush1.xpose.msra.mxu0 0.0
    %2312 = vmatprep.subr.mxu0 0.0
    %2313 = vmatpush1.xpose.msra.mxu0 0.0
    %2314 = vmatprep.subr.mxu0 0.0
    %2315 = vmatpush1.xpose.msra.mxu0 0.0
    %2316 = vmatprep.subr.mxu0 0.0
    %2317 = vmatpush1.xpose.msra.mxu0 0.0
    %2318 = vmatprep.subr.mxu0 0.0
    %2319 = vmatpush1.xpose.msra.mxu0 0.0
    %2320 = vmatprep.subr.mxu0 0.0
    %2321 = vmatpush1.xpose.msra.mxu0 0.0
    %2322 = vmatprep.subr.mxu0 0.0
    %2323 = vmatpush1.xpose.msra.mxu0 0.0
    %2324 = vmatprep.subr.mxu0 0.0
    %2325 = vmatpush1.xpose.msra.mxu0 0.0
    %2326 = vmatprep.subr.mxu0 0.0
    %2327 = vmatpush1.xpose.msra.mxu0 0.0
    %2328 = vmatprep.subr.mxu0 0.0
    %2329 = vmatpush1.xpose.msra.mxu0 0.0
    %2330 = vmatprep.subr.mxu0 0.0
    %2331 = vmatpush1.xpose.msra.mxu0 0.0
    %2332 = vmatprep.subr.mxu0 0.0
    %2333 = vmatpush1.xpose.msra.mxu0 0.0
    %2334 = vmatprep.subr.mxu0 0.0
    %2335 = vmatpush1.xpose.msra.mxu0 0.0
    %2336 = vmatprep.subr.mxu0 0.0
    %2337 = vmatpush1.xpose.msra.mxu0 0.0
    %2338 = vmatprep.mubr.f32.mxu0 0.0
    %2339 = vmatmul.mubr.f32.gmra.mrb[0].mxu0 %v2263
    %v2340 = vpop.f32.mrb[0].mxu0
    %v2341 = vadd.f32 %v31, %v2340
    %v2342 = vpop.f32.mrb[0].mxu0
    %2343 = vmatprep.mubr.f32.mxu0 0.0
    %2344 = vmatmul.mubr.f32.gmra.mrb[0].mxu0 %v2266
    %v2345 = vpop.f32.mrb[0].mxu0
    %v2346 = vadd.f32 %v32, %v2345
    %v2347 = vpop.f32.mrb[0].mxu0
    %2348 = vdwg.mxu0
    %v2349 = vsel %vm515, %v2341, -inf
    %2350 = vmax.xlane.f32.xlu0 %v2349
    %v2351 = vpop.xlane.xlu0 %2350
    %v2352 = vsel %vm515, %v2346, -inf
    %2353 = vmax.xlane.f32.xlu0 %v2352
    %v2354 = vpop.xlane.xlu0 %2353
    %v2355 = vsub.f32 %v2341, %v2351
    %v2356 = vsub.f32 %v2346, %v2354
    %v2357 = vmul.f32 %v2355, 1.442695
    %v2358 = vpow.pop %v2357
    %v2359 = vmul.f32 %v2356, 1.442695
    %v2360 = vpow.pop %v2359
    %v2361 = vsel %vm515, %v2358, 0.0
    %2362 = vadd.xlane.f32.xlu0 %v2361
    %v2363 = vpop.xlane.xlu0 %2362
    %v2364 = vsel %vm515, %v2360, 0.0
    %2365 = vadd.xlane.f32.xlu0 %v2364
    %v2366 = vpop.xlane.xlu0 %2365
    %v2367 = vrcp.pop %v2363
    %v2368 = vmul.f32 %v2358, %v2367
    %v2369 = vrcp.pop %v2366
    %v2370 = vmul.f32 %v2360, %v2369
    %v2371 = vld [vmem:[#allocation2 + $0x2e0] sm:$0xff]
    %v2372 = vld [vmem:[#allocation2 + $0x2e8] sm:$0xff]
    %v2373 = vld [vmem:[#allocation2 + $0x2f0] sm:$0xff]
    %v2374 = vld [vmem:[#allocation2 + $0x2f8] sm:$0xff]
    %v2375 = vld [vmem:[#allocation2 + $0x300] sm:$0x1]
    %v2376 = vlaneseq
    %v2377 = vshrl.u32 %v2376, 7
    %v2378 = vsub.s32 0, %v2377
    %v2379 = vrot.slane %v2375, %v2378
    %2380 = vmatprep.subr.mxu0 0.0
    %2381 = vmatpush1.msra.mxu0 %v2371
    %2382 = vmatprep.subr.mxu0 0.0
    %2383 = vmatpush1.msra.mxu0 %v2372
    %2384 = vmatprep.subr.mxu0 0.0
    %2385 = vmatpush1.msra.mxu0 %v2373
    %2386 = vmatprep.subr.mxu0 0.0
    %2387 = vmatpush1.msra.mxu0 %v2374
    %2388 = vmatprep.subr.mxu0 0.0
    %2389 = vmatpush1.msra.mxu0 0.0
    %2390 = vmatprep.subr.mxu0 0.0
    %2391 = vmatpush1.msra.mxu0 0.0
    %2392 = vmatprep.subr.mxu0 0.0
    %2393 = vmatpush1.msra.mxu0 0.0
    %2394 = vmatprep.subr.mxu0 0.0
    %2395 = vmatpush1.msra.mxu0 0.0
    %2396 = vmatprep.subr.mxu0 0.0
    %2397 = vmatpush1.msra.mxu0 0.0
    %2398 = vmatprep.subr.mxu0 0.0
    %2399 = vmatpush1.msra.mxu0 0.0
    %2400 = vmatprep.subr.mxu0 0.0
    %2401 = vmatpush1.msra.mxu0 0.0
    %2402 = vmatprep.subr.mxu0 0.0
    %2403 = vmatpush1.msra.mxu0 0.0
    %2404 = vmatprep.subr.mxu0 0.0
    %2405 = vmatpush1.msra.mxu0 0.0
    %2406 = vmatprep.subr.mxu0 0.0
    %2407 = vmatpush1.msra.mxu0 0.0
    %2408 = vmatprep.subr.mxu0 0.0
    %2409 = vmatpush1.msra.mxu0 0.0
    %2410 = vmatprep.subr.mxu0 0.0
    %2411 = vmatpush1.msra.mxu0 0.0
    %2412 = vmatprep.subr.mxu0 0.0
    %2413 = vmatpush1.msra.mxu0 0.0
    %2414 = vmatprep.subr.mxu0 0.0
    %2415 = vmatpush1.msra.mxu0 0.0
    %2416 = vmatprep.subr.mxu0 0.0
    %2417 = vmatpush1.msra.mxu0 0.0
    %2418 = vmatprep.subr.mxu0 0.0
    %2419 = vmatpush1.msra.mxu0 0.0
    %2420 = vmatprep.subr.mxu0 0.0
    %2421 = vmatpush1.msra.mxu0 0.0
    %2422 = vmatprep.subr.mxu0 0.0
    %2423 = vmatpush1.msra.mxu0 0.0
    %2424 = vmatprep.subr.mxu0 0.0
    %2425 = vmatpush1.msra.mxu0 0.0
    %2426 = vmatprep.subr.mxu0 0.0
    %2427 = vmatpush1.msra.mxu0 0.0
    %2428 = vmatprep.subr.mxu0 0.0
    %2429 = vmatpush1.msra.mxu0 0.0
    %2430 = vmatprep.subr.mxu0 0.0
    %2431 = vmatpush1.msra.mxu0 0.0
    %2432 = vmatprep.subr.mxu0 0.0
    %2433 = vmatpush1.msra.mxu0 0.0
    %2434 = vmatprep.subr.mxu0 0.0
    %2435 = vmatpush1.msra.mxu0 0.0
    %2436 = vmatprep.subr.mxu0 0.0
    %2437 = vmatpush1.msra.mxu0 0.0
    %2438 = vmatprep.subr.mxu0 0.0
    %2439 = vmatpush1.msra.mxu0 0.0
    %2440 = vmatprep.subr.mxu0 0.0
    %2441 = vmatpush1.msra.mxu0 0.0
    %2442 = vmatprep.subr.mxu0 0.0
    %2443 = vmatpush1.msra.mxu0 0.0
    %2444 = vmatprep.mubr.f32.mxu0 0.0
    %2445 = vmatmul.mubr.f32.gmra.mrb[0].mxu0 %v2008
    %v2446 = vpop.f32.mrb[0].mxu0
    %v2447 = vadd.f32 %v2379, %v2446
    %v2448 = vpop.f32.mrb[0].mxu0
    %2449 = vmatprep.mubr.f32.mxu0 0.0
    %2450 = vmatmul.mubr.f32.gmra.mrb[0].mxu0 %v2011
    %v2451 = vpop.f32.mrb[0].mxu0
    %v2452 = vadd.f32 %v2379, %v2451
    %v2453 = vpop.f32.mrb[0].mxu0
    %2454 = vdwg.mxu0
    %v2455 = vld [vmem:[#allocation2 + $0x308] sm:$0xff]
    %v2456 = vld [vmem:[#allocation2 + $0x310] sm:$0xff]
    %v2457 = vld [vmem:[#allocation2 + $0x318] sm:$0xff]
    %v2458 = vld [vmem:[#allocation2 + $0x320] sm:$0xff]
    %v2459 = vld [vmem:[#allocation2 + $0x328] sm:$0x1]
    %v2460 = vlaneseq
    %v2461 = vshrl.u32 %v2460, 7
    %v2462 = vsub.s32 0, %v2461
    %v2463 = vrot.slane %v2459, %v2462
    %2464 = vmatprep.subr.mxu0 0.0
    %2465 = vmatpush1.msra.mxu0 %v2455
    %2466 = vmatprep.subr.mxu0 0.0
    %2467 = vmatpush1.msra.mxu0 %v2456
    %2468 = vmatprep.subr.mxu0 0.0
    %2469 = vmatpush1.msra.mxu0 %v2457
    %2470 = vmatprep.subr.mxu0 0.0
    %2471 = vmatpush1.msra.mxu0 %v2458
    %2472 = vmatprep.subr.mxu0 0.0
    %2473 = vmatpush1.msra.mxu0 0.0
    %2474 = vmatprep.subr.mxu0 0.0
    %2475 = vmatpush1.msra.mxu0 0.0
    %2476 = vmatprep.subr.mxu0 0.0
    %2477 = vmatpush1.msra.mxu0 0.0
    %2478 = vmatprep.subr.mxu0 0.0
    %2479 = vmatpush1.msra.mxu0 0.0
    %2480 = vmatprep.subr.mxu0 0.0
    %2481 = vmatpush1.msra.mxu0 0.0
    %2482 = vmatprep.subr.mxu0 0.0
    %2483 = vmatpush1.msra.mxu0 0.0
    %2484 = vmatprep.subr.mxu0 0.0
    %2485 = vmatpush1.msra.mxu0 0.0
    %2486 = vmatprep.subr.mxu0 0.0
    %2487 = vmatpush1.msra.mxu0 0.0
    %2488 = vmatprep.subr.mxu0 0.0
    %2489 = vmatpush1.msra.mxu0 0.0
    %2490 = vmatprep.subr.mxu0 0.0
    %2491 = vmatpush1.msra.mxu0 0.0
    %2492 = vmatprep.subr.mxu0 0.0
    %2493 = vmatpush1.msra.mxu0 0.0
    %2494 = vmatprep.subr.mxu0 0.0
    %2495 = vmatpush1.msra.mxu0 0.0
    %2496 = vmatprep.subr.mxu0 0.0
    %2497 = vmatpush1.msra.mxu0 0.0
    %2498 = vmatprep.subr.mxu0 0.0
    %2499 = vmatpush1.msra.mxu0 0.0
    %2500 = vmatprep.subr.mxu0 0.0
    %2501 = vmatpush1.msra.mxu0 0.0
    %2502 = vmatprep.subr.mxu0 0.0
    %2503 = vmatpush1.msra.mxu0 0.0
    %2504 = vmatprep.subr.mxu0 0.0
    %2505 = vmatpush1.msra.mxu0 0.0
    %2506 = vmatprep.subr.mxu0 0.0
    %2507 = vmatpush1.msra.mxu0 0.0
    %2508 = vmatprep.subr.mxu0 0.0
    %2509 = vmatpush1.msra.mxu0 0.0
    %2510 = vmatprep.subr.mxu0 0.0
    %2511 = vmatpush1.msra.mxu0 0.0
    %2512 = vmatprep.subr.mxu0 0.0
    %2513 = vmatpush1.msra.mxu0 0.0
    %2514 = vmatprep.subr.mxu0 0.0
    %2515 = vmatpush1.msra.mxu0 0.0
    %2516 = vmatprep.subr.mxu0 0.0
    %2517 = vmatpush1.msra.mxu0 0.0
    %2518 = vmatprep.subr.mxu0 0.0
    %2519 = vmatpush1.msra.mxu0 0.0
    %2520 = vmatprep.subr.mxu0 0.0
    %2521 = vmatpush1.msra.mxu0 0.0
    %2522 = vmatprep.subr.mxu0 0.0
    %2523 = vmatpush1.msra.mxu0 0.0
    %2524 = vmatprep.subr.mxu0 0.0
    %2525 = vmatpush1.msra.mxu0 0.0
    %2526 = vmatprep.subr.mxu0 0.0
    %2527 = vmatpush1.msra.mxu0 0.0
    %2528 = vmatprep.mubr.f32.mxu0 0.0
    %2529 = vmatmul.mubr.f32.gmra.mrb[0].mxu0 %v2098
    %v2530 = vpop.f32.mrb[0].mxu0
    %v2531 = vadd.f32 %v2463, %v2530
    %v2532 = vpop.f32.mrb[0].mxu0
    %2533 = vmatprep.mubr.f32.mxu0 0.0
    %2534 = vmatmul.mubr.f32.gmra.mrb[0].mxu0 %v2101
    %v2535 = vpop.f32.mrb[0].mxu0
    %v2536 = vadd.f32 %v2463, %v2535
    %v2537 = vpop.f32.mrb[0].mxu0
    %2538 = vdwg.mxu0
    %v2539 = vld [vmem:[#allocation2 + $0x330] sm:$0xff]
    %v2540 = vld [vmem:[#allocation2 + $0x338] sm:$0xff]
    %v2541 = vld [vmem:[#allocation2 + $0x340] sm:$0xff]
    %v2542 = vld [vmem:[#allocation2 + $0x348] sm:$0xff]
    %v2543 = vld [vmem:[#allocation2 + $0x350] sm:$0x1]
    %v2544 = vlaneseq
    %v2545 = vshrl.u32 %v2544, 7
    %v2546 = vsub.s32 0, %v2545
    %v2547 = vrot.slane %v2543, %v2546
    %2548 = vmatprep.subr.mxu0 0.0
    %2549 = vmatpush1.msra.mxu0 %v2539
    %2550 = vmatprep.subr.mxu0 0.0
    %2551 = vmatpush1.msra.mxu0 %v2540
    %2552 = vmatprep.subr.mxu0 0.0
    %2553 = vmatpush1.msra.mxu0 %v2541
    %2554 = vmatprep.subr.mxu0 0.0
    %2555 = vmatpush1.msra.mxu0 %v2542
    %2556 = vmatprep.subr.mxu0 0.0
    %2557 = vmatpush1.msra.mxu0 0.0
    %2558 = vmatprep.subr.mxu0 0.0
    %2559 = vmatpush1.msra.mxu0 0.0
    %2560 = vmatprep.subr.mxu0 0.0
    %2561 = vmatpush1.msra.mxu0 0.0
    %2562 = vmatprep.subr.mxu0 0.0
    %2563 = vmatpush1.msra.mxu0 0.0
    %2564 = vmatprep.subr.mxu0 0.0
    %2565 = vmatpush1.msra.mxu0 0.0
    %2566 = vmatprep.subr.mxu0 0.0
    %2567 = vmatpush1.msra.mxu0 0.0
    %2568 = vmatprep.subr.mxu0 0.0
    %2569 = vmatpush1.msra.mxu0 0.0
    %2570 = vmatprep.subr.mxu0 0.0
    %2571 = vmatpush1.msra.mxu0 0.0
    %2572 = vmatprep.subr.mxu0 0.0
    %2573 = vmatpush1.msra.mxu0 0.0
    %2574 = vmatprep.subr.mxu0 0.0
    %2575 = vmatpush1.msra.mxu0 0.0
    %2576 = vmatprep.subr.mxu0 0.0
    %2577 = vmatpush1.msra.mxu0 0.0
    %2578 = vmatprep.subr.mxu0 0.0
    %2579 = vmatpush1.msra.mxu0 0.0
    %2580 = vmatprep.subr.mxu0 0.0
    %2581 = vmatpush1.msra.mxu0 0.0
    %2582 = vmatprep.subr.mxu0 0.0
    %2583 = vmatpush1.msra.mxu0 0.0
    %2584 = vmatprep.subr.mxu0 0.0
    %2585 = vmatpush1.msra.mxu0 0.0
    %2586 = vmatprep.subr.mxu0 0.0
    %2587 = vmatpush1.msra.mxu0 0.0
    %2588 = vmatprep.subr.mxu0 0.0
    %2589 = vmatpush1.msra.mxu0 0.0
    %2590 = vmatprep.subr.mxu0 0.0
    %2591 = vmatpush1.msra.mxu0 0.0
    %2592 = vmatprep.subr.mxu0 0.0
    %2593 = vmatpush1.msra.mxu0 0.0
    %2594 = vmatprep.subr.mxu0 0.0
    %2595 = vmatpush1.msra.mxu0 0.0
    %2596 = vmatprep.subr.mxu0 0.0
    %2597 = vmatpush1.msra.mxu0 0.0
    %2598 = vmatprep.subr.mxu0 0.0
    %2599 = vmatpush1.msra.mxu0 0.0
    %2600 = vmatprep.subr.mxu0 0.0
    %2601 = vmatpush1.msra.mxu0 0.0
    %2602 = vmatprep.subr.mxu0 0.0
    %2603 = vmatpush1.msra.mxu0 0.0
    %2604 = vmatprep.subr.mxu0 0.0
    %2605 = vmatpush1.msra.mxu0 0.0
    %2606 = vmatprep.subr.mxu0 0.0
    %2607 = vmatpush1.msra.mxu0 0.0
    %2608 = vmatprep.subr.mxu0 0.0
    %2609 = vmatpush1.msra.mxu0 0.0
    %2610 = vmatprep.subr.mxu0 0.0
    %2611 = vmatpush1.msra.mxu0 0.0
    %2612 = vmatprep.mubr.f32.mxu0 0.0
    %2613 = vmatmul.mubr.f32.gmra.mrb[0].mxu0 %v2098
    %v2614 = vpop.f32.mrb[0].mxu0
    %v2615 = vadd.f32 %v2547, %v2614
    %v2616 = vpop.f32.mrb[0].mxu0
    %2617 = vmatprep.mubr.f32.mxu0 0.0
    %2618 = vmatmul.mubr.f32.gmra.mrb[0].mxu0 %v2101
    %v2619 = vpop.f32.mrb[0].mxu0
    %v2620 = vadd.f32 %v2547, %v2619
    %v2621 = vpop.f32.mrb[0].mxu0
    %2622 = vdwg.mxu0
    %v2624 = vsel %vm427, %v2447, 0
    %v2627 = vsel %vm427, %v2452, 0
    %v2630 = vsel %vm427, %v2531, 0
    %v2633 = vsel %vm427, %v2536, 0
    %2635 = vmatprep.subr.mxu0 0.0
    %2636 = vmatpush1.xpose.msra.mxu0 %v2630
    %2637 = vmatprep.subr.mxu0 0.0
    %2638 = vmatpush1.xpose.msra.mxu0 %v2633
    %2639 = vmatprep.subr.mxu0 0.0
    %2640 = vmatpush1.xpose.msra.mxu0 0.0
    %2641 = vmatprep.subr.mxu0 0.0
    %2642 = vmatpush1.xpose.msra.mxu0 0.0
    %2643 = vmatprep.subr.mxu0 0.0
    %2644 = vmatpush1.xpose.msra.mxu0 0.0
    %2645 = vmatprep.subr.mxu0 0.0
    %2646 = vmatpush1.xpose.msra.mxu0 0.0
    %2647 = vmatprep.subr.mxu0 0.0
    %2648 = vmatpush1.xpose.msra.mxu0 0.0
    %2649 = vmatprep.subr.mxu0 0.0
    %2650 = vmatpush1.xpose.msra.mxu0 0.0
    %2651 = vmatprep.subr.mxu0 0.0
    %2652 = vmatpush1.xpose.msra.mxu0 0.0
    %2653 = vmatprep.subr.mxu0 0.0
    %2654 = vmatpush1.xpose.msra.mxu0 0.0
    %2655 = vmatprep.subr.mxu0 0.0
    %2656 = vmatpush1.xpose.msra.mxu0 0.0
    %2657 = vmatprep.subr.mxu0 0.0
    %2658 = vmatpush1.xpose.msra.mxu0 0.0
    %2659 = vmatprep.subr.mxu0 0.0
    %2660 = vmatpush1.xpose.msra.mxu0 0.0
    %2661 = vmatprep.subr.mxu0 0.0
    %2662 = vmatpush1.xpose.msra.mxu0 0.0
    %2663 = vmatprep.subr.mxu0 0.0
    %2664 = vmatpush1.xpose.msra.mxu0 0.0
    %2665 = vmatprep.subr.mxu0 0.0
    %2666 = vmatpush1.xpose.msra.mxu0 0.0
    %2667 = vmatprep.subr.mxu0 0.0
    %2668 = vmatpush1.xpose.msra.mxu0 0.0
    %2669 = vmatprep.subr.mxu0 0.0
    %2670 = vmatpush1.xpose.msra.mxu0 0.0
    %2671 = vmatprep.subr.mxu0 0.0
    %2672 = vmatpush1.xpose.msra.mxu0 0.0
    %2673 = vmatprep.subr.mxu0 0.0
    %2674 = vmatpush1.xpose.msra.mxu0 0.0
    %2675 = vmatprep.subr.mxu0 0.0
    %2676 = vmatpush1.xpose.msra.mxu0 0.0
    %2677 = vmatprep.subr.mxu0 0.0
    %2678 = vmatpush1.xpose.msra.mxu0 0.0
    %2679 = vmatprep.subr.mxu0 0.0
    %2680 = vmatpush1.xpose.msra.mxu0 0.0
    %2681 = vmatprep.subr.mxu0 0.0
    %2682 = vmatpush1.xpose.msra.mxu0 0.0
    %2683 = vmatprep.subr.mxu0 0.0
    %2684 = vmatpush1.xpose.msra.mxu0 0.0
    %2685 = vmatprep.subr.mxu0 0.0
    %2686 = vmatpush1.xpose.msra.mxu0 0.0
    %2687 = vmatprep.subr.mxu0 0.0
    %2688 = vmatpush1.xpose.msra.mxu0 0.0
    %2689 = vmatprep.subr.mxu0 0.0
    %2690 = vmatpush1.xpose.msra.mxu0 0.0
    %2691 = vmatprep.subr.mxu0 0.0
    %2692 = vmatpush1.xpose.msra.mxu0 0.0
    %2693 = vmatprep.subr.mxu0 0.0
    %2694 = vmatpush1.xpose.msra.mxu0 0.0
    %2695 = vmatprep.subr.mxu0 0.0
    %2696 = vmatpush1.xpose.msra.mxu0 0.0
    %2697 = vmatprep.subr.mxu0 0.0
    %2698 = vmatpush1.xpose.msra.mxu0 0.0
    %2699 = vmatprep.mubr.f32.mxu0 0.0
    %2700 = vmatmul.mubr.f32.gmra.mrb[0].mxu0 %v2624
    %v2701 = vpop.f32.mrb[0].mxu0
    %v2702 = vadd.f32 %v31, %v2701
    %v2703 = vpop.f32.mrb[0].mxu0
    %2704 = vmatprep.mubr.f32.mxu0 0.0
    %2705 = vmatmul.mubr.f32.gmra.mrb[0].mxu0 %v2627
    %v2706 = vpop.f32.mrb[0].mxu0
    %v2707 = vadd.f32 %v32, %v2706
    %v2708 = vpop.f32.mrb[0].mxu0
    %2709 = vdwg.mxu0
    %v2710 = vsel %vm515, %v2702, -inf
    %2711 = vmax.xlane.f32.xlu0 %v2710
    %v2712 = vpop.xlane.xlu0 %2711
    %v2713 = vsel %vm515, %v2707, -inf
    %2714 = vmax.xlane.f32.xlu0 %v2713
    %v2715 = vpop.xlane.xlu0 %2714
    %v2716 = vsub.f32 %v2702, %v2712
    %v2717 = vsub.f32 %v2707, %v2715
    %v2718 = vmul.f32 %v2716, 1.442695
    %v2719 = vpow.pop %v2718
    %v2720 = vmul.f32 %v2717, 1.442695
    %v2721 = vpow.pop %v2720
    %v2722 = vsel %vm515, %v2719, 0.0
    %2723 = vadd.xlane.f32.xlu0 %v2722
    %v2724 = vpop.xlane.xlu0 %2723
    %v2725 = vsel %vm515, %v2721, 0.0
    %2726 = vadd.xlane.f32.xlu0 %v2725
    %v2727 = vpop.xlane.xlu0 %2726
    %v2728 = vrcp.pop %v2724
    %v2729 = vmul.f32 %v2719, %v2728
    %v2730 = vrcp.pop %v2727
    %v2731 = vmul.f32 %v2721, %v2730
    %v2733 = vsel %vm515, %v2729, 0
    %v2736 = vsel %vm515, %v2731, 0
    %2738 = vmatprep.subr.mxu0 0.0
    %2739 = vmatpush1.msra.mxu0 %v2615
    %2740 = vmatprep.subr.mxu0 0.0
    %2741 = vmatpush1.msra.mxu0 %v2620
    %2742 = vmatprep.subr.mxu0 0.0
    %2743 = vmatpush1.msra.mxu0 0.0
    %2744 = vmatprep.subr.mxu0 0.0
    %2745 = vmatpush1.msra.mxu0 0.0
    %2746 = vmatprep.subr.mxu0 0.0
    %2747 = vmatpush1.msra.mxu0 0.0
    %2748 = vmatprep.subr.mxu0 0.0
    %2749 = vmatpush1.msra.mxu0 0.0
    %2750 = vmatprep.subr.mxu0 0.0
    %2751 = vmatpush1.msra.mxu0 0.0
    %2752 = vmatprep.subr.mxu0 0.0
    %2753 = vmatpush1.msra.mxu0 0.0
    %2754 = vmatprep.subr.mxu0 0.0
    %2755 = vmatpush1.msra.mxu0 0.0
    %2756 = vmatprep.subr.mxu0 0.0
    %2757 = vmatpush1.msra.mxu0 0.0
    %2758 = vmatprep.subr.mxu0 0.0
    %2759 = vmatpush1.msra.mxu0 0.0
    %2760 = vmatprep.subr.mxu0 0.0
    %2761 = vmatpush1.msra.mxu0 0.0
    %2762 = vmatprep.subr.mxu0 0.0
    %2763 = vmatpush1.msra.mxu0 0.0
    %2764 = vmatprep.subr.mxu0 0.0
    %2765 = vmatpush1.msra.mxu0 0.0
    %2766 = vmatprep.subr.mxu0 0.0
    %2767 = vmatpush1.msra.mxu0 0.0
    %2768 = vmatprep.subr.mxu0 0.0
    %2769 = vmatpush1.msra.mxu0 0.0
    %2770 = vmatprep.subr.mxu0 0.0
    %2771 = vmatpush1.msra.mxu0 0.0
    %2772 = vmatprep.subr.mxu0 0.0
    %2773 = vmatpush1.msra.mxu0 0.0
    %2774 = vmatprep.subr.mxu0 0.0
    %2775 = vmatpush1.msra.mxu0 0.0
    %2776 = vmatprep.subr.mxu0 0.0
    %2777 = vmatpush1.msra.mxu0 0.0
    %2778 = vmatprep.subr.mxu0 0.0
    %2779 = vmatpush1.msra.mxu0 0.0
    %2780 = vmatprep.subr.mxu0 0.0
    %2781 = vmatpush1.msra.mxu0 0.0
    %2782 = vmatprep.subr.mxu0 0.0
    %2783 = vmatpush1.msra.mxu0 0.0
    %2784 = vmatprep.subr.mxu0 0.0
    %2785 = vmatpush1.msra.mxu0 0.0
    %2786 = vmatprep.subr.mxu0 0.0
    %2787 = vmatpush1.msra.mxu0 0.0
    %2788 = vmatprep.subr.mxu0 0.0
    %2789 = vmatpush1.msra.mxu0 0.0
    %2790 = vmatprep.subr.mxu0 0.0
    %2791 = vmatpush1.msra.mxu0 0.0
    %2792 = vmatprep.subr.mxu0 0.0
    %2793 = vmatpush1.msra.mxu0 0.0
    %2794 = vmatprep.subr.mxu0 0.0
    %2795 = vmatpush1.msra.mxu0 0.0
    %2796 = vmatprep.subr.mxu0 0.0
    %2797 = vmatpush1.msra.mxu0 0.0
    %2798 = vmatprep.subr.mxu0 0.0
    %2799 = vmatpush1.msra.mxu0 0.0
    %2800 = vmatprep.subr.mxu0 0.0
    %2801 = vmatpush1.msra.mxu0 0.0
    %2802 = vmatprep.mubr.f32.mxu0 0.0
    %2803 = vmatmul.mubr.f32.gmra.mrb[0].mxu0 %v2733
    %v2804 = vpop.f32.mrb[0].mxu0
    %v2805 = vadd.f32 0.0, %v2804
    %v2806 = vpop.f32.mrb[0].mxu0
    %2807 = vmatprep.mubr.f32.mxu0 0.0
    %2808 = vmatmul.mubr.f32.gmra.mrb[0].mxu0 %v2736
    %v2809 = vpop.f32.mrb[0].mxu0
    %v2810 = vadd.f32 0.0, %v2809
    %v2811 = vpop.f32.mrb[0].mxu0
    %2812 = vdwg.mxu0
    %v2814 = vsel %vm515, %v2368, 0
    %v2817 = vsel %vm515, %v2370, 0
    %2819 = vmatprep.subr.mxu0 0.0
    %2820 = vmatpush1.msra.mxu0 %v2254
    %2821 = vmatprep.subr.mxu0 0.0
    %2822 = vmatpush1.msra.mxu0 %v2259
    %2823 = vmatprep.subr.mxu0 0.0
    %2824 = vmatpush1.msra.mxu0 0.0
    %2825 = vmatprep.subr.mxu0 0.0
    %2826 = vmatpush1.msra.mxu0 0.0
    %2827 = vmatprep.subr.mxu0 0.0
    %2828 = vmatpush1.msra.mxu0 0.0
    %2829 = vmatprep.subr.mxu0 0.0
    %2830 = vmatpush1.msra.mxu0 0.0
    %2831 = vmatprep.subr.mxu0 0.0
    %2832 = vmatpush1.msra.mxu0 0.0
    %2833 = vmatprep.subr.mxu0 0.0
    %2834 = vmatpush1.msra.mxu0 0.0
    %2835 = vmatprep.subr.mxu0 0.0
    %2836 = vmatpush1.msra.mxu0 0.0
    %2837 = vmatprep.subr.mxu0 0.0
    %2838 = vmatpush1.msra.mxu0 0.0
    %2839 = vmatprep.subr.mxu0 0.0
    %2840 = vmatpush1.msra.mxu0 0.0
    %2841 = vmatprep.subr.mxu0 0.0
    %2842 = vmatpush1.msra.mxu0 0.0
    %2843 = vmatprep.subr.mxu0 0.0
    %2844 = vmatpush1.msra.mxu0 0.0
    %2845 = vmatprep.subr.mxu0 0.0
    %2846 = vmatpush1.msra.mxu0 0.0
    %2847 = vmatprep.subr.mxu0 0.0
    %2848 = vmatpush1.msra.mxu0 0.0
    %2849 = vmatprep.subr.mxu0 0.0
    %2850 = vmatpush1.msra.mxu0 0.0
    %2851 = vmatprep.subr.mxu0 0.0
    %2852 = vmatpush1.msra.mxu0 0.0
    %2853 = vmatprep.subr.mxu0 0.0
    %2854 = vmatpush1.msra.mxu0 0.0
    %2855 = vmatprep.subr.mxu0 0.0
    %2856 = vmatpush1.msra.mxu0 0.0
    %2857 = vmatprep.subr.mxu0 0.0
    %2858 = vmatpush1.msra.mxu0 0.0
    %2859 = vmatprep.subr.mxu0 0.0
    %2860 = vmatpush1.msra.mxu0 0.0
    %2861 = vmatprep.subr.mxu0 0.0
    %2862 = vmatpush1.msra.mxu0 0.0
    %2863 = vmatprep.subr.mxu0 0.0
    %2864 = vmatpush1.msra.mxu0 0.0
    %2865 = vmatprep.subr.mxu0 0.0
    %2866 = vmatpush1.msra.mxu0 0.0
    %2867 = vmatprep.subr.mxu0 0.0
    %2868 = vmatpush1.msra.mxu0 0.0
    %2869 = vmatprep.subr.mxu0 0.0
    %2870 = vmatpush1.msra.mxu0 0.0
    %2871 = vmatprep.subr.mxu0 0.0
    %2872 = vmatpush1.msra.mxu0 0.0
    %2873 = vmatprep.subr.mxu0 0.0
    %2874 = vmatpush1.msra.mxu0 0.0
    %2875 = vmatprep.subr.mxu0 0.0
    %2876 = vmatpush1.msra.mxu0 0.0
    %2877 = vmatprep.subr.mxu0 0.0
    %2878 = vmatpush1.msra.mxu0 0.0
    %2879 = vmatprep.subr.mxu0 0.0
    %2880 = vmatpush1.msra.mxu0 0.0
    %2881 = vmatprep.subr.mxu0 0.0
    %2882 = vmatpush1.msra.mxu0 0.0
    %2883 = vmatprep.mubr.f32.mxu0 0.0
    %2884 = vmatmul.mubr.f32.gmra.mrb[0].mxu0 %v2814
    %v2885 = vpop.f32.mrb[0].mxu0
    %v2886 = vadd.f32 %v2805, %v2885
    %v2887 = vpop.f32.mrb[0].mxu0
    %2888 = vmatprep.mubr.f32.mxu0 0.0
    %2889 = vmatmul.mubr.f32.gmra.mrb[0].mxu0 %v2817
    %v2890 = vpop.f32.mrb[0].mxu0
    %v2891 = vadd.f32 %v2810, %v2890
    %v2892 = vpop.f32.mrb[0].mxu0
    %2893 = vdwg.mxu0
    %v2894 = vld [vmem:[#allocation2 + $0x358] sm:$0xff]
    %v2895 = vld [vmem:[#allocation2 + $0x360] sm:$0xff]
    %v2896 = vld [vmem:[#allocation2 + $0x368] sm:$0xff]
    %v2897 = vld [vmem:[#allocation2 + $0x370] sm:$0xff]
    %v2898 = vld [vmem:[#allocation2 + $0x378] sm:$0x1]
    %v2899 = vlaneseq
    %v2900 = vshrl.u32 %v2899, 7
    %v2901 = vsub.s32 0, %v2900
    %v2902 = vrot.slane %v2898, %v2901
    %2903 = vmatprep.subr.mxu0 0.0
    %2904 = vmatpush1.msra.mxu0 %v2894
    %2905 = vmatprep.subr.mxu0 0.0
    %2906 = vmatpush1.msra.mxu0 %v2895
    %2907 = vmatprep.subr.mxu0 0.0
    %2908 = vmatpush1.msra.mxu0 %v2896
    %2909 = vmatprep.subr.mxu0 0.0
    %2910 = vmatpush1.msra.mxu0 %v2897
    %2911 = vmatprep.subr.mxu0 0.0
    %2912 = vmatpush1.msra.mxu0 0.0
    %2913 = vmatprep.subr.mxu0 0.0
    %2914 = vmatpush1.msra.mxu0 0.0
    %2915 = vmatprep.subr.mxu0 0.0
    %2916 = vmatpush1.msra.mxu0 0.0
    %2917 = vmatprep.subr.mxu0 0.0
    %2918 = vmatpush1.msra.mxu0 0.0
    %2919 = vmatprep.subr.mxu0 0.0
    %2920 = vmatpush1.msra.mxu0 0.0
    %2921 = vmatprep.subr.mxu0 0.0
    %2922 = vmatpush1.msra.mxu0 0.0
    %2923 = vmatprep.subr.mxu0 0.0
    %2924 = vmatpush1.msra.mxu0 0.0
    %2925 = vmatprep.subr.mxu0 0.0
    %2926 = vmatpush1.msra.mxu0 0.0
    %2927 = vmatprep.subr.mxu0 0.0
    %2928 = vmatpush1.msra.mxu0 0.0
    %2929 = vmatprep.subr.mxu0 0.0
    %2930 = vmatpush1.msra.mxu0 0.0
    %2931 = vmatprep.subr.mxu0 0.0
    %2932 = vmatpush1.msra.mxu0 0.0
    %2933 = vmatprep.subr.mxu0 0.0
    %2934 = vmatpush1.msra.mxu0 0.0
    %2935 = vmatprep.subr.mxu0 0.0
    %2936 = vmatpush1.msra.mxu0 0.0
    %2937 = vmatprep.subr.mxu0 0.0
    %2938 = vmatpush1.msra.mxu0 0.0
    %2939 = vmatprep.subr.mxu0 0.0
    %2940 = vmatpush1.msra.mxu0 0.0
    %2941 = vmatprep.subr.mxu0 0.0
    %2942 = vmatpush1.msra.mxu0 0.0
    %2943 = vmatprep.subr.mxu0 0.0
    %2944 = vmatpush1.msra.mxu0 0.0
    %2945 = vmatprep.subr.mxu0 0.0
    %2946 = vmatpush1.msra.mxu0 0.0
    %2947 = vmatprep.subr.mxu0 0.0
    %2948 = vmatpush1.msra.mxu0 0.0
    %2949 = vmatprep.subr.mxu0 0.0
    %2950 = vmatpush1.msra.mxu0 0.0
    %2951 = vmatprep.subr.mxu0 0.0
    %2952 = vmatpush1.msra.mxu0 0.0
    %2953 = vmatprep.subr.mxu0 0.0
    %2954 = vmatpush1.msra.mxu0 0.0
    %2955 = vmatprep.subr.mxu0 0.0
    %2956 = vmatpush1.msra.mxu0 0.0
    %2957 = vmatprep.subr.mxu0 0.0
    %2958 = vmatpush1.msra.mxu0 0.0
    %2959 = vmatprep.subr.mxu0 0.0
    %2960 = vmatpush1.msra.mxu0 0.0
    %2961 = vmatprep.subr.mxu0 0.0
    %2962 = vmatpush1.msra.mxu0 0.0
    %2963 = vmatprep.subr.mxu0 0.0
    %2964 = vmatpush1.msra.mxu0 0.0
    %2965 = vmatprep.subr.mxu0 0.0
    %2966 = vmatpush1.msra.mxu0 0.0
    %2967 = vmatprep.mubr.f32.mxu0 0.0
    %2968 = vmatmul.mubr.f32.gmra.mrb[0].mxu0 %v2008
    %v2969 = vpop.f32.mrb[0].mxu0
    %v2970 = vadd.f32 %v2902, %v2969
    %v2971 = vpop.f32.mrb[0].mxu0
    %2972 = vmatprep.mubr.f32.mxu0 0.0
    %2973 = vmatmul.mubr.f32.gmra.mrb[0].mxu0 %v2011
    %v2974 = vpop.f32.mrb[0].mxu0
    %v2975 = vadd.f32 %v2902, %v2974
    %v2976 = vpop.f32.mrb[0].mxu0
    %2977 = vdwg.mxu0
    %v2978 = vld [vmem:[#allocation2 + $0x380] sm:$0xff]
    %v2979 = vld [vmem:[#allocation2 + $0x388] sm:$0xff]
    %v2980 = vld [vmem:[#allocation2 + $0x390] sm:$0xff]
    %v2981 = vld [vmem:[#allocation2 + $0x398] sm:$0xff]
    %v2982 = vld [vmem:[#allocation2 + $0x3a0] sm:$0x1]
    %v2983 = vlaneseq
    %v2984 = vshrl.u32 %v2983, 7
    %v2985 = vsub.s32 0, %v2984
    %v2986 = vrot.slane %v2982, %v2985
    %2987 = vmatprep.subr.mxu0 0.0
    %2988 = vmatpush1.msra.mxu0 %v2978
    %2989 = vmatprep.subr.mxu0 0.0
    %2990 = vmatpush1.msra.mxu0 %v2979
    %2991 = vmatprep.subr.mxu0 0.0
    %2992 = vmatpush1.msra.mxu0 %v2980
    %2993 = vmatprep.subr.mxu0 0.0
    %2994 = vmatpush1.msra.mxu0 %v2981
    %2995 = vmatprep.subr.mxu0 0.0
    %2996 = vmatpush1.msra.mxu0 0.0
    %2997 = vmatprep.subr.mxu0 0.0
    %2998 = vmatpush1.msra.mxu0 0.0
    %2999 = vmatprep.subr.mxu0 0.0
    %3000 = vmatpush1.msra.mxu0 0.0
    %3001 = vmatprep.subr.mxu0 0.0
    %3002 = vmatpush1.msra.mxu0 0.0
    %3003 = vmatprep.subr.mxu0 0.0
    %3004 = vmatpush1.msra.mxu0 0.0
    %3005 = vmatprep.subr.mxu0 0.0
    %3006 = vmatpush1.msra.mxu0 0.0
    %3007 = vmatprep.subr.mxu0 0.0
    %3008 = vmatpush1.msra.mxu0 0.0
    %3009 = vmatprep.subr.mxu0 0.0
    %3010 = vmatpush1.msra.mxu0 0.0
    %3011 = vmatprep.subr.mxu0 0.0
    %3012 = vmatpush1.msra.mxu0 0.0
    %3013 = vmatprep.subr.mxu0 0.0
    %3014 = vmatpush1.msra.mxu0 0.0
    %3015 = vmatprep.subr.mxu0 0.0
    %3016 = vmatpush1.msra.mxu0 0.0
    %3017 = vmatprep.subr.mxu0 0.0
    %3018 = vmatpush1.msra.mxu0 0.0
    %3019 = vmatprep.subr.mxu0 0.0
    %3020 = vmatpush1.msra.mxu0 0.0
    %3021 = vmatprep.subr.mxu0 0.0
    %3022 = vmatpush1.msra.mxu0 0.0
    %3023 = vmatprep.subr.mxu0 0.0
    %3024 = vmatpush1.msra.mxu0 0.0
    %3025 = vmatprep.subr.mxu0 0.0
    %3026 = vmatpush1.msra.mxu0 0.0
    %3027 = vmatprep.subr.mxu0 0.0
    %3028 = vmatpush1.msra.mxu0 0.0
    %3029 = vmatprep.subr.mxu0 0.0
    %3030 = vmatpush1.msra.mxu0 0.0
    %3031 = vmatprep.subr.mxu0 0.0
    %3032 = vmatpush1.msra.mxu0 0.0
    %3033 = vmatprep.subr.mxu0 0.0
    %3034 = vmatpush1.msra.mxu0 0.0
    %3035 = vmatprep.subr.mxu0 0.0
    %3036 = vmatpush1.msra.mxu0 0.0
    %3037 = vmatprep.subr.mxu0 0.0
    %3038 = vmatpush1.msra.mxu0 0.0
    %3039 = vmatprep.subr.mxu0 0.0
    %3040 = vmatpush1.msra.mxu0 0.0
    %3041 = vmatprep.subr.mxu0 0.0
    %3042 = vmatpush1.msra.mxu0 0.0
    %3043 = vmatprep.subr.mxu0 0.0
    %3044 = vmatpush1.msra.mxu0 0.0
    %3045 = vmatprep.subr.mxu0 0.0
    %3046 = vmatpush1.msra.mxu0 0.0
    %3047 = vmatprep.subr.mxu0 0.0
    %3048 = vmatpush1.msra.mxu0 0.0
    %3049 = vmatprep.subr.mxu0 0.0
    %3050 = vmatpush1.msra.mxu0 0.0
    %3051 = vmatprep.mubr.f32.mxu0 0.0
    %3052 = vmatmul.mubr.f32.gmra.mrb[0].mxu0 %v2098
    %v3053 = vpop.f32.mrb[0].mxu0
    %v3054 = vadd.f32 %v2986, %v3053
    %v3055 = vpop.f32.mrb[0].mxu0
    %3056 = vmatprep.mubr.f32.mxu0 0.0
    %3057 = vmatmul.mubr.f32.gmra.mrb[0].mxu0 %v2101
    %v3058 = vpop.f32.mrb[0].mxu0
    %v3059 = vadd.f32 %v2986, %v3058
    %v3060 = vpop.f32.mrb[0].mxu0
    %3061 = vdwg.mxu0
    %v3062 = vld [vmem:[#allocation2 + $0x3a8] sm:$0xff]
    %v3063 = vld [vmem:[#allocation2 + $0x3b0] sm:$0xff]
    %v3064 = vld [vmem:[#allocation2 + $0x3b8] sm:$0xff]
    %v3065 = vld [vmem:[#allocation2 + $0x3c0] sm:$0xff]
    %v3066 = vld [vmem:[#allocation2 + $0x3c8] sm:$0x1]
    %v3067 = vlaneseq
    %v3068 = vshrl.u32 %v3067, 7
    %v3069 = vsub.s32 0, %v3068
    %v3070 = vrot.slane %v3066, %v3069
    %3071 = vmatprep.subr.mxu0 0.0
    %3072 = vmatpush1.msra.mxu0 %v3062
    %3073 = vmatprep.subr.mxu0 0.0
    %3074 = vmatpush1.msra.mxu0 %v3063
    %3075 = vmatprep.subr.mxu0 0.0
    %3076 = vmatpush1.msra.mxu0 %v3064
    %3077 = vmatprep.subr.mxu0 0.0
    %3078 = vmatpush1.msra.mxu0 %v3065
    %3079 = vmatprep.subr.mxu0 0.0
    %3080 = vmatpush1.msra.mxu0 0.0
    %3081 = vmatprep.subr.mxu0 0.0
    %3082 = vmatpush1.msra.mxu0 0.0
    %3083 = vmatprep.subr.mxu0 0.0
    %3084 = vmatpush1.msra.mxu0 0.0
    %3085 = vmatprep.subr.mxu0 0.0
    %3086 = vmatpush1.msra.mxu0 0.0
    %3087 = vmatprep.subr.mxu0 0.0
    %3088 = vmatpush1.msra.mxu0 0.0
    %3089 = vmatprep.subr.mxu0 0.0
    %3090 = vmatpush1.msra.mxu0 0.0
    %3091 = vmatprep.subr.mxu0 0.0
    %3092 = vmatpush1.msra.mxu0 0.0
    %3093 = vmatprep.subr.mxu0 0.0
    %3094 = vmatpush1.msra.mxu0 0.0
    %3095 = vmatprep.subr.mxu0 0.0
    %3096 = vmatpush1.msra.mxu0 0.0
    %3097 = vmatprep.subr.mxu0 0.0
    %3098 = vmatpush1.msra.mxu0 0.0
    %3099 = vmatprep.subr.mxu0 0.0
    %3100 = vmatpush1.msra.mxu0 0.0
    %3101 = vmatprep.subr.mxu0 0.0
    %3102 = vmatpush1.msra.mxu0 0.0
    %3103 = vmatprep.subr.mxu0 0.0
    %3104 = vmatpush1.msra.mxu0 0.0
    %3105 = vmatprep.subr.mxu0 0.0
    %3106 = vmatpush1.msra.mxu0 0.0
    %3107 = vmatprep.subr.mxu0 0.0
    %3108 = vmatpush1.msra.mxu0 0.0
    %3109 = vmatprep.subr.mxu0 0.0
    %3110 = vmatpush1.msra.mxu0 0.0
    %3111 = vmatprep.subr.mxu0 0.0
    %3112 = vmatpush1.msra.mxu0 0.0
    %3113 = vmatprep.subr.mxu0 0.0
    %3114 = vmatpush1.msra.mxu0 0.0
    %3115 = vmatprep.subr.mxu0 0.0
    %3116 = vmatpush1.msra.mxu0 0.0
    %3117 = vmatprep.subr.mxu0 0.0
    %3118 = vmatpush1.msra.mxu0 0.0
    %3119 = vmatprep.subr.mxu0 0.0
    %3120 = vmatpush1.msra.mxu0 0.0
    %3121 = vmatprep.subr.mxu0 0.0
    %3122 = vmatpush1.msra.mxu0 0.0
    %3123 = vmatprep.subr.mxu0 0.0
    %3124 = vmatpush1.msra.mxu0 0.0
    %3125 = vmatprep.subr.mxu0 0.0
    %3126 = vmatpush1.msra.mxu0 0.0
    %3127 = vmatprep.subr.mxu0 0.0
    %3128 = vmatpush1.msra.mxu0 0.0
    %3129 = vmatprep.subr.mxu0 0.0
    %3130 = vmatpush1.msra.mxu0 0.0
    %3131 = vmatprep.subr.mxu0 0.0
    %3132 = vmatpush1.msra.mxu0 0.0
    %3133 = vmatprep.subr.mxu0 0.0
    %3134 = vmatpush1.msra.mxu0 0.0
    %3135 = vmatprep.mubr.f32.mxu0 0.0
    %3136 = vmatmul.mubr.f32.gmra.mrb[0].mxu0 %v2098
    %v3137 = vpop.f32.mrb[0].mxu0
    %v3138 = vadd.f32 %v3070, %v3137
    %v3139 = vpop.f32.mrb[0].mxu0
    %3140 = vmatprep.mubr.f32.mxu0 0.0
    %3141 = vmatmul.mubr.f32.gmra.mrb[0].mxu0 %v2101
    %v3142 = vpop.f32.mrb[0].mxu0
    %v3143 = vadd.f32 %v3070, %v3142
    %v3144 = vpop.f32.mrb[0].mxu0
    %3145 = vdwg.mxu0
    %v3147 = vsel %vm427, %v2970, 0
    %v3150 = vsel %vm427, %v2975, 0
    %v3153 = vsel %vm427, %v3054, 0
    %v3156 = vsel %vm427, %v3059, 0
    %3158 = vmatprep.subr.mxu0 0.0
    %3159 = vmatpush1.xpose.msra.mxu0 %v3153
    %3160 = vmatprep.subr.mxu0 0.0
    %3161 = vmatpush1.xpose.msra.mxu0 %v3156
    %3162 = vmatprep.subr.mxu0 0.0
    %3163 = vmatpush1.xpose.msra.mxu0 0.0
    %3164 = vmatprep.subr.mxu0 0.0
    %3165 = vmatpush1.xpose.msra.mxu0 0.0
    %3166 = vmatprep.subr.mxu0 0.0
    %3167 = vmatpush1.xpose.msra.mxu0 0.0
    %3168 = vmatprep.subr.mxu0 0.0
    %3169 = vmatpush1.xpose.msra.mxu0 0.0
    %3170 = vmatprep.subr.mxu0 0.0
    %3171 = vmatpush1.xpose.msra.mxu0 0.0
    %3172 = vmatprep.subr.mxu0 0.0
    %3173 = vmatpush1.xpose.msra.mxu0 0.0
    %3174 = vmatprep.subr.mxu0 0.0
    %3175 = vmatpush1.xpose.msra.mxu0 0.0
    %3176 = vmatprep.subr.mxu0 0.0
    %3177 = vmatpush1.xpose.msra.mxu0 0.0
    %3178 = vmatprep.subr.mxu0 0.0
    %3179 = vmatpush1.xpose.msra.mxu0 0.0
    %3180 = vmatprep.subr.mxu0 0.0
    %3181 = vmatpush1.xpose.msra.mxu0 0.0
    %3182 = vmatprep.subr.mxu0 0.0
    %3183 = vmatpush1.xpose.msra.mxu0 0.0
    %3184 = vmatprep.subr.mxu0 0.0
    %3185 = vmatpush1.xpose.msra.mxu0 0.0
    %3186 = vmatprep.subr.mxu0 0.0
    %3187 = vmatpush1.xpose.msra.mxu0 0.0
    %3188 = vmatprep.subr.mxu0 0.0
    %3189 = vmatpush1.xpose.msra.mxu0 0.0
    %3190 = vmatprep.subr.mxu0 0.0
    %3191 = vmatpush1.xpose.msra.mxu0 0.0
    %3192 = vmatprep.subr.mxu0 0.0
    %3193 = vmatpush1.xpose.msra.mxu0 0.0
    %3194 = vmatprep.subr.mxu0 0.0
    %3195 = vmatpush1.xpose.msra.mxu0 0.0
    %3196 = vmatprep.subr.mxu0 0.0
    %3197 = vmatpush1.xpose.msra.mxu0 0.0
    %3198 = vmatprep.subr.mxu0 0.0
    %3199 = vmatpush1.xpose.msra.mxu0 0.0
    %3200 = vmatprep.subr.mxu0 0.0
    %3201 = vmatpush1.xpose.msra.mxu0 0.0
    %3202 = vmatprep.subr.mxu0 0.0
    %3203 = vmatpush1.xpose.msra.mxu0 0.0
    %3204 = vmatprep.subr.mxu0 0.0
    %3205 = vmatpush1.xpose.msra.mxu0 0.0
    %3206 = vmatprep.subr.mxu0 0.0
    %3207 = vmatpush1.xpose.msra.mxu0 0.0
    %3208 = vmatprep.subr.mxu0 0.0
    %3209 = vmatpush1.xpose.msra.mxu0 0.0
    %3210 = vmatprep.subr.mxu0 0.0
    %3211 = vmatpush1.xpose.msra.mxu0 0.0
    %3212 = vmatprep.subr.mxu0 0.0
    %3213 = vmatpush1.xpose.msra.mxu0 0.0
    %3214 = vmatprep.subr.mxu0 0.0
    %3215 = vmatpush1.xpose.msra.mxu0 0.0
    %3216 = vmatprep.subr.mxu0 0.0
    %3217 = vmatpush1.xpose.msra.mxu0 0.0
    %3218 = vmatprep.subr.mxu0 0.0
    %3219 = vmatpush1.xpose.msra.mxu0 0.0
    %3220 = vmatprep.subr.mxu0 0.0
    %3221 = vmatpush1.xpose.msra.mxu0 0.0
    %3222 = vmatprep.mubr.f32.mxu0 0.0
    %3223 = vmatmul.mubr.f32.gmra.mrb[0].mxu0 %v3147
    %v3224 = vpop.f32.mrb[0].mxu0
    %v3225 = vadd.f32 %v31, %v3224
    %v3226 = vpop.f32.mrb[0].mxu0
    %3227 = vmatprep.mubr.f32.mxu0 0.0
    %3228 = vmatmul.mubr.f32.gmra.mrb[0].mxu0 %v3150
    %v3229 = vpop.f32.mrb[0].mxu0
    %v3230 = vadd.f32 %v32, %v3229
    %v3231 = vpop.f32.mrb[0].mxu0
    %3232 = vdwg.mxu0
    %v3233 = vsel %vm515, %v3225, -inf
    %3234 = vmax.xlane.f32.xlu0 %v3233
    %v3235 = vpop.xlane.xlu0 %3234
    %v3236 = vsel %vm515, %v3230, -inf
    %3237 = vmax.xlane.f32.xlu0 %v3236
    %v3238 = vpop.xlane.xlu0 %3237
    %v3239 = vsub.f32 %v3225, %v3235
    %v3240 = vsub.f32 %v3230, %v3238
    %v3241 = vmul.f32 %v3239, 1.442695
    %v3242 = vpow.pop %v3241
    %v3243 = vmul.f32 %v3240, 1.442695
    %v3244 = vpow.pop %v3243
    %v3245 = vsel %vm515, %v3242, 0.0
    %3246 = vadd.xlane.f32.xlu0 %v3245
    %v3247 = vpop.xlane.xlu0 %3246
    %v3248 = vsel %vm515, %v3244, 0.0
    %3249 = vadd.xlane.f32.xlu0 %v3248
    %v3250 = vpop.xlane.xlu0 %3249
    %v3251 = vrcp.pop %v3247
    %v3252 = vmul.f32 %v3242, %v3251
    %v3253 = vrcp.pop %v3250
    %v3254 = vmul.f32 %v3244, %v3253
    %v3256 = vsel %vm515, %v3252, 0
    %v3259 = vsel %vm515, %v3254, 0
    %3261 = vmatprep.subr.mxu0 0.0
    %3262 = vmatpush1.msra.mxu0 %v3138
    %3263 = vmatprep.subr.mxu0 0.0
    %3264 = vmatpush1.msra.mxu0 %v3143
    %3265 = vmatprep.subr.mxu0 0.0
    %3266 = vmatpush1.msra.mxu0 0.0
    %3267 = vmatprep.subr.mxu0 0.0
    %3268 = vmatpush1.msra.mxu0 0.0
    %3269 = vmatprep.subr.mxu0 0.0
    %3270 = vmatpush1.msra.mxu0 0.0
    %3271 = vmatprep.subr.mxu0 0.0
    %3272 = vmatpush1.msra.mxu0 0.0
    %3273 = vmatprep.subr.mxu0 0.0
    %3274 = vmatpush1.msra.mxu0 0.0
    %3275 = vmatprep.subr.mxu0 0.0
    %3276 = vmatpush1.msra.mxu0 0.0
    %3277 = vmatprep.subr.mxu0 0.0
    %3278 = vmatpush1.msra.mxu0 0.0
    %3279 = vmatprep.subr.mxu0 0.0
    %3280 = vmatpush1.msra.mxu0 0.0
    %3281 = vmatprep.subr.mxu0 0.0
    %3282 = vmatpush1.msra.mxu0 0.0
    %3283 = vmatprep.subr.mxu0 0.0
    %3284 = vmatpush1.msra.mxu0 0.0
    %3285 = vmatprep.subr.mxu0 0.0
    %3286 = vmatpush1.msra.mxu0 0.0
    %3287 = vmatprep.subr.mxu0 0.0
    %3288 = vmatpush1.msra.mxu0 0.0
    %3289 = vmatprep.subr.mxu0 0.0
    %3290 = vmatpush1.msra.mxu0 0.0
    %3291 = vmatprep.subr.mxu0 0.0
    %3292 = vmatpush1.msra.mxu0 0.0
    %3293 = vmatprep.subr.mxu0 0.0
    %3294 = vmatpush1.msra.mxu0 0.0
    %3295 = vmatprep.subr.mxu0 0.0
    %3296 = vmatpush1.msra.mxu0 0.0
    %3297 = vmatprep.subr.mxu0 0.0
    %3298 = vmatpush1.msra.mxu0 0.0
    %3299 = vmatprep.subr.mxu0 0.0
    %3300 = vmatpush1.msra.mxu0 0.0
    %3301 = vmatprep.subr.mxu0 0.0
    %3302 = vmatpush1.msra.mxu0 0.0
    %3303 = vmatprep.subr.mxu0 0.0
    %3304 = vmatpush1.msra.mxu0 0.0
    %3305 = vmatprep.subr.mxu0 0.0
    %3306 = vmatpush1.msra.mxu0 0.0
    %3307 = vmatprep.subr.mxu0 0.0
    %3308 = vmatpush1.msra.mxu0 0.0
    %3309 = vmatprep.subr.mxu0 0.0
    %3310 = vmatpush1.msra.mxu0 0.0
    %3311 = vmatprep.subr.mxu0 0.0
    %3312 = vmatpush1.msra.mxu0 0.0
    %3313 = vmatprep.subr.mxu0 0.0
    %3314 = vmatpush1.msra.mxu0 0.0
    %3315 = vmatprep.subr.mxu0 0.0
    %3316 = vmatpush1.msra.mxu0 0.0
    %3317 = vmatprep.subr.mxu0 0.0
    %3318 = vmatpush1.msra.mxu0 0.0
    %3319 = vmatprep.subr.mxu0 0.0
    %3320 = vmatpush1.msra.mxu0 0.0
    %3321 = vmatprep.subr.mxu0 0.0
    %3322 = vmatpush1.msra.mxu0 0.0
    %3323 = vmatprep.subr.mxu0 0.0
    %3324 = vmatpush1.msra.mxu0 0.0
    %3325 = vmatprep.mubr.f32.mxu0 0.0
    %3326 = vmatmul.mubr.f32.gmra.mrb[0].mxu0 %v3256
    %v3327 = vpop.f32.mrb[0].mxu0
    %v3328 = vadd.f32 0.0, %v3327
    %v3329 = vpop.f32.mrb[0].mxu0
    %3330 = vmatprep.mubr.f32.mxu0 0.0
    %3331 = vmatmul.mubr.f32.gmra.mrb[0].mxu0 %v3259
    %v3332 = vpop.f32.mrb[0].mxu0
    %v3333 = vadd.f32 0.0, %v3332
    %v3334 = vpop.f32.mrb[0].mxu0
    %3335 = vdwg.mxu0
    %v3336 = vadd.f32 %v2886, %v3328
    %v3337 = vadd.f32 %v2891, %v3333
    %v3338 = vld [vmem:[#allocation2 + $0x3d0] sm:$0xff]
    %v3339 = vld [vmem:[#allocation2 + $0x3d8] sm:$0xff]
    %v3340 = vld [vmem:[#allocation2 + $0x3e0] sm:$0xff]
    %v3341 = vld [vmem:[#allocation2 + $0x3e8] sm:$0xff]
    %v3342 = vld [vmem:[#allocation2 + $0x3f0] sm:$0x1]
    %v3343 = vlaneseq
    %v3344 = vshrl.u32 %v3343, 7
    %v3345 = vsub.s32 0, %v3344
    %v3346 = vrot.slane %v3342, %v3345
    %3347 = vmatprep.subr.mxu0 0.0
    %3348 = vmatpush1.msra.mxu0 %v3338
    %3349 = vmatprep.subr.mxu0 0.0
    %3350 = vmatpush1.msra.mxu0 %v3339
    %3351 = vmatprep.subr.mxu0 0.0
    %3352 = vmatpush1.msra.mxu0 %v3340
    %3353 = vmatprep.subr.mxu0 0.0
    %3354 = vmatpush1.msra.mxu0 %v3341
    %3355 = vmatprep.subr.mxu0 0.0
    %3356 = vmatpush1.msra.mxu0 0.0
    %3357 = vmatprep.subr.mxu0 0.0
    %3358 = vmatpush1.msra.mxu0 0.0
    %3359 = vmatprep.subr.mxu0 0.0
    %3360 = vmatpush1.msra.mxu0 0.0
    %3361 = vmatprep.subr.mxu0 0.0
    %3362 = vmatpush1.msra.mxu0 0.0
    %3363 = vmatprep.subr.mxu0 0.0
    %3364 = vmatpush1.msra.mxu0 0.0
    %3365 = vmatprep.subr.mxu0 0.0
    %3366 = vmatpush1.msra.mxu0 0.0
    %3367 = vmatprep.subr.mxu0 0.0
    %3368 = vmatpush1.msra.mxu0 0.0
    %3369 = vmatprep.subr.mxu0 0.0
    %3370 = vmatpush1.msra.mxu0 0.0
    %3371 = vmatprep.subr.mxu0 0.0
    %3372 = vmatpush1.msra.mxu0 0.0
    %3373 = vmatprep.subr.mxu0 0.0
    %3374 = vmatpush1.msra.mxu0 0.0
    %3375 = vmatprep.subr.mxu0 0.0
    %3376 = vmatpush1.msra.mxu0 0.0
    %3377 = vmatprep.subr.mxu0 0.0
    %3378 = vmatpush1.msra.mxu0 0.0
    %3379 = vmatprep.subr.mxu0 0.0
    %3380 = vmatpush1.msra.mxu0 0.0
    %3381 = vmatprep.subr.mxu0 0.0
    %3382 = vmatpush1.msra.mxu0 0.0
    %3383 = vmatprep.subr.mxu0 0.0
    %3384 = vmatpush1.msra.mxu0 0.0
    %3385 = vmatprep.subr.mxu0 0.0
    %3386 = vmatpush1.msra.mxu0 0.0
    %3387 = vmatprep.subr.mxu0 0.0
    %3388 = vmatpush1.msra.mxu0 0.0
    %3389 = vmatprep.subr.mxu0 0.0
    %3390 = vmatpush1.msra.mxu0 0.0
    %3391 = vmatprep.subr.mxu0 0.0
    %3392 = vmatpush1.msra.mxu0 0.0
    %3393 = vmatprep.subr.mxu0 0.0
    %3394 = vmatpush1.msra.mxu0 0.0
    %3395 = vmatprep.subr.mxu0 0.0
    %3396 = vmatpush1.msra.mxu0 0.0
    %3397 = vmatprep.subr.mxu0 0.0
    %3398 = vmatpush1.msra.mxu0 0.0
    %3399 = vmatprep.subr.mxu0 0.0
    %3400 = vmatpush1.msra.mxu0 0.0
    %3401 = vmatprep.subr.mxu0 0.0
    %3402 = vmatpush1.msra.mxu0 0.0
    %3403 = vmatprep.subr.mxu0 0.0
    %3404 = vmatpush1.msra.mxu0 0.0
    %3405 = vmatprep.subr.mxu0 0.0
    %3406 = vmatpush1.msra.mxu0 0.0
    %3407 = vmatprep.subr.mxu0 0.0
    %3408 = vmatpush1.msra.mxu0 0.0
    %3409 = vmatprep.subr.mxu0 0.0
    %3410 = vmatpush1.msra.mxu0 0.0
    %3411 = vmatprep.mubr.f32.mxu0 0.0
    %3412 = vmatmul.mubr.f32.gmra.mrb[0].mxu0 %v2008
    %v3413 = vpop.f32.mrb[0].mxu0
    %v3414 = vadd.f32 %v3346, %v3413
    %v3415 = vpop.f32.mrb[0].mxu0
    %3416 = vmatprep.mubr.f32.mxu0 0.0
    %3417 = vmatmul.mubr.f32.gmra.mrb[0].mxu0 %v2011
    %v3418 = vpop.f32.mrb[0].mxu0
    %v3419 = vadd.f32 %v3346, %v3418
    %v3420 = vpop.f32.mrb[0].mxu0
    %3421 = vdwg.mxu0
    %v3422 = vld [vmem:[#allocation2 + $0x3f8] sm:$0xff]
    %v3423 = vld [vmem:[#allocation2 + $0x400] sm:$0xff]
    %v3424 = vld [vmem:[#allocation2 + $0x408] sm:$0xff]
    %v3425 = vld [vmem:[#allocation2 + $0x410] sm:$0xff]
    %v3426 = vld [vmem:[#allocation2 + $0x418] sm:$0x1]
    %v3427 = vlaneseq
    %v3428 = vshrl.u32 %v3427, 7
    %v3429 = vsub.s32 0, %v3428
    %v3430 = vrot.slane %v3426, %v3429
    %3431 = vmatprep.subr.mxu0 0.0
    %3432 = vmatpush1.msra.mxu0 %v3422
    %3433 = vmatprep.subr.mxu0 0.0
    %3434 = vmatpush1.msra.mxu0 %v3423
    %3435 = vmatprep.subr.mxu0 0.0
    %3436 = vmatpush1.msra.mxu0 %v3424
    %3437 = vmatprep.subr.mxu0 0.0
    %3438 = vmatpush1.msra.mxu0 %v3425
    %3439 = vmatprep.subr.mxu0 0.0
    %3440 = vmatpush1.msra.mxu0 0.0
    %3441 = vmatprep.subr.mxu0 0.0
    %3442 = vmatpush1.msra.mxu0 0.0
    %3443 = vmatprep.subr.mxu0 0.0
    %3444 = vmatpush1.msra.mxu0 0.0
    %3445 = vmatprep.subr.mxu0 0.0
    %3446 = vmatpush1.msra.mxu0 0.0
    %3447 = vmatprep.subr.mxu0 0.0
    %3448 = vmatpush1.msra.mxu0 0.0
    %3449 = vmatprep.subr.mxu0 0.0
    %3450 = vmatpush1.msra.mxu0 0.0
    %3451 = vmatprep.subr.mxu0 0.0
    %3452 = vmatpush1.msra.mxu0 0.0
    %3453 = vmatprep.subr.mxu0 0.0
    %3454 = vmatpush1.msra.mxu0 0.0
    %3455 = vmatprep.subr.mxu0 0.0
    %3456 = vmatpush1.msra.mxu0 0.0
    %3457 = vmatprep.subr.mxu0 0.0
    %3458 = vmatpush1.msra.mxu0 0.0
    %3459 = vmatprep.subr.mxu0 0.0
    %3460 = vmatpush1.msra.mxu0 0.0
    %3461 = vmatprep.subr.mxu0 0.0
    %3462 = vmatpush1.msra.mxu0 0.0
    %3463 = vmatprep.subr.mxu0 0.0
    %3464 = vmatpush1.msra.mxu0 0.0
    %3465 = vmatprep.subr.mxu0 0.0
    %3466 = vmatpush1.msra.mxu0 0.0
    %3467 = vmatprep.subr.mxu0 0.0
    %3468 = vmatpush1.msra.mxu0 0.0
    %3469 = vmatprep.subr.mxu0 0.0
    %3470 = vmatpush1.msra.mxu0 0.0
    %3471 = vmatprep.subr.mxu0 0.0
    %3472 = vmatpush1.msra.mxu0 0.0
    %3473 = vmatprep.subr.mxu0 0.0
    %3474 = vmatpush1.msra.mxu0 0.0
    %3475 = vmatprep.subr.mxu0 0.0
    %3476 = vmatpush1.msra.mxu0 0.0
    %3477 = vmatprep.subr.mxu0 0.0
    %3478 = vmatpush1.msra.mxu0 0.0
    %3479 = vmatprep.subr.mxu0 0.0
    %3480 = vmatpush1.msra.mxu0 0.0
    %3481 = vmatprep.subr.mxu0 0.0
    %3482 = vmatpush1.msra.mxu0 0.0
    %3483 = vmatprep.subr.mxu0 0.0
    %3484 = vmatpush1.msra.mxu0 0.0
    %3485 = vmatprep.subr.mxu0 0.0
    %3486 = vmatpush1.msra.mxu0 0.0
    %3487 = vmatprep.subr.mxu0 0.0
    %3488 = vmatpush1.msra.mxu0 0.0
    %3489 = vmatprep.subr.mxu0 0.0
    %3490 = vmatpush1.msra.mxu0 0.0
    %3491 = vmatprep.subr.mxu0 0.0
    %3492 = vmatpush1.msra.mxu0 0.0
    %3493 = vmatprep.subr.mxu0 0.0
    %3494 = vmatpush1.msra.mxu0 0.0
    %3495 = vmatprep.mubr.f32.mxu0 0.0
    %3496 = vmatmul.mubr.f32.gmra.mrb[0].mxu0 %v2098
    %v3497 = vpop.f32.mrb[0].mxu0
    %v3498 = vadd.f32 %v3430, %v3497
    %v3499 = vpop.f32.mrb[0].mxu0
    %3500 = vmatprep.mubr.f32.mxu0 0.0
    %3501 = vmatmul.mubr.f32.gmra.mrb[0].mxu0 %v2101
    %v3502 = vpop.f32.mrb[0].mxu0
    %v3503 = vadd.f32 %v3430, %v3502
    %v3504 = vpop.f32.mrb[0].mxu0
    %3505 = vdwg.mxu0
    %v3506 = vld [vmem:[#allocation2 + $0x420] sm:$0xff]
    %v3507 = vld [vmem:[#allocation2 + $0x428] sm:$0xff]
    %v3508 = vld [vmem:[#allocation2 + $0x430] sm:$0xff]
    %v3509 = vld [vmem:[#allocation2 + $0x438] sm:$0xff]
    %v3510 = vld [vmem:[#allocation2 + $0x440] sm:$0x1]
    %v3511 = vlaneseq
    %v3512 = vshrl.u32 %v3511, 7
    %v3513 = vsub.s32 0, %v3512
    %v3514 = vrot.slane %v3510, %v3513
    %3515 = vmatprep.subr.mxu0 0.0
    %3516 = vmatpush1.msra.mxu0 %v3506
    %3517 = vmatprep.subr.mxu0 0.0
    %3518 = vmatpush1.msra.mxu0 %v3507
    %3519 = vmatprep.subr.mxu0 0.0
    %3520 = vmatpush1.msra.mxu0 %v3508
    %3521 = vmatprep.subr.mxu0 0.0
    %3522 = vmatpush1.msra.mxu0 %v3509
    %3523 = vmatprep.subr.mxu0 0.0
    %3524 = vmatpush1.msra.mxu0 0.0
    %3525 = vmatprep.subr.mxu0 0.0
    %3526 = vmatpush1.msra.mxu0 0.0
    %3527 = vmatprep.subr.mxu0 0.0
    %3528 = vmatpush1.msra.mxu0 0.0
    %3529 = vmatprep.subr.mxu0 0.0
    %3530 = vmatpush1.msra.mxu0 0.0
    %3531 = vmatprep.subr.mxu0 0.0
    %3532 = vmatpush1.msra.mxu0 0.0
    %3533 = vmatprep.subr.mxu0 0.0
    %3534 = vmatpush1.msra.mxu0 0.0
    %3535 = vmatprep.subr.mxu0 0.0
    %3536 = vmatpush1.msra.mxu0 0.0
    %3537 = vmatprep.subr.mxu0 0.0
    %3538 = vmatpush1.msra.mxu0 0.0
    %3539 = vmatprep.subr.mxu0 0.0
    %3540 = vmatpush1.msra.mxu0 0.0
    %3541 = vmatprep.subr.mxu0 0.0
    %3542 = vmatpush1.msra.mxu0 0.0
    %3543 = vmatprep.subr.mxu0 0.0
    %3544 = vmatpush1.msra.mxu0 0.0
    %3545 = vmatprep.subr.mxu0 0.0
    %3546 = vmatpush1.msra.mxu0 0.0
    %3547 = vmatprep.subr.mxu0 0.0
    %3548 = vmatpush1.msra.mxu0 0.0
    %3549 = vmatprep.subr.mxu0 0.0
    %3550 = vmatpush1.msra.mxu0 0.0
    %3551 = vmatprep.subr.mxu0 0.0
    %3552 = vmatpush1.msra.mxu0 0.0
    %3553 = vmatprep.subr.mxu0 0.0
    %3554 = vmatpush1.msra.mxu0 0.0
    %3555 = vmatprep.subr.mxu0 0.0
    %3556 = vmatpush1.msra.mxu0 0.0
    %3557 = vmatprep.subr.mxu0 0.0
    %3558 = vmatpush1.msra.mxu0 0.0
    %3559 = vmatprep.subr.mxu0 0.0
    %3560 = vmatpush1.msra.mxu0 0.0
    %3561 = vmatprep.subr.mxu0 0.0
    %3562 = vmatpush1.msra.mxu0 0.0
    %3563 = vmatprep.subr.mxu0 0.0
    %3564 = vmatpush1.msra.mxu0 0.0
    %3565 = vmatprep.subr.mxu0 0.0
    %3566 = vmatpush1.msra.mxu0 0.0
    %3567 = vmatprep.subr.mxu0 0.0
    %3568 = vmatpush1.msra.mxu0 0.0
    %3569 = vmatprep.subr.mxu0 0.0
    %3570 = vmatpush1.msra.mxu0 0.0
    %3571 = vmatprep.subr.mxu0 0.0
    %3572 = vmatpush1.msra.mxu0 0.0
    %3573 = vmatprep.subr.mxu0 0.0
    %3574 = vmatpush1.msra.mxu0 0.0
    %3575 = vmatprep.subr.mxu0 0.0
    %3576 = vmatpush1.msra.mxu0 0.0
    %3577 = vmatprep.subr.mxu0 0.0
    %3578 = vmatpush1.msra.mxu0 0.0
    %3579 = vmatprep.mubr.f32.mxu0 0.0
    %3580 = vmatmul.mubr.f32.gmra.mrb[0].mxu0 %v2098
    %v3581 = vpop.f32.mrb[0].mxu0
    %v3582 = vadd.f32 %v3514, %v3581
    %v3583 = vpop.f32.mrb[0].mxu0
    %3584 = vmatprep.mubr.f32.mxu0 0.0
    %3585 = vmatmul.mubr.f32.gmra.mrb[0].mxu0 %v2101
    %v3586 = vpop.f32.mrb[0].mxu0
    %v3587 = vadd.f32 %v3514, %v3586
    %v3588 = vpop.f32.mrb[0].mxu0
    %3589 = vdwg.mxu0
    %v3591 = vsel %vm427, %v3414, 0
    %v3594 = vsel %vm427, %v3419, 0
    %v3597 = vsel %vm427, %v3498, 0
    %v3600 = vsel %vm427, %v3503, 0
    %3602 = vmatprep.subr.mxu0 0.0
    %3603 = vmatpush1.xpose.msra.mxu0 %v3597
    %3604 = vmatprep.subr.mxu0 0.0
    %3605 = vmatpush1.xpose.msra.mxu0 %v3600
    %3606 = vmatprep.subr.mxu0 0.0
    %3607 = vmatpush1.xpose.msra.mxu0 0.0
    %3608 = vmatprep.subr.mxu0 0.0
    %3609 = vmatpush1.xpose.msra.mxu0 0.0
    %3610 = vmatprep.subr.mxu0 0.0
    %3611 = vmatpush1.xpose.msra.mxu0 0.0
    %3612 = vmatprep.subr.mxu0 0.0
    %3613 = vmatpush1.xpose.msra.mxu0 0.0
    %3614 = vmatprep.subr.mxu0 0.0
    %3615 = vmatpush1.xpose.msra.mxu0 0.0
    %3616 = vmatprep.subr.mxu0 0.0
    %3617 = vmatpush1.xpose.msra.mxu0 0.0
    %3618 = vmatprep.subr.mxu0 0.0
    %3619 = vmatpush1.xpose.msra.mxu0 0.0
    %3620 = vmatprep.subr.mxu0 0.0
    %3621 = vmatpush1.xpose.msra.mxu0 0.0
    %3622 = vmatprep.subr.mxu0 0.0
    %3623 = vmatpush1.xpose.msra.mxu0 0.0
    %3624 = vmatprep.subr.mxu0 0.0
    %3625 = vmatpush1.xpose.msra.mxu0 0.0
    %3626 = vmatprep.subr.mxu0 0.0
    %3627 = vmatpush1.xpose.msra.mxu0 0.0
    %3628 = vmatprep.subr.mxu0 0.0
    %3629 = vmatpush1.xpose.msra.mxu0 0.0
    %3630 = vmatprep.subr.mxu0 0.0
    %3631 = vmatpush1.xpose.msra.mxu0 0.0
    %3632 = vmatprep.subr.mxu0 0.0
    %3633 = vmatpush1.xpose.msra.mxu0 0.0
    %3634 = vmatprep.subr.mxu0 0.0
    %3635 = vmatpush1.xpose.msra.mxu0 0.0
    %3636 = vmatprep.subr.mxu0 0.0
    %3637 = vmatpush1.xpose.msra.mxu0 0.0
    %3638 = vmatprep.subr.mxu0 0.0
    %3639 = vmatpush1.xpose.msra.mxu0 0.0
    %3640 = vmatprep.subr.mxu0 0.0
    %3641 = vmatpush1.xpose.msra.mxu0 0.0
    %3642 = vmatprep.subr.mxu0 0.0
    %3643 = vmatpush1.xpose.msra.mxu0 0.0
    %3644 = vmatprep.subr.mxu0 0.0
    %3645 = vmatpush1.xpose.msra.mxu0 0.0
    %3646 = vmatprep.subr.mxu0 0.0
    %3647 = vmatpush1.xpose.msra.mxu0 0.0
    %3648 = vmatprep.subr.mxu0 0.0
    %3649 = vmatpush1.xpose.msra.mxu0 0.0
    %3650 = vmatprep.subr.mxu0 0.0
    %3651 = vmatpush1.xpose.msra.mxu0 0.0
    %3652 = vmatprep.subr.mxu0 0.0
    %3653 = vmatpush1.xpose.msra.mxu0 0.0
    %3654 = vmatprep.subr.mxu0 0.0
    %3655 = vmatpush1.xpose.msra.mxu0 0.0
    %3656 = vmatprep.subr.mxu0 0.0
    %3657 = vmatpush1.xpose.msra.mxu0 0.0
    %3658 = vmatprep.subr.mxu0 0.0
    %3659 = vmatpush1.xpose.msra.mxu0 0.0
    %3660 = vmatprep.subr.mxu0 0.0
    %3661 = vmatpush1.xpose.msra.mxu0 0.0
    %3662 = vmatprep.subr.mxu0 0.0
    %3663 = vmatpush1.xpose.msra.mxu0 0.0
    %3664 = vmatprep.subr.mxu0 0.0
    %3665 = vmatpush1.xpose.msra.mxu0 0.0
    %3666 = vmatprep.mubr.f32.mxu0 0.0
    %3667 = vmatmul.mubr.f32.gmra.mrb[0].mxu0 %v3591
    %v3668 = vpop.f32.mrb[0].mxu0
    %v3669 = vadd.f32 %v31, %v3668
    %v3670 = vpop.f32.mrb[0].mxu0
    %3671 = vmatprep.mubr.f32.mxu0 0.0
    %3672 = vmatmul.mubr.f32.gmra.mrb[0].mxu0 %v3594
    %v3673 = vpop.f32.mrb[0].mxu0
    %v3674 = vadd.f32 %v32, %v3673
    %v3675 = vpop.f32.mrb[0].mxu0
    %3676 = vdwg.mxu0
    %v3677 = vsel %vm515, %v3669, -inf
    %3678 = vmax.xlane.f32.xlu0 %v3677
    %v3679 = vpop.xlane.xlu0 %3678
    %v3680 = vsel %vm515, %v3674, -inf
    %3681 = vmax.xlane.f32.xlu0 %v3680
    %v3682 = vpop.xlane.xlu0 %3681
    %v3683 = vsub.f32 %v3669, %v3679
    %v3684 = vsub.f32 %v3674, %v3682
    %v3685 = vmul.f32 %v3683, 1.442695
    %v3686 = vpow.pop %v3685
    %v3687 = vmul.f32 %v3684, 1.442695
    %v3688 = vpow.pop %v3687
    %v3689 = vsel %vm515, %v3686, 0.0
    %3690 = vadd.xlane.f32.xlu0 %v3689
    %v3691 = vpop.xlane.xlu0 %3690
    %v3692 = vsel %vm515, %v3688, 0.0
    %3693 = vadd.xlane.f32.xlu0 %v3692
    %v3694 = vpop.xlane.xlu0 %3693
    %v3695 = vrcp.pop %v3691
    %v3696 = vmul.f32 %v3686, %v3695
    %v3697 = vrcp.pop %v3694
    %v3698 = vmul.f32 %v3688, %v3697
    %v3700 = vsel %vm515, %v3696, 0
    %v3703 = vsel %vm515, %v3698, 0
    %3705 = vmatprep.subr.mxu0 0.0
    %3706 = vmatpush1.msra.mxu0 %v3582
    %3707 = vmatprep.subr.mxu0 0.0
    %3708 = vmatpush1.msra.mxu0 %v3587
    %3709 = vmatprep.subr.mxu0 0.0
    %3710 = vmatpush1.msra.mxu0 0.0
    %3711 = vmatprep.subr.mxu0 0.0
    %3712 = vmatpush1.msra.mxu0 0.0
    %3713 = vmatprep.subr.mxu0 0.0
    %3714 = vmatpush1.msra.mxu0 0.0
    %3715 = vmatprep.subr.mxu0 0.0
    %3716 = vmatpush1.msra.mxu0 0.0
    %3717 = vmatprep.subr.mxu0 0.0
    %3718 = vmatpush1.msra.mxu0 0.0
    %3719 = vmatprep.subr.mxu0 0.0
    %3720 = vmatpush1.msra.mxu0 0.0
    %3721 = vmatprep.subr.mxu0 0.0
    %3722 = vmatpush1.msra.mxu0 0.0
    %3723 = vmatprep.subr.mxu0 0.0
    %3724 = vmatpush1.msra.mxu0 0.0
    %3725 = vmatprep.subr.mxu0 0.0
    %3726 = vmatpush1.msra.mxu0 0.0
    %3727 = vmatprep.subr.mxu0 0.0
    %3728 = vmatpush1.msra.mxu0 0.0
    %3729 = vmatprep.subr.mxu0 0.0
    %3730 = vmatpush1.msra.mxu0 0.0
    %3731 = vmatprep.subr.mxu0 0.0
    %3732 = vmatpush1.msra.mxu0 0.0
    %3733 = vmatprep.subr.mxu0 0.0
    %3734 = vmatpush1.msra.mxu0 0.0
    %3735 = vmatprep.subr.mxu0 0.0
    %3736 = vmatpush1.msra.mxu0 0.0
    %3737 = vmatprep.subr.mxu0 0.0
    %3738 = vmatpush1.msra.mxu0 0.0
    %3739 = vmatprep.subr.mxu0 0.0
    %3740 = vmatpush1.msra.mxu0 0.0
    %3741 = vmatprep.subr.mxu0 0.0
    %3742 = vmatpush1.msra.mxu0 0.0
    %3743 = vmatprep.subr.mxu0 0.0
    %3744 = vmatpush1.msra.mxu0 0.0
    %3745 = vmatprep.subr.mxu0 0.0
    %3746 = vmatpush1.msra.mxu0 0.0
    %3747 = vmatprep.subr.mxu0 0.0
    %3748 = vmatpush1.msra.mxu0 0.0
    %3749 = vmatprep.subr.mxu0 0.0
    %3750 = vmatpush1.msra.mxu0 0.0
    %3751 = vmatprep.subr.mxu0 0.0
    %3752 = vmatpush1.msra.mxu0 0.0
    %3753 = vmatprep.subr.mxu0 0.0
    %3754 = vmatpush1.msra.mxu0 0.0
    %3755 = vmatprep.subr.mxu0 0.0
    %3756 = vmatpush1.msra.mxu0 0.0
    %3757 = vmatprep.subr.mxu0 0.0
    %3758 = vmatpush1.msra.mxu0 0.0
    %3759 = vmatprep.subr.mxu0 0.0
    %3760 = vmatpush1.msra.mxu0 0.0
    %3761 = vmatprep.subr.mxu0 0.0
    %3762 = vmatpush1.msra.mxu0 0.0
    %3763 = vmatprep.subr.mxu0 0.0
    %3764 = vmatpush1.msra.mxu0 0.0
    %3765 = vmatprep.subr.mxu0 0.0
    %3766 = vmatpush1.msra.mxu0 0.0
    %3767 = vmatprep.subr.mxu0 0.0
    %3768 = vmatpush1.msra.mxu0 0.0
    %3769 = vmatprep.mubr.f32.mxu0 0.0
    %3770 = vmatmul.mubr.f32.gmra.mrb[0].mxu0 %v3700
    %v3771 = vpop.f32.mrb[0].mxu0
    %v3772 = vadd.f32 0.0, %v3771
    %v3773 = vpop.f32.mrb[0].mxu0
    %3774 = vmatprep.mubr.f32.mxu0 0.0
    %3775 = vmatmul.mubr.f32.gmra.mrb[0].mxu0 %v3703
    %v3776 = vpop.f32.mrb[0].mxu0
    %v3777 = vadd.f32 0.0, %v3776
    %v3778 = vpop.f32.mrb[0].mxu0
    %3779 = vdwg.mxu0
    %v3780 = vadd.f32 %v3336, %v3772
    %v3781 = vadd.f32 %v3337, %v3777
    %v3782 = vld [vmem:[#allocation2 + $0x448] sm:$0x1]
    %v3783 = vlaneseq
    %v3784 = vshrl.u32 %v3783, 7
    %v3785 = vsub.s32 0, %v3784
    %v3786 = vrot.slane %v3782, %v3785
    %v3787 = vadd.f32 %v3780, %v3786
    %v3788 = vadd.f32 %v3781, %v3786
    %v3789 = vadd.f32 %v1996, %v3787
    %v3790 = vadd.f32 %v1997, %v3788
    %v3791 = vld [vmem:[#allocation2 + $0x450] sm:$0x1]
    %v3792 = vld [vmem:[#allocation2 + $0x458] sm:$0x1]
    %v3793 = vsel %vm129, %v3789, 0.0
    %3794 = vadd.xlane.f32.xlu0 %v3793
    %v3795 = vpop.xlane.xlu0 %3794
    %v3796 = vsel %vm129, %v3790, 0.0
    %3797 = vadd.xlane.f32.xlu0 %v3796
    %v3798 = vpop.xlane.xlu0 %3797
    %v3799 = vmul.f32 %v3795, %v136
    %v3800 = vmul.f32 %v3798, %v136
    %v3801 = vsub.f32 %v3789, %v3799
    %v3802 = vsub.f32 %v3790, %v3800
    %v3803 = vmul.f32 %v3801, %v3801
    %v3804 = vmul.f32 %v3802, %v3802
    %v3805 = vsel %vm129, %v3803, 0.0
    %3806 = vadd.xlane.f32.xlu0 %v3805
    %v3807 = vpop.xlane.xlu0 %3806
    %v3808 = vsel %vm129, %v3804, 0.0
    %3809 = vadd.xlane.f32.xlu0 %v3808
    %v3810 = vpop.xlane.xlu0 %3809
    %v3811 = vmul.f32 %v3807, %v136
    %v3812 = vmul.f32 %v3810, %v136
    %v3813 = vadd.f32 %v3811, 1e-05
    %v3814 = vadd.f32 %v3812, 1e-05
    %v3815 = vrsqrt.pop %v3813
    %v3816 = vrsqrt.pop %v3814
    %v3817 = vmul.f32 %v3801, %v3815
    %v3818 = vmul.f32 %v3802, %v3816
    %v3819 = vlaneseq
    %v3820 = vshrl.u32 %v3819, 7
    %v3821 = vsub.s32 0, %v3820
    %v3822 = vrot.slane %v3791, %v3821
    %v3823 = vmul.f32 %v3817, %v3822
    %v3824 = vmul.f32 %v3818, %v3822
    %v3825 = vlaneseq
    %v3826 = vshrl.u32 %v3825, 7
    %v3827 = vsub.s32 0, %v3826
    %v3828 = vrot.slane %v3792, %v3827
    %v3829 = vadd.f32 %v3823, %v3828
    %v3830 = vadd.f32 %v3824, %v3828
    %v3831 = vld [vmem:[#allocation2 + $0x460] sm:$0xff]
    %v3832 = vld [vmem:[#allocation2 + $0x468] sm:$0xff]
    %v3833 = vld [vmem:[#allocation2 + $0x470] sm:$0xff]
    %v3834 = vld [vmem:[#allocation2 + $0x478] sm:$0xff]
    %v3835 = vld [vmem:[#allocation2 + $0x480] sm:$0x1]
    %v3836 = vlaneseq
    %v3837 = vshrl.u32 %v3836, 7
    %v3838 = vsub.s32 0, %v3837
    %v3839 = vrot.slane %v3835, %v3838
    %v3841 = vsel %vm129, %v3829, 0
    %v3844 = vsel %vm129, %v3830, 0
    %3846 = vmatprep.subr.mxu0 0.0
    %3847 = vmatpush1.msra.mxu0 %v3831
    %3848 = vmatprep.subr.mxu0 0.0
    %3849 = vmatpush1.msra.mxu0 %v3832
    %3850 = vmatprep.subr.mxu0 0.0
    %3851 = vmatpush1.msra.mxu0 %v3833
    %3852 = vmatprep.subr.mxu0 0.0
    %3853 = vmatpush1.msra.mxu0 %v3834
    %3854 = vmatprep.subr.mxu0 0.0
    %3855 = vmatpush1.msra.mxu0 0.0
    %3856 = vmatprep.subr.mxu0 0.0
    %3857 = vmatpush1.msra.mxu0 0.0
    %3858 = vmatprep.subr.mxu0 0.0
    %3859 = vmatpush1.msra.mxu0 0.0
    %3860 = vmatprep.subr.mxu0 0.0
    %3861 = vmatpush1.msra.mxu0 0.0
    %3862 = vmatprep.subr.mxu0 0.0
    %3863 = vmatpush1.msra.mxu0 0.0
    %3864 = vmatprep.subr.mxu0 0.0
    %3865 = vmatpush1.msra.mxu0 0.0
    %3866 = vmatprep.subr.mxu0 0.0
    %3867 = vmatpush1.msra.mxu0 0.0
    %3868 = vmatprep.subr.mxu0 0.0
    %3869 = vmatpush1.msra.mxu0 0.0
    %3870 = vmatprep.subr.mxu0 0.0
    %3871 = vmatpush1.msra.mxu0 0.0
    %3872 = vmatprep.subr.mxu0 0.0
    %3873 = vmatpush1.msra.mxu0 0.0
    %3874 = vmatprep.subr.mxu0 0.0
    %3875 = vmatpush1.msra.mxu0 0.0
    %3876 = vmatprep.subr.mxu0 0.0
    %3877 = vmatpush1.msra.mxu0 0.0
    %3878 = vmatprep.subr.mxu0 0.0
    %3879 = vmatpush1.msra.mxu0 0.0
    %3880 = vmatprep.subr.mxu0 0.0
    %3881 = vmatpush1.msra.mxu0 0.0
    %3882 = vmatprep.subr.mxu0 0.0
    %3883 = vmatpush1.msra.mxu0 0.0
    %3884 = vmatprep.subr.mxu0 0.0
    %3885 = vmatpush1.msra.mxu0 0.0
    %3886 = vmatprep.subr.mxu0 0.0
    %3887 = vmatpush1.msra.mxu0 0.0
    %3888 = vmatprep.subr.mxu0 0.0
    %3889 = vmatpush1.msra.mxu0 0.0
    %3890 = vmatprep.subr.mxu0 0.0
    %3891 = vmatpush1.msra.mxu0 0.0
    %3892 = vmatprep.subr.mxu0 0.0
    %3893 = vmatpush1.msra.mxu0 0.0
    %3894 = vmatprep.subr.mxu0 0.0
    %3895 = vmatpush1.msra.mxu0 0.0
    %3896 = vmatprep.subr.mxu0 0.0
    %3897 = vmatpush1.msra.mxu0 0.0
    %3898 = vmatprep.subr.mxu0 0.0
    %3899 = vmatpush1.msra.mxu0 0.0
    %3900 = vmatprep.subr.mxu0 0.0
    %3901 = vmatpush1.msra.mxu0 0.0
    %3902 = vmatprep.subr.mxu0 0.0
    %3903 = vmatpush1.msra.mxu0 0.0
    %3904 = vmatprep.subr.mxu0 0.0
    %3905 = vmatpush1.msra.mxu0 0.0
    %3906 = vmatprep.subr.mxu0 0.0
    %3907 = vmatpush1.msra.mxu0 0.0
    %3908 = vmatprep.subr.mxu0 0.0
    %3909 = vmatpush1.msra.mxu0 0.0
    %3910 = vmatprep.mubr.f32.mxu0 0.0
    %3911 = vmatmul.mubr.f32.gmra.mrb[0].mxu0 %v3841
    %v3912 = vpop.f32.mrb[0].mxu0
    %v3913 = vadd.f32 %v3839, %v3912
    %v3914 = vpop.f32.mrb[0].mxu0
    %3915 = vmatprep.mubr.f32.mxu0 0.0
    %3916 = vmatmul.mubr.f32.gmra.mrb[0].mxu0 %v3844
    %v3917 = vpop.f32.mrb[0].mxu0
    %v3918 = vadd.f32 %v3839, %v3917
    %v3919 = vpop.f32.mrb[0].mxu0
    %3920 = vdwg.mxu0
    %v3921 = vmul.f32 %v3913, 0.5
    %v3922 = vmul.f32 %v3918, 0.5
    %v3923 = vmul.f32 %v3913, 0.70710677
    %v3924 = vmul.f32 %v3918, 0.70710677
    %v3925 = verf.f32.pop %v3923
    %v3926 = verf.f32.pop %v3924
    %v3927 = vadd.f32 %v3925, 1.0
    %v3928 = vadd.f32 %v3926, 1.0
    %v3929 = vmul.f32 %v3921, %v3927
    %v3930 = vmul.f32 %v3922, %v3928
    %v3931 = vld [vmem:[#allocation2 + $0x488] sm:$0xff]
    %v3932 = vld [vmem:[#allocation2 + $0x490] sm:$0xff]
    %v3933 = vld [vmem:[#allocation2 + $0x498] sm:$0xff]
    %v3934 = vld [vmem:[#allocation2 + $0x4a0] sm:$0xff]
    %v3935 = vld [vmem:[#allocation2 + $0x4a8] sm:$0xff]
    %v3936 = vld [vmem:[#allocation2 + $0x4b0] sm:$0xff]
    %v3937 = vld [vmem:[#allocation2 + $0x4b8] sm:$0xff]
    %v3938 = vld [vmem:[#allocation2 + $0x4c0] sm:$0xff]
    %v3939 = vld [vmem:[#allocation2 + $0x4c8] sm:$0x1]
    %v3940 = vlaneseq
    %v3941 = vshrl.u32 %v3940, 7
    %v3942 = vsub.s32 0, %v3941
    %v3943 = vrot.slane %v3939, %v3942
    %vm3944 = vcmask 523264
    %v3946 = vsel %vm3944, %v3929, 0
    %v3949 = vsel %vm3944, %v3930, 0
    %3951 = vmatprep.subr.mxu0 0.0
    %3952 = vmatpush1.msra.mxu0 %v3931
    %3953 = vmatprep.subr.mxu0 0.0
    %3954 = vmatpush1.msra.mxu0 %v3932
    %3955 = vmatprep.subr.mxu0 0.0
    %3956 = vmatpush1.msra.mxu0 %v3933
    %3957 = vmatprep.subr.mxu0 0.0
    %3958 = vmatpush1.msra.mxu0 %v3934
    %3959 = vmatprep.subr.mxu0 0.0
    %3960 = vmatpush1.msra.mxu0 %v3935
    %3961 = vmatprep.subr.mxu0 0.0
    %3962 = vmatpush1.msra.mxu0 %v3936
    %3963 = vmatprep.subr.mxu0 0.0
    %3964 = vmatpush1.msra.mxu0 %v3937
    %3965 = vmatprep.subr.mxu0 0.0
    %3966 = vmatpush1.msra.mxu0 %v3938
    %3967 = vmatprep.subr.mxu0 0.0
    %3968 = vmatpush1.msra.mxu0 0.0
    %3969 = vmatprep.subr.mxu0 0.0
    %3970 = vmatpush1.msra.mxu0 0.0
    %3971 = vmatprep.subr.mxu0 0.0
    %3972 = vmatpush1.msra.mxu0 0.0
    %3973 = vmatprep.subr.mxu0 0.0
    %3974 = vmatpush1.msra.mxu0 0.0
    %3975 = vmatprep.subr.mxu0 0.0
    %3976 = vmatpush1.msra.mxu0 0.0
    %3977 = vmatprep.subr.mxu0 0.0
    %3978 = vmatpush1.msra.mxu0 0.0
    %3979 = vmatprep.subr.mxu0 0.0
    %3980 = vmatpush1.msra.mxu0 0.0
    %3981 = vmatprep.subr.mxu0 0.0
    %3982 = vmatpush1.msra.mxu0 0.0
    %3983 = vmatprep.subr.mxu0 0.0
    %3984 = vmatpush1.msra.mxu0 0.0
    %3985 = vmatprep.subr.mxu0 0.0
    %3986 = vmatpush1.msra.mxu0 0.0
    %3987 = vmatprep.subr.mxu0 0.0
    %3988 = vmatpush1.msra.mxu0 0.0
    %3989 = vmatprep.subr.mxu0 0.0
    %3990 = vmatpush1.msra.mxu0 0.0
    %3991 = vmatprep.subr.mxu0 0.0
    %3992 = vmatpush1.msra.mxu0 0.0
    %3993 = vmatprep.subr.mxu0 0.0
    %3994 = vmatpush1.msra.mxu0 0.0
    %3995 = vmatprep.subr.mxu0 0.0
    %3996 = vmatpush1.msra.mxu0 0.0
    %3997 = vmatprep.subr.mxu0 0.0
    %3998 = vmatpush1.msra.mxu0 0.0
    %3999 = vmatprep.subr.mxu0 0.0
    %4000 = vmatpush1.msra.mxu0 0.0
    %4001 = vmatprep.subr.mxu0 0.0
    %4002 = vmatpush1.msra.mxu0 0.0
    %4003 = vmatprep.subr.mxu0 0.0
    %4004 = vmatpush1.msra.mxu0 0.0
    %4005 = vmatprep.subr.mxu0 0.0
    %4006 = vmatpush1.msra.mxu0 0.0
    %4007 = vmatprep.subr.mxu0 0.0
    %4008 = vmatpush1.msra.mxu0 0.0
    %4009 = vmatprep.subr.mxu0 0.0
    %4010 = vmatpush1.msra.mxu0 0.0
    %4011 = vmatprep.subr.mxu0 0.0
    %4012 = vmatpush1.msra.mxu0 0.0
    %4013 = vmatprep.subr.mxu0 0.0
    %4014 = vmatpush1.msra.mxu0 0.0
    %4015 = vmatprep.mubr.f32.mxu0 0.0
    %4016 = vmatmul.mubr.f32.gmra.mrb[0].mxu0 %v3946
    %v4017 = vpop.f32.mrb[0].mxu0
    %v4018 = vadd.f32 %v3943, %v4017
    %v4019 = vpop.f32.mrb[0].mxu0
    %4020 = vmatprep.mubr.f32.mxu0 0.0
    %4021 = vmatmul.mubr.f32.gmra.mrb[0].mxu0 %v3949
    %v4022 = vpop.f32.mrb[0].mxu0
    %v4023 = vadd.f32 %v3943, %v4022
    %v4024 = vpop.f32.mrb[0].mxu0
    %4025 = vdwg.mxu0
    %v4026 = vadd.f32 %v3829, %v4018
    %v4027 = vadd.f32 %v3830, %v4023
    %v4028 = vld [vmem:[#allocation2 + $0x4d0] sm:$0x1]
    %v4029 = vld [vmem:[#allocation2 + $0x4d8] sm:$0x1]
    %v4030 = vsel %vm129, %v4026, 0.0
    %4031 = vadd.xlane.f32.xlu0 %v4030
    %v4032 = vpop.xlane.xlu0 %4031
    %v4033 = vsel %vm129, %v4027, 0.0
    %4034 = vadd.xlane.f32.xlu0 %v4033
    %v4035 = vpop.xlane.xlu0 %4034
    %v4036 = vmul.f32 %v4032, %v136
    %v4037 = vmul.f32 %v4035, %v136
    %v4038 = vsub.f32 %v4026, %v4036
    %v4039 = vsub.f32 %v4027, %v4037
    %v4040 = vmul.f32 %v4038, %v4038
    %v4041 = vmul.f32 %v4039, %v4039
    %v4042 = vsel %vm129, %v4040, 0.0
    %4043 = vadd.xlane.f32.xlu0 %v4042
    %v4044 = vpop.xlane.xlu0 %4043
    %v4045 = vsel %vm129, %v4041, 0.0
    %4046 = vadd.xlane.f32.xlu0 %v4045
    %v4047 = vpop.xlane.xlu0 %4046
    %v4048 = vmul.f32 %v4044, %v136
    %v4049 = vmul.f32 %v4047, %v136
    %v4050 = vadd.f32 %v4048, 1e-05
    %v4051 = vadd.f32 %v4049, 1e-05
    %v4052 = vrsqrt.pop %v4050
    %v4053 = vrsqrt.pop %v4051
    %v4054 = vmul.f32 %v4038, %v4052
    %v4055 = vmul.f32 %v4039, %v4053
    %v4056 = vlaneseq
    %v4057 = vshrl.u32 %v4056, 7
    %v4058 = vsub.s32 0, %v4057
    %v4059 = vrot.slane %v4028, %v4058
    %v4060 = vmul.f32 %v4054, %v4059
    %v4061 = vmul.f32 %v4055, %v4059
    %v4062 = vlaneseq
    %v4063 = vshrl.u32 %v4062, 7
    %v4064 = vsub.s32 0, %v4063
    %v4065 = vrot.slane %v4029, %v4064
    %v4066 = vadd.f32 %v4060, %v4065
    %v4067 = vadd.f32 %v4061, %v4065
    %v4068 = vld [vmem:[#allocation2 + $0x4e0] sm:$0xff]
    %v4069 = vld [vmem:[#allocation2 + $0x4e8] sm:$0xff]
    %v4070 = vld [vmem:[#allocation2 + $0x4f0] sm:$0xff]
    %v4071 = vld [vmem:[#allocation2 + $0x4f8] sm:$0xff]
    %v4072 = vld [vmem:[#allocation2 + $0x500] sm:$0x1]
    %v4073 = vlaneseq
    %v4074 = vshrl.u32 %v4073, 7
    %v4075 = vsub.s32 0, %v4074
    %v4076 = vrot.slane %v4072, %v4075
    %v4078 = vsel %vm129, %v4066, 0
    %v4081 = vsel %vm129, %v4067, 0
    %4083 = vmatprep.subr.mxu0 0.0
    %4084 = vmatpush1.msra.mxu0 %v4068
    %4085 = vmatprep.subr.mxu0 0.0
    %4086 = vmatpush1.msra.mxu0 %v4069
    %4087 = vmatprep.subr.mxu0 0.0
    %4088 = vmatpush1.msra.mxu0 %v4070
    %4089 = vmatprep.subr.mxu0 0.0
    %4090 = vmatpush1.msra.mxu0 %v4071
    %4091 = vmatprep.subr.mxu0 0.0
    %4092 = vmatpush1.msra.mxu0 0.0
    %4093 = vmatprep.subr.mxu0 0.0
    %4094 = vmatpush1.msra.mxu0 0.0
    %4095 = vmatprep.subr.mxu0 0.0
    %4096 = vmatpush1.msra.mxu0 0.0
    %4097 = vmatprep.subr.mxu0 0.0
    %4098 = vmatpush1.msra.mxu0 0.0
    %4099 = vmatprep.subr.mxu0 0.0
    %4100 = vmatpush1.msra.mxu0 0.0
    %4101 = vmatprep.subr.mxu0 0.0
    %4102 = vmatpush1.msra.mxu0 0.0
    %4103 = vmatprep.subr.mxu0 0.0
    %4104 = vmatpush1.msra.mxu0 0.0
    %4105 = vmatprep.subr.mxu0 0.0
    %4106 = vmatpush1.msra.mxu0 0.0
    %4107 = vmatprep.subr.mxu0 0.0
    %4108 = vmatpush1.msra.mxu0 0.0
    %4109 = vmatprep.subr.mxu0 0.0
    %4110 = vmatpush1.msra.mxu0 0.0
    %4111 = vmatprep.subr.mxu0 0.0
    %4112 = vmatpush1.msra.mxu0 0.0
    %4113 = vmatprep.subr.mxu0 0.0
    %4114 = vmatpush1.msra.mxu0 0.0
    %4115 = vmatprep.subr.mxu0 0.0
    %4116 = vmatpush1.msra.mxu0 0.0
    %4117 = vmatprep.subr.mxu0 0.0
    %4118 = vmatpush1.msra.mxu0 0.0
    %4119 = vmatprep.subr.mxu0 0.0
    %4120 = vmatpush1.msra.mxu0 0.0
    %4121 = vmatprep.subr.mxu0 0.0
    %4122 = vmatpush1.msra.mxu0 0.0
    %4123 = vmatprep.subr.mxu0 0.0
    %4124 = vmatpush1.msra.mxu0 0.0
    %4125 = vmatprep.subr.mxu0 0.0
    %4126 = vmatpush1.msra.mxu0 0.0
    %4127 = vmatprep.subr.mxu0 0.0
    %4128 = vmatpush1.msra.mxu0 0.0
    %4129 = vmatprep.subr.mxu0 0.0
    %4130 = vmatpush1.msra.mxu0 0.0
    %4131 = vmatprep.subr.mxu0 0.0
    %4132 = vmatpush1.msra.mxu0 0.0
    %4133 = vmatprep.subr.mxu0 0.0
    %4134 = vmatpush1.msra.mxu0 0.0
    %4135 = vmatprep.subr.mxu0 0.0
    %4136 = vmatpush1.msra.mxu0 0.0
    %4137 = vmatprep.subr.mxu0 0.0
    %4138 = vmatpush1.msra.mxu0 0.0
    %4139 = vmatprep.subr.mxu0 0.0
    %4140 = vmatpush1.msra.mxu0 0.0
    %4141 = vmatprep.subr.mxu0 0.0
    %4142 = vmatpush1.msra.mxu0 0.0
    %4143 = vmatprep.subr.mxu0 0.0
    %4144 = vmatpush1.msra.mxu0 0.0
    %4145 = vmatprep.subr.mxu0 0.0
    %4146 = vmatpush1.msra.mxu0 0.0
    %4147 = vmatprep.mubr.f32.mxu0 0.0
    %4148 = vmatmul.mubr.f32.gmra.mrb[0].mxu0 %v4078
    %v4149 = vpop.f32.mrb[0].mxu0
    %v4150 = vadd.f32 %v4076, %v4149
    %v4151 = vpop.f32.mrb[0].mxu0
    %4152 = vmatprep.mubr.f32.mxu0 0.0
    %4153 = vmatmul.mubr.f32.gmra.mrb[0].mxu0 %v4081
    %v4154 = vpop.f32.mrb[0].mxu0
    %v4155 = vadd.f32 %v4076, %v4154
    %v4156 = vpop.f32.mrb[0].mxu0
    %4157 = vdwg.mxu0
    %v4158 = vld [vmem:[#allocation2 + $0x508] sm:$0xff]
    %v4159 = vld [vmem:[#allocation2 + $0x510] sm:$0xff]
    %v4160 = vld [vmem:[#allocation2 + $0x518] sm:$0xff]
    %v4161 = vld [vmem:[#allocation2 + $0x520] sm:$0xff]
    %v4162 = vld [vmem:[#allocation2 + $0x528] sm:$0x1]
    %v4163 = vlaneseq
    %v4164 = vshrl.u32 %v4163, 7
    %v4165 = vsub.s32 0, %v4164
    %v4166 = vrot.slane %v4162, %v4165
    %4167 = vmatprep.subr.mxu0 0.0
    %4168 = vmatpush1.msra.mxu0 %v4158
    %4169 = vmatprep.subr.mxu0 0.0
    %4170 = vmatpush1.msra.mxu0 %v4159
    %4171 = vmatprep.subr.mxu0 0.0
    %4172 = vmatpush1.msra.mxu0 %v4160
    %4173 = vmatprep.subr.mxu0 0.0
    %4174 = vmatpush1.msra.mxu0 %v4161
    %4175 = vmatprep.subr.mxu0 0.0
    %4176 = vmatpush1.msra.mxu0 0.0
    %4177 = vmatprep.subr.mxu0 0.0
    %4178 = vmatpush1.msra.mxu0 0.0
    %4179 = vmatprep.subr.mxu0 0.0
    %4180 = vmatpush1.msra.mxu0 0.0
    %4181 = vmatprep.subr.mxu0 0.0
    %4182 = vmatpush1.msra.mxu0 0.0
    %4183 = vmatprep.subr.mxu0 0.0
    %4184 = vmatpush1.msra.mxu0 0.0
    %4185 = vmatprep.subr.mxu0 0.0
    %4186 = vmatpush1.msra.mxu0 0.0
    %4187 = vmatprep.subr.mxu0 0.0
    %4188 = vmatpush1.msra.mxu0 0.0
    %4189 = vmatprep.subr.mxu0 0.0
    %4190 = vmatpush1.msra.mxu0 0.0
    %4191 = vmatprep.subr.mxu0 0.0
    %4192 = vmatpush1.msra.mxu0 0.0
    %4193 = vmatprep.subr.mxu0 0.0
    %4194 = vmatpush1.msra.mxu0 0.0
    %4195 = vmatprep.subr.mxu0 0.0
    %4196 = vmatpush1.msra.mxu0 0.0
    %4197 = vmatprep.subr.mxu0 0.0
    %4198 = vmatpush1.msra.mxu0 0.0
    %4199 = vmatprep.subr.mxu0 0.0
    %4200 = vmatpush1.msra.mxu0 0.0
    %4201 = vmatprep.subr.mxu0 0.0
    %4202 = vmatpush1.msra.mxu0 0.0
    %4203 = vmatprep.subr.mxu0 0.0
    %4204 = vmatpush1.msra.mxu0 0.0
    %4205 = vmatprep.subr.mxu0 0.0
    %4206 = vmatpush1.msra.mxu0 0.0
    %4207 = vmatprep.subr.mxu0 0.0
    %4208 = vmatpush1.msra.mxu0 0.0
    %4209 = vmatprep.subr.mxu0 0.0
    %4210 = vmatpush1.msra.mxu0 0.0
    %4211 = vmatprep.subr.mxu0 0.0
    %4212 = vmatpush1.msra.mxu0 0.0
    %4213 = vmatprep.subr.mxu0 0.0
    %4214 = vmatpush1.msra.mxu0 0.0
    %4215 = vmatprep.subr.mxu0 0.0
    %4216 = vmatpush1.msra.mxu0 0.0
    %4217 = vmatprep.subr.mxu0 0.0
    %4218 = vmatpush1.msra.mxu0 0.0
    %4219 = vmatprep.subr.mxu0 0.0
    %4220 = vmatpush1.msra.mxu0 0.0
    %4221 = vmatprep.subr.mxu0 0.0
    %4222 = vmatpush1.msra.mxu0 0.0
    %4223 = vmatprep.subr.mxu0 0.0
    %4224 = vmatpush1.msra.mxu0 0.0
    %4225 = vmatprep.subr.mxu0 0.0
    %4226 = vmatpush1.msra.mxu0 0.0
    %4227 = vmatprep.subr.mxu0 0.0
    %4228 = vmatpush1.msra.mxu0 0.0
    %4229 = vmatprep.subr.mxu0 0.0
    %4230 = vmatpush1.msra.mxu0 0.0
    %4231 = vmatprep.mubr.f32.mxu0 0.0
    %4232 = vmatmul.mubr.f32.gmra.mrb[0].mxu0 %v4078
    %v4233 = vpop.f32.mrb[0].mxu0
    %v4234 = vadd.f32 %v4166, %v4233
    %v4235 = vpop.f32.mrb[0].mxu0
    %4236 = vmatprep.mubr.f32.mxu0 0.0
    %4237 = vmatmul.mubr.f32.gmra.mrb[0].mxu0 %v4081
    %v4238 = vpop.f32.mrb[0].mxu0
    %v4239 = vadd.f32 %v4166, %v4238
    %v4240 = vpop.f32.mrb[0].mxu0
    %4241 = vdwg.mxu0
    %v4242 = vld [vmem:[#allocation2 + $0x530] sm:$0xff]
    %v4243 = vld [vmem:[#allocation2 + $0x538] sm:$0xff]
    %v4244 = vld [vmem:[#allocation2 + $0x540] sm:$0xff]
    %v4245 = vld [vmem:[#allocation2 + $0x548] sm:$0xff]
    %v4246 = vld [vmem:[#allocation2 + $0x550] sm:$0x1]
    %v4247 = vlaneseq
    %v4248 = vshrl.u32 %v4247, 7
    %v4249 = vsub.s32 0, %v4248
    %v4250 = vrot.slane %v4246, %v4249
    %4251 = vmatprep.subr.mxu0 0.0
    %4252 = vmatpush1.msra.mxu0 %v4242
    %4253 = vmatprep.subr.mxu0 0.0
    %4254 = vmatpush1.msra.mxu0 %v4243
    %4255 = vmatprep.subr.mxu0 0.0
    %4256 = vmatpush1.msra.mxu0 %v4244
    %4257 = vmatprep.subr.mxu0 0.0
    %4258 = vmatpush1.msra.mxu0 %v4245
    %4259 = vmatprep.subr.mxu0 0.0
    %4260 = vmatpush1.msra.mxu0 0.0
    %4261 = vmatprep.subr.mxu0 0.0
    %4262 = vmatpush1.msra.mxu0 0.0
    %4263 = vmatprep.subr.mxu0 0.0
    %4264 = vmatpush1.msra.mxu0 0.0
    %4265 = vmatprep.subr.mxu0 0.0
    %4266 = vmatpush1.msra.mxu0 0.0
    %4267 = vmatprep.subr.mxu0 0.0
    %4268 = vmatpush1.msra.mxu0 0.0
    %4269 = vmatprep.subr.mxu0 0.0
    %4270 = vmatpush1.msra.mxu0 0.0
    %4271 = vmatprep.subr.mxu0 0.0
    %4272 = vmatpush1.msra.mxu0 0.0
    %4273 = vmatprep.subr.mxu0 0.0
    %4274 = vmatpush1.msra.mxu0 0.0
    %4275 = vmatprep.subr.mxu0 0.0
    %4276 = vmatpush1.msra.mxu0 0.0
    %4277 = vmatprep.subr.mxu0 0.0
    %4278 = vmatpush1.msra.mxu0 0.0
    %4279 = vmatprep.subr.mxu0 0.0
    %4280 = vmatpush1.msra.mxu0 0.0
    %4281 = vmatprep.subr.mxu0 0.0
    %4282 = vmatpush1.msra.mxu0 0.0
    %4283 = vmatprep.subr.mxu0 0.0
    %4284 = vmatpush1.msra.mxu0 0.0
    %4285 = vmatprep.subr.mxu0 0.0
    %4286 = vmatpush1.msra.mxu0 0.0
    %4287 = vmatprep.subr.mxu0 0.0
    %4288 = vmatpush1.msra.mxu0 0.0
    %4289 = vmatprep.subr.mxu0 0.0
    %4290 = vmatpush1.msra.mxu0 0.0
    %4291 = vmatprep.subr.mxu0 0.0
    %4292 = vmatpush1.msra.mxu0 0.0
    %4293 = vmatprep.subr.mxu0 0.0
    %4294 = vmatpush1.msra.mxu0 0.0
    %4295 = vmatprep.subr.mxu0 0.0
    %4296 = vmatpush1.msra.mxu0 0.0
    %4297 = vmatprep.subr.mxu0 0.0
    %4298 = vmatpush1.msra.mxu0 0.0
    %4299 = vmatprep.subr.mxu0 0.0
    %4300 = vmatpush1.msra.mxu0 0.0
    %4301 = vmatprep.subr.mxu0 0.0
    %4302 = vmatpush1.msra.mxu0 0.0
    %4303 = vmatprep.subr.mxu0 0.0
    %4304 = vmatpush1.msra.mxu0 0.0
    %4305 = vmatprep.subr.mxu0 0.0
    %4306 = vmatpush1.msra.mxu0 0.0
    %4307 = vmatprep.subr.mxu0 0.0
    %4308 = vmatpush1.msra.mxu0 0.0
    %4309 = vmatprep.subr.mxu0 0.0
    %4310 = vmatpush1.msra.mxu0 0.0
    %4311 = vmatprep.subr.mxu0 0.0
    %4312 = vmatpush1.msra.mxu0 0.0
    %4313 = vmatprep.subr.mxu0 0.0
    %4314 = vmatpush1.msra.mxu0 0.0
    %4315 = vmatprep.mubr.f32.mxu0 0.0
    %4316 = vmatmul.mubr.f32.gmra.mrb[0].mxu0 %v4078
    %v4317 = vpop.f32.mrb[0].mxu0
    %v4318 = vadd.f32 %v4250, %v4317
    %v4319 = vpop.f32.mrb[0].mxu0
    %4320 = vmatprep.mubr.f32.mxu0 0.0
    %4321 = vmatmul.mubr.f32.gmra.mrb[0].mxu0 %v4081
    %v4322 = vpop.f32.mrb[0].mxu0
    %v4323 = vadd.f32 %v4250, %v4322
    %v4324 = vpop.f32.mrb[0].mxu0
    %4325 = vdwg.mxu0
    %v4327 = vsel %vm427, %v4150, 0
    %v4330 = vsel %vm427, %v4155, 0
    %v4333 = vsel %vm427, %v4234, 0
    %v4336 = vsel %vm427, %v4239, 0
    %4338 = vmatprep.subr.mxu0 0.0
    %4339 = vmatpush1.xpose.msra.mxu0 %v4333
    %4340 = vmatprep.subr.mxu0 0.0
    %4341 = vmatpush1.xpose.msra.mxu0 %v4336
    %4342 = vmatprep.subr.mxu0 0.0
    %4343 = vmatpush1.xpose.msra.mxu0 0.0
    %4344 = vmatprep.subr.mxu0 0.0
    %4345 = vmatpush1.xpose.msra.mxu0 0.0
    %4346 = vmatprep.subr.mxu0 0.0
    %4347 = vmatpush1.xpose.msra.mxu0 0.0
    %4348 = vmatprep.subr.mxu0 0.0
    %4349 = vmatpush1.xpose.msra.mxu0 0.0
    %4350 = vmatprep.subr.mxu0 0.0
    %4351 = vmatpush1.xpose.msra.mxu0 0.0
    %4352 = vmatprep.subr.mxu0 0.0
    %4353 = vmatpush1.xpose.msra.mxu0 0.0
    %4354 = vmatprep.subr.mxu0 0.0
    %4355 = vmatpush1.xpose.msra.mxu0 0.0
    %4356 = vmatprep.subr.mxu0 0.0
    %4357 = vmatpush1.xpose.msra.mxu0 0.0
    %4358 = vmatprep.subr.mxu0 0.0
    %4359 = vmatpush1.xpose.msra.mxu0 0.0
    %4360 = vmatprep.subr.mxu0 0.0
    %4361 = vmatpush1.xpose.msra.mxu0 0.0
    %4362 = vmatprep.subr.mxu0 0.0
    %4363 = vmatpush1.xpose.msra.mxu0 0.0
    %4364 = vmatprep.subr.mxu0 0.0
    %4365 = vmatpush1.xpose.msra.mxu0 0.0
    %4366 = vmatprep.subr.mxu0 0.0
    %4367 = vmatpush1.xpose.msra.mxu0 0.0
    %4368 = vmatprep.subr.mxu0 0.0
    %4369 = vmatpush1.xpose.msra.mxu0 0.0
    %4370 = vmatprep.subr.mxu0 0.0
    %4371 = vmatpush1.xpose.msra.mxu0 0.0
    %4372 = vmatprep.subr.mxu0 0.0
    %4373 = vmatpush1.xpose.msra.mxu0 0.0
    %4374 = vmatprep.subr.mxu0 0.0
    %4375 = vmatpush1.xpose.msra.mxu0 0.0
    %4376 = vmatprep.subr.mxu0 0.0
    %4377 = vmatpush1.xpose.msra.mxu0 0.0
    %4378 = vmatprep.subr.mxu0 0.0
    %4379 = vmatpush1.xpose.msra.mxu0 0.0
    %4380 = vmatprep.subr.mxu0 0.0
    %4381 = vmatpush1.xpose.msra.mxu0 0.0
    %4382 = vmatprep.subr.mxu0 0.0
    %4383 = vmatpush1.xpose.msra.mxu0 0.0
    %4384 = vmatprep.subr.mxu0 0.0
    %4385 = vmatpush1.xpose.msra.mxu0 0.0
    %4386 = vmatprep.subr.mxu0 0.0
    %4387 = vmatpush1.xpose.msra.mxu0 0.0
    %4388 = vmatprep.subr.mxu0 0.0
    %4389 = vmatpush1.xpose.msra.mxu0 0.0
    %4390 = vmatprep.subr.mxu0 0.0
    %4391 = vmatpush1.xpose.msra.mxu0 0.0
    %4392 = vmatprep.subr.mxu0 0.0
    %4393 = vmatpush1.xpose.msra.mxu0 0.0
    %4394 = vmatprep.subr.mxu0 0.0
    %4395 = vmatpush1.xpose.msra.mxu0 0.0
    %4396 = vmatprep.subr.mxu0 0.0
    %4397 = vmatpush1.xpose.msra.mxu0 0.0
    %4398 = vmatprep.subr.mxu0 0.0
    %4399 = vmatpush1.xpose.msra.mxu0 0.0
    %4400 = vmatprep.subr.mxu0 0.0
    %4401 = vmatpush1.xpose.msra.mxu0 0.0
    %4402 = vmatprep.mubr.f32.mxu0 0.0
    %4403 = vmatmul.mubr.f32.gmra.mrb[0].mxu0 %v4327
    %v4404 = vpop.f32.mrb[0].mxu0
    %v4405 = vadd.f32 %v29, %v4404
    %v4406 = vpop.f32.mrb[0].mxu0
    %4407 = vmatprep.mubr.f32.mxu0 0.0
    %4408 = vmatmul.mubr.f32.gmra.mrb[0].mxu0 %v4330
    %v4409 = vpop.f32.mrb[0].mxu0
    %v4410 = vadd.f32 %v30, %v4409
    %v4411 = vpop.f32.mrb[0].mxu0
    %4412 = vdwg.mxu0
    %v4413 = vsel %vm515, %v4405, -inf
    %4414 = vmax.xlane.f32.xlu0 %v4413
    %v4415 = vpop.xlane.xlu0 %4414
    %v4416 = vsel %vm515, %v4410, -inf
    %4417 = vmax.xlane.f32.xlu0 %v4416
    %v4418 = vpop.xlane.xlu0 %4417
    %v4419 = vsub.f32 %v4405, %v4415
    %v4420 = vsub.f32 %v4410, %v4418
    %v4421 = vmul.f32 %v4419, 1.442695
    %v4422 = vpow.pop %v4421
    %v4423 = vmul.f32 %v4420, 1.442695
    %v4424 = vpow.pop %v4423
    %v4425 = vsel %vm515, %v4422, 0.0
    %4426 = vadd.xlane.f32.xlu0 %v4425
    %v4427 = vpop.xlane.xlu0 %4426
    %v4428 = vsel %vm515, %v4424, 0.0
    %4429 = vadd.xlane.f32.xlu0 %v4428
    %v4430 = vpop.xlane.xlu0 %4429
    %v4431 = vrcp.pop %v4427
    %v4432 = vmul.f32 %v4422, %v4431
    %v4433 = vrcp.pop %v4430
    %v4434 = vmul.f32 %v4424, %v4433
    %v4435 = vld [vmem:[#allocation2 + $0x558] sm:$0xff]
    %v4436 = vld [vmem:[#allocation2 + $0x560] sm:$0xff]
    %v4437 = vld [vmem:[#allocation2 + $0x568] sm:$0xff]
    %v4438 = vld [vmem:[#allocation2 + $0x570] sm:$0xff]
    %v4439 = vld [vmem:[#allocation2 + $0x578] sm:$0x1]
    %v4440 = vlaneseq
    %v4441 = vshrl.u32 %v4440, 7
    %v4442 = vsub.s32 0, %v4441
    %v4443 = vrot.slane %v4439, %v4442
    %4444 = vmatprep.subr.mxu0 0.0
    %4445 = vmatpush1.msra.mxu0 %v4435
    %4446 = vmatprep.subr.mxu0 0.0
    %4447 = vmatpush1.msra.mxu0 %v4436
    %4448 = vmatprep.subr.mxu0 0.0
    %4449 = vmatpush1.msra.mxu0 %v4437
    %4450 = vmatprep.subr.mxu0 0.0
    %4451 = vmatpush1.msra.mxu0 %v4438
    %4452 = vmatprep.subr.mxu0 0.0
    %4453 = vmatpush1.msra.mxu0 0.0
    %4454 = vmatprep.subr.mxu0 0.0
    %4455 = vmatpush1.msra.mxu0 0.0
    %4456 = vmatprep.subr.mxu0 0.0
    %4457 = vmatpush1.msra.mxu0 0.0
    %4458 = vmatprep.subr.mxu0 0.0
    %4459 = vmatpush1.msra.mxu0 0.0
    %4460 = vmatprep.subr.mxu0 0.0
    %4461 = vmatpush1.msra.mxu0 0.0
    %4462 = vmatprep.subr.mxu0 0.0
    %4463 = vmatpush1.msra.mxu0 0.0
    %4464 = vmatprep.subr.mxu0 0.0
    %4465 = vmatpush1.msra.mxu0 0.0
    %4466 = vmatprep.subr.mxu0 0.0
    %4467 = vmatpush1.msra.mxu0 0.0
    %4468 = vmatprep.subr.mxu0 0.0
    %4469 = vmatpush1.msra.mxu0 0.0
    %4470 = vmatprep.subr.mxu0 0.0
    %4471 = vmatpush1.msra.mxu0 0.0
    %4472 = vmatprep.subr.mxu0 0.0
    %4473 = vmatpush1.msra.mxu0 0.0
    %4474 = vmatprep.subr.mxu0 0.0
    %4475 = vmatpush1.msra.mxu0 0.0
    %4476 = vmatprep.subr.mxu0 0.0
    %4477 = vmatpush1.msra.mxu0 0.0
    %4478 = vmatprep.subr.mxu0 0.0
    %4479 = vmatpush1.msra.mxu0 0.0
    %4480 = vmatprep.subr.mxu0 0.0
    %4481 = vmatpush1.msra.mxu0 0.0
    %4482 = vmatprep.subr.mxu0 0.0
    %4483 = vmatpush1.msra.mxu0 0.0
    %4484 = vmatprep.subr.mxu0 0.0
    %4485 = vmatpush1.msra.mxu0 0.0
    %4486 = vmatprep.subr.mxu0 0.0
    %4487 = vmatpush1.msra.mxu0 0.0
    %4488 = vmatprep.subr.mxu0 0.0
    %4489 = vmatpush1.msra.mxu0 0.0
    %4490 = vmatprep.subr.mxu0 0.0
    %4491 = vmatpush1.msra.mxu0 0.0
    %4492 = vmatprep.subr.mxu0 0.0
    %4493 = vmatpush1.msra.mxu0 0.0
    %4494 = vmatprep.subr.mxu0 0.0
    %4495 = vmatpush1.msra.mxu0 0.0
    %4496 = vmatprep.subr.mxu0 0.0
    %4497 = vmatpush1.msra.mxu0 0.0
    %4498 = vmatprep.subr.mxu0 0.0
    %4499 = vmatpush1.msra.mxu0 0.0
    %4500 = vmatprep.subr.mxu0 0.0
    %4501 = vmatpush1.msra.mxu0 0.0
    %4502 = vmatprep.subr.mxu0 0.0
    %4503 = vmatpush1.msra.mxu0 0.0
    %4504 = vmatprep.subr.mxu0 0.0
    %4505 = vmatpush1.msra.mxu0 0.0
    %4506 = vmatprep.subr.mxu0 0.0
    %4507 = vmatpush1.msra.mxu0 0.0
    %4508 = vmatprep.mubr.f32.mxu0 0.0
    %4509 = vmatmul.mubr.f32.gmra.mrb[0].mxu0 %v4078
    %v4510 = vpop.f32.mrb[0].mxu0
    %v4511 = vadd.f32 %v4443, %v4510
    %v4512 = vpop.f32.mrb[0].mxu0
    %4513 = vmatprep.mubr.f32.mxu0 0.0
    %4514 = vmatmul.mubr.f32.gmra.mrb[0].mxu0 %v4081
    %v4515 = vpop.f32.mrb[0].mxu0
    %v4516 = vadd.f32 %v4443, %v4515
    %v4517 = vpop.f32.mrb[0].mxu0
    %4518 = vdwg.mxu0
    %v4519 = vld [vmem:[#allocation2 + $0x580] sm:$0xff]
    %v4520 = vld [vmem:[#allocation2 + $0x588] sm:$0xff]
    %v4521 = vld [vmem:[#allocation2 + $0x590] sm:$0xff]
    %v4522 = vld [vmem:[#allocation2 + $0x598] sm:$0xff]
    %v4523 = vld [vmem:[#allocation2 + $0x5a0] sm:$0x1]
    %v4524 = vlaneseq
    %v4525 = vshrl.u32 %v4524, 7
    %v4526 = vsub.s32 0, %v4525
    %v4527 = vrot.slane %v4523, %v4526
    %4528 = vmatprep.subr.mxu0 0.0
    %4529 = vmatpush1.msra.mxu0 %v4519
    %4530 = vmatprep.subr.mxu0 0.0
    %4531 = vmatpush1.msra.mxu0 %v4520
    %4532 = vmatprep.subr.mxu0 0.0
    %4533 = vmatpush1.msra.mxu0 %v4521
    %4534 = vmatprep.subr.mxu0 0.0
    %4535 = vmatpush1.msra.mxu0 %v4522
    %4536 = vmatprep.subr.mxu0 0.0
    %4537 = vmatpush1.msra.mxu0 0.0
    %4538 = vmatprep.subr.mxu0 0.0
    %4539 = vmatpush1.msra.mxu0 0.0
    %4540 = vmatprep.subr.mxu0 0.0
    %4541 = vmatpush1.msra.mxu0 0.0
    %4542 = vmatprep.subr.mxu0 0.0
    %4543 = vmatpush1.msra.mxu0 0.0
    %4544 = vmatprep.subr.mxu0 0.0
    %4545 = vmatpush1.msra.mxu0 0.0
    %4546 = vmatprep.subr.mxu0 0.0
    %4547 = vmatpush1.msra.mxu0 0.0
    %4548 = vmatprep.subr.mxu0 0.0
    %4549 = vmatpush1.msra.mxu0 0.0
    %4550 = vmatprep.subr.mxu0 0.0
    %4551 = vmatpush1.msra.mxu0 0.0
    %4552 = vmatprep.subr.mxu0 0.0
    %4553 = vmatpush1.msra.mxu0 0.0
    %4554 = vmatprep.subr.mxu0 0.0
    %4555 = vmatpush1.msra.mxu0 0.0
    %4556 = vmatprep.subr.mxu0 0.0
    %4557 = vmatpush1.msra.mxu0 0.0
    %4558 = vmatprep.subr.mxu0 0.0
    %4559 = vmatpush1.msra.mxu0 0.0
    %4560 = vmatprep.subr.mxu0 0.0
    %4561 = vmatpush1.msra.mxu0 0.0
    %4562 = vmatprep.subr.mxu0 0.0
    %4563 = vmatpush1.msra.mxu0 0.0
    %4564 = vmatprep.subr.mxu0 0.0
    %4565 = vmatpush1.msra.mxu0 0.0
    %4566 = vmatprep.subr.mxu0 0.0
    %4567 = vmatpush1.msra.mxu0 0.0
    %4568 = vmatprep.subr.mxu0 0.0
    %4569 = vmatpush1.msra.mxu0 0.0
    %4570 = vmatprep.subr.mxu0 0.0
    %4571 = vmatpush1.msra.mxu0 0.0
    %4572 = vmatprep.subr.mxu0 0.0
    %4573 = vmatpush1.msra.mxu0 0.0
    %4574 = vmatprep.subr.mxu0 0.0
    %4575 = vmatpush1.msra.mxu0 0.0
    %4576 = vmatprep.subr.mxu0 0.0
    %4577 = vmatpush1.msra.mxu0 0.0
    %4578 = vmatprep.subr.mxu0 0.0
    %4579 = vmatpush1.msra.mxu0 0.0
    %4580 = vmatprep.subr.mxu0 0.0
    %4581 = vmatpush1.msra.mxu0 0.0
    %4582 = vmatprep.subr.mxu0 0.0
    %4583 = vmatpush1.msra.mxu0 0.0
    %4584 = vmatprep.subr.mxu0 0.0
    %4585 = vmatpush1.msra.mxu0 0.0
    %4586 = vmatprep.subr.mxu0 0.0
    %4587 = vmatpush1.msra.mxu0 0.0
    %4588 = vmatprep.subr.mxu0 0.0
    %4589 = vmatpush1.msra.mxu0 0.0
    %4590 = vmatprep.subr.mxu0 0.0
    %4591 = vmatpush1.msra.mxu0 0.0
    %4592 = vmatprep.mubr.f32.mxu0 0.0
    %4593 = vmatmul.mubr.f32.gmra.mrb[0].mxu0 %v4078
    %v4594 = vpop.f32.mrb[0].mxu0
    %v4595 = vadd.f32 %v4527, %v4594
    %v4596 = vpop.f32.mrb[0].mxu0
    %4597 = vmatprep.mubr.f32.mxu0 0.0
    %4598 = vmatmul.mubr.f32.gmra.mrb[0].mxu0 %v4081
    %v4599 = vpop.f32.mrb[0].mxu0
    %v4600 = vadd.f32 %v4527, %v4599
    %v4601 = vpop.f32.mrb[0].mxu0
    %4602 = vdwg.mxu0
    %v4603 = vld [vmem:[#allocation2 + $0x5a8] sm:$0xff]
    %v4604 = vld [vmem:[#allocation2 + $0x5b0] sm:$0xff]
    %v4605 = vld [vmem:[#allocation2 + $0x5b8] sm:$0xff]
    %v4606 = vld [vmem:[#allocation2 + $0x5c0] sm:$0xff]
    %v4607 = vld [vmem:[#allocation2 + $0x5c8] sm:$0x1]
    %v4608 = vlaneseq
    %v4609 = vshrl.u32 %v4608, 7
    %v4610 = vsub.s32 0, %v4609
    %v4611 = vrot.slane %v4607, %v4610
    %4612 = vmatprep.subr.mxu0 0.0
    %4613 = vmatpush1.msra.mxu0 %v4603
    %4614 = vmatprep.subr.mxu0 0.0
    %4615 = vmatpush1.msra.mxu0 %v4604
    %4616 = vmatprep.subr.mxu0 0.0
    %4617 = vmatpush1.msra.mxu0 %v4605
    %4618 = vmatprep.subr.mxu0 0.0
    %4619 = vmatpush1.msra.mxu0 %v4606
    %4620 = vmatprep.subr.mxu0 0.0
    %4621 = vmatpush1.msra.mxu0 0.0
    %4622 = vmatprep.subr.mxu0 0.0
    %4623 = vmatpush1.msra.mxu0 0.0
    %4624 = vmatprep.subr.mxu0 0.0
    %4625 = vmatpush1.msra.mxu0 0.0
    %4626 = vmatprep.subr.mxu0 0.0
    %4627 = vmatpush1.msra.mxu0 0.0
    %4628 = vmatprep.subr.mxu0 0.0
    %4629 = vmatpush1.msra.mxu0 0.0
    %4630 = vmatprep.subr.mxu0 0.0
    %4631 = vmatpush1.msra.mxu0 0.0
    %4632 = vmatprep.subr.mxu0 0.0
    %4633 = vmatpush1.msra.mxu0 0.0
    %4634 = vmatprep.subr.mxu0 0.0
    %4635 = vmatpush1.msra.mxu0 0.0
    %4636 = vmatprep.subr.mxu0 0.0
    %4637 = vmatpush1.msra.mxu0 0.0
    %4638 = vmatprep.subr.mxu0 0.0
    %4639 = vmatpush1.msra.mxu0 0.0
    %4640 = vmatprep.subr.mxu0 0.0
    %4641 = vmatpush1.msra.mxu0 0.0
    %4642 = vmatprep.subr.mxu0 0.0
    %4643 = vmatpush1.msra.mxu0 0.0
    %4644 = vmatprep.subr.mxu0 0.0
    %4645 = vmatpush1.msra.mxu0 0.0
    %4646 = vmatprep.subr.mxu0 0.0
    %4647 = vmatpush1.msra.mxu0 0.0
    %4648 = vmatprep.subr.mxu0 0.0
    %4649 = vmatpush1.msra.mxu0 0.0
    %4650 = vmatprep.subr.mxu0 0.0
    %4651 = vmatpush1.msra.mxu0 0.0
    %4652 = vmatprep.subr.mxu0 0.0
    %4653 = vmatpush1.msra.mxu0 0.0
    %4654 = vmatprep.subr.mxu0 0.0
    %4655 = vmatpush1.msra.mxu0 0.0
    %4656 = vmatprep.subr.mxu0 0.0
    %4657 = vmatpush1.msra.mxu0 0.0
    %4658 = vmatprep.subr.mxu0 0.0
    %4659 = vmatpush1.msra.mxu0 0.0
    %4660 = vmatprep.subr.mxu0 0.0
    %4661 = vmatpush1.msra.mxu0 0.0
    %4662 = vmatprep.subr.mxu0 0.0
    %4663 = vmatpush1.msra.mxu0 0.0
    %4664 = vmatprep.subr.mxu0 0.0
    %4665 = vmatpush1.msra.mxu0 0.0
    %4666 = vmatprep.subr.mxu0 0.0
    %4667 = vmatpush1.msra.mxu0 0.0
    %4668 = vmatprep.subr.mxu0 0.0
    %4669 = vmatpush1.msra.mxu0 0.0
    %4670 = vmatprep.subr.mxu0 0.0
    %4671 = vmatpush1.msra.mxu0 0.0
    %4672 = vmatprep.subr.mxu0 0.0
    %4673 = vmatpush1.msra.mxu0 0.0
    %4674 = vmatprep.subr.mxu0 0.0
    %4675 = vmatpush1.msra.mxu0 0.0
    %4676 = vmatprep.mubr.f32.mxu0 0.0
    %4677 = vmatmul.mubr.f32.gmra.mrb[0].mxu0 %v4078
    %v4678 = vpop.f32.mrb[0].mxu0
    %v4679 = vadd.f32 %v4611, %v4678
    %v4680 = vpop.f32.mrb[0].mxu0
    %4681 = vmatprep.mubr.f32.mxu0 0.0
    %4682 = vmatmul.mubr.f32.gmra.mrb[0].mxu0 %v4081
    %v4683 = vpop.f32.mrb[0].mxu0
    %v4684 = vadd.f32 %v4611, %v4683
    %v4685 = vpop.f32.mrb[0].mxu0
    %4686 = vdwg.mxu0
    %v4688 = vsel %vm427, %v4511, 0
    %v4691 = vsel %vm427, %v4516, 0
    %v4694 = vsel %vm427, %v4595, 0
    %v4697 = vsel %vm427, %v4600, 0
    %4699 = vmatprep.subr.mxu0 0.0
    %4700 = vmatpush1.xpose.msra.mxu0 %v4694
    %4701 = vmatprep.subr.mxu0 0.0
    %4702 = vmatpush1.xpose.msra.mxu0 %v4697
    %4703 = vmatprep.subr.mxu0 0.0
    %4704 = vmatpush1.xpose.msra.mxu0 0.0
    %4705 = vmatprep.subr.mxu0 0.0
    %4706 = vmatpush1.xpose.msra.mxu0 0.0
    %4707 = vmatprep.subr.mxu0 0.0
    %4708 = vmatpush1.xpose.msra.mxu0 0.0
    %4709 = vmatprep.subr.mxu0 0.0
    %4710 = vmatpush1.xpose.msra.mxu0 0.0
    %4711 = vmatprep.subr.mxu0 0.0
    %4712 = vmatpush1.xpose.msra.mxu0 0.0
    %4713 = vmatprep.subr.mxu0 0.0
    %4714 = vmatpush1.xpose.msra.mxu0 0.0
    %4715 = vmatprep.subr.mxu0 0.0
    %4716 = vmatpush1.xpose.msra.mxu0 0.0
    %4717 = vmatprep.subr.mxu0 0.0
    %4718 = vmatpush1.xpose.msra.mxu0 0.0
    %4719 = vmatprep.subr.mxu0 0.0
    %4720 = vmatpush1.xpose.msra.mxu0 0.0
    %4721 = vmatprep.subr.mxu0 0.0
    %4722 = vmatpush1.xpose.msra.mxu0 0.0
    %4723 = vmatprep.subr.mxu0 0.0
    %4724 = vmatpush1.xpose.msra.mxu0 0.0
    %4725 = vmatprep.subr.mxu0 0.0
    %4726 = vmatpush1.xpose.msra.mxu0 0.0
    %4727 = vmatprep.subr.mxu0 0.0
    %4728 = vmatpush1.xpose.msra.mxu0 0.0
    %4729 = vmatprep.subr.mxu0 0.0
    %4730 = vmatpush1.xpose.msra.mxu0 0.0
    %4731 = vmatprep.subr.mxu0 0.0
    %4732 = vmatpush1.xpose.msra.mxu0 0.0
    %4733 = vmatprep.subr.mxu0 0.0
    %4734 = vmatpush1.xpose.msra.mxu0 0.0
    %4735 = vmatprep.subr.mxu0 0.0
    %4736 = vmatpush1.xpose.msra.mxu0 0.0
    %4737 = vmatprep.subr.mxu0 0.0
    %4738 = vmatpush1.xpose.msra.mxu0 0.0
    %4739 = vmatprep.subr.mxu0 0.0
    %4740 = vmatpush1.xpose.msra.mxu0 0.0
    %4741 = vmatprep.subr.mxu0 0.0
    %4742 = vmatpush1.xpose.msra.mxu0 0.0
    %4743 = vmatprep.subr.mxu0 0.0
    %4744 = vmatpush1.xpose.msra.mxu0 0.0
    %4745 = vmatprep.subr.mxu0 0.0
    %4746 = vmatpush1.xpose.msra.mxu0 0.0
    %4747 = vmatprep.subr.mxu0 0.0
    %4748 = vmatpush1.xpose.msra.mxu0 0.0
    %4749 = vmatprep.subr.mxu0 0.0
    %4750 = vmatpush1.xpose.msra.mxu0 0.0
    %4751 = vmatprep.subr.mxu0 0.0
    %4752 = vmatpush1.xpose.msra.mxu0 0.0
    %4753 = vmatprep.subr.mxu0 0.0
    %4754 = vmatpush1.xpose.msra.mxu0 0.0
    %4755 = vmatprep.subr.mxu0 0.0
    %4756 = vmatpush1.xpose.msra.mxu0 0.0
    %4757 = vmatprep.subr.mxu0 0.0
    %4758 = vmatpush1.xpose.msra.mxu0 0.0
    %4759 = vmatprep.subr.mxu0 0.0
    %4760 = vmatpush1.xpose.msra.mxu0 0.0
    %4761 = vmatprep.subr.mxu0 0.0
    %4762 = vmatpush1.xpose.msra.mxu0 0.0
    %4763 = vmatprep.mubr.f32.mxu0 0.0
    %4764 = vmatmul.mubr.f32.gmra.mrb[0].mxu0 %v4688
    %v4765 = vpop.f32.mrb[0].mxu0
    %v4766 = vadd.f32 %v29, %v4765
    %v4767 = vpop.f32.mrb[0].mxu0
    %4768 = vmatprep.mubr.f32.mxu0 0.0
    %4769 = vmatmul.mubr.f32.gmra.mrb[0].mxu0 %v4691
    %v4770 = vpop.f32.mrb[0].mxu0
    %v4771 = vadd.f32 %v30, %v4770
    %v4772 = vpop.f32.mrb[0].mxu0
    %4773 = vdwg.mxu0
    %v4774 = vsel %vm515, %v4766, -inf
    %4775 = vmax.xlane.f32.xlu0 %v4774
    %v4776 = vpop.xlane.xlu0 %4775
    %v4777 = vsel %vm515, %v4771, -inf
    %4778 = vmax.xlane.f32.xlu0 %v4777
    %v4779 = vpop.xlane.xlu0 %4778
    %v4780 = vsub.f32 %v4766, %v4776
    %v4781 = vsub.f32 %v4771, %v4779
    %v4782 = vmul.f32 %v4780, 1.442695
    %v4783 = vpow.pop %v4782
    %v4784 = vmul.f32 %v4781, 1.442695
    %v4785 = vpow.pop %v4784
    %v4786 = vsel %vm515, %v4783, 0.0
    %4787 = vadd.xlane.f32.xlu0 %v4786
    %v4788 = vpop.xlane.xlu0 %4787
    %v4789 = vsel %vm515, %v4785, 0.0
    %4790 = vadd.xlane.f32.xlu0 %v4789
    %v4791 = vpop.xlane.xlu0 %4790
    %v4792 = vrcp.pop %v4788
    %v4793 = vmul.f32 %v4783, %v4792
    %v4794 = vrcp.pop %v4791
    %v4795 = vmul.f32 %v4785, %v4794
    %v4797 = vsel %vm515, %v4793, 0
    %v4800 = vsel %vm515, %v4795, 0
    %4802 = vmatprep.subr.mxu0 0.0
    %4803 = vmatpush1.msra.mxu0 %v4679
    %4804 = vmatprep.subr.mxu0 0.0
    %4805 = vmatpush1.msra.mxu0 %v4684
    %4806 = vmatprep.subr.mxu0 0.0
    %4807 = vmatpush1.msra.mxu0 0.0
    %4808 = vmatprep.subr.mxu0 0.0
    %4809 = vmatpush1.msra.mxu0 0.0
    %4810 = vmatprep.subr.mxu0 0.0
    %4811 = vmatpush1.msra.mxu0 0.0
    %4812 = vmatprep.subr.mxu0 0.0
    %4813 = vmatpush1.msra.mxu0 0.0
    %4814 = vmatprep.subr.mxu0 0.0
    %4815 = vmatpush1.msra.mxu0 0.0
    %4816 = vmatprep.subr.mxu0 0.0
    %4817 = vmatpush1.msra.mxu0 0.0
    %4818 = vmatprep.subr.mxu0 0.0
    %4819 = vmatpush1.msra.mxu0 0.0
    %4820 = vmatprep.subr.mxu0 0.0
    %4821 = vmatpush1.msra.mxu0 0.0
    %4822 = vmatprep.subr.mxu0 0.0
    %4823 = vmatpush1.msra.mxu0 0.0
    %4824 = vmatprep.subr.mxu0 0.0
    %4825 = vmatpush1.msra.mxu0 0.0
    %4826 = vmatprep.subr.mxu0 0.0
    %4827 = vmatpush1.msra.mxu0 0.0
    %4828 = vmatprep.subr.mxu0 0.0
    %4829 = vmatpush1.msra.mxu0 0.0
    %4830 = vmatprep.subr.mxu0 0.0
    %4831 = vmatpush1.msra.mxu0 0.0
    %4832 = vmatprep.subr.mxu0 0.0
    %4833 = vmatpush1.msra.mxu0 0.0
    %4834 = vmatprep.subr.mxu0 0.0
    %4835 = vmatpush1.msra.mxu0 0.0
    %4836 = vmatprep.subr.mxu0 0.0
    %4837 = vmatpush1.msra.mxu0 0.0
    %4838 = vmatprep.subr.mxu0 0.0
    %4839 = vmatpush1.msra.mxu0 0.0
    %4840 = vmatprep.subr.mxu0 0.0
    %4841 = vmatpush1.msra.mxu0 0.0
    %4842 = vmatprep.subr.mxu0 0.0
    %4843 = vmatpush1.msra.mxu0 0.0
    %4844 = vmatprep.subr.mxu0 0.0
    %4845 = vmatpush1.msra.mxu0 0.0
    %4846 = vmatprep.subr.mxu0 0.0
    %4847 = vmatpush1.msra.mxu0 0.0
    %4848 = vmatprep.subr.mxu0 0.0
    %4849 = vmatpush1.msra.mxu0 0.0
    %4850 = vmatprep.subr.mxu0 0.0
    %4851 = vmatpush1.msra.mxu0 0.0
    %4852 = vmatprep.subr.mxu0 0.0
    %4853 = vmatpush1.msra.mxu0 0.0
    %4854 = vmatprep.subr.mxu0 0.0
    %4855 = vmatpush1.msra.mxu0 0.0
    %4856 = vmatprep.subr.mxu0 0.0
    %4857 = vmatpush1.msra.mxu0 0.0
    %4858 = vmatprep.subr.mxu0 0.0
    %4859 = vmatpush1.msra.mxu0 0.0
    %4860 = vmatprep.subr.mxu0 0.0
    %4861 = vmatpush1.msra.mxu0 0.0
    %4862 = vmatprep.subr.mxu0 0.0
    %4863 = vmatpush1.msra.mxu0 0.0
    %4864 = vmatprep.subr.mxu0 0.0
    %4865 = vmatpush1.msra.mxu0 0.0
    %4866 = vmatprep.mubr.f32.mxu0 0.0
    %4867 = vmatmul.mubr.f32.gmra.mrb[0].mxu0 %v4797
    %v4868 = vpop.f32.mrb[0].mxu0
    %v4869 = vadd.f32 0.0, %v4868
    %v4870 = vpop.f32.mrb[0].mxu0
    %4871 = vmatprep.mubr.f32.mxu0 0.0
    %4872 = vmatmul.mubr.f32.gmra.mrb[0].mxu0 %v4800
    %v4873 = vpop.f32.mrb[0].mxu0
    %v4874 = vadd.f32 0.0, %v4873
    %v4875 = vpop.f32.mrb[0].mxu0
    %4876 = vdwg.mxu0
    %v4878 = vsel %vm515, %v4432, 0
    %v4881 = vsel %vm515, %v4434, 0
    %4883 = vmatprep.subr.mxu0 0.0
    %4884 = vmatpush1.msra.mxu0 %v4318
    %4885 = vmatprep.subr.mxu0 0.0
    %4886 = vmatpush1.msra.mxu0 %v4323
    %4887 = vmatprep.subr.mxu0 0.0
    %4888 = vmatpush1.msra.mxu0 0.0
    %4889 = vmatprep.subr.mxu0 0.0
    %4890 = vmatpush1.msra.mxu0 0.0
    %4891 = vmatprep.subr.mxu0 0.0
    %4892 = vmatpush1.msra.mxu0 0.0
    %4893 = vmatprep.subr.mxu0 0.0
    %4894 = vmatpush1.msra.mxu0 0.0
    %4895 = vmatprep.subr.mxu0 0.0
    %4896 = vmatpush1.msra.mxu0 0.0
    %4897 = vmatprep.subr.mxu0 0.0
    %4898 = vmatpush1.msra.mxu0 0.0
    %4899 = vmatprep.subr.mxu0 0.0
    %4900 = vmatpush1.msra.mxu0 0.0
    %4901 = vmatprep.subr.mxu0 0.0
    %4902 = vmatpush1.msra.mxu0 0.0
    %4903 = vmatprep.subr.mxu0 0.0
    %4904 = vmatpush1.msra.mxu0 0.0
    %4905 = vmatprep.subr.mxu0 0.0
    %4906 = vmatpush1.msra.mxu0 0.0
    %4907 = vmatprep.subr.mxu0 0.0
    %4908 = vmatpush1.msra.mxu0 0.0
    %4909 = vmatprep.subr.mxu0 0.0
    %4910 = vmatpush1.msra.mxu0 0.0
    %4911 = vmatprep.subr.mxu0 0.0
    %4912 = vmatpush1.msra.mxu0 0.0
    %4913 = vmatprep.subr.mxu0 0.0
    %4914 = vmatpush1.msra.mxu0 0.0
    %4915 = vmatprep.subr.mxu0 0.0
    %4916 = vmatpush1.msra.mxu0 0.0
    %4917 = vmatprep.subr.mxu0 0.0
    %4918 = vmatpush1.msra.mxu0 0.0
    %4919 = vmatprep.subr.mxu0 0.0
    %4920 = vmatpush1.msra.mxu0 0.0
    %4921 = vmatprep.subr.mxu0 0.0
    %4922 = vmatpush1.msra.mxu0 0.0
    %4923 = vmatprep.subr.mxu0 0.0
    %4924 = vmatpush1.msra.mxu0 0.0
    %4925 = vmatprep.subr.mxu0 0.0
    %4926 = vmatpush1.msra.mxu0 0.0
    %4927 = vmatprep.subr.mxu0 0.0
    %4928 = vmatpush1.msra.mxu0 0.0
    %4929 = vmatprep.subr.mxu0 0.0
    %4930 = vmatpush1.msra.mxu0 0.0
    %4931 = vmatprep.subr.mxu0 0.0
    %4932 = vmatpush1.msra.mxu0 0.0
    %4933 = vmatprep.subr.mxu0 0.0
    %4934 = vmatpush1.msra.mxu0 0.0
    %4935 = vmatprep.subr.mxu0 0.0
    %4936 = vmatpush1.msra.mxu0 0.0
    %4937 = vmatprep.subr.mxu0 0.0
    %4938 = vmatpush1.msra.mxu0 0.0
    %4939 = vmatprep.subr.mxu0 0.0
    %4940 = vmatpush1.msra.mxu0 0.0
    %4941 = vmatprep.subr.mxu0 0.0
    %4942 = vmatpush1.msra.mxu0 0.0
    %4943 = vmatprep.subr.mxu0 0.0
    %4944 = vmatpush1.msra.mxu0 0.0
    %4945 = vmatprep.subr.mxu0 0.0
    %4946 = vmatpush1.msra.mxu0 0.0
    %4947 = vmatprep.mubr.f32.mxu0 0.0
    %4948 = vmatmul.mubr.f32.gmra.mrb[0].mxu0 %v4878
    %v4949 = vpop.f32.mrb[0].mxu0
    %v4950 = vadd.f32 %v4869, %v4949
    %v4951 = vpop.f32.mrb[0].mxu0
    %4952 = vmatprep.mubr.f32.mxu0 0.0
    %4953 = vmatmul.mubr.f32.gmra.mrb[0].mxu0 %v4881
    %v4954 = vpop.f32.mrb[0].mxu0
    %v4955 = vadd.f32 %v4874, %v4954
    %v4956 = vpop.f32.mrb[0].mxu0
    %4957 = vdwg.mxu0
    %v4958 = vld [vmem:[#allocation2 + $0x5d0] sm:$0xff]
    %v4959 = vld [vmem:[#allocation2 + $0x5d8] sm:$0xff]
    %v4960 = vld [vmem:[#allocation2 + $0x5e0] sm:$0xff]
    %v4961 = vld [vmem:[#allocation2 + $0x5e8] sm:$0xff]
    %v4962 = vld [vmem:[#allocation2 + $0x5f0] sm:$0x1]
    %v4963 = vlaneseq
    %v4964 = vshrl.u32 %v4963, 7
    %v4965 = vsub.s32 0, %v4964
    %v4966 = vrot.slane %v4962, %v4965
    %4967 = vmatprep.subr.mxu0 0.0
    %4968 = vmatpush1.msra.mxu0 %v4958
    %4969 = vmatprep.subr.mxu0 0.0
    %4970 = vmatpush1.msra.mxu0 %v4959
    %4971 = vmatprep.subr.mxu0 0.0
    %4972 = vmatpush1.msra.mxu0 %v4960
    %4973 = vmatprep.subr.mxu0 0.0
    %4974 = vmatpush1.msra.mxu0 %v4961
    %4975 = vmatprep.subr.mxu0 0.0
    %4976 = vmatpush1.msra.mxu0 0.0
    %4977 = vmatprep.subr.mxu0 0.0
    %4978 = vmatpush1.msra.mxu0 0.0
    %4979 = vmatprep.subr.mxu0 0.0
    %4980 = vmatpush1.msra.mxu0 0.0
    %4981 = vmatprep.subr.mxu0 0.0
    %4982 = vmatpush1.msra.mxu0 0.0
    %4983 = vmatprep.subr.mxu0 0.0
    %4984 = vmatpush1.msra.mxu0 0.0
    %4985 = vmatprep.subr.mxu0 0.0
    %4986 = vmatpush1.msra.mxu0 0.0
    %4987 = vmatprep.subr.mxu0 0.0
    %4988 = vmatpush1.msra.mxu0 0.0
    %4989 = vmatprep.subr.mxu0 0.0
    %4990 = vmatpush1.msra.mxu0 0.0
    %4991 = vmatprep.subr.mxu0 0.0
    %4992 = vmatpush1.msra.mxu0 0.0
    %4993 = vmatprep.subr.mxu0 0.0
    %4994 = vmatpush1.msra.mxu0 0.0
    %4995 = vmatprep.subr.mxu0 0.0
    %4996 = vmatpush1.msra.mxu0 0.0
    %4997 = vmatprep.subr.mxu0 0.0
    %4998 = vmatpush1.msra.mxu0 0.0
    %4999 = vmatprep.subr.mxu0 0.0
    %5000 = vmatpush1.msra.mxu0 0.0
    %5001 = vmatprep.subr.mxu0 0.0
    %5002 = vmatpush1.msra.mxu0 0.0
    %5003 = vmatprep.subr.mxu0 0.0
    %5004 = vmatpush1.msra.mxu0 0.0
    %5005 = vmatprep.subr.mxu0 0.0
    %5006 = vmatpush1.msra.mxu0 0.0
    %5007 = vmatprep.subr.mxu0 0.0
    %5008 = vmatpush1.msra.mxu0 0.0
    %5009 = vmatprep.subr.mxu0 0.0
    %5010 = vmatpush1.msra.mxu0 0.0
    %5011 = vmatprep.subr.mxu0 0.0
    %5012 = vmatpush1.msra.mxu0 0.0
    %5013 = vmatprep.subr.mxu0 0.0
    %5014 = vmatpush1.msra.mxu0 0.0
    %5015 = vmatprep.subr.mxu0 0.0
    %5016 = vmatpush1.msra.mxu0 0.0
    %5017 = vmatprep.subr.mxu0 0.0
    %5018 = vmatpush1.msra.mxu0 0.0
    %5019 = vmatprep.subr.mxu0 0.0
    %5020 = vmatpush1.msra.mxu0 0.0
    %5021 = vmatprep.subr.mxu0 0.0
    %5022 = vmatpush1.msra.mxu0 0.0
    %5023 = vmatprep.subr.mxu0 0.0
    %5024 = vmatpush1.msra.mxu0 0.0
    %5025 = vmatprep.subr.mxu0 0.0
    %5026 = vmatpush1.msra.mxu0 0.0
    %5027 = vmatprep.subr.mxu0 0.0
    %5028 = vmatpush1.msra.mxu0 0.0
    %5029 = vmatprep.subr.mxu0 0.0
    %5030 = vmatpush1.msra.mxu0 0.0
    %5031 = vmatprep.mubr.f32.mxu0 0.0
    %5032 = vmatmul.mubr.f32.gmra.mrb[0].mxu0 %v4078
    %v5033 = vpop.f32.mrb[0].mxu0
    %v5034 = vadd.f32 %v4966, %v5033
    %v5035 = vpop.f32.mrb[0].mxu0
    %5036 = vmatprep.mubr.f32.mxu0 0.0
    %5037 = vmatmul.mubr.f32.gmra.mrb[0].mxu0 %v4081
    %v5038 = vpop.f32.mrb[0].mxu0
    %v5039 = vadd.f32 %v4966, %v5038
    %v5040 = vpop.f32.mrb[0].mxu0
    %5041 = vdwg.mxu0
    %v5042 = vld [vmem:[#allocation2 + $0x5f8] sm:$0xff]
    %v5043 = vld [vmem:[#allocation2 + $0x600] sm:$0xff]
    %v5044 = vld [vmem:[#allocation2 + $0x608] sm:$0xff]
    %v5045 = vld [vmem:[#allocation2 + $0x610] sm:$0xff]
    %v5046 = vld [vmem:[#allocation2 + $0x618] sm:$0x1]
    %v5047 = vlaneseq
    %v5048 = vshrl.u32 %v5047, 7
    %v5049 = vsub.s32 0, %v5048
    %v5050 = vrot.slane %v5046, %v5049
    %5051 = vmatprep.subr.mxu0 0.0
    %5052 = vmatpush1.msra.mxu0 %v5042
    %5053 = vmatprep.subr.mxu0 0.0
    %5054 = vmatpush1.msra.mxu0 %v5043
    %5055 = vmatprep.subr.mxu0 0.0
    %5056 = vmatpush1.msra.mxu0 %v5044
    %5057 = vmatprep.subr.mxu0 0.0
    %5058 = vmatpush1.msra.mxu0 %v5045
    %5059 = vmatprep.subr.mxu0 0.0
    %5060 = vmatpush1.msra.mxu0 0.0
    %5061 = vmatprep.subr.mxu0 0.0
    %5062 = vmatpush1.msra.mxu0 0.0
    %5063 = vmatprep.subr.mxu0 0.0
    %5064 = vmatpush1.msra.mxu0 0.0
    %5065 = vmatprep.subr.mxu0 0.0
    %5066 = vmatpush1.msra.mxu0 0.0
    %5067 = vmatprep.subr.mxu0 0.0
    %5068 = vmatpush1.msra.mxu0 0.0
    %5069 = vmatprep.subr.mxu0 0.0
    %5070 = vmatpush1.msra.mxu0 0.0
    %5071 = vmatprep.subr.mxu0 0.0
    %5072 = vmatpush1.msra.mxu0 0.0
    %5073 = vmatprep.subr.mxu0 0.0
    %5074 = vmatpush1.msra.mxu0 0.0
    %5075 = vmatprep.subr.mxu0 0.0
    %5076 = vmatpush1.msra.mxu0 0.0
    %5077 = vmatprep.subr.mxu0 0.0
    %5078 = vmatpush1.msra.mxu0 0.0
    %5079 = vmatprep.subr.mxu0 0.0
    %5080 = vmatpush1.msra.mxu0 0.0
    %5081 = vmatprep.subr.mxu0 0.0
    %5082 = vmatpush1.msra.mxu0 0.0
    %5083 = vmatprep.subr.mxu0 0.0
    %5084 = vmatpush1.msra.mxu0 0.0
    %5085 = vmatprep.subr.mxu0 0.0
    %5086 = vmatpush1.msra.mxu0 0.0
    %5087 = vmatprep.subr.mxu0 0.0
    %5088 = vmatpush1.msra.mxu0 0.0
    %5089 = vmatprep.subr.mxu0 0.0
    %5090 = vmatpush1.msra.mxu0 0.0
    %5091 = vmatprep.subr.mxu0 0.0
    %5092 = vmatpush1.msra.mxu0 0.0
    %5093 = vmatprep.subr.mxu0 0.0
    %5094 = vmatpush1.msra.mxu0 0.0
    %5095 = vmatprep.subr.mxu0 0.0
    %5096 = vmatpush1.msra.mxu0 0.0
    %5097 = vmatprep.subr.mxu0 0.0
    %5098 = vmatpush1.msra.mxu0 0.0
    %5099 = vmatprep.subr.mxu0 0.0
    %5100 = vmatpush1.msra.mxu0 0.0
    %5101 = vmatprep.subr.mxu0 0.0
    %5102 = vmatpush1.msra.mxu0 0.0
    %5103 = vmatprep.subr.mxu0 0.0
    %5104 = vmatpush1.msra.mxu0 0.0
    %5105 = vmatprep.subr.mxu0 0.0
    %5106 = vmatpush1.msra.mxu0 0.0
    %5107 = vmatprep.subr.mxu0 0.0
    %5108 = vmatpush1.msra.mxu0 0.0
    %5109 = vmatprep.subr.mxu0 0.0
    %5110 = vmatpush1.msra.mxu0 0.0
    %5111 = vmatprep.subr.mxu0 0.0
    %5112 = vmatpush1.msra.mxu0 0.0
    %5113 = vmatprep.subr.mxu0 0.0
    %5114 = vmatpush1.msra.mxu0 0.0
    %5115 = vmatprep.mubr.f32.mxu0 0.0
    %5116 = vmatmul.mubr.f32.gmra.mrb[0].mxu0 %v4078
    %v5117 = vpop.f32.mrb[0].mxu0
    %v5118 = vadd.f32 %v5050, %v5117
    %v5119 = vpop.f32.mrb[0].mxu0
    %5120 = vmatprep.mubr.f32.mxu0 0.0
    %5121 = vmatmul.mubr.f32.gmra.mrb[0].mxu0 %v4081
    %v5122 = vpop.f32.mrb[0].mxu0
    %v5123 = vadd.f32 %v5050, %v5122
    %v5124 = vpop.f32.mrb[0].mxu0
    %5125 = vdwg.mxu0
    %v5126 = vld [vmem:[#allocation2 + $0x620] sm:$0xff]
    %v5127 = vld [vmem:[#allocation2 + $0x628] sm:$0xff]
    %v5128 = vld [vmem:[#allocation2 + $0x630] sm:$0xff]
    %v5129 = vld [vmem:[#allocation2 + $0x638] sm:$0xff]
    %v5130 = vld [vmem:[#allocation2 + $0x640] sm:$0x1]
    %v5131 = vlaneseq
    %v5132 = vshrl.u32 %v5131, 7
    %v5133 = vsub.s32 0, %v5132
    %v5134 = vrot.slane %v5130, %v5133
    %5135 = vmatprep.subr.mxu0 0.0
    %5136 = vmatpush1.msra.mxu0 %v5126
    %5137 = vmatprep.subr.mxu0 0.0
    %5138 = vmatpush1.msra.mxu0 %v5127
    %5139 = vmatprep.subr.mxu0 0.0
    %5140 = vmatpush1.msra.mxu0 %v5128
    %5141 = vmatprep.subr.mxu0 0.0
    %5142 = vmatpush1.msra.mxu0 %v5129
    %5143 = vmatprep.subr.mxu0 0.0
    %5144 = vmatpush1.msra.mxu0 0.0
    %5145 = vmatprep.subr.mxu0 0.0
    %5146 = vmatpush1.msra.mxu0 0.0
    %5147 = vmatprep.subr.mxu0 0.0
    %5148 = vmatpush1.msra.mxu0 0.0
    %5149 = vmatprep.subr.mxu0 0.0
    %5150 = vmatpush1.msra.mxu0 0.0
    %5151 = vmatprep.subr.mxu0 0.0
    %5152 = vmatpush1.msra.mxu0 0.0
    %5153 = vmatprep.subr.mxu0 0.0
    %5154 = vmatpush1.msra.mxu0 0.0
    %5155 = vmatprep.subr.mxu0 0.0
    %5156 = vmatpush1.msra.mxu0 0.0
    %5157 = vmatprep.subr.mxu0 0.0
    %5158 = vmatpush1.msra.mxu0 0.0
    %5159 = vmatprep.subr.mxu0 0.0
    %5160 = vmatpush1.msra.mxu0 0.0
    %5161 = vmatprep.subr.mxu0 0.0
    %5162 = vmatpush1.msra.mxu0 0.0
    %5163 = vmatprep.subr.mxu0 0.0
    %5164 = vmatpush1.msra.mxu0 0.0
    %5165 = vmatprep.subr.mxu0 0.0
    %5166 = vmatpush1.msra.mxu0 0.0
    %5167 = vmatprep.subr.mxu0 0.0
    %5168 = vmatpush1.msra.mxu0 0.0
    %5169 = vmatprep.subr.mxu0 0.0
    %5170 = vmatpush1.msra.mxu0 0.0
    %5171 = vmatprep.subr.mxu0 0.0
    %5172 = vmatpush1.msra.mxu0 0.0
    %5173 = vmatprep.subr.mxu0 0.0
    %5174 = vmatpush1.msra.mxu0 0.0
    %5175 = vmatprep.subr.mxu0 0.0
    %5176 = vmatpush1.msra.mxu0 0.0
    %5177 = vmatprep.subr.mxu0 0.0
    %5178 = vmatpush1.msra.mxu0 0.0
    %5179 = vmatprep.subr.mxu0 0.0
    %5180 = vmatpush1.msra.mxu0 0.0
    %5181 = vmatprep.subr.mxu0 0.0
    %5182 = vmatpush1.msra.mxu0 0.0
    %5183 = vmatprep.subr.mxu0 0.0
    %5184 = vmatpush1.msra.mxu0 0.0
    %5185 = vmatprep.subr.mxu0 0.0
    %5186 = vmatpush1.msra.mxu0 0.0
    %5187 = vmatprep.subr.mxu0 0.0
    %5188 = vmatpush1.msra.mxu0 0.0
    %5189 = vmatprep.subr.mxu0 0.0
    %5190 = vmatpush1.msra.mxu0 0.0
    %5191 = vmatprep.subr.mxu0 0.0
    %5192 = vmatpush1.msra.mxu0 0.0
    %5193 = vmatprep.subr.mxu0 0.0
    %5194 = vmatpush1.msra.mxu0 0.0
    %5195 = vmatprep.subr.mxu0 0.0
    %5196 = vmatpush1.msra.mxu0 0.0
    %5197 = vmatprep.subr.mxu0 0.0
    %5198 = vmatpush1.msra.mxu0 0.0
    %5199 = vmatprep.mubr.f32.mxu0 0.0
    %5200 = vmatmul.mubr.f32.gmra.mrb[0].mxu0 %v4078
    %v5201 = vpop.f32.mrb[0].mxu0
    %v5202 = vadd.f32 %v5134, %v5201
    %v5203 = vpop.f32.mrb[0].mxu0
    %5204 = vmatprep.mubr.f32.mxu0 0.0
    %5205 = vmatmul.mubr.f32.gmra.mrb[0].mxu0 %v4081
    %v5206 = vpop.f32.mrb[0].mxu0
    %v5207 = vadd.f32 %v5134, %v5206
    %v5208 = vpop.f32.mrb[0].mxu0
    %5209 = vdwg.mxu0
    %v5211 = vsel %vm427, %v5034, 0
    %v5214 = vsel %vm427, %v5039, 0
    %v5217 = vsel %vm427, %v5118, 0
    %v5220 = vsel %vm427, %v5123, 0
    %5222 = vmatprep.subr.mxu0 0.0
    %5223 = vmatpush1.xpose.msra.mxu0 %v5217
    %5224 = vmatprep.subr.mxu0 0.0
    %5225 = vmatpush1.xpose.msra.mxu0 %v5220
    %5226 = vmatprep.subr.mxu0 0.0
    %5227 = vmatpush1.xpose.msra.mxu0 0.0
    %5228 = vmatprep.subr.mxu0 0.0
    %5229 = vmatpush1.xpose.msra.mxu0 0.0
    %5230 = vmatprep.subr.mxu0 0.0
    %5231 = vmatpush1.xpose.msra.mxu0 0.0
    %5232 = vmatprep.subr.mxu0 0.0
    %5233 = vmatpush1.xpose.msra.mxu0 0.0
    %5234 = vmatprep.subr.mxu0 0.0
    %5235 = vmatpush1.xpose.msra.mxu0 0.0
    %5236 = vmatprep.subr.mxu0 0.0
    %5237 = vmatpush1.xpose.msra.mxu0 0.0
    %5238 = vmatprep.subr.mxu0 0.0
    %5239 = vmatpush1.xpose.msra.mxu0 0.0
    %5240 = vmatprep.subr.mxu0 0.0
    %5241 = vmatpush1.xpose.msra.mxu0 0.0
    %5242 = vmatprep.subr.mxu0 0.0
    %5243 = vmatpush1.xpose.msra.mxu0 0.0
    %5244 = vmatprep.subr.mxu0 0.0
    %5245 = vmatpush1.xpose.msra.mxu0 0.0
    %5246 = vmatprep.subr.mxu0 0.0
    %5247 = vmatpush1.xpose.msra.mxu0 0.0
    %5248 = vmatprep.subr.mxu0 0.0
    %5249 = vmatpush1.xpose.msra.mxu0 0.0
    %5250 = vmatprep.subr.mxu0 0.0
    %5251 = vmatpush1.xpose.msra.mxu0 0.0
    %5252 = vmatprep.subr.mxu0 0.0
    %5253 = vmatpush1.xpose.msra.mxu0 0.0
    %5254 = vmatprep.subr.mxu0 0.0
    %5255 = vmatpush1.xpose.msra.mxu0 0.0
    %5256 = vmatprep.subr.mxu0 0.0
    %5257 = vmatpush1.xpose.msra.mxu0 0.0
    %5258 = vmatprep.subr.mxu0 0.0
    %5259 = vmatpush1.xpose.msra.mxu0 0.0
    %5260 = vmatprep.subr.mxu0 0.0
    %5261 = vmatpush1.xpose.msra.mxu0 0.0
    %5262 = vmatprep.subr.mxu0 0.0
    %5263 = vmatpush1.xpose.msra.mxu0 0.0
    %5264 = vmatprep.subr.mxu0 0.0
    %5265 = vmatpush1.xpose.msra.mxu0 0.0
    %5266 = vmatprep.subr.mxu0 0.0
    %5267 = vmatpush1.xpose.msra.mxu0 0.0
    %5268 = vmatprep.subr.mxu0 0.0
    %5269 = vmatpush1.xpose.msra.mxu0 0.0
    %5270 = vmatprep.subr.mxu0 0.0
    %5271 = vmatpush1.xpose.msra.mxu0 0.0
    %5272 = vmatprep.subr.mxu0 0.0
    %5273 = vmatpush1.xpose.msra.mxu0 0.0
    %5274 = vmatprep.subr.mxu0 0.0
    %5275 = vmatpush1.xpose.msra.mxu0 0.0
    %5276 = vmatprep.subr.mxu0 0.0
    %5277 = vmatpush1.xpose.msra.mxu0 0.0
    %5278 = vmatprep.subr.mxu0 0.0
    %5279 = vmatpush1.xpose.msra.mxu0 0.0
    %5280 = vmatprep.subr.mxu0 0.0
    %5281 = vmatpush1.xpose.msra.mxu0 0.0
    %5282 = vmatprep.subr.mxu0 0.0
    %5283 = vmatpush1.xpose.msra.mxu0 0.0
    %5284 = vmatprep.subr.mxu0 0.0
    %5285 = vmatpush1.xpose.msra.mxu0 0.0
    %5286 = vmatprep.mubr.f32.mxu0 0.0
    %5287 = vmatmul.mubr.f32.gmra.mrb[0].mxu0 %v5211
    %v5288 = vpop.f32.mrb[0].mxu0
    %v5289 = vadd.f32 %v29, %v5288
    %v5290 = vpop.f32.mrb[0].mxu0
    %5291 = vmatprep.mubr.f32.mxu0 0.0
    %5292 = vmatmul.mubr.f32.gmra.mrb[0].mxu0 %v5214
    %v5293 = vpop.f32.mrb[0].mxu0
    %v5294 = vadd.f32 %v30, %v5293
    %v5295 = vpop.f32.mrb[0].mxu0
    %5296 = vdwg.mxu0
    %v5297 = vsel %vm515, %v5289, -inf
    %5298 = vmax.xlane.f32.xlu0 %v5297
    %v5299 = vpop.xlane.xlu0 %5298
    %v5300 = vsel %vm515, %v5294, -inf
    %5301 = vmax.xlane.f32.xlu0 %v5300
    %v5302 = vpop.xlane.xlu0 %5301
    %v5303 = vsub.f32 %v5289, %v5299
    %v5304 = vsub.f32 %v5294, %v5302
    %v5305 = vmul.f32 %v5303, 1.442695
    %v5306 = vpow.pop %v5305
    %v5307 = vmul.f32 %v5304, 1.442695
    %v5308 = vpow.pop %v5307
    %v5309 = vsel %vm515, %v5306, 0.0
    %5310 = vadd.xlane.f32.xlu0 %v5309
    %v5311 = vpop.xlane.xlu0 %5310
    %v5312 = vsel %vm515, %v5308, 0.0
    %5313 = vadd.xlane.f32.xlu0 %v5312
    %v5314 = vpop.xlane.xlu0 %5313
    %v5315 = vrcp.pop %v5311
    %v5316 = vmul.f32 %v5306, %v5315
    %v5317 = vrcp.pop %v5314
    %v5318 = vmul.f32 %v5308, %v5317
    %v5320 = vsel %vm515, %v5316, 0
    %v5323 = vsel %vm515, %v5318, 0
    %5325 = vmatprep.subr.mxu0 0.0
    %5326 = vmatpush1.msra.mxu0 %v5202
    %5327 = vmatprep.subr.mxu0 0.0
    %5328 = vmatpush1.msra.mxu0 %v5207
    %5329 = vmatprep.subr.mxu0 0.0
    %5330 = vmatpush1.msra.mxu0 0.0
    %5331 = vmatprep.subr.mxu0 0.0
    %5332 = vmatpush1.msra.mxu0 0.0
    %5333 = vmatprep.subr.mxu0 0.0
    %5334 = vmatpush1.msra.mxu0 0.0
    %5335 = vmatprep.subr.mxu0 0.0
    %5336 = vmatpush1.msra.mxu0 0.0
    %5337 = vmatprep.subr.mxu0 0.0
    %5338 = vmatpush1.msra.mxu0 0.0
    %5339 = vmatprep.subr.mxu0 0.0
    %5340 = vmatpush1.msra.mxu0 0.0
    %5341 = vmatprep.subr.mxu0 0.0
    %5342 = vmatpush1.msra.mxu0 0.0
    %5343 = vmatprep.subr.mxu0 0.0
    %5344 = vmatpush1.msra.mxu0 0.0
    %5345 = vmatprep.subr.mxu0 0.0
    %5346 = vmatpush1.msra.mxu0 0.0
    %5347 = vmatprep.subr.mxu0 0.0
    %5348 = vmatpush1.msra.mxu0 0.0
    %5349 = vmatprep.subr.mxu0 0.0
    %5350 = vmatpush1.msra.mxu0 0.0
    %5351 = vmatprep.subr.mxu0 0.0
    %5352 = vmatpush1.msra.mxu0 0.0
    %5353 = vmatprep.subr.mxu0 0.0
    %5354 = vmatpush1.msra.mxu0 0.0
    %5355 = vmatprep.subr.mxu0 0.0
    %5356 = vmatpush1.msra.mxu0 0.0
    %5357 = vmatprep.subr.mxu0 0.0
    %5358 = vmatpush1.msra.mxu0 0.0
    %5359 = vmatprep.subr.mxu0 0.0
    %5360 = vmatpush1.msra.mxu0 0.0
    %5361 = vmatprep.subr.mxu0 0.0
    %5362 = vmatpush1.msra.mxu0 0.0
    %5363 = vmatprep.subr.mxu0 0.0
    %5364 = vmatpush1.msra.mxu0 0.0
    %5365 = vmatprep.subr.mxu0 0.0
    %5366 = vmatpush1.msra.mxu0 0.0
    %5367 = vmatprep.subr.mxu0 0.0
    %5368 = vmatpush1.msra.mxu0 0.0
    %5369 = vmatprep.subr.mxu0 0.0
    %5370 = vmatpush1.msra.mxu0 0.0
    %5371 = vmatprep.subr.mxu0 0.0
    %5372 = vmatpush1.msra.mxu0 0.0
    %5373 = vmatprep.subr.mxu0 0.0
    %5374 = vmatpush1.msra.mxu0 0.0
    %5375 = vmatprep.subr.mxu0 0.0
    %5376 = vmatpush1.msra.mxu0 0.0
    %5377 = vmatprep.subr.mxu0 0.0
    %5378 = vmatpush1.msra.mxu0 0.0
    %5379 = vmatprep.subr.mxu0 0.0
    %5380 = vmatpush1.msra.mxu0 0.0
    %5381 = vmatprep.subr.mxu0 0.0
    %5382 = vmatpush1.msra.mxu0 0.0
    %5383 = vmatprep.subr.mxu0 0.0
    %5384 = vmatpush1.msra.mxu0 0.0
    %5385 = vmatprep.subr.mxu0 0.0
    %5386 = vmatpush1.msra.mxu0 0.0
    %5387 = vmatprep.subr.mxu0 0.0
    %5388 = vmatpush1.msra.mxu0 0.0
    %5389 = vmatprep.mubr.f32.mxu0 0.0
    %5390 = vmatmul.mubr.f32.gmra.mrb[0].mxu0 %v5320
    %v5391 = vpop.f32.mrb[0].mxu0
    %v5392 = vadd.f32 0.0, %v5391
    %v5393 = vpop.f32.mrb[0].mxu0
    %5394 = vmatprep.mubr.f32.mxu0 0.0
    %5395 = vmatmul.mubr.f32.gmra.mrb[0].mxu0 %v5323
    %v5396 = vpop.f32.mrb[0].mxu0
    %v5397 = vadd.f32 0.0, %v5396
    %v5398 = vpop.f32.mrb[0].mxu0
    %5399 = vdwg.mxu0
    %v5400 = vadd.f32 %v4950, %v5392
    %v5401 = vadd.f32 %v4955, %v5397
    %v5402 = vld [vmem:[#allocation2 + $0x648] sm:$0xff]
    %v5403 = vld [vmem:[#allocation2 + $0x650] sm:$0xff]
    %v5404 = vld [vmem:[#allocation2 + $0x658] sm:$0xff]
    %v5405 = vld [vmem:[#allocation2 + $0x660] sm:$0xff]
    %v5406 = vld [vmem:[#allocation2 + $0x668] sm:$0x1]
    %v5407 = vlaneseq
    %v5408 = vshrl.u32 %v5407, 7
    %v5409 = vsub.s32 0, %v5408
    %v5410 = vrot.slane %v5406, %v5409
    %5411 = vmatprep.subr.mxu0 0.0
    %5412 = vmatpush1.msra.mxu0 %v5402
    %5413 = vmatprep.subr.mxu0 0.0
    %5414 = vmatpush1.msra.mxu0 %v5403
    %5415 = vmatprep.subr.mxu0 0.0
    %5416 = vmatpush1.msra.mxu0 %v5404
    %5417 = vmatprep.subr.mxu0 0.0
    %5418 = vmatpush1.msra.mxu0 %v5405
    %5419 = vmatprep.subr.mxu0 0.0
    %5420 = vmatpush1.msra.mxu0 0.0
    %5421 = vmatprep.subr.mxu0 0.0
    %5422 = vmatpush1.msra.mxu0 0.0
    %5423 = vmatprep.subr.mxu0 0.0
    %5424 = vmatpush1.msra.mxu0 0.0
    %5425 = vmatprep.subr.mxu0 0.0
    %5426 = vmatpush1.msra.mxu0 0.0
    %5427 = vmatprep.subr.mxu0 0.0
    %5428 = vmatpush1.msra.mxu0 0.0
    %5429 = vmatprep.subr.mxu0 0.0
    %5430 = vmatpush1.msra.mxu0 0.0
    %5431 = vmatprep.subr.mxu0 0.0
    %5432 = vmatpush1.msra.mxu0 0.0
    %5433 = vmatprep.subr.mxu0 0.0
    %5434 = vmatpush1.msra.mxu0 0.0
    %5435 = vmatprep.subr.mxu0 0.0
    %5436 = vmatpush1.msra.mxu0 0.0
    %5437 = vmatprep.subr.mxu0 0.0
    %5438 = vmatpush1.msra.mxu0 0.0
    %5439 = vmatprep.subr.mxu0 0.0
    %5440 = vmatpush1.msra.mxu0 0.0
    %5441 = vmatprep.subr.mxu0 0.0
    %5442 = vmatpush1.msra.mxu0 0.0
    %5443 = vmatprep.subr.mxu0 0.0
    %5444 = vmatpush1.msra.mxu0 0.0
    %5445 = vmatprep.subr.mxu0 0.0
    %5446 = vmatpush1.msra.mxu0 0.0
    %5447 = vmatprep.subr.mxu0 0.0
    %5448 = vmatpush1.msra.mxu0 0.0
    %5449 = vmatprep.subr.mxu0 0.0
    %5450 = vmatpush1.msra.mxu0 0.0
    %5451 = vmatprep.subr.mxu0 0.0
    %5452 = vmatpush1.msra.mxu0 0.0
    %5453 = vmatprep.subr.mxu0 0.0
    %5454 = vmatpush1.msra.mxu0 0.0
    %5455 = vmatprep.subr.mxu0 0.0
    %5456 = vmatpush1.msra.mxu0 0.0
    %5457 = vmatprep.subr.mxu0 0.0
    %5458 = vmatpush1.msra.mxu0 0.0
    %5459 = vmatprep.subr.mxu0 0.0
    %5460 = vmatpush1.msra.mxu0 0.0
    %5461 = vmatprep.subr.mxu0 0.0
    %5462 = vmatpush1.msra.mxu0 0.0
    %5463 = vmatprep.subr.mxu0 0.0
    %5464 = vmatpush1.msra.mxu0 0.0
    %5465 = vmatprep.subr.mxu0 0.0
    %5466 = vmatpush1.msra.mxu0 0.0
    %5467 = vmatprep.subr.mxu0 0.0
    %5468 = vmatpush1.msra.mxu0 0.0
    %5469 = vmatprep.subr.mxu0 0.0
    %5470 = vmatpush1.msra.mxu0 0.0
    %5471 = vmatprep.subr.mxu0 0.0
    %5472 = vmatpush1.msra.mxu0 0.0
    %5473 = vmatprep.subr.mxu0 0.0
    %5474 = vmatpush1.msra.mxu0 0.0
    %5475 = vmatprep.mubr.f32.mxu0 0.0
    %5476 = vmatmul.mubr.f32.gmra.mrb[0].mxu0 %v4078
    %v5477 = vpop.f32.mrb[0].mxu0
    %v5478 = vadd.f32 %v5410, %v5477
    %v5479 = vpop.f32.mrb[0].mxu0
    %5480 = vmatprep.mubr.f32.mxu0 0.0
    %5481 = vmatmul.mubr.f32.gmra.mrb[0].mxu0 %v4081
    %v5482 = vpop.f32.mrb[0].mxu0
    %v5483 = vadd.f32 %v5410, %v5482
    %v5484 = vpop.f32.mrb[0].mxu0
    %5485 = vdwg.mxu0
    %v5486 = vld [vmem:[#allocation2 + $0x670] sm:$0xff]
    %v5487 = vld [vmem:[#allocation2 + $0x678] sm:$0xff]
    %v5488 = vld [vmem:[#allocation2 + $0x680] sm:$0xff]
    %v5489 = vld [vmem:[#allocation2 + $0x688] sm:$0xff]
    %v5490 = vld [vmem:[#allocation2 + $0x690] sm:$0x1]
    %v5491 = vlaneseq
    %v5492 = vshrl.u32 %v5491, 7
    %v5493 = vsub.s32 0, %v5492
    %v5494 = vrot.slane %v5490, %v5493
    %5495 = vmatprep.subr.mxu0 0.0
    %5496 = vmatpush1.msra.mxu0 %v5486
    %5497 = vmatprep.subr.mxu0 0.0
    %5498 = vmatpush1.msra.mxu0 %v5487
    %5499 = vmatprep.subr.mxu0 0.0
    %5500 = vmatpush1.msra.mxu0 %v5488
    %5501 = vmatprep.subr.mxu0 0.0
    %5502 = vmatpush1.msra.mxu0 %v5489
    %5503 = vmatprep.subr.mxu0 0.0
    %5504 = vmatpush1.msra.mxu0 0.0
    %5505 = vmatprep.subr.mxu0 0.0
    %5506 = vmatpush1.msra.mxu0 0.0
    %5507 = vmatprep.subr.mxu0 0.0
    %5508 = vmatpush1.msra.mxu0 0.0
    %5509 = vmatprep.subr.mxu0 0.0
    %5510 = vmatpush1.msra.mxu0 0.0
    %5511 = vmatprep.subr.mxu0 0.0
    %5512 = vmatpush1.msra.mxu0 0.0
    %5513 = vmatprep.subr.mxu0 0.0
    %5514 = vmatpush1.msra.mxu0 0.0
    %5515 = vmatprep.subr.mxu0 0.0
    %5516 = vmatpush1.msra.mxu0 0.0
    %5517 = vmatprep.subr.mxu0 0.0
    %5518 = vmatpush1.msra.mxu0 0.0
    %5519 = vmatprep.subr.mxu0 0.0
    %5520 = vmatpush1.msra.mxu0 0.0
    %5521 = vmatprep.subr.mxu0 0.0
    %5522 = vmatpush1.msra.mxu0 0.0
    %5523 = vmatprep.subr.mxu0 0.0
    %5524 = vmatpush1.msra.mxu0 0.0
    %5525 = vmatprep.subr.mxu0 0.0
    %5526 = vmatpush1.msra.mxu0 0.0
    %5527 = vmatprep.subr.mxu0 0.0
    %5528 = vmatpush1.msra.mxu0 0.0
    %5529 = vmatprep.subr.mxu0 0.0
    %5530 = vmatpush1.msra.mxu0 0.0
    %5531 = vmatprep.subr.mxu0 0.0
    %5532 = vmatpush1.msra.mxu0 0.0
    %5533 = vmatprep.subr.mxu0 0.0
    %5534 = vmatpush1.msra.mxu0 0.0
    %5535 = vmatprep.subr.mxu0 0.0
    %5536 = vmatpush1.msra.mxu0 0.0
    %5537 = vmatprep.subr.mxu0 0.0
    %5538 = vmatpush1.msra.mxu0 0.0
    %5539 = vmatprep.subr.mxu0 0.0
    %5540 = vmatpush1.msra.mxu0 0.0
    %5541 = vmatprep.subr.mxu0 0.0
    %5542 = vmatpush1.msra.mxu0 0.0
    %5543 = vmatprep.subr.mxu0 0.0
    %5544 = vmatpush1.msra.mxu0 0.0
    %5545 = vmatprep.subr.mxu0 0.0
    %5546 = vmatpush1.msra.mxu0 0.0
    %5547 = vmatprep.subr.mxu0 0.0
    %5548 = vmatpush1.msra.mxu0 0.0
    %5549 = vmatprep.subr.mxu0 0.0
    %5550 = vmatpush1.msra.mxu0 0.0
    %5551 = vmatprep.subr.mxu0 0.0
    %5552 = vmatpush1.msra.mxu0 0.0
    %5553 = vmatprep.subr.mxu0 0.0
    %5554 = vmatpush1.msra.mxu0 0.0
    %5555 = vmatprep.subr.mxu0 0.0
    %5556 = vmatpush1.msra.mxu0 0.0
    %5557 = vmatprep.subr.mxu0 0.0
    %5558 = vmatpush1.msra.mxu0 0.0
    %5559 = vmatprep.mubr.f32.mxu0 0.0
    %5560 = vmatmul.mubr.f32.gmra.mrb[0].mxu0 %v4078
    %v5561 = vpop.f32.mrb[0].mxu0
    %v5562 = vadd.f32 %v5494, %v5561
    %v5563 = vpop.f32.mrb[0].mxu0
    %5564 = vmatprep.mubr.f32.mxu0 0.0
    %5565 = vmatmul.mubr.f32.gmra.mrb[0].mxu0 %v4081
    %v5566 = vpop.f32.mrb[0].mxu0
    %v5567 = vadd.f32 %v5494, %v5566
    %v5568 = vpop.f32.mrb[0].mxu0
    %5569 = vdwg.mxu0
    %v5570 = vld [vmem:[#allocation2 + $0x698] sm:$0xff]
    %v5571 = vld [vmem:[#allocation2 + $0x6a0] sm:$0xff]
    %v5572 = vld [vmem:[#allocation2 + $0x6a8] sm:$0xff]
    %v5573 = vld [vmem:[#allocation2 + $0x6b0] sm:$0xff]
    %v5574 = vld [vmem:[#allocation2 + $0x6b8] sm:$0x1]
    %v5575 = vlaneseq
    %v5576 = vshrl.u32 %v5575, 7
    %v5577 = vsub.s32 0, %v5576
    %v5578 = vrot.slane %v5574, %v5577
    %5579 = vmatprep.subr.mxu0 0.0
    %5580 = vmatpush1.msra.mxu0 %v5570
    %5581 = vmatprep.subr.mxu0 0.0
    %5582 = vmatpush1.msra.mxu0 %v5571
    %5583 = vmatprep.subr.mxu0 0.0
    %5584 = vmatpush1.msra.mxu0 %v5572
    %5585 = vmatprep.subr.mxu0 0.0
    %5586 = vmatpush1.msra.mxu0 %v5573
    %5587 = vmatprep.subr.mxu0 0.0
    %5588 = vmatpush1.msra.mxu0 0.0
    %5589 = vmatprep.subr.mxu0 0.0
    %5590 = vmatpush1.msra.mxu0 0.0
    %5591 = vmatprep.subr.mxu0 0.0
    %5592 = vmatpush1.msra.mxu0 0.0
    %5593 = vmatprep.subr.mxu0 0.0
    %5594 = vmatpush1.msra.mxu0 0.0
    %5595 = vmatprep.subr.mxu0 0.0
    %5596 = vmatpush1.msra.mxu0 0.0
    %5597 = vmatprep.subr.mxu0 0.0
    %5598 = vmatpush1.msra.mxu0 0.0
    %5599 = vmatprep.subr.mxu0 0.0
    %5600 = vmatpush1.msra.mxu0 0.0
    %5601 = vmatprep.subr.mxu0 0.0
    %5602 = vmatpush1.msra.mxu0 0.0
    %5603 = vmatprep.subr.mxu0 0.0
    %5604 = vmatpush1.msra.mxu0 0.0
    %5605 = vmatprep.subr.mxu0 0.0
    %5606 = vmatpush1.msra.mxu0 0.0
    %5607 = vmatprep.subr.mxu0 0.0
    %5608 = vmatpush1.msra.mxu0 0.0
    %5609 = vmatprep.subr.mxu0 0.0
    %5610 = vmatpush1.msra.mxu0 0.0
    %5611 = vmatprep.subr.mxu0 0.0
    %5612 = vmatpush1.msra.mxu0 0.0
    %5613 = vmatprep.subr.mxu0 0.0
    %5614 = vmatpush1.msra.mxu0 0.0
    %5615 = vmatprep.subr.mxu0 0.0
    %5616 = vmatpush1.msra.mxu0 0.0
    %5617 = vmatprep.subr.mxu0 0.0
    %5618 = vmatpush1.msra.mxu0 0.0
    %5619 = vmatprep.subr.mxu0 0.0
    %5620 = vmatpush1.msra.mxu0 0.0
    %5621 = vmatprep.subr.mxu0 0.0
    %5622 = vmatpush1.msra.mxu0 0.0
    %5623 = vmatprep.subr.mxu0 0.0
    %5624 = vmatpush1.msra.mxu0 0.0
    %5625 = vmatprep.subr.mxu0 0.0
    %5626 = vmatpush1.msra.mxu0 0.0
    %5627 = vmatprep.subr.mxu0 0.0
    %5628 = vmatpush1.msra.mxu0 0.0
    %5629 = vmatprep.subr.mxu0 0.0
    %5630 = vmatpush1.msra.mxu0 0.0
    %5631 = vmatprep.subr.mxu0 0.0
    %5632 = vmatpush1.msra.mxu0 0.0
    %5633 = vmatprep.subr.mxu0 0.0
    %5634 = vmatpush1.msra.mxu0 0.0
    %5635 = vmatprep.subr.mxu0 0.0
    %5636 = vmatpush1.msra.mxu0 0.0
    %5637 = vmatprep.subr.mxu0 0.0
    %5638 = vmatpush1.msra.mxu0 0.0
    %5639 = vmatprep.subr.mxu0 0.0
    %5640 = vmatpush1.msra.mxu0 0.0
    %5641 = vmatprep.subr.mxu0 0.0
    %5642 = vmatpush1.msra.mxu0 0.0
    %5643 = vmatprep.mubr.f32.mxu0 0.0
    %5644 = vmatmul.mubr.f32.gmra.mrb[0].mxu0 %v4078
    %v5645 = vpop.f32.mrb[0].mxu0
    %v5646 = vadd.f32 %v5578, %v5645
    %v5647 = vpop.f32.mrb[0].mxu0
    %5648 = vmatprep.mubr.f32.mxu0 0.0
    %5649 = vmatmul.mubr.f32.gmra.mrb[0].mxu0 %v4081
    %v5650 = vpop.f32.mrb[0].mxu0
    %v5651 = vadd.f32 %v5578, %v5650
    %v5652 = vpop.f32.mrb[0].mxu0
    %5653 = vdwg.mxu0
    %v5655 = vsel %vm427, %v5478, 0
    %v5658 = vsel %vm427, %v5483, 0
    %v5661 = vsel %vm427, %v5562, 0
    %v5664 = vsel %vm427, %v5567, 0
    %5666 = vmatprep.subr.mxu0 0.0
    %5667 = vmatpush1.xpose.msra.mxu0 %v5661
    %5668 = vmatprep.subr.mxu0 0.0
    %5669 = vmatpush1.xpose.msra.mxu0 %v5664
    %5670 = vmatprep.subr.mxu0 0.0
    %5671 = vmatpush1.xpose.msra.mxu0 0.0
    %5672 = vmatprep.subr.mxu0 0.0
    %5673 = vmatpush1.xpose.msra.mxu0 0.0
    %5674 = vmatprep.subr.mxu0 0.0
    %5675 = vmatpush1.xpose.msra.mxu0 0.0
    %5676 = vmatprep.subr.mxu0 0.0
    %5677 = vmatpush1.xpose.msra.mxu0 0.0
    %5678 = vmatprep.subr.mxu0 0.0
    %5679 = vmatpush1.xpose.msra.mxu0 0.0
    %5680 = vmatprep.subr.mxu0 0.0
    %5681 = vmatpush1.xpose.msra.mxu0 0.0
    %5682 = vmatprep.subr.mxu0 0.0
    %5683 = vmatpush1.xpose.msra.mxu0 0.0
    %5684 = vmatprep.subr.mxu0 0.0
    %5685 = vmatpush1.xpose.msra.mxu0 0.0
    %5686 = vmatprep.subr.mxu0 0.0
    %5687 = vmatpush1.xpose.msra.mxu0 0.0
    %5688 = vmatprep.subr.mxu0 0.0
    %5689 = vmatpush1.xpose.msra.mxu0 0.0
    %5690 = vmatprep.subr.mxu0 0.0
    %5691 = vmatpush1.xpose.msra.mxu0 0.0
    %5692 = vmatprep.subr.mxu0 0.0
    %5693 = vmatpush1.xpose.msra.mxu0 0.0
    %5694 = vmatprep.subr.mxu0 0.0
    %5695 = vmatpush1.xpose.msra.mxu0 0.0
    %5696 = vmatprep.subr.mxu0 0.0
    %5697 = vmatpush1.xpose.msra.mxu0 0.0
    %5698 = vmatprep.subr.mxu0 0.0
    %5699 = vmatpush1.xpose.msra.mxu0 0.0
    %5700 = vmatprep.subr.mxu0 0.0
    %5701 = vmatpush1.xpose.msra.mxu0 0.0
    %5702 = vmatprep.subr.mxu0 0.0
    %5703 = vmatpush1.xpose.msra.mxu0 0.0
    %5704 = vmatprep.subr.mxu0 0.0
    %5705 = vmatpush1.xpose.msra.mxu0 0.0
    %5706 = vmatprep.subr.mxu0 0.0
    %5707 = vmatpush1.xpose.msra.mxu0 0.0
    %5708 = vmatprep.subr.mxu0 0.0
    %5709 = vmatpush1.xpose.msra.mxu0 0.0
    %5710 = vmatprep.subr.mxu0 0.0
    %5711 = vmatpush1.xpose.msra.mxu0 0.0
    %5712 = vmatprep.subr.mxu0 0.0
    %5713 = vmatpush1.xpose.msra.mxu0 0.0
    %5714 = vmatprep.subr.mxu0 0.0
    %5715 = vmatpush1.xpose.msra.mxu0 0.0
    %5716 = vmatprep.subr.mxu0 0.0
    %5717 = vmatpush1.xpose.msra.mxu0 0.0
    %5718 = vmatprep.subr.mxu0 0.0
    %5719 = vmatpush1.xpose.msra.mxu0 0.0
    %5720 = vmatprep.subr.mxu0 0.0
    %5721 = vmatpush1.xpose.msra.mxu0 0.0
    %5722 = vmatprep.subr.mxu0 0.0
    %5723 = vmatpush1.xpose.msra.mxu0 0.0
    %5724 = vmatprep.subr.mxu0 0.0
    %5725 = vmatpush1.xpose.msra.mxu0 0.0
    %5726 = vmatprep.subr.mxu0 0.0
    %5727 = vmatpush1.xpose.msra.mxu0 0.0
    %5728 = vmatprep.subr.mxu0 0.0
    %5729 = vmatpush1.xpose.msra.mxu0 0.0
    %5730 = vmatprep.mubr.f32.mxu0 0.0
    %5731 = vmatmul.mubr.f32.gmra.mrb[0].mxu0 %v5655
    %v5732 = vpop.f32.mrb[0].mxu0
    %v5733 = vadd.f32 %v29, %v5732
    %v5734 = vpop.f32.mrb[0].mxu0
    %5735 = vmatprep.mubr.f32.mxu0 0.0
    %5736 = vmatmul.mubr.f32.gmra.mrb[0].mxu0 %v5658
    %v5737 = vpop.f32.mrb[0].mxu0
    %v5738 = vadd.f32 %v30, %v5737
    %v5739 = vpop.f32.mrb[0].mxu0
    %5740 = vdwg.mxu0
    %v5741 = vsel %vm515, %v5733, -inf
    %5742 = vmax.xlane.f32.xlu0 %v5741
    %v5743 = vpop.xlane.xlu0 %5742
    %v5744 = vsel %vm515, %v5738, -inf
    %5745 = vmax.xlane.f32.xlu0 %v5744
    %v5746 = vpop.xlane.xlu0 %5745
    %v5747 = vsub.f32 %v5733, %v5743
    %v5748 = vsub.f32 %v5738, %v5746
    %v5749 = vmul.f32 %v5747, 1.442695
    %v5750 = vpow.pop %v5749
    %v5751 = vmul.f32 %v5748, 1.442695
    %v5752 = vpow.pop %v5751
    %v5753 = vsel %vm515, %v5750, 0.0
    %5754 = vadd.xlane.f32.xlu0 %v5753
    %v5755 = vpop.xlane.xlu0 %5754
    %v5756 = vsel %vm515, %v5752, 0.0
    %5757 = vadd.xlane.f32.xlu0 %v5756
    %v5758 = vpop.xlane.xlu0 %5757
    %v5759 = vrcp.pop %v5755
    %v5760 = vmul.f32 %v5750, %v5759
    %v5761 = vrcp.pop %v5758
    %v5762 = vmul.f32 %v5752, %v5761
    %v5764 = vsel %vm515, %v5760, 0
    %v5767 = vsel %vm515, %v5762, 0
    %5769 = vmatprep.subr.mxu0 0.0
    %5770 = vmatpush1.msra.mxu0 %v5646
    %5771 = vmatprep.subr.mxu0 0.0
    %5772 = vmatpush1.msra.mxu0 %v5651
    %5773 = vmatprep.subr.mxu0 0.0
    %5774 = vmatpush1.msra.mxu0 0.0
    %5775 = vmatprep.subr.mxu0 0.0
    %5776 = vmatpush1.msra.mxu0 0.0
    %5777 = vmatprep.subr.mxu0 0.0
    %5778 = vmatpush1.msra.mxu0 0.0
    %5779 = vmatprep.subr.mxu0 0.0
    %5780 = vmatpush1.msra.mxu0 0.0
    %5781 = vmatprep.subr.mxu0 0.0
    %5782 = vmatpush1.msra.mxu0 0.0
    %5783 = vmatprep.subr.mxu0 0.0
    %5784 = vmatpush1.msra.mxu0 0.0
    %5785 = vmatprep.subr.mxu0 0.0
    %5786 = vmatpush1.msra.mxu0 0.0
    %5787 = vmatprep.subr.mxu0 0.0
    %5788 = vmatpush1.msra.mxu0 0.0
    %5789 = vmatprep.subr.mxu0 0.0
    %5790 = vmatpush1.msra.mxu0 0.0
    %5791 = vmatprep.subr.mxu0 0.0
    %5792 = vmatpush1.msra.mxu0 0.0
    %5793 = vmatprep.subr.mxu0 0.0
    %5794 = vmatpush1.msra.mxu0 0.0
    %5795 = vmatprep.subr.mxu0 0.0
    %5796 = vmatpush1.msra.mxu0 0.0
    %5797 = vmatprep.subr.mxu0 0.0
    %5798 = vmatpush1.msra.mxu0 0.0
    %5799 = vmatprep.subr.mxu0 0.0
    %5800 = vmatpush1.msra.mxu0 0.0
    %5801 = vmatprep.subr.mxu0 0.0
    %5802 = vmatpush1.msra.mxu0 0.0
    %5803 = vmatprep.subr.mxu0 0.0
    %5804 = vmatpush1.msra.mxu0 0.0
    %5805 = vmatprep.subr.mxu0 0.0
    %5806 = vmatpush1.msra.mxu0 0.0
    %5807 = vmatprep.subr.mxu0 0.0
    %5808 = vmatpush1.msra.mxu0 0.0
    %5809 = vmatprep.subr.mxu0 0.0
    %5810 = vmatpush1.msra.mxu0 0.0
    %5811 = vmatprep.subr.mxu0 0.0
    %5812 = vmatpush1.msra.mxu0 0.0
    %5813 = vmatprep.subr.mxu0 0.0
    %5814 = vmatpush1.msra.mxu0 0.0
    %5815 = vmatprep.subr.mxu0 0.0
    %5816 = vmatpush1.msra.mxu0 0.0
    %5817 = vmatprep.subr.mxu0 0.0
    %5818 = vmatpush1.msra.mxu0 0.0
    %5819 = vmatprep.subr.mxu0 0.0
    %5820 = vmatpush1.msra.mxu0 0.0
    %5821 = vmatprep.subr.mxu0 0.0
    %5822 = vmatpush1.msra.mxu0 0.0
    %5823 = vmatprep.subr.mxu0 0.0
    %5824 = vmatpush1.msra.mxu0 0.0
    %5825 = vmatprep.subr.mxu0 0.0
    %5826 = vmatpush1.msra.mxu0 0.0
    %5827 = vmatprep.subr.mxu0 0.0
    %5828 = vmatpush1.msra.mxu0 0.0
    %5829 = vmatprep.subr.mxu0 0.0
    %5830 = vmatpush1.msra.mxu0 0.0
    %5831 = vmatprep.subr.mxu0 0.0
    %5832 = vmatpush1.msra.mxu0 0.0
    %5833 = vmatprep.mubr.f32.mxu0 0.0
    %5834 = vmatmul.mubr.f32.gmra.mrb[0].mxu0 %v5764
    %v5835 = vpop.f32.mrb[0].mxu0
    %v5836 = vadd.f32 0.0, %v5835
    %v5837 = vpop.f32.mrb[0].mxu0
    %5838 = vmatprep.mubr.f32.mxu0 0.0
    %5839 = vmatmul.mubr.f32.gmra.mrb[0].mxu0 %v5767
    %v5840 = vpop.f32.mrb[0].mxu0
    %v5841 = vadd.f32 0.0, %v5840
    %v5842 = vpop.f32.mrb[0].mxu0
    %5843 = vdwg.mxu0
    %v5844 = vadd.f32 %v5400, %v5836
    %v5845 = vadd.f32 %v5401, %v5841
    %v5846 = vld [vmem:[#allocation2 + $0x6c0] sm:$0x1]
    %v5847 = vlaneseq
    %v5848 = vshrl.u32 %v5847, 7
    %v5849 = vsub.s32 0, %v5848
    %v5850 = vrot.slane %v5846, %v5849
    %v5851 = vadd.f32 %v5844, %v5850
    %v5852 = vadd.f32 %v5845, %v5850
    %v5853 = vadd.f32 %v4066, %v5851
    %v5854 = vadd.f32 %v4067, %v5852
    %v5855 = vld [vmem:[#allocation2 + $0x6c8] sm:$0x1]
    %v5856 = vld [vmem:[#allocation2 + $0x6d0] sm:$0x1]
    %v5857 = vsel %vm129, %v5853, 0.0
    %5858 = vadd.xlane.f32.xlu0 %v5857
    %v5859 = vpop.xlane.xlu0 %5858
    %v5860 = vsel %vm129, %v5854, 0.0
    %5861 = vadd.xlane.f32.xlu0 %v5860
    %v5862 = vpop.xlane.xlu0 %5861
    %v5863 = vmul.f32 %v5859, %v136
    %v5864 = vmul.f32 %v5862, %v136
    %v5865 = vsub.f32 %v5853, %v5863
    %v5866 = vsub.f32 %v5854, %v5864
    %v5867 = vmul.f32 %v5865, %v5865
    %v5868 = vmul.f32 %v5866, %v5866
    %v5869 = vsel %vm129, %v5867, 0.0
    %5870 = vadd.xlane.f32.xlu0 %v5869
    %v5871 = vpop.xlane.xlu0 %5870
    %v5872 = vsel %vm129, %v5868, 0.0
    %5873 = vadd.xlane.f32.xlu0 %v5872
    %v5874 = vpop.xlane.xlu0 %5873
    %v5875 = vmul.f32 %v5871, %v136
    %v5876 = vmul.f32 %v5874, %v136
    %v5877 = vadd.f32 %v5875, 1e-05
    %v5878 = vadd.f32 %v5876, 1e-05
    %v5879 = vrsqrt.pop %v5877
    %v5880 = vrsqrt.pop %v5878
    %v5881 = vmul.f32 %v5865, %v5879
    %v5882 = vmul.f32 %v5866, %v5880
    %v5883 = vlaneseq
    %v5884 = vshrl.u32 %v5883, 7
    %v5885 = vsub.s32 0, %v5884
    %v5886 = vrot.slane %v5855, %v5885
    %v5887 = vmul.f32 %v5881, %v5886
    %v5888 = vmul.f32 %v5882, %v5886
    %v5889 = vlaneseq
    %v5890 = vshrl.u32 %v5889, 7
    %v5891 = vsub.s32 0, %v5890
    %v5892 = vrot.slane %v5856, %v5891
    %v5893 = vadd.f32 %v5887, %v5892
    %v5894 = vadd.f32 %v5888, %v5892
    %v5895 = vld [vmem:[#allocation2 + $0x6d8] sm:$0xff]
    %v5896 = vld [vmem:[#allocation2 + $0x6e0] sm:$0xff]
    %v5897 = vld [vmem:[#allocation2 + $0x6e8] sm:$0xff]
    %v5898 = vld [vmem:[#allocation2 + $0x6f0] sm:$0xff]
    %v5899 = vld [vmem:[#allocation2 + $0x6f8] sm:$0x1]
    %v5900 = vlaneseq
    %v5901 = vshrl.u32 %v5900, 7
    %v5902 = vsub.s32 0, %v5901
    %v5903 = vrot.slane %v5899, %v5902
    %v5905 = vsel %vm129, %v5893, 0
    %v5908 = vsel %vm129, %v5894, 0
    %5910 = vmatprep.subr.mxu0 0.0
    %5911 = vmatpush1.msra.mxu0 %v5895
    %5912 = vmatprep.subr.mxu0 0.0
    %5913 = vmatpush1.msra.mxu0 %v5896
    %5914 = vmatprep.subr.mxu0 0.0
    %5915 = vmatpush1.msra.mxu0 %v5897
    %5916 = vmatprep.subr.mxu0 0.0
    %5917 = vmatpush1.msra.mxu0 %v5898
    %5918 = vmatprep.subr.mxu0 0.0
    %5919 = vmatpush1.msra.mxu0 0.0
    %5920 = vmatprep.subr.mxu0 0.0
    %5921 = vmatpush1.msra.mxu0 0.0
    %5922 = vmatprep.subr.mxu0 0.0
    %5923 = vmatpush1.msra.mxu0 0.0
    %5924 = vmatprep.subr.mxu0 0.0
    %5925 = vmatpush1.msra.mxu0 0.0
    %5926 = vmatprep.subr.mxu0 0.0
    %5927 = vmatpush1.msra.mxu0 0.0
    %5928 = vmatprep.subr.mxu0 0.0
    %5929 = vmatpush1.msra.mxu0 0.0
    %5930 = vmatprep.subr.mxu0 0.0
    %5931 = vmatpush1.msra.mxu0 0.0
    %5932 = vmatprep.subr.mxu0 0.0
    %5933 = vmatpush1.msra.mxu0 0.0
    %5934 = vmatprep.subr.mxu0 0.0
    %5935 = vmatpush1.msra.mxu0 0.0
    %5936 = vmatprep.subr.mxu0 0.0
    %5937 = vmatpush1.msra.mxu0 0.0
    %5938 = vmatprep.subr.mxu0 0.0
    %5939 = vmatpush1.msra.mxu0 0.0
    %5940 = vmatprep.subr.mxu0 0.0
    %5941 = vmatpush1.msra.mxu0 0.0
    %5942 = vmatprep.subr.mxu0 0.0
    %5943 = vmatpush1.msra.mxu0 0.0
    %5944 = vmatprep.subr.mxu0 0.0
    %5945 = vmatpush1.msra.mxu0 0.0
    %5946 = vmatprep.subr.mxu0 0.0
    %5947 = vmatpush1.msra.mxu0 0.0
    %5948 = vmatprep.subr.mxu0 0.0
    %5949 = vmatpush1.msra.mxu0 0.0
    %5950 = vmatprep.subr.mxu0 0.0
    %5951 = vmatpush1.msra.mxu0 0.0
    %5952 = vmatprep.subr.mxu0 0.0
    %5953 = vmatpush1.msra.mxu0 0.0
    %5954 = vmatprep.subr.mxu0 0.0
    %5955 = vmatpush1.msra.mxu0 0.0
    %5956 = vmatprep.subr.mxu0 0.0
    %5957 = vmatpush1.msra.mxu0 0.0
    %5958 = vmatprep.subr.mxu0 0.0
    %5959 = vmatpush1.msra.mxu0 0.0
    %5960 = vmatprep.subr.mxu0 0.0
    %5961 = vmatpush1.msra.mxu0 0.0
    %5962 = vmatprep.subr.mxu0 0.0
    %5963 = vmatpush1.msra.mxu0 0.0
    %5964 = vmatprep.subr.mxu0 0.0
    %5965 = vmatpush1.msra.mxu0 0.0
    %5966 = vmatprep.subr.mxu0 0.0
    %5967 = vmatpush1.msra.mxu0 0.0
    %5968 = vmatprep.subr.mxu0 0.0
    %5969 = vmatpush1.msra.mxu0 0.0
    %5970 = vmatprep.subr.mxu0 0.0
    %5971 = vmatpush1.msra.mxu0 0.0
    %5972 = vmatprep.subr.mxu0 0.0
    %5973 = vmatpush1.msra.mxu0 0.0
    %5974 = vmatprep.mubr.f32.mxu0 0.0
    %5975 = vmatmul.mubr.f32.gmra.mrb[0].mxu0 %v5905
    %v5976 = vpop.f32.mrb[0].mxu0
    %v5977 = vadd.f32 %v5903, %v5976
    %v5978 = vpop.f32.mrb[0].mxu0
    %5979 = vmatprep.mubr.f32.mxu0 0.0
    %5980 = vmatmul.mubr.f32.gmra.mrb[0].mxu0 %v5908
    %v5981 = vpop.f32.mrb[0].mxu0
    %v5982 = vadd.f32 %v5903, %v5981
    %v5983 = vpop.f32.mrb[0].mxu0
    %5984 = vdwg.mxu0
    %v5985 = vld [vmem:[#allocation2 + $0x700] sm:$0xff]
    %v5986 = vld [vmem:[#allocation2 + $0x708] sm:$0xff]
    %v5987 = vld [vmem:[#allocation2 + $0x710] sm:$0xff]
    %v5988 = vld [vmem:[#allocation2 + $0x718] sm:$0xff]
    %v5989 = vld [vmem:[#allocation2 + $0x720] sm:$0x1]
    %v5990 = vlaneseq
    %v5991 = vshrl.u32 %v5990, 7
    %v5992 = vsub.s32 0, %v5991
    %v5993 = vrot.slane %v5989, %v5992
    %5994 = vmatprep.subr.mxu0 0.0
    %5995 = vmatpush1.msra.mxu0 %v5985
    %5996 = vmatprep.subr.mxu0 0.0
    %5997 = vmatpush1.msra.mxu0 %v5986
    %5998 = vmatprep.subr.mxu0 0.0
    %5999 = vmatpush1.msra.mxu0 %v5987
    %6000 = vmatprep.subr.mxu0 0.0
    %6001 = vmatpush1.msra.mxu0 %v5988
    %6002 = vmatprep.subr.mxu0 0.0
    %6003 = vmatpush1.msra.mxu0 0.0
    %6004 = vmatprep.subr.mxu0 0.0
    %6005 = vmatpush1.msra.mxu0 0.0
    %6006 = vmatprep.subr.mxu0 0.0
    %6007 = vmatpush1.msra.mxu0 0.0
    %6008 = vmatprep.subr.mxu0 0.0
    %6009 = vmatpush1.msra.mxu0 0.0
    %6010 = vmatprep.subr.mxu0 0.0
    %6011 = vmatpush1.msra.mxu0 0.0
    %6012 = vmatprep.subr.mxu0 0.0
    %6013 = vmatpush1.msra.mxu0 0.0
    %6014 = vmatprep.subr.mxu0 0.0
    %6015 = vmatpush1.msra.mxu0 0.0
    %6016 = vmatprep.subr.mxu0 0.0
    %6017 = vmatpush1.msra.mxu0 0.0
    %6018 = vmatprep.subr.mxu0 0.0
    %6019 = vmatpush1.msra.mxu0 0.0
    %6020 = vmatprep.subr.mxu0 0.0
    %6021 = vmatpush1.msra.mxu0 0.0
    %6022 = vmatprep.subr.mxu0 0.0
    %6023 = vmatpush1.msra.mxu0 0.0
    %6024 = vmatprep.subr.mxu0 0.0
    %6025 = vmatpush1.msra.mxu0 0.0
    %6026 = vmatprep.subr.mxu0 0.0
    %6027 = vmatpush1.msra.mxu0 0.0
    %6028 = vmatprep.subr.mxu0 0.0
    %6029 = vmatpush1.msra.mxu0 0.0
    %6030 = vmatprep.subr.mxu0 0.0
    %6031 = vmatpush1.msra.mxu0 0.0
    %6032 = vmatprep.subr.mxu0 0.0
    %6033 = vmatpush1.msra.mxu0 0.0
    %6034 = vmatprep.subr.mxu0 0.0
    %6035 = vmatpush1.msra.mxu0 0.0
    %6036 = vmatprep.subr.mxu0 0.0
    %6037 = vmatpush1.msra.mxu0 0.0
    %6038 = vmatprep.subr.mxu0 0.0
    %6039 = vmatpush1.msra.mxu0 0.0
    %6040 = vmatprep.subr.mxu0 0.0
    %6041 = vmatpush1.msra.mxu0 0.0
    %6042 = vmatprep.subr.mxu0 0.0
    %6043 = vmatpush1.msra.mxu0 0.0
    %6044 = vmatprep.subr.mxu0 0.0
    %6045 = vmatpush1.msra.mxu0 0.0
    %6046 = vmatprep.subr.mxu0 0.0
    %6047 = vmatpush1.msra.mxu0 0.0
    %6048 = vmatprep.subr.mxu0 0.0
    %6049 = vmatpush1.msra.mxu0 0.0
    %6050 = vmatprep.subr.mxu0 0.0
    %6051 = vmatpush1.msra.mxu0 0.0
    %6052 = vmatprep.subr.mxu0 0.0
    %6053 = vmatpush1.msra.mxu0 0.0
    %6054 = vmatprep.subr.mxu0 0.0
    %6055 = vmatpush1.msra.mxu0 0.0
    %6056 = vmatprep.subr.mxu0 0.0
    %6057 = vmatpush1.msra.mxu0 0.0
    %6058 = vmatprep.mubr.f32.mxu0 0.0
    %6059 = vmatmul.mubr.f32.gmra.mrb[0].mxu0 %v2098
    %v6060 = vpop.f32.mrb[0].mxu0
    %v6061 = vadd.f32 %v5993, %v6060
    %v6062 = vpop.f32.mrb[0].mxu0
    %6063 = vmatprep.mubr.f32.mxu0 0.0
    %6064 = vmatmul.mubr.f32.gmra.mrb[0].mxu0 %v2101
    %v6065 = vpop.f32.mrb[0].mxu0
    %v6066 = vadd.f32 %v5993, %v6065
    %v6067 = vpop.f32.mrb[0].mxu0
    %6068 = vdwg.mxu0
    %v6069 = vld [vmem:[#allocation2 + $0x728] sm:$0xff]
    %v6070 = vld [vmem:[#allocation2 + $0x730] sm:$0xff]
    %v6071 = vld [vmem:[#allocation2 + $0x738] sm:$0xff]
    %v6072 = vld [vmem:[#allocation2 + $0x740] sm:$0xff]
    %v6073 = vld [vmem:[#allocation2 + $0x748] sm:$0x1]
    %v6074 = vlaneseq
    %v6075 = vshrl.u32 %v6074, 7
    %v6076 = vsub.s32 0, %v6075
    %v6077 = vrot.slane %v6073, %v6076
    %6078 = vmatprep.subr.mxu0 0.0
    %6079 = vmatpush1.msra.mxu0 %v6069
    %6080 = vmatprep.subr.mxu0 0.0
    %6081 = vmatpush1.msra.mxu0 %v6070
    %6082 = vmatprep.subr.mxu0 0.0
    %6083 = vmatpush1.msra.mxu0 %v6071
    %6084 = vmatprep.subr.mxu0 0.0
    %6085 = vmatpush1.msra.mxu0 %v6072
    %6086 = vmatprep.subr.mxu0 0.0
    %6087 = vmatpush1.msra.mxu0 0.0
    %6088 = vmatprep.subr.mxu0 0.0
    %6089 = vmatpush1.msra.mxu0 0.0
    %6090 = vmatprep.subr.mxu0 0.0
    %6091 = vmatpush1.msra.mxu0 0.0
    %6092 = vmatprep.subr.mxu0 0.0
    %6093 = vmatpush1.msra.mxu0 0.0
    %6094 = vmatprep.subr.mxu0 0.0
    %6095 = vmatpush1.msra.mxu0 0.0
    %6096 = vmatprep.subr.mxu0 0.0
    %6097 = vmatpush1.msra.mxu0 0.0
    %6098 = vmatprep.subr.mxu0 0.0
    %6099 = vmatpush1.msra.mxu0 0.0
    %6100 = vmatprep.subr.mxu0 0.0
    %6101 = vmatpush1.msra.mxu0 0.0
    %6102 = vmatprep.subr.mxu0 0.0
    %6103 = vmatpush1.msra.mxu0 0.0
    %6104 = vmatprep.subr.mxu0 0.0
    %6105 = vmatpush1.msra.mxu0 0.0
    %6106 = vmatprep.subr.mxu0 0.0
    %6107 = vmatpush1.msra.mxu0 0.0
    %6108 = vmatprep.subr.mxu0 0.0
    %6109 = vmatpush1.msra.mxu0 0.0
    %6110 = vmatprep.subr.mxu0 0.0
    %6111 = vmatpush1.msra.mxu0 0.0
    %6112 = vmatprep.subr.mxu0 0.0
    %6113 = vmatpush1.msra.mxu0 0.0
    %6114 = vmatprep.subr.mxu0 0.0
    %6115 = vmatpush1.msra.mxu0 0.0
    %6116 = vmatprep.subr.mxu0 0.0
    %6117 = vmatpush1.msra.mxu0 0.0
    %6118 = vmatprep.subr.mxu0 0.0
    %6119 = vmatpush1.msra.mxu0 0.0
    %6120 = vmatprep.subr.mxu0 0.0
    %6121 = vmatpush1.msra.mxu0 0.0
    %6122 = vmatprep.subr.mxu0 0.0
    %6123 = vmatpush1.msra.mxu0 0.0
    %6124 = vmatprep.subr.mxu0 0.0
    %6125 = vmatpush1.msra.mxu0 0.0
    %6126 = vmatprep.subr.mxu0 0.0
    %6127 = vmatpush1.msra.mxu0 0.0
    %6128 = vmatprep.subr.mxu0 0.0
    %6129 = vmatpush1.msra.mxu0 0.0
    %6130 = vmatprep.subr.mxu0 0.0
    %6131 = vmatpush1.msra.mxu0 0.0
    %6132 = vmatprep.subr.mxu0 0.0
    %6133 = vmatpush1.msra.mxu0 0.0
    %6134 = vmatprep.subr.mxu0 0.0
    %6135 = vmatpush1.msra.mxu0 0.0
    %6136 = vmatprep.subr.mxu0 0.0
    %6137 = vmatpush1.msra.mxu0 0.0
    %6138 = vmatprep.subr.mxu0 0.0
    %6139 = vmatpush1.msra.mxu0 0.0
    %6140 = vmatprep.subr.mxu0 0.0
    %6141 = vmatpush1.msra.mxu0 0.0
    %6142 = vmatprep.mubr.f32.mxu0 0.0
    %6143 = vmatmul.mubr.f32.gmra.mrb[0].mxu0 %v2098
    %v6144 = vpop.f32.mrb[0].mxu0
    %v6145 = vadd.f32 %v6077, %v6144
    %v6146 = vpop.f32.mrb[0].mxu0
    %6147 = vmatprep.mubr.f32.mxu0 0.0
    %6148 = vmatmul.mubr.f32.gmra.mrb[0].mxu0 %v2101
    %v6149 = vpop.f32.mrb[0].mxu0
    %v6150 = vadd.f32 %v6077, %v6149
    %v6151 = vpop.f32.mrb[0].mxu0
    %6152 = vdwg.mxu0
    %v6154 = vsel %vm427, %v5977, 0
    %v6157 = vsel %vm427, %v5982, 0
    %v6160 = vsel %vm427, %v6061, 0
    %v6163 = vsel %vm427, %v6066, 0
    %6165 = vmatprep.subr.mxu0 0.0
    %6166 = vmatpush1.xpose.msra.mxu0 %v6160
    %6167 = vmatprep.subr.mxu0 0.0
    %6168 = vmatpush1.xpose.msra.mxu0 %v6163
    %6169 = vmatprep.subr.mxu0 0.0
    %6170 = vmatpush1.xpose.msra.mxu0 0.0
    %6171 = vmatprep.subr.mxu0 0.0
    %6172 = vmatpush1.xpose.msra.mxu0 0.0
    %6173 = vmatprep.subr.mxu0 0.0
    %6174 = vmatpush1.xpose.msra.mxu0 0.0
    %6175 = vmatprep.subr.mxu0 0.0
    %6176 = vmatpush1.xpose.msra.mxu0 0.0
    %6177 = vmatprep.subr.mxu0 0.0
    %6178 = vmatpush1.xpose.msra.mxu0 0.0
    %6179 = vmatprep.subr.mxu0 0.0
    %6180 = vmatpush1.xpose.msra.mxu0 0.0
    %6181 = vmatprep.subr.mxu0 0.0
    %6182 = vmatpush1.xpose.msra.mxu0 0.0
    %6183 = vmatprep.subr.mxu0 0.0
    %6184 = vmatpush1.xpose.msra.mxu0 0.0
    %6185 = vmatprep.subr.mxu0 0.0
    %6186 = vmatpush1.xpose.msra.mxu0 0.0
    %6187 = vmatprep.subr.mxu0 0.0
    %6188 = vmatpush1.xpose.msra.mxu0 0.0
    %6189 = vmatprep.subr.mxu0 0.0
    %6190 = vmatpush1.xpose.msra.mxu0 0.0
    %6191 = vmatprep.subr.mxu0 0.0
    %6192 = vmatpush1.xpose.msra.mxu0 0.0
    %6193 = vmatprep.subr.mxu0 0.0
    %6194 = vmatpush1.xpose.msra.mxu0 0.0
    %6195 = vmatprep.subr.mxu0 0.0
    %6196 = vmatpush1.xpose.msra.mxu0 0.0
    %6197 = vmatprep.subr.mxu0 0.0
    %6198 = vmatpush1.xpose.msra.mxu0 0.0
    %6199 = vmatprep.subr.mxu0 0.0
    %6200 = vmatpush1.xpose.msra.mxu0 0.0
    %6201 = vmatprep.subr.mxu0 0.0
    %6202 = vmatpush1.xpose.msra.mxu0 0.0
    %6203 = vmatprep.subr.mxu0 0.0
    %6204 = vmatpush1.xpose.msra.mxu0 0.0
    %6205 = vmatprep.subr.mxu0 0.0
    %6206 = vmatpush1.xpose.msra.mxu0 0.0
    %6207 = vmatprep.subr.mxu0 0.0
    %6208 = vmatpush1.xpose.msra.mxu0 0.0
    %6209 = vmatprep.subr.mxu0 0.0
    %6210 = vmatpush1.xpose.msra.mxu0 0.0
    %6211 = vmatprep.subr.mxu0 0.0
    %6212 = vmatpush1.xpose.msra.mxu0 0.0
    %6213 = vmatprep.subr.mxu0 0.0
    %6214 = vmatpush1.xpose.msra.mxu0 0.0
    %6215 = vmatprep.subr.mxu0 0.0
    %6216 = vmatpush1.xpose.msra.mxu0 0.0
    %6217 = vmatprep.subr.mxu0 0.0
    %6218 = vmatpush1.xpose.msra.mxu0 0.0
    %6219 = vmatprep.subr.mxu0 0.0
    %6220 = vmatpush1.xpose.msra.mxu0 0.0
    %6221 = vmatprep.subr.mxu0 0.0
    %6222 = vmatpush1.xpose.msra.mxu0 0.0
    %6223 = vmatprep.subr.mxu0 0.0
    %6224 = vmatpush1.xpose.msra.mxu0 0.0
    %6225 = vmatprep.subr.mxu0 0.0
    %6226 = vmatpush1.xpose.msra.mxu0 0.0
    %6227 = vmatprep.subr.mxu0 0.0
    %6228 = vmatpush1.xpose.msra.mxu0 0.0
    %6229 = vmatprep.mubr.f32.mxu0 0.0
    %6230 = vmatmul.mubr.f32.gmra.mrb[0].mxu0 %v6154
    %v6231 = vpop.f32.mrb[0].mxu0
    %v6232 = vadd.f32 %v31, %v6231
    %v6233 = vpop.f32.mrb[0].mxu0
    %6234 = vmatprep.mubr.f32.mxu0 0.0
    %6235 = vmatmul.mubr.f32.gmra.mrb[0].mxu0 %v6157
    %v6236 = vpop.f32.mrb[0].mxu0
    %v6237 = vadd.f32 %v32, %v6236
    %v6238 = vpop.f32.mrb[0].mxu0
    %6239 = vdwg.mxu0
    %v6240 = vsel %vm515, %v6232, -inf
    %6241 = vmax.xlane.f32.xlu0 %v6240
    %v6242 = vpop.xlane.xlu0 %6241
    %v6243 = vsel %vm515, %v6237, -inf
    %6244 = vmax.xlane.f32.xlu0 %v6243
    %v6245 = vpop.xlane.xlu0 %6244
    %v6246 = vsub.f32 %v6232, %v6242
    %v6247 = vsub.f32 %v6237, %v6245
    %v6248 = vmul.f32 %v6246, 1.442695
    %v6249 = vpow.pop %v6248
    %v6250 = vmul.f32 %v6247, 1.442695
    %v6251 = vpow.pop %v6250
    %v6252 = vsel %vm515, %v6249, 0.0
    %6253 = vadd.xlane.f32.xlu0 %v6252
    %v6254 = vpop.xlane.xlu0 %6253
    %v6255 = vsel %vm515, %v6251, 0.0
    %6256 = vadd.xlane.f32.xlu0 %v6255
    %v6257 = vpop.xlane.xlu0 %6256
    %v6258 = vrcp.pop %v6254
    %v6259 = vmul.f32 %v6249, %v6258
    %v6260 = vrcp.pop %v6257
    %v6261 = vmul.f32 %v6251, %v6260
    %v6262 = vld [vmem:[#allocation2 + $0x750] sm:$0xff]
    %v6263 = vld [vmem:[#allocation2 + $0x758] sm:$0xff]
    %v6264 = vld [vmem:[#allocation2 + $0x760] sm:$0xff]
    %v6265 = vld [vmem:[#allocation2 + $0x768] sm:$0xff]
    %v6266 = vld [vmem:[#allocation2 + $0x770] sm:$0x1]
    %v6267 = vlaneseq
    %v6268 = vshrl.u32 %v6267, 7
    %v6269 = vsub.s32 0, %v6268
    %v6270 = vrot.slane %v6266, %v6269
    %6271 = vmatprep.subr.mxu0 0.0
    %6272 = vmatpush1.msra.mxu0 %v6262
    %6273 = vmatprep.subr.mxu0 0.0
    %6274 = vmatpush1.msra.mxu0 %v6263
    %6275 = vmatprep.subr.mxu0 0.0
    %6276 = vmatpush1.msra.mxu0 %v6264
    %6277 = vmatprep.subr.mxu0 0.0
    %6278 = vmatpush1.msra.mxu0 %v6265
    %6279 = vmatprep.subr.mxu0 0.0
    %6280 = vmatpush1.msra.mxu0 0.0
    %6281 = vmatprep.subr.mxu0 0.0
    %6282 = vmatpush1.msra.mxu0 0.0
    %6283 = vmatprep.subr.mxu0 0.0
    %6284 = vmatpush1.msra.mxu0 0.0
    %6285 = vmatprep.subr.mxu0 0.0
    %6286 = vmatpush1.msra.mxu0 0.0
    %6287 = vmatprep.subr.mxu0 0.0
    %6288 = vmatpush1.msra.mxu0 0.0
    %6289 = vmatprep.subr.mxu0 0.0
    %6290 = vmatpush1.msra.mxu0 0.0
    %6291 = vmatprep.subr.mxu0 0.0
    %6292 = vmatpush1.msra.mxu0 0.0
    %6293 = vmatprep.subr.mxu0 0.0
    %6294 = vmatpush1.msra.mxu0 0.0
    %6295 = vmatprep.subr.mxu0 0.0
    %6296 = vmatpush1.msra.mxu0 0.0
    %6297 = vmatprep.subr.mxu0 0.0
    %6298 = vmatpush1.msra.mxu0 0.0
    %6299 = vmatprep.subr.mxu0 0.0
    %6300 = vmatpush1.msra.mxu0 0.0
    %6301 = vmatprep.subr.mxu0 0.0
    %6302 = vmatpush1.msra.mxu0 0.0
    %6303 = vmatprep.subr.mxu0 0.0
    %6304 = vmatpush1.msra.mxu0 0.0
    %6305 = vmatprep.subr.mxu0 0.0
    %6306 = vmatpush1.msra.mxu0 0.0
    %6307 = vmatprep.subr.mxu0 0.0
    %6308 = vmatpush1.msra.mxu0 0.0
    %6309 = vmatprep.subr.mxu0 0.0
    %6310 = vmatpush1.msra.mxu0 0.0
    %6311 = vmatprep.subr.mxu0 0.0
    %6312 = vmatpush1.msra.mxu0 0.0
    %6313 = vmatprep.subr.mxu0 0.0
    %6314 = vmatpush1.msra.mxu0 0.0
    %6315 = vmatprep.subr.mxu0 0.0
    %6316 = vmatpush1.msra.mxu0 0.0
    %6317 = vmatprep.subr.mxu0 0.0
    %6318 = vmatpush1.msra.mxu0 0.0
    %6319 = vmatprep.subr.mxu0 0.0
    %6320 = vmatpush1.msra.mxu0 0.0
    %6321 = vmatprep.subr.mxu0 0.0
    %6322 = vmatpush1.msra.mxu0 0.0
    %6323 = vmatprep.subr.mxu0 0.0
    %6324 = vmatpush1.msra.mxu0 0.0
    %6325 = vmatprep.subr.mxu0 0.0
    %6326 = vmatpush1.msra.mxu0 0.0
    %6327 = vmatprep.subr.mxu0 0.0
    %6328 = vmatpush1.msra.mxu0 0.0
    %6329 = vmatprep.subr.mxu0 0.0
    %6330 = vmatpush1.msra.mxu0 0.0
    %6331 = vmatprep.subr.mxu0 0.0
    %6332 = vmatpush1.msra.mxu0 0.0
    %6333 = vmatprep.subr.mxu0 0.0
    %6334 = vmatpush1.msra.mxu0 0.0
    %6335 = vmatprep.mubr.f32.mxu0 0.0
    %6336 = vmatmul.mubr.f32.gmra.mrb[0].mxu0 %v5905
    %v6337 = vpop.f32.mrb[0].mxu0
    %v6338 = vadd.f32 %v6270, %v6337
    %v6339 = vpop.f32.mrb[0].mxu0
    %6340 = vmatprep.mubr.f32.mxu0 0.0
    %6341 = vmatmul.mubr.f32.gmra.mrb[0].mxu0 %v5908
    %v6342 = vpop.f32.mrb[0].mxu0
    %v6343 = vadd.f32 %v6270, %v6342
    %v6344 = vpop.f32.mrb[0].mxu0
    %6345 = vdwg.mxu0
    %v6346 = vld [vmem:[#allocation2 + $0x778] sm:$0xff]
    %v6347 = vld [vmem:[#allocation2 + $0x780] sm:$0xff]
    %v6348 = vld [vmem:[#allocation2 + $0x788] sm:$0xff]
    %v6349 = vld [vmem:[#allocation2 + $0x790] sm:$0xff]
    %v6350 = vld [vmem:[#allocation2 + $0x798] sm:$0x1]
    %v6351 = vlaneseq
    %v6352 = vshrl.u32 %v6351, 7
    %v6353 = vsub.s32 0, %v6352
    %v6354 = vrot.slane %v6350, %v6353
    %6355 = vmatprep.subr.mxu0 0.0
    %6356 = vmatpush1.msra.mxu0 %v6346
    %6357 = vmatprep.subr.mxu0 0.0
    %6358 = vmatpush1.msra.mxu0 %v6347
    %6359 = vmatprep.subr.mxu0 0.0
    %6360 = vmatpush1.msra.mxu0 %v6348
    %6361 = vmatprep.subr.mxu0 0.0
    %6362 = vmatpush1.msra.mxu0 %v6349
    %6363 = vmatprep.subr.mxu0 0.0
    %6364 = vmatpush1.msra.mxu0 0.0
    %6365 = vmatprep.subr.mxu0 0.0
    %6366 = vmatpush1.msra.mxu0 0.0
    %6367 = vmatprep.subr.mxu0 0.0
    %6368 = vmatpush1.msra.mxu0 0.0
    %6369 = vmatprep.subr.mxu0 0.0
    %6370 = vmatpush1.msra.mxu0 0.0
    %6371 = vmatprep.subr.mxu0 0.0
    %6372 = vmatpush1.msra.mxu0 0.0
    %6373 = vmatprep.subr.mxu0 0.0
    %6374 = vmatpush1.msra.mxu0 0.0
    %6375 = vmatprep.subr.mxu0 0.0
    %6376 = vmatpush1.msra.mxu0 0.0
    %6377 = vmatprep.subr.mxu0 0.0
    %6378 = vmatpush1.msra.mxu0 0.0
    %6379 = vmatprep.subr.mxu0 0.0
    %6380 = vmatpush1.msra.mxu0 0.0
    %6381 = vmatprep.subr.mxu0 0.0
    %6382 = vmatpush1.msra.mxu0 0.0
    %6383 = vmatprep.subr.mxu0 0.0
    %6384 = vmatpush1.msra.mxu0 0.0
    %6385 = vmatprep.subr.mxu0 0.0
    %6386 = vmatpush1.msra.mxu0 0.0
    %6387 = vmatprep.subr.mxu0 0.0
    %6388 = vmatpush1.msra.mxu0 0.0
    %6389 = vmatprep.subr.mxu0 0.0
    %6390 = vmatpush1.msra.mxu0 0.0
    %6391 = vmatprep.subr.mxu0 0.0
    %6392 = vmatpush1.msra.mxu0 0.0
    %6393 = vmatprep.subr.mxu0 0.0
    %6394 = vmatpush1.msra.mxu0 0.0
    %6395 = vmatprep.subr.mxu0 0.0
    %6396 = vmatpush1.msra.mxu0 0.0
    %6397 = vmatprep.subr.mxu0 0.0
    %6398 = vmatpush1.msra.mxu0 0.0
    %6399 = vmatprep.subr.mxu0 0.0
    %6400 = vmatpush1.msra.mxu0 0.0
    %6401 = vmatprep.subr.mxu0 0.0
    %6402 = vmatpush1.msra.mxu0 0.0
    %6403 = vmatprep.subr.mxu0 0.0
    %6404 = vmatpush1.msra.mxu0 0.0
    %6405 = vmatprep.subr.mxu0 0.0
    %6406 = vmatpush1.msra.mxu0 0.0
    %6407 = vmatprep.subr.mxu0 0.0
    %6408 = vmatpush1.msra.mxu0 0.0
    %6409 = vmatprep.subr.mxu0 0.0
    %6410 = vmatpush1.msra.mxu0 0.0
    %6411 = vmatprep.subr.mxu0 0.0
    %6412 = vmatpush1.msra.mxu0 0.0
    %6413 = vmatprep.subr.mxu0 0.0
    %6414 = vmatpush1.msra.mxu0 0.0
    %6415 = vmatprep.subr.mxu0 0.0
    %6416 = vmatpush1.msra.mxu0 0.0
    %6417 = vmatprep.subr.mxu0 0.0
    %6418 = vmatpush1.msra.mxu0 0.0
    %6419 = vmatprep.mubr.f32.mxu0 0.0
    %6420 = vmatmul.mubr.f32.gmra.mrb[0].mxu0 %v2098
    %v6421 = vpop.f32.mrb[0].mxu0
    %v6422 = vadd.f32 %v6354, %v6421
    %v6423 = vpop.f32.mrb[0].mxu0
    %6424 = vmatprep.mubr.f32.mxu0 0.0
    %6425 = vmatmul.mubr.f32.gmra.mrb[0].mxu0 %v2101
    %v6426 = vpop.f32.mrb[0].mxu0
    %v6427 = vadd.f32 %v6354, %v6426
    %v6428 = vpop.f32.mrb[0].mxu0
    %6429 = vdwg.mxu0
    %v6430 = vld [vmem:[#allocation2 + $0x7a0] sm:$0xff]
    %v6431 = vld [vmem:[#allocation2 + $0x7a8] sm:$0xff]
    %v6432 = vld [vmem:[#allocation2 + $0x7b0] sm:$0xff]
    %v6433 = vld [vmem:[#allocation2 + $0x7b8] sm:$0xff]
    %v6434 = vld [vmem:[#allocation2 + $0x7c0] sm:$0x1]
    %v6435 = vlaneseq
    %v6436 = vshrl.u32 %v6435, 7
    %v6437 = vsub.s32 0, %v6436
    %v6438 = vrot.slane %v6434, %v6437
    %6439 = vmatprep.subr.mxu0 0.0
    %6440 = vmatpush1.msra.mxu0 %v6430
    %6441 = vmatprep.subr.mxu0 0.0
    %6442 = vmatpush1.msra.mxu0 %v6431
    %6443 = vmatprep.subr.mxu0 0.0
    %6444 = vmatpush1.msra.mxu0 %v6432
    %6445 = vmatprep.subr.mxu0 0.0
    %6446 = vmatpush1.msra.mxu0 %v6433
    %6447 = vmatprep.subr.mxu0 0.0
    %6448 = vmatpush1.msra.mxu0 0.0
    %6449 = vmatprep.subr.mxu0 0.0
    %6450 = vmatpush1.msra.mxu0 0.0
    %6451 = vmatprep.subr.mxu0 0.0
    %6452 = vmatpush1.msra.mxu0 0.0
    %6453 = vmatprep.subr.mxu0 0.0
    %6454 = vmatpush1.msra.mxu0 0.0
    %6455 = vmatprep.subr.mxu0 0.0
    %6456 = vmatpush1.msra.mxu0 0.0
    %6457 = vmatprep.subr.mxu0 0.0
    %6458 = vmatpush1.msra.mxu0 0.0
    %6459 = vmatprep.subr.mxu0 0.0
    %6460 = vmatpush1.msra.mxu0 0.0
    %6461 = vmatprep.subr.mxu0 0.0
    %6462 = vmatpush1.msra.mxu0 0.0
    %6463 = vmatprep.subr.mxu0 0.0
    %6464 = vmatpush1.msra.mxu0 0.0
    %6465 = vmatprep.subr.mxu0 0.0
    %6466 = vmatpush1.msra.mxu0 0.0
    %6467 = vmatprep.subr.mxu0 0.0
    %6468 = vmatpush1.msra.mxu0 0.0
    %6469 = vmatprep.subr.mxu0 0.0
    %6470 = vmatpush1.msra.mxu0 0.0
    %6471 = vmatprep.subr.mxu0 0.0
    %6472 = vmatpush1.msra.mxu0 0.0
    %6473 = vmatprep.subr.mxu0 0.0
    %6474 = vmatpush1.msra.mxu0 0.0
    %6475 = vmatprep.subr.mxu0 0.0
    %6476 = vmatpush1.msra.mxu0 0.0
    %6477 = vmatprep.subr.mxu0 0.0
    %6478 = vmatpush1.msra.mxu0 0.0
    %6479 = vmatprep.subr.mxu0 0.0
    %6480 = vmatpush1.msra.mxu0 0.0
    %6481 = vmatprep.subr.mxu0 0.0
    %6482 = vmatpush1.msra.mxu0 0.0
    %6483 = vmatprep.subr.mxu0 0.0
    %6484 = vmatpush1.msra.mxu0 0.0
    %6485 = vmatprep.subr.mxu0 0.0
    %6486 = vmatpush1.msra.mxu0 0.0
    %6487 = vmatprep.subr.mxu0 0.0
    %6488 = vmatpush1.msra.mxu0 0.0
    %6489 = vmatprep.subr.mxu0 0.0
    %6490 = vmatpush1.msra.mxu0 0.0
    %6491 = vmatprep.subr.mxu0 0.0
    %6492 = vmatpush1.msra.mxu0 0.0
    %6493 = vmatprep.subr.mxu0 0.0
    %6494 = vmatpush1.msra.mxu0 0.0
    %6495 = vmatprep.subr.mxu0 0.0
    %6496 = vmatpush1.msra.mxu0 0.0
    %6497 = vmatprep.subr.mxu0 0.0
    %6498 = vmatpush1.msra.mxu0 0.0
    %6499 = vmatprep.subr.mxu0 0.0
    %6500 = vmatpush1.msra.mxu0 0.0
    %6501 = vmatprep.subr.mxu0 0.0
    %6502 = vmatpush1.msra.mxu0 0.0
    %6503 = vmatprep.mubr.f32.mxu0 0.0
    %6504 = vmatmul.mubr.f32.gmra.mrb[0].mxu0 %v2098
    %v6505 = vpop.f32.mrb[0].mxu0
    %v6506 = vadd.f32 %v6438, %v6505
    %v6507 = vpop.f32.mrb[0].mxu0
    %6508 = vmatprep.mubr.f32.mxu0 0.0
    %6509 = vmatmul.mubr.f32.gmra.mrb[0].mxu0 %v2101
    %v6510 = vpop.f32.mrb[0].mxu0
    %v6511 = vadd.f32 %v6438, %v6510
    %v6512 = vpop.f32.mrb[0].mxu0
    %6513 = vdwg.mxu0
    %v6515 = vsel %vm427, %v6338, 0
    %v6518 = vsel %vm427, %v6343, 0
    %v6521 = vsel %vm427, %v6422, 0
    %v6524 = vsel %vm427, %v6427, 0
    %6526 = vmatprep.subr.mxu0 0.0
    %6527 = vmatpush1.xpose.msra.mxu0 %v6521
    %6528 = vmatprep.subr.mxu0 0.0
    %6529 = vmatpush1.xpose.msra.mxu0 %v6524
    %6530 = vmatprep.subr.mxu0 0.0
    %6531 = vmatpush1.xpose.msra.mxu0 0.0
    %6532 = vmatprep.subr.mxu0 0.0
    %6533 = vmatpush1.xpose.msra.mxu0 0.0
    %6534 = vmatprep.subr.mxu0 0.0
    %6535 = vmatpush1.xpose.msra.mxu0 0.0
    %6536 = vmatprep.subr.mxu0 0.0
    %6537 = vmatpush1.xpose.msra.mxu0 0.0
    %6538 = vmatprep.subr.mxu0 0.0
    %6539 = vmatpush1.xpose.msra.mxu0 0.0
    %6540 = vmatprep.subr.mxu0 0.0
    %6541 = vmatpush1.xpose.msra.mxu0 0.0
    %6542 = vmatprep.subr.mxu0 0.0
    %6543 = vmatpush1.xpose.msra.mxu0 0.0
    %6544 = vmatprep.subr.mxu0 0.0
    %6545 = vmatpush1.xpose.msra.mxu0 0.0
    %6546 = vmatprep.subr.mxu0 0.0
    %6547 = vmatpush1.xpose.msra.mxu0 0.0
    %6548 = vmatprep.subr.mxu0 0.0
    %6549 = vmatpush1.xpose.msra.mxu0 0.0
    %6550 = vmatprep.subr.mxu0 0.0
    %6551 = vmatpush1.xpose.msra.mxu0 0.0
    %6552 = vmatprep.subr.mxu0 0.0
    %6553 = vmatpush1.xpose.msra.mxu0 0.0
    %6554 = vmatprep.subr.mxu0 0.0
    %6555 = vmatpush1.xpose.msra.mxu0 0.0
    %6556 = vmatprep.subr.mxu0 0.0
    %6557 = vmatpush1.xpose.msra.mxu0 0.0
    %6558 = vmatprep.subr.mxu0 0.0
    %6559 = vmatpush1.xpose.msra.mxu0 0.0
    %6560 = vmatprep.subr.mxu0 0.0
    %6561 = vmatpush1.xpose.msra.mxu0 0.0
    %6562 = vmatprep.subr.mxu0 0.0
    %6563 = vmatpush1.xpose.msra.mxu0 0.0
    %6564 = vmatprep.subr.mxu0 0.0
    %6565 = vmatpush1.xpose.msra.mxu0 0.0
    %6566 = vmatprep.subr.mxu0 0.0
    %6567 = vmatpush1.xpose.msra.mxu0 0.0
    %6568 = vmatprep.subr.mxu0 0.0
    %6569 = vmatpush1.xpose.msra.mxu0 0.0
    %6570 = vmatprep.subr.mxu0 0.0
    %6571 = vmatpush1.xpose.msra.mxu0 0.0
    %6572 = vmatprep.subr.mxu0 0.0
    %6573 = vmatpush1.xpose.msra.mxu0 0.0
    %6574 = vmatprep.subr.mxu0 0.0
    %6575 = vmatpush1.xpose.msra.mxu0 0.0
    %6576 = vmatprep.subr.mxu0 0.0
    %6577 = vmatpush1.xpose.msra.mxu0 0.0
    %6578 = vmatprep.subr.mxu0 0.0
    %6579 = vmatpush1.xpose.msra.mxu0 0.0
    %6580 = vmatprep.subr.mxu0 0.0
    %6581 = vmatpush1.xpose.msra.mxu0 0.0
    %6582 = vmatprep.subr.mxu0 0.0
    %6583 = vmatpush1.xpose.msra.mxu0 0.0
    %6584 = vmatprep.subr.mxu0 0.0
    %6585 = vmatpush1.xpose.msra.mxu0 0.0
    %6586 = vmatprep.subr.mxu0 0.0
    %6587 = vmatpush1.xpose.msra.mxu0 0.0
    %6588 = vmatprep.subr.mxu0 0.0
    %6589 = vmatpush1.xpose.msra.mxu0 0.0
    %6590 = vmatprep.mubr.f32.mxu0 0.0
    %6591 = vmatmul.mubr.f32.gmra.mrb[0].mxu0 %v6515
    %v6592 = vpop.f32.mrb[0].mxu0
    %v6593 = vadd.f32 %v31, %v6592
    %v6594 = vpop.f32.mrb[0].mxu0
    %6595 = vmatprep.mubr.f32.mxu0 0.0
    %6596 = vmatmul.mubr.f32.gmra.mrb[0].mxu0 %v6518
    %v6597 = vpop.f32.mrb[0].mxu0
    %v6598 = vadd.f32 %v32, %v6597
    %v6599 = vpop.f32.mrb[0].mxu0
    %6600 = vdwg.mxu0
    %v6601 = vsel %vm515, %v6593, -inf
    %6602 = vmax.xlane.f32.xlu0 %v6601
    %v6603 = vpop.xlane.xlu0 %6602
    %v6604 = vsel %vm515, %v6598, -inf
    %6605 = vmax.xlane.f32.xlu0 %v6604
    %v6606 = vpop.xlane.xlu0 %6605
    %v6607 = vsub.f32 %v6593, %v6603
    %v6608 = vsub.f32 %v6598, %v6606
    %v6609 = vmul.f32 %v6607, 1.442695
    %v6610 = vpow.pop %v6609
    %v6611 = vmul.f32 %v6608, 1.442695
    %v6612 = vpow.pop %v6611
    %v6613 = vsel %vm515, %v6610, 0.0
    %6614 = vadd.xlane.f32.xlu0 %v6613
    %v6615 = vpop.xlane.xlu0 %6614
    %v6616 = vsel %vm515, %v6612, 0.0
    %6617 = vadd.xlane.f32.xlu0 %v6616
    %v6618 = vpop.xlane.xlu0 %6617
    %v6619 = vrcp.pop %v6615
    %v6620 = vmul.f32 %v6610, %v6619
    %v6621 = vrcp.pop %v6618
    %v6622 = vmul.f32 %v6612, %v6621
    %v6624 = vsel %vm515, %v6620, 0
    %v6627 = vsel %vm515, %v6622, 0
    %6629 = vmatprep.subr.mxu0 0.0
    %6630 = vmatpush1.msra.mxu0 %v6506
    %6631 = vmatprep.subr.mxu0 0.0
    %6632 = vmatpush1.msra.mxu0 %v6511
    %6633 = vmatprep.subr.mxu0 0.0
    %6634 = vmatpush1.msra.mxu0 0.0
    %6635 = vmatprep.subr.mxu0 0.0
    %6636 = vmatpush1.msra.mxu0 0.0
    %6637 = vmatprep.subr.mxu0 0.0
    %6638 = vmatpush1.msra.mxu0 0.0
    %6639 = vmatprep.subr.mxu0 0.0
    %6640 = vmatpush1.msra.mxu0 0.0
    %6641 = vmatprep.subr.mxu0 0.0
    %6642 = vmatpush1.msra.mxu0 0.0
    %6643 = vmatprep.subr.mxu0 0.0
    %6644 = vmatpush1.msra.mxu0 0.0
    %6645 = vmatprep.subr.mxu0 0.0
    %6646 = vmatpush1.msra.mxu0 0.0
    %6647 = vmatprep.subr.mxu0 0.0
    %6648 = vmatpush1.msra.mxu0 0.0
    %6649 = vmatprep.subr.mxu0 0.0
    %6650 = vmatpush1.msra.mxu0 0.0
    %6651 = vmatprep.subr.mxu0 0.0
    %6652 = vmatpush1.msra.mxu0 0.0
    %6653 = vmatprep.subr.mxu0 0.0
    %6654 = vmatpush1.msra.mxu0 0.0
    %6655 = vmatprep.subr.mxu0 0.0
    %6656 = vmatpush1.msra.mxu0 0.0
    %6657 = vmatprep.subr.mxu0 0.0
    %6658 = vmatpush1.msra.mxu0 0.0
    %6659 = vmatprep.subr.mxu0 0.0
    %6660 = vmatpush1.msra.mxu0 0.0
    %6661 = vmatprep.subr.mxu0 0.0
    %6662 = vmatpush1.msra.mxu0 0.0
    %6663 = vmatprep.subr.mxu0 0.0
    %6664 = vmatpush1.msra.mxu0 0.0
    %6665 = vmatprep.subr.mxu0 0.0
    %6666 = vmatpush1.msra.mxu0 0.0
    %6667 = vmatprep.subr.mxu0 0.0
    %6668 = vmatpush1.msra.mxu0 0.0
    %6669 = vmatprep.subr.mxu0 0.0
    %6670 = vmatpush1.msra.mxu0 0.0
    %6671 = vmatprep.subr.mxu0 0.0
    %6672 = vmatpush1.msra.mxu0 0.0
    %6673 = vmatprep.subr.mxu0 0.0
    %6674 = vmatpush1.msra.mxu0 0.0
    %6675 = vmatprep.subr.mxu0 0.0
    %6676 = vmatpush1.msra.mxu0 0.0
    %6677 = vmatprep.subr.mxu0 0.0
    %6678 = vmatpush1.msra.mxu0 0.0
    %6679 = vmatprep.subr.mxu0 0.0
    %6680 = vmatpush1.msra.mxu0 0.0
    %6681 = vmatprep.subr.mxu0 0.0
    %6682 = vmatpush1.msra.mxu0 0.0
    %6683 = vmatprep.subr.mxu0 0.0
    %6684 = vmatpush1.msra.mxu0 0.0
    %6685 = vmatprep.subr.mxu0 0.0
    %6686 = vmatpush1.msra.mxu0 0.0
    %6687 = vmatprep.subr.mxu0 0.0
    %6688 = vmatpush1.msra.mxu0 0.0
    %6689 = vmatprep.subr.mxu0 0.0
    %6690 = vmatpush1.msra.mxu0 0.0
    %6691 = vmatprep.subr.mxu0 0.0
    %6692 = vmatpush1.msra.mxu0 0.0
    %6693 = vmatprep.mubr.f32.mxu0 0.0
    %6694 = vmatmul.mubr.f32.gmra.mrb[0].mxu0 %v6624
    %v6695 = vpop.f32.mrb[0].mxu0
    %v6696 = vadd.f32 0.0, %v6695
    %v6697 = vpop.f32.mrb[0].mxu0
    %6698 = vmatprep.mubr.f32.mxu0 0.0
    %6699 = vmatmul.mubr.f32.gmra.mrb[0].mxu0 %v6627
    %v6700 = vpop.f32.mrb[0].mxu0
    %v6701 = vadd.f32 0.0, %v6700
    %v6702 = vpop.f32.mrb[0].mxu0
    %6703 = vdwg.mxu0
    %v6705 = vsel %vm515, %v6259, 0
    %v6708 = vsel %vm515, %v6261, 0
    %6710 = vmatprep.subr.mxu0 0.0
    %6711 = vmatpush1.msra.mxu0 %v6145
    %6712 = vmatprep.subr.mxu0 0.0
    %6713 = vmatpush1.msra.mxu0 %v6150
    %6714 = vmatprep.subr.mxu0 0.0
    %6715 = vmatpush1.msra.mxu0 0.0
    %6716 = vmatprep.subr.mxu0 0.0
    %6717 = vmatpush1.msra.mxu0 0.0
    %6718 = vmatprep.subr.mxu0 0.0
    %6719 = vmatpush1.msra.mxu0 0.0
    %6720 = vmatprep.subr.mxu0 0.0
    %6721 = vmatpush1.msra.mxu0 0.0
    %6722 = vmatprep.subr.mxu0 0.0
    %6723 = vmatpush1.msra.mxu0 0.0
    %6724 = vmatprep.subr.mxu0 0.0
    %6725 = vmatpush1.msra.mxu0 0.0
    %6726 = vmatprep.subr.mxu0 0.0
    %6727 = vmatpush1.msra.mxu0 0.0
    %6728 = vmatprep.subr.mxu0 0.0
    %6729 = vmatpush1.msra.mxu0 0.0
    %6730 = vmatprep.subr.mxu0 0.0
    %6731 = vmatpush1.msra.mxu0 0.0
    %6732 = vmatprep.subr.mxu0 0.0
    %6733 = vmatpush1.msra.mxu0 0.0
    %6734 = vmatprep.subr.mxu0 0.0
    %6735 = vmatpush1.msra.mxu0 0.0
    %6736 = vmatprep.subr.mxu0 0.0
    %6737 = vmatpush1.msra.mxu0 0.0
    %6738 = vmatprep.subr.mxu0 0.0
    %6739 = vmatpush1.msra.mxu0 0.0
    %6740 = vmatprep.subr.mxu0 0.0
    %6741 = vmatpush1.msra.mxu0 0.0
    %6742 = vmatprep.subr.mxu0 0.0
    %6743 = vmatpush1.msra.mxu0 0.0
    %6744 = vmatprep.subr.mxu0 0.0
    %6745 = vmatpush1.msra.mxu0 0.0
    %6746 = vmatprep.subr.mxu0 0.0
    %6747 = vmatpush1.msra.mxu0 0.0
    %6748 = vmatprep.subr.mxu0 0.0
    %6749 = vmatpush1.msra.mxu0 0.0
    %6750 = vmatprep.subr.mxu0 0.0
    %6751 = vmatpush1.msra.mxu0 0.0
    %6752 = vmatprep.subr.mxu0 0.0
    %6753 = vmatpush1.msra.mxu0 0.0
    %6754 = vmatprep.subr.mxu0 0.0
    %6755 = vmatpush1.msra.mxu0 0.0
    %6756 = vmatprep.subr.mxu0 0.0
    %6757 = vmatpush1.msra.mxu0 0.0
    %6758 = vmatprep.subr.mxu0 0.0
    %6759 = vmatpush1.msra.mxu0 0.0
    %6760 = vmatprep.subr.mxu0 0.0
    %6761 = vmatpush1.msra.mxu0 0.0
    %6762 = vmatprep.subr.mxu0 0.0
    %6763 = vmatpush1.msra.mxu0 0.0
    %6764 = vmatprep.subr.mxu0 0.0
    %6765 = vmatpush1.msra.mxu0 0.0
    %6766 = vmatprep.subr.mxu0 0.0
    %6767 = vmatpush1.msra.mxu0 0.0
    %6768 = vmatprep.subr.mxu0 0.0
    %6769 = vmatpush1.msra.mxu0 0.0
    %6770 = vmatprep.subr.mxu0 0.0
    %6771 = vmatpush1.msra.mxu0 0.0
    %6772 = vmatprep.subr.mxu0 0.0
    %6773 = vmatpush1.msra.mxu0 0.0
    %6774 = vmatprep.mubr.f32.mxu0 0.0
    %6775 = vmatmul.mubr.f32.gmra.mrb[0].mxu0 %v6705
    %v6776 = vpop.f32.mrb[0].mxu0
    %v6777 = vadd.f32 %v6696, %v6776
    %v6778 = vpop.f32.mrb[0].mxu0
    %6779 = vmatprep.mubr.f32.mxu0 0.0
    %6780 = vmatmul.mubr.f32.gmra.mrb[0].mxu0 %v6708
    %v6781 = vpop.f32.mrb[0].mxu0
    %v6782 = vadd.f32 %v6701, %v6781
    %v6783 = vpop.f32.mrb[0].mxu0
    %6784 = vdwg.mxu0
    %v6785 = vld [vmem:[#allocation2 + $0x7c8] sm:$0xff]
    %v6786 = vld [vmem:[#allocation2 + $0x7d0] sm:$0xff]
    %v6787 = vld [vmem:[#allocation2 + $0x7d8] sm:$0xff]
    %v6788 = vld [vmem:[#allocation2 + $0x7e0] sm:$0xff]
    %v6789 = vld [vmem:[#allocation2 + $0x7e8] sm:$0x1]
    %v6790 = vlaneseq
    %v6791 = vshrl.u32 %v6790, 7
    %v6792 = vsub.s32 0, %v6791
    %v6793 = vrot.slane %v6789, %v6792
    %6794 = vmatprep.subr.mxu0 0.0
    %6795 = vmatpush1.msra.mxu0 %v6785
    %6796 = vmatprep.subr.mxu0 0.0
    %6797 = vmatpush1.msra.mxu0 %v6786
    %6798 = vmatprep.subr.mxu0 0.0
    %6799 = vmatpush1.msra.mxu0 %v6787
    %6800 = vmatprep.subr.mxu0 0.0
    %6801 = vmatpush1.msra.mxu0 %v6788
    %6802 = vmatprep.subr.mxu0 0.0
    %6803 = vmatpush1.msra.mxu0 0.0
    %6804 = vmatprep.subr.mxu0 0.0
    %6805 = vmatpush1.msra.mxu0 0.0
    %6806 = vmatprep.subr.mxu0 0.0
    %6807 = vmatpush1.msra.mxu0 0.0
    %6808 = vmatprep.subr.mxu0 0.0
    %6809 = vmatpush1.msra.mxu0 0.0
    %6810 = vmatprep.subr.mxu0 0.0
    %6811 = vmatpush1.msra.mxu0 0.0
    %6812 = vmatprep.subr.mxu0 0.0
    %6813 = vmatpush1.msra.mxu0 0.0
    %6814 = vmatprep.subr.mxu0 0.0
    %6815 = vmatpush1.msra.mxu0 0.0
    %6816 = vmatprep.subr.mxu0 0.0
    %6817 = vmatpush1.msra.mxu0 0.0
    %6818 = vmatprep.subr.mxu0 0.0
    %6819 = vmatpush1.msra.mxu0 0.0
    %6820 = vmatprep.subr.mxu0 0.0
    %6821 = vmatpush1.msra.mxu0 0.0
    %6822 = vmatprep.subr.mxu0 0.0
    %6823 = vmatpush1.msra.mxu0 0.0
    %6824 = vmatprep.subr.mxu0 0.0
    %6825 = vmatpush1.msra.mxu0 0.0
    %6826 = vmatprep.subr.mxu0 0.0
    %6827 = vmatpush1.msra.mxu0 0.0
    %6828 = vmatprep.subr.mxu0 0.0
    %6829 = vmatpush1.msra.mxu0 0.0
    %6830 = vmatprep.subr.mxu0 0.0
    %6831 = vmatpush1.msra.mxu0 0.0
    %6832 = vmatprep.subr.mxu0 0.0
    %6833 = vmatpush1.msra.mxu0 0.0
    %6834 = vmatprep.subr.mxu0 0.0
    %6835 = vmatpush1.msra.mxu0 0.0
    %6836 = vmatprep.subr.mxu0 0.0
    %6837 = vmatpush1.msra.mxu0 0.0
    %6838 = vmatprep.subr.mxu0 0.0
    %6839 = vmatpush1.msra.mxu0 0.0
    %6840 = vmatprep.subr.mxu0 0.0
    %6841 = vmatpush1.msra.mxu0 0.0
    %6842 = vmatprep.subr.mxu0 0.0
    %6843 = vmatpush1.msra.mxu0 0.0
    %6844 = vmatprep.subr.mxu0 0.0
    %6845 = vmatpush1.msra.mxu0 0.0
    %6846 = vmatprep.subr.mxu0 0.0
    %6847 = vmatpush1.msra.mxu0 0.0
    %6848 = vmatprep.subr.mxu0 0.0
    %6849 = vmatpush1.msra.mxu0 0.0
    %6850 = vmatprep.subr.mxu0 0.0
    %6851 = vmatpush1.msra.mxu0 0.0
    %6852 = vmatprep.subr.mxu0 0.0
    %6853 = vmatpush1.msra.mxu0 0.0
    %6854 = vmatprep.subr.mxu0 0.0
    %6855 = vmatpush1.msra.mxu0 0.0
    %6856 = vmatprep.subr.mxu0 0.0
    %6857 = vmatpush1.msra.mxu0 0.0
    %6858 = vmatprep.mubr.f32.mxu0 0.0
    %6859 = vmatmul.mubr.f32.gmra.mrb[0].mxu0 %v5905
    %v6860 = vpop.f32.mrb[0].mxu0
    %v6861 = vadd.f32 %v6793, %v6860
    %v6862 = vpop.f32.mrb[0].mxu0
    %6863 = vmatprep.mubr.f32.mxu0 0.0
    %6864 = vmatmul.mubr.f32.gmra.mrb[0].mxu0 %v5908
    %v6865 = vpop.f32.mrb[0].mxu0
    %v6866 = vadd.f32 %v6793, %v6865
    %v6867 = vpop.f32.mrb[0].mxu0
    %6868 = vdwg.mxu0
    %v6869 = vld [vmem:[#allocation2 + $0x7f0] sm:$0xff]
    %v6870 = vld [vmem:[#allocation2 + $0x7f8] sm:$0xff]
    %v6871 = vld [vmem:[#allocation2 + $0x800] sm:$0xff]
    %v6872 = vld [vmem:[#allocation2 + $0x808] sm:$0xff]
    %v6873 = vld [vmem:[#allocation2 + $0x810] sm:$0x1]
    %v6874 = vlaneseq
    %v6875 = vshrl.u32 %v6874, 7
    %v6876 = vsub.s32 0, %v6875
    %v6877 = vrot.slane %v6873, %v6876
    %6878 = vmatprep.subr.mxu0 0.0
    %6879 = vmatpush1.msra.mxu0 %v6869
    %6880 = vmatprep.subr.mxu0 0.0
    %6881 = vmatpush1.msra.mxu0 %v6870
    %6882 = vmatprep.subr.mxu0 0.0
    %6883 = vmatpush1.msra.mxu0 %v6871
    %6884 = vmatprep.subr.mxu0 0.0
    %6885 = vmatpush1.msra.mxu0 %v6872
    %6886 = vmatprep.subr.mxu0 0.0
    %6887 = vmatpush1.msra.mxu0 0.0
    %6888 = vmatprep.subr.mxu0 0.0
    %6889 = vmatpush1.msra.mxu0 0.0
    %6890 = vmatprep.subr.mxu0 0.0
    %6891 = vmatpush1.msra.mxu0 0.0
    %6892 = vmatprep.subr.mxu0 0.0
    %6893 = vmatpush1.msra.mxu0 0.0
    %6894 = vmatprep.subr.mxu0 0.0
    %6895 = vmatpush1.msra.mxu0 0.0
    %6896 = vmatprep.subr.mxu0 0.0
    %6897 = vmatpush1.msra.mxu0 0.0
    %6898 = vmatprep.subr.mxu0 0.0
    %6899 = vmatpush1.msra.mxu0 0.0
    %6900 = vmatprep.subr.mxu0 0.0
    %6901 = vmatpush1.msra.mxu0 0.0
    %6902 = vmatprep.subr.mxu0 0.0
    %6903 = vmatpush1.msra.mxu0 0.0
    %6904 = vmatprep.subr.mxu0 0.0
    %6905 = vmatpush1.msra.mxu0 0.0
    %6906 = vmatprep.subr.mxu0 0.0
    %6907 = vmatpush1.msra.mxu0 0.0
    %6908 = vmatprep.subr.mxu0 0.0
    %6909 = vmatpush1.msra.mxu0 0.0
    %6910 = vmatprep.subr.mxu0 0.0
    %6911 = vmatpush1.msra.mxu0 0.0
    %6912 = vmatprep.subr.mxu0 0.0
    %6913 = vmatpush1.msra.mxu0 0.0
    %6914 = vmatprep.subr.mxu0 0.0
    %6915 = vmatpush1.msra.mxu0 0.0
    %6916 = vmatprep.subr.mxu0 0.0
    %6917 = vmatpush1.msra.mxu0 0.0
    %6918 = vmatprep.subr.mxu0 0.0
    %6919 = vmatpush1.msra.mxu0 0.0
    %6920 = vmatprep.subr.mxu0 0.0
    %6921 = vmatpush1.msra.mxu0 0.0
    %6922 = vmatprep.subr.mxu0 0.0
    %6923 = vmatpush1.msra.mxu0 0.0
    %6924 = vmatprep.subr.mxu0 0.0
    %6925 = vmatpush1.msra.mxu0 0.0
    %6926 = vmatprep.subr.mxu0 0.0
    %6927 = vmatpush1.msra.mxu0 0.0
    %6928 = vmatprep.subr.mxu0 0.0
    %6929 = vmatpush1.msra.mxu0 0.0
    %6930 = vmatprep.subr.mxu0 0.0
    %6931 = vmatpush1.msra.mxu0 0.0
    %6932 = vmatprep.subr.mxu0 0.0
    %6933 = vmatpush1.msra.mxu0 0.0
    %6934 = vmatprep.subr.mxu0 0.0
    %6935 = vmatpush1.msra.mxu0 0.0
    %6936 = vmatprep.subr.mxu0 0.0
    %6937 = vmatpush1.msra.mxu0 0.0
    %6938 = vmatprep.subr.mxu0 0.0
    %6939 = vmatpush1.msra.mxu0 0.0
    %6940 = vmatprep.subr.mxu0 0.0
    %6941 = vmatpush1.msra.mxu0 0.0
    %6942 = vmatprep.mubr.f32.mxu0 0.0
    %6943 = vmatmul.mubr.f32.gmra.mrb[0].mxu0 %v2098
    %v6944 = vpop.f32.mrb[0].mxu0
    %v6945 = vadd.f32 %v6877, %v6944
    %v6946 = vpop.f32.mrb[0].mxu0
    %6947 = vmatprep.mubr.f32.mxu0 0.0
    %6948 = vmatmul.mubr.f32.gmra.mrb[0].mxu0 %v2101
    %v6949 = vpop.f32.mrb[0].mxu0
    %v6950 = vadd.f32 %v6877, %v6949
    %v6951 = vpop.f32.mrb[0].mxu0
    %6952 = vdwg.mxu0
    %v6953 = vld [vmem:[#allocation2 + $0x818] sm:$0xff]
    %v6954 = vld [vmem:[#allocation2 + $0x820] sm:$0xff]
    %v6955 = vld [vmem:[#allocation2 + $0x828] sm:$0xff]
    %v6956 = vld [vmem:[#allocation2 + $0x830] sm:$0xff]
    %v6957 = vld [vmem:[#allocation2 + $0x838] sm:$0x1]
    %v6958 = vlaneseq
    %v6959 = vshrl.u32 %v6958, 7
    %v6960 = vsub.s32 0, %v6959
    %v6961 = vrot.slane %v6957, %v6960
    %6962 = vmatprep.subr.mxu0 0.0
    %6963 = vmatpush1.msra.mxu0 %v6953
    %6964 = vmatprep.subr.mxu0 0.0
    %6965 = vmatpush1.msra.mxu0 %v6954
    %6966 = vmatprep.subr.mxu0 0.0
    %6967 = vmatpush1.msra.mxu0 %v6955
    %6968 = vmatprep.subr.mxu0 0.0
    %6969 = vmatpush1.msra.mxu0 %v6956
    %6970 = vmatprep.subr.mxu0 0.0
    %6971 = vmatpush1.msra.mxu0 0.0
    %6972 = vmatprep.subr.mxu0 0.0
    %6973 = vmatpush1.msra.mxu0 0.0
    %6974 = vmatprep.subr.mxu0 0.0
    %6975 = vmatpush1.msra.mxu0 0.0
    %6976 = vmatprep.subr.mxu0 0.0
    %6977 = vmatpush1.msra.mxu0 0.0
    %6978 = vmatprep.subr.mxu0 0.0
    %6979 = vmatpush1.msra.mxu0 0.0
    %6980 = vmatprep.subr.mxu0 0.0
    %6981 = vmatpush1.msra.mxu0 0.0
    %6982 = vmatprep.subr.mxu0 0.0
    %6983 = vmatpush1.msra.mxu0 0.0
    %6984 = vmatprep.subr.mxu0 0.0
    %6985 = vmatpush1.msra.mxu0 0.0
    %6986 = vmatprep.subr.mxu0 0.0
    %6987 = vmatpush1.msra.mxu0 0.0
    %6988 = vmatprep.subr.mxu0 0.0
    %6989 = vmatpush1.msra.mxu0 0.0
    %6990 = vmatprep.subr.mxu0 0.0
    %6991 = vmatpush1.msra.mxu0 0.0
    %6992 = vmatprep.subr.mxu0 0.0
    %6993 = vmatpush1.msra.mxu0 0.0
    %6994 = vmatprep.subr.mxu0 0.0
    %6995 = vmatpush1.msra.mxu0 0.0
    %6996 = vmatprep.subr.mxu0 0.0
    %6997 = vmatpush1.msra.mxu0 0.0
    %6998 = vmatprep.subr.mxu0 0.0
    %6999 = vmatpush1.msra.mxu0 0.0
    %7000 = vmatprep.subr.mxu0 0.0
    %7001 = vmatpush1.msra.mxu0 0.0
    %7002 = vmatprep.subr.mxu0 0.0
    %7003 = vmatpush1.msra.mxu0 0.0
    %7004 = vmatprep.subr.mxu0 0.0
    %7005 = vmatpush1.msra.mxu0 0.0
    %7006 = vmatprep.subr.mxu0 0.0
    %7007 = vmatpush1.msra.mxu0 0.0
    %7008 = vmatprep.subr.mxu0 0.0
    %7009 = vmatpush1.msra.mxu0 0.0
    %7010 = vmatprep.subr.mxu0 0.0
    %7011 = vmatpush1.msra.mxu0 0.0
    %7012 = vmatprep.subr.mxu0 0.0
    %7013 = vmatpush1.msra.mxu0 0.0
    %7014 = vmatprep.subr.mxu0 0.0
    %7015 = vmatpush1.msra.mxu0 0.0
    %7016 = vmatprep.subr.mxu0 0.0
    %7017 = vmatpush1.msra.mxu0 0.0
    %7018 = vmatprep.subr.mxu0 0.0
    %7019 = vmatpush1.msra.mxu0 0.0
    %7020 = vmatprep.subr.mxu0 0.0
    %7021 = vmatpush1.msra.mxu0 0.0
    %7022 = vmatprep.subr.mxu0 0.0
    %7023 = vmatpush1.msra.mxu0 0.0
    %7024 = vmatprep.subr.mxu0 0.0
    %7025 = vmatpush1.msra.mxu0 0.0
    %7026 = vmatprep.mubr.f32.mxu0 0.0
    %7027 = vmatmul.mubr.f32.gmra.mrb[0].mxu0 %v2098
    %v7028 = vpop.f32.mrb[0].mxu0
    %v7029 = vadd.f32 %v6961, %v7028
    %v7030 = vpop.f32.mrb[0].mxu0
    %7031 = vmatprep.mubr.f32.mxu0 0.0
    %7032 = vmatmul.mubr.f32.gmra.mrb[0].mxu0 %v2101
    %v7033 = vpop.f32.mrb[0].mxu0
    %v7034 = vadd.f32 %v6961, %v7033
    %v7035 = vpop.f32.mrb[0].mxu0
    %7036 = vdwg.mxu0
    %v7038 = vsel %vm427, %v6861, 0
    %v7041 = vsel %vm427, %v6866, 0
    %v7044 = vsel %vm427, %v6945, 0
    %v7047 = vsel %vm427, %v6950, 0
    %7049 = vmatprep.subr.mxu0 0.0
    %7050 = vmatpush1.xpose.msra.mxu0 %v7044
    %7051 = vmatprep.subr.mxu0 0.0
    %7052 = vmatpush1.xpose.msra.mxu0 %v7047
    %7053 = vmatprep.subr.mxu0 0.0
    %7054 = vmatpush1.xpose.msra.mxu0 0.0
    %7055 = vmatprep.subr.mxu0 0.0
    %7056 = vmatpush1.xpose.msra.mxu0 0.0
    %7057 = vmatprep.subr.mxu0 0.0
    %7058 = vmatpush1.xpose.msra.mxu0 0.0
    %7059 = vmatprep.subr.mxu0 0.0
    %7060 = vmatpush1.xpose.msra.mxu0 0.0
    %7061 = vmatprep.subr.mxu0 0.0
    %7062 = vmatpush1.xpose.msra.mxu0 0.0
    %7063 = vmatprep.subr.mxu0 0.0
    %7064 = vmatpush1.xpose.msra.mxu0 0.0
    %7065 = vmatprep.subr.mxu0 0.0
    %7066 = vmatpush1.xpose.msra.mxu0 0.0
    %7067 = vmatprep.subr.mxu0 0.0
    %7068 = vmatpush1.xpose.msra.mxu0 0.0
    %7069 = vmatprep.subr.mxu0 0.0
    %7070 = vmatpush1.xpose.msra.mxu0 0.0
    %7071 = vmatprep.subr.mxu0 0.0
    %7072 = vmatpush1.xpose.msra.mxu0 0.0
    %7073 = vmatprep.subr.mxu0 0.0
    %7074 = vmatpush1.xpose.msra.mxu0 0.0
    %7075 = vmatprep.subr.mxu0 0.0
    %7076 = vmatpush1.xpose.msra.mxu0 0.0
    %7077 = vmatprep.subr.mxu0 0.0
    %7078 = vmatpush1.xpose.msra.mxu0 0.0
    %7079 = vmatprep.subr.mxu0 0.0
    %7080 = vmatpush1.xpose.msra.mxu0 0.0
    %7081 = vmatprep.subr.mxu0 0.0
    %7082 = vmatpush1.xpose.msra.mxu0 0.0
    %7083 = vmatprep.subr.mxu0 0.0
    %7084 = vmatpush1.xpose.msra.mxu0 0.0
    %7085 = vmatprep.subr.mxu0 0.0
    %7086 = vmatpush1.xpose.msra.mxu0 0.0
    %7087 = vmatprep.subr.mxu0 0.0
    %7088 = vmatpush1.xpose.msra.mxu0 0.0
    %7089 = vmatprep.subr.mxu0 0.0
    %7090 = vmatpush1.xpose.msra.mxu0 0.0
    %7091 = vmatprep.subr.mxu0 0.0
    %7092 = vmatpush1.xpose.msra.mxu0 0.0
    %7093 = vmatprep.subr.mxu0 0.0
    %7094 = vmatpush1.xpose.msra.mxu0 0.0
    %7095 = vmatprep.subr.mxu0 0.0
    %7096 = vmatpush1.xpose.msra.mxu0 0.0
    %7097 = vmatprep.subr.mxu0 0.0
    %7098 = vmatpush1.xpose.msra.mxu0 0.0
    %7099 = vmatprep.subr.mxu0 0.0
    %7100 = vmatpush1.xpose.msra.mxu0 0.0
    %7101 = vmatprep.subr.mxu0 0.0
    %7102 = vmatpush1.xpose.msra.mxu0 0.0
    %7103 = vmatprep.subr.mxu0 0.0
    %7104 = vmatpush1.xpose.msra.mxu0 0.0
    %7105 = vmatprep.subr.mxu0 0.0
    %7106 = vmatpush1.xpose.msra.mxu0 0.0
    %7107 = vmatprep.subr.mxu0 0.0
    %7108 = vmatpush1.xpose.msra.mxu0 0.0
    %7109 = vmatprep.subr.mxu0 0.0
    %7110 = vmatpush1.xpose.msra.mxu0 0.0
    %7111 = vmatprep.subr.mxu0 0.0
    %7112 = vmatpush1.xpose.msra.mxu0 0.0
    %7113 = vmatprep.mubr.f32.mxu0 0.0
    %7114 = vmatmul.mubr.f32.gmra.mrb[0].mxu0 %v7038
    %v7115 = vpop.f32.mrb[0].mxu0
    %v7116 = vadd.f32 %v31, %v7115
    %v7117 = vpop.f32.mrb[0].mxu0
    %7118 = vmatprep.mubr.f32.mxu0 0.0
    %7119 = vmatmul.mubr.f32.gmra.mrb[0].mxu0 %v7041
    %v7120 = vpop.f32.mrb[0].mxu0
    %v7121 = vadd.f32 %v32, %v7120
    %v7122 = vpop.f32.mrb[0].mxu0
    %7123 = vdwg.mxu0
    %v7124 = vsel %vm515, %v7116, -inf
    %7125 = vmax.xlane.f32.xlu0 %v7124
    %v7126 = vpop.xlane.xlu0 %7125
    %v7127 = vsel %vm515, %v7121, -inf
    %7128 = vmax.xlane.f32.xlu0 %v7127
    %v7129 = vpop.xlane.xlu0 %7128
    %v7130 = vsub.f32 %v7116, %v7126
    %v7131 = vsub.f32 %v7121, %v7129
    %v7132 = vmul.f32 %v7130, 1.442695
    %v7133 = vpow.pop %v7132
    %v7134 = vmul.f32 %v7131, 1.442695
    %v7135 = vpow.pop %v7134
    %v7136 = vsel %vm515, %v7133, 0.0
    %7137 = vadd.xlane.f32.xlu0 %v7136
    %v7138 = vpop.xlane.xlu0 %7137
    %v7139 = vsel %vm515, %v7135, 0.0
    %7140 = vadd.xlane.f32.xlu0 %v7139
    %v7141 = vpop.xlane.xlu0 %7140
    %v7142 = vrcp.pop %v7138
    %v7143 = vmul.f32 %v7133, %v7142
    %v7144 = vrcp.pop %v7141
    %v7145 = vmul.f32 %v7135, %v7144
    %v7147 = vsel %vm515, %v7143, 0
    %v7150 = vsel %vm515, %v7145, 0
    %7152 = vmatprep.subr.mxu0 0.0
    %7153 = vmatpush1.msra.mxu0 %v7029
    %7154 = vmatprep.subr.mxu0 0.0
    %7155 = vmatpush1.msra.mxu0 %v7034
    %7156 = vmatprep.subr.mxu0 0.0
    %7157 = vmatpush1.msra.mxu0 0.0
    %7158 = vmatprep.subr.mxu0 0.0
    %7159 = vmatpush1.msra.mxu0 0.0
    %7160 = vmatprep.subr.mxu0 0.0
    %7161 = vmatpush1.msra.mxu0 0.0
    %7162 = vmatprep.subr.mxu0 0.0
    %7163 = vmatpush1.msra.mxu0 0.0
    %7164 = vmatprep.subr.mxu0 0.0
    %7165 = vmatpush1.msra.mxu0 0.0
    %7166 = vmatprep.subr.mxu0 0.0
    %7167 = vmatpush1.msra.mxu0 0.0
    %7168 = vmatprep.subr.mxu0 0.0
    %7169 = vmatpush1.msra.mxu0 0.0
    %7170 = vmatprep.subr.mxu0 0.0
    %7171 = vmatpush1.msra.mxu0 0.0
    %7172 = vmatprep.subr.mxu0 0.0
    %7173 = vmatpush1.msra.mxu0 0.0
    %7174 = vmatprep.subr.mxu0 0.0
    %7175 = vmatpush1.msra.mxu0 0.0
    %7176 = vmatprep.subr.mxu0 0.0
    %7177 = vmatpush1.msra.mxu0 0.0
    %7178 = vmatprep.subr.mxu0 0.0
    %7179 = vmatpush1.msra.mxu0 0.0
    %7180 = vmatprep.subr.mxu0 0.0
    %7181 = vmatpush1.msra.mxu0 0.0
    %7182 = vmatprep.subr.mxu0 0.0
    %7183 = vmatpush1.msra.mxu0 0.0
    %7184 = vmatprep.subr.mxu0 0.0
    %7185 = vmatpush1.msra.mxu0 0.0
    %7186 = vmatprep.subr.mxu0 0.0
    %7187 = vmatpush1.msra.mxu0 0.0
    %7188 = vmatprep.subr.mxu0 0.0
    %7189 = vmatpush1.msra.mxu0 0.0
    %7190 = vmatprep.subr.mxu0 0.0
    %7191 = vmatpush1.msra.mxu0 0.0
    %7192 = vmatprep.subr.mxu0 0.0
    %7193 = vmatpush1.msra.mxu0 0.0
    %7194 = vmatprep.subr.mxu0 0.0
    %7195 = vmatpush1.msra.mxu0 0.0
    %7196 = vmatprep.subr.mxu0 0.0
    %7197 = vmatpush1.msra.mxu0 0.0
    %7198 = vmatprep.subr.mxu0 0.0
    %7199 = vmatpush1.msra.mxu0 0.0
    %7200 = vmatprep.subr.mxu0 0.0
    %7201 = vmatpush1.msra.mxu0 0.0
    %7202 = vmatprep.subr.mxu0 0.0
    %7203 = vmatpush1.msra.mxu0 0.0
    %7204 = vmatprep.subr.mxu0 0.0
    %7205 = vmatpush1.msra.mxu0 0.0
    %7206 = vmatprep.subr.mxu0 0.0
    %7207 = vmatpush1.msra.mxu0 0.0
    %7208 = vmatprep.subr.mxu0 0.0
    %7209 = vmatpush1.msra.mxu0 0.0
    %7210 = vmatprep.subr.mxu0 0.0
    %7211 = vmatpush1.msra.mxu0 0.0
    %7212 = vmatprep.subr.mxu0 0.0
    %7213 = vmatpush1.msra.mxu0 0.0
    %7214 = vmatprep.subr.mxu0 0.0
    %7215 = vmatpush1.msra.mxu0 0.0
    %7216 = vmatprep.mubr.f32.mxu0 0.0
    %7217 = vmatmul.mubr.f32.gmra.mrb[0].mxu0 %v7147
    %v7218 = vpop.f32.mrb[0].mxu0
    %v7219 = vadd.f32 0.0, %v7218
    %v7220 = vpop.f32.mrb[0].mxu0
    %7221 = vmatprep.mubr.f32.mxu0 0.0
    %7222 = vmatmul.mubr.f32.gmra.mrb[0].mxu0 %v7150
    %v7223 = vpop.f32.mrb[0].mxu0
    %v7224 = vadd.f32 0.0, %v7223
    %v7225 = vpop.f32.mrb[0].mxu0
    %7226 = vdwg.mxu0
    %v7227 = vadd.f32 %v6777, %v7219
    %v7228 = vadd.f32 %v6782, %v7224
    %v7229 = vld [vmem:[#allocation2 + $0x840] sm:$0xff]
    %v7230 = vld [vmem:[#allocation2 + $0x848] sm:$0xff]
    %v7231 = vld [vmem:[#allocation2 + $0x850] sm:$0xff]
    %v7232 = vld [vmem:[#allocation2 + $0x858] sm:$0xff]
    %v7233 = vld [vmem:[#allocation2 + $0x860] sm:$0x1]
    %v7234 = vlaneseq
    %v7235 = vshrl.u32 %v7234, 7
    %v7236 = vsub.s32 0, %v7235
    %v7237 = vrot.slane %v7233, %v7236
    %7238 = vmatprep.subr.mxu0 0.0
    %7239 = vmatpush1.msra.mxu0 %v7229
    %7240 = vmatprep.subr.mxu0 0.0
    %7241 = vmatpush1.msra.mxu0 %v7230
    %7242 = vmatprep.subr.mxu0 0.0
    %7243 = vmatpush1.msra.mxu0 %v7231
    %7244 = vmatprep.subr.mxu0 0.0
    %7245 = vmatpush1.msra.mxu0 %v7232
    %7246 = vmatprep.subr.mxu0 0.0
    %7247 = vmatpush1.msra.mxu0 0.0
    %7248 = vmatprep.subr.mxu0 0.0
    %7249 = vmatpush1.msra.mxu0 0.0
    %7250 = vmatprep.subr.mxu0 0.0
    %7251 = vmatpush1.msra.mxu0 0.0
    %7252 = vmatprep.subr.mxu0 0.0
    %7253 = vmatpush1.msra.mxu0 0.0
    %7254 = vmatprep.subr.mxu0 0.0
    %7255 = vmatpush1.msra.mxu0 0.0
    %7256 = vmatprep.subr.mxu0 0.0
    %7257 = vmatpush1.msra.mxu0 0.0
    %7258 = vmatprep.subr.mxu0 0.0
    %7259 = vmatpush1.msra.mxu0 0.0
    %7260 = vmatprep.subr.mxu0 0.0
    %7261 = vmatpush1.msra.mxu0 0.0
    %7262 = vmatprep.subr.mxu0 0.0
    %7263 = vmatpush1.msra.mxu0 0.0
    %7264 = vmatprep.subr.mxu0 0.0
    %7265 = vmatpush1.msra.mxu0 0.0
    %7266 = vmatprep.subr.mxu0 0.0
    %7267 = vmatpush1.msra.mxu0 0.0
    %7268 = vmatprep.subr.mxu0 0.0
    %7269 = vmatpush1.msra.mxu0 0.0
    %7270 = vmatprep.subr.mxu0 0.0
    %7271 = vmatpush1.msra.mxu0 0.0
    %7272 = vmatprep.subr.mxu0 0.0
    %7273 = vmatpush1.msra.mxu0 0.0
    %7274 = vmatprep.subr.mxu0 0.0
    %7275 = vmatpush1.msra.mxu0 0.0
    %7276 = vmatprep.subr.mxu0 0.0
    %7277 = vmatpush1.msra.mxu0 0.0
    %7278 = vmatprep.subr.mxu0 0.0
    %7279 = vmatpush1.msra.mxu0 0.0
    %7280 = vmatprep.subr.mxu0 0.0
    %7281 = vmatpush1.msra.mxu0 0.0
    %7282 = vmatprep.subr.mxu0 0.0
    %7283 = vmatpush1.msra.mxu0 0.0
    %7284 = vmatprep.subr.mxu0 0.0
    %7285 = vmatpush1.msra.mxu0 0.0
    %7286 = vmatprep.subr.mxu0 0.0
    %7287 = vmatpush1.msra.mxu0 0.0
    %7288 = vmatprep.subr.mxu0 0.0
    %7289 = vmatpush1.msra.mxu0 0.0
    %7290 = vmatprep.subr.mxu0 0.0
    %7291 = vmatpush1.msra.mxu0 0.0
    %7292 = vmatprep.subr.mxu0 0.0
    %7293 = vmatpush1.msra.mxu0 0.0
    %7294 = vmatprep.subr.mxu0 0.0
    %7295 = vmatpush1.msra.mxu0 0.0
    %7296 = vmatprep.subr.mxu0 0.0
    %7297 = vmatpush1.msra.mxu0 0.0
    %7298 = vmatprep.subr.mxu0 0.0
    %7299 = vmatpush1.msra.mxu0 0.0
    %7300 = vmatprep.subr.mxu0 0.0
    %7301 = vmatpush1.msra.mxu0 0.0
    %7302 = vmatprep.mubr.f32.mxu0 0.0
    %7303 = vmatmul.mubr.f32.gmra.mrb[0].mxu0 %v5905
    %v7304 = vpop.f32.mrb[0].mxu0
    %v7305 = vadd.f32 %v7237, %v7304
    %v7306 = vpop.f32.mrb[0].mxu0
    %7307 = vmatprep.mubr.f32.mxu0 0.0
    %7308 = vmatmul.mubr.f32.gmra.mrb[0].mxu0 %v5908
    %v7309 = vpop.f32.mrb[0].mxu0
    %v7310 = vadd.f32 %v7237, %v7309
    %v7311 = vpop.f32.mrb[0].mxu0
    %7312 = vdwg.mxu0
    %v7313 = vld [vmem:[#allocation2 + $0x868] sm:$0xff]
    %v7314 = vld [vmem:[#allocation2 + $0x870] sm:$0xff]
    %v7315 = vld [vmem:[#allocation2 + $0x878] sm:$0xff]
    %v7316 = vld [vmem:[#allocation2 + $0x880] sm:$0xff]
    %v7317 = vld [vmem:[#allocation2 + $0x888] sm:$0x1]
    %v7318 = vlaneseq
    %v7319 = vshrl.u32 %v7318, 7
    %v7320 = vsub.s32 0, %v7319
    %v7321 = vrot.slane %v7317, %v7320
    %7322 = vmatprep.subr.mxu0 0.0
    %7323 = vmatpush1.msra.mxu0 %v7313
    %7324 = vmatprep.subr.mxu0 0.0
    %7325 = vmatpush1.msra.mxu0 %v7314
    %7326 = vmatprep.subr.mxu0 0.0
    %7327 = vmatpush1.msra.mxu0 %v7315
    %7328 = vmatprep.subr.mxu0 0.0
    %7329 = vmatpush1.msra.mxu0 %v7316
    %7330 = vmatprep.subr.mxu0 0.0
    %7331 = vmatpush1.msra.mxu0 0.0
    %7332 = vmatprep.subr.mxu0 0.0
    %7333 = vmatpush1.msra.mxu0 0.0
    %7334 = vmatprep.subr.mxu0 0.0
    %7335 = vmatpush1.msra.mxu0 0.0
    %7336 = vmatprep.subr.mxu0 0.0
    %7337 = vmatpush1.msra.mxu0 0.0
    %7338 = vmatprep.subr.mxu0 0.0
    %7339 = vmatpush1.msra.mxu0 0.0
    %7340 = vmatprep.subr.mxu0 0.0
    %7341 = vmatpush1.msra.mxu0 0.0
    %7342 = vmatprep.subr.mxu0 0.0
    %7343 = vmatpush1.msra.mxu0 0.0
    %7344 = vmatprep.subr.mxu0 0.0
    %7345 = vmatpush1.msra.mxu0 0.0
    %7346 = vmatprep.subr.mxu0 0.0
    %7347 = vmatpush1.msra.mxu0 0.0
    %7348 = vmatprep.subr.mxu0 0.0
    %7349 = vmatpush1.msra.mxu0 0.0
    %7350 = vmatprep.subr.mxu0 0.0
    %7351 = vmatpush1.msra.mxu0 0.0
    %7352 = vmatprep.subr.mxu0 0.0
    %7353 = vmatpush1.msra.mxu0 0.0
    %7354 = vmatprep.subr.mxu0 0.0
    %7355 = vmatpush1.msra.mxu0 0.0
    %7356 = vmatprep.subr.mxu0 0.0
    %7357 = vmatpush1.msra.mxu0 0.0
    %7358 = vmatprep.subr.mxu0 0.0
    %7359 = vmatpush1.msra.mxu0 0.0
    %7360 = vmatprep.subr.mxu0 0.0
    %7361 = vmatpush1.msra.mxu0 0.0
    %7362 = vmatprep.subr.mxu0 0.0
    %7363 = vmatpush1.msra.mxu0 0.0
    %7364 = vmatprep.subr.mxu0 0.0
    %7365 = vmatpush1.msra.mxu0 0.0
    %7366 = vmatprep.subr.mxu0 0.0
    %7367 = vmatpush1.msra.mxu0 0.0
    %7368 = vmatprep.subr.mxu0 0.0
    %7369 = vmatpush1.msra.mxu0 0.0
    %7370 = vmatprep.subr.mxu0 0.0
    %7371 = vmatpush1.msra.mxu0 0.0
    %7372 = vmatprep.subr.mxu0 0.0
    %7373 = vmatpush1.msra.mxu0 0.0
    %7374 = vmatprep.subr.mxu0 0.0
    %7375 = vmatpush1.msra.mxu0 0.0
    %7376 = vmatprep.subr.mxu0 0.0
    %7377 = vmatpush1.msra.mxu0 0.0
    %7378 = vmatprep.subr.mxu0 0.0
    %7379 = vmatpush1.msra.mxu0 0.0
    %7380 = vmatprep.subr.mxu0 0.0
    %7381 = vmatpush1.msra.mxu0 0.0
    %7382 = vmatprep.subr.mxu0 0.0
    %7383 = vmatpush1.msra.mxu0 0.0
    %7384 = vmatprep.subr.mxu0 0.0
    %7385 = vmatpush1.msra.mxu0 0.0
    %7386 = vmatprep.mubr.f32.mxu0 0.0
    %7387 = vmatmul.mubr.f32.gmra.mrb[0].mxu0 %v2098
    %v7388 = vpop.f32.mrb[0].mxu0
    %v7389 = vadd.f32 %v7321, %v7388
    %v7390 = vpop.f32.mrb[0].mxu0
    %7391 = vmatprep.mubr.f32.mxu0 0.0
    %7392 = vmatmul.mubr.f32.gmra.mrb[0].mxu0 %v2101
    %v7393 = vpop.f32.mrb[0].mxu0
    %v7394 = vadd.f32 %v7321, %v7393
    %v7395 = vpop.f32.mrb[0].mxu0
    %7396 = vdwg.mxu0
    %v7397 = vld [vmem:[#allocation2 + $0x890] sm:$0xff]
    %v7398 = vld [vmem:[#allocation2 + $0x898] sm:$0xff]
    %v7399 = vld [vmem:[#allocation2 + $0x8a0] sm:$0xff]
    %v7400 = vld [vmem:[#allocation2 + $0x8a8] sm:$0xff]
    %v7401 = vld [vmem:[#allocation2 + $0x8b0] sm:$0x1]
    %v7402 = vlaneseq
    %v7403 = vshrl.u32 %v7402, 7
    %v7404 = vsub.s32 0, %v7403
    %v7405 = vrot.slane %v7401, %v7404
    %7406 = vmatprep.subr.mxu0 0.0
    %7407 = vmatpush1.msra.mxu0 %v7397
    %7408 = vmatprep.subr.mxu0 0.0
    %7409 = vmatpush1.msra.mxu0 %v7398
    %7410 = vmatprep.subr.mxu0 0.0
    %7411 = vmatpush1.msra.mxu0 %v7399
    %7412 = vmatprep.subr.mxu0 0.0
    %7413 = vmatpush1.msra.mxu0 %v7400
    %7414 = vmatprep.subr.mxu0 0.0
    %7415 = vmatpush1.msra.mxu0 0.0
    %7416 = vmatprep.subr.mxu0 0.0
    %7417 = vmatpush1.msra.mxu0 0.0
    %7418 = vmatprep.subr.mxu0 0.0
    %7419 = vmatpush1.msra.mxu0 0.0
    %7420 = vmatprep.subr.mxu0 0.0
    %7421 = vmatpush1.msra.mxu0 0.0
    %7422 = vmatprep.subr.mxu0 0.0
    %7423 = vmatpush1.msra.mxu0 0.0
    %7424 = vmatprep.subr.mxu0 0.0
    %7425 = vmatpush1.msra.mxu0 0.0
    %7426 = vmatprep.subr.mxu0 0.0
    %7427 = vmatpush1.msra.mxu0 0.0
    %7428 = vmatprep.subr.mxu0 0.0
    %7429 = vmatpush1.msra.mxu0 0.0
    %7430 = vmatprep.subr.mxu0 0.0
    %7431 = vmatpush1.msra.mxu0 0.0
    %7432 = vmatprep.subr.mxu0 0.0
    %7433 = vmatpush1.msra.mxu0 0.0
    %7434 = vmatprep.subr.mxu0 0.0
    %7435 = vmatpush1.msra.mxu0 0.0
    %7436 = vmatprep.subr.mxu0 0.0
    %7437 = vmatpush1.msra.mxu0 0.0
    %7438 = vmatprep.subr.mxu0 0.0
    %7439 = vmatpush1.msra.mxu0 0.0
    %7440 = vmatprep.subr.mxu0 0.0
    %7441 = vmatpush1.msra.mxu0 0.0
    %7442 = vmatprep.subr.mxu0 0.0
    %7443 = vmatpush1.msra.mxu0 0.0
    %7444 = vmatprep.subr.mxu0 0.0
    %7445 = vmatpush1.msra.mxu0 0.0
    %7446 = vmatprep.subr.mxu0 0.0
    %7447 = vmatpush1.msra.mxu0 0.0
    %7448 = vmatprep.subr.mxu0 0.0
    %7449 = vmatpush1.msra.mxu0 0.0
    %7450 = vmatprep.subr.mxu0 0.0
    %7451 = vmatpush1.msra.mxu0 0.0
    %7452 = vmatprep.subr.mxu0 0.0
    %7453 = vmatpush1.msra.mxu0 0.0
    %7454 = vmatprep.subr.mxu0 0.0
    %7455 = vmatpush1.msra.mxu0 0.0
    %7456 = vmatprep.subr.mxu0 0.0
    %7457 = vmatpush1.msra.mxu0 0.0
    %7458 = vmatprep.subr.mxu0 0.0
    %7459 = vmatpush1.msra.mxu0 0.0
    %7460 = vmatprep.subr.mxu0 0.0
    %7461 = vmatpush1.msra.mxu0 0.0
    %7462 = vmatprep.subr.mxu0 0.0
    %7463 = vmatpush1.msra.mxu0 0.0
    %7464 = vmatprep.subr.mxu0 0.0
    %7465 = vmatpush1.msra.mxu0 0.0
    %7466 = vmatprep.subr.mxu0 0.0
    %7467 = vmatpush1.msra.mxu0 0.0
    %7468 = vmatprep.subr.mxu0 0.0
    %7469 = vmatpush1.msra.mxu0 0.0
    %7470 = vmatprep.mubr.f32.mxu0 0.0
    %7471 = vmatmul.mubr.f32.gmra.mrb[0].mxu0 %v2098
    %v7472 = vpop.f32.mrb[0].mxu0
    %v7473 = vadd.f32 %v7405, %v7472
    %v7474 = vpop.f32.mrb[0].mxu0
    %7475 = vmatprep.mubr.f32.mxu0 0.0
    %7476 = vmatmul.mubr.f32.gmra.mrb[0].mxu0 %v2101
    %v7477 = vpop.f32.mrb[0].mxu0
    %v7478 = vadd.f32 %v7405, %v7477
    %v7479 = vpop.f32.mrb[0].mxu0
    %7480 = vdwg.mxu0
    %v7482 = vsel %vm427, %v7305, 0
    %v7485 = vsel %vm427, %v7310, 0
    %v7488 = vsel %vm427, %v7389, 0
    %v7491 = vsel %vm427, %v7394, 0
    %7493 = vmatprep.subr.mxu0 0.0
    %7494 = vmatpush1.xpose.msra.mxu0 %v7488
    %7495 = vmatprep.subr.mxu0 0.0
    %7496 = vmatpush1.xpose.msra.mxu0 %v7491
    %7497 = vmatprep.subr.mxu0 0.0
    %7498 = vmatpush1.xpose.msra.mxu0 0.0
    %7499 = vmatprep.subr.mxu0 0.0
    %7500 = vmatpush1.xpose.msra.mxu0 0.0
    %7501 = vmatprep.subr.mxu0 0.0
    %7502 = vmatpush1.xpose.msra.mxu0 0.0
    %7503 = vmatprep.subr.mxu0 0.0
    %7504 = vmatpush1.xpose.msra.mxu0 0.0
    %7505 = vmatprep.subr.mxu0 0.0
    %7506 = vmatpush1.xpose.msra.mxu0 0.0
    %7507 = vmatprep.subr.mxu0 0.0
    %7508 = vmatpush1.xpose.msra.mxu0 0.0
    %7509 = vmatprep.subr.mxu0 0.0
    %7510 = vmatpush1.xpose.msra.mxu0 0.0
    %7511 = vmatprep.subr.mxu0 0.0
    %7512 = vmatpush1.xpose.msra.mxu0 0.0
    %7513 = vmatprep.subr.mxu0 0.0
    %7514 = vmatpush1.xpose.msra.mxu0 0.0
    %7515 = vmatprep.subr.mxu0 0.0
    %7516 = vmatpush1.xpose.msra.mxu0 0.0
    %7517 = vmatprep.subr.mxu0 0.0
    %7518 = vmatpush1.xpose.msra.mxu0 0.0
    %7519 = vmatprep.subr.mxu0 0.0
    %7520 = vmatpush1.xpose.msra.mxu0 0.0
    %7521 = vmatprep.subr.mxu0 0.0
    %7522 = vmatpush1.xpose.msra.mxu0 0.0
    %7523 = vmatprep.subr.mxu0 0.0
    %7524 = vmatpush1.xpose.msra.mxu0 0.0
    %7525 = vmatprep.subr.mxu0 0.0
    %7526 = vmatpush1.xpose.msra.mxu0 0.0
    %7527 = vmatprep.subr.mxu0 0.0
    %7528 = vmatpush1.xpose.msra.mxu0 0.0
    %7529 = vmatprep.subr.mxu0 0.0
    %7530 = vmatpush1.xpose.msra.mxu0 0.0
    %7531 = vmatprep.subr.mxu0 0.0
    %7532 = vmatpush1.xpose.msra.mxu0 0.0
    %7533 = vmatprep.subr.mxu0 0.0
    %7534 = vmatpush1.xpose.msra.mxu0 0.0
    %7535 = vmatprep.subr.mxu0 0.0
    %7536 = vmatpush1.xpose.msra.mxu0 0.0
    %7537 = vmatprep.subr.mxu0 0.0
    %7538 = vmatpush1.xpose.msra.mxu0 0.0
    %7539 = vmatprep.subr.mxu0 0.0
    %7540 = vmatpush1.xpose.msra.mxu0 0.0
    %7541 = vmatprep.subr.mxu0 0.0
    %7542 = vmatpush1.xpose.msra.mxu0 0.0
    %7543 = vmatprep.subr.mxu0 0.0
    %7544 = vmatpush1.xpose.msra.mxu0 0.0
    %7545 = vmatprep.subr.mxu0 0.0
    %7546 = vmatpush1.xpose.msra.mxu0 0.0
    %7547 = vmatprep.subr.mxu0 0.0
    %7548 = vmatpush1.xpose.msra.mxu0 0.0
    %7549 = vmatprep.subr.mxu0 0.0
    %7550 = vmatpush1.xpose.msra.mxu0 0.0
    %7551 = vmatprep.subr.mxu0 0.0
    %7552 = vmatpush1.xpose.msra.mxu0 0.0
    %7553 = vmatprep.subr.mxu0 0.0
    %7554 = vmatpush1.xpose.msra.mxu0 0.0
    %7555 = vmatprep.subr.mxu0 0.0
    %7556 = vmatpush1.xpose.msra.mxu0 0.0
    %7557 = vmatprep.mubr.f32.mxu0 0.0
    %7558 = vmatmul.mubr.f32.gmra.mrb[0].mxu0 %v7482
    %v7559 = vpop.f32.mrb[0].mxu0
    %v7560 = vadd.f32 %v31, %v7559
    %v7561 = vpop.f32.mrb[0].mxu0
    %7562 = vmatprep.mubr.f32.mxu0 0.0
    %7563 = vmatmul.mubr.f32.gmra.mrb[0].mxu0 %v7485
    %v7564 = vpop.f32.mrb[0].mxu0
    %v7565 = vadd.f32 %v32, %v7564
    %v7566 = vpop.f32.mrb[0].mxu0
    %7567 = vdwg.mxu0
    %v7568 = vsel %vm515, %v7560, -inf
    %7569 = vmax.xlane.f32.xlu0 %v7568
    %v7570 = vpop.xlane.xlu0 %7569
    %v7571 = vsel %vm515, %v7565, -inf
    %7572 = vmax.xlane.f32.xlu0 %v7571
    %v7573 = vpop.xlane.xlu0 %7572
    %v7574 = vsub.f32 %v7560, %v7570
    %v7575 = vsub.f32 %v7565, %v7573
    %v7576 = vmul.f32 %v7574, 1.442695
    %v7577 = vpow.pop %v7576
    %v7578 = vmul.f32 %v7575, 1.442695
    %v7579 = vpow.pop %v7578
    %v7580 = vsel %vm515, %v7577, 0.0
    %7581 = vadd.xlane.f32.xlu0 %v7580
    %v7582 = vpop.xlane.xlu0 %7581
    %v7583 = vsel %vm515, %v7579, 0.0
    %7584 = vadd.xlane.f32.xlu0 %v7583
    %v7585 = vpop.xlane.xlu0 %7584
    %v7586 = vrcp.pop %v7582
    %v7587 = vmul.f32 %v7577, %v7586
    %v7588 = vrcp.pop %v7585
    %v7589 = vmul.f32 %v7579, %v7588
    %v7591 = vsel %vm515, %v7587, 0
    %v7594 = vsel %vm515, %v7589, 0
    %7596 = vmatprep.subr.mxu0 0.0
    %7597 = vmatpush1.msra.mxu0 %v7473
    %7598 = vmatprep.subr.mxu0 0.0
    %7599 = vmatpush1.msra.mxu0 %v7478
    %7600 = vmatprep.subr.mxu0 0.0
    %7601 = vmatpush1.msra.mxu0 0.0
    %7602 = vmatprep.subr.mxu0 0.0
    %7603 = vmatpush1.msra.mxu0 0.0
    %7604 = vmatprep.subr.mxu0 0.0
    %7605 = vmatpush1.msra.mxu0 0.0
    %7606 = vmatprep.subr.mxu0 0.0
    %7607 = vmatpush1.msra.mxu0 0.0
    %7608 = vmatprep.subr.mxu0 0.0
    %7609 = vmatpush1.msra.mxu0 0.0
    %7610 = vmatprep.subr.mxu0 0.0
    %7611 = vmatpush1.msra.mxu0 0.0
    %7612 = vmatprep.subr.mxu0 0.0
    %7613 = vmatpush1.msra.mxu0 0.0
    %7614 = vmatprep.subr.mxu0 0.0
    %7615 = vmatpush1.msra.mxu0 0.0
    %7616 = vmatprep.subr.mxu0 0.0
    %7617 = vmatpush1.msra.mxu0 0.0
    %7618 = vmatprep.subr.mxu0 0.0
    %7619 = vmatpush1.msra.mxu0 0.0
    %7620 = vmatprep.subr.mxu0 0.0
    %7621 = vmatpush1.msra.mxu0 0.0
    %7622 = vmatprep.subr.mxu0 0.0
    %7623 = vmatpush1.msra.mxu0 0.0
    %7624 = vmatprep.subr.mxu0 0.0
    %7625 = vmatpush1.msra.mxu0 0.0
    %7626 = vmatprep.subr.mxu0 0.0
    %7627 = vmatpush1.msra.mxu0 0.0
    %7628 = vmatprep.subr.mxu0 0.0
    %7629 = vmatpush1.msra.mxu0 0.0
    %7630 = vmatprep.subr.mxu0 0.0
    %7631 = vmatpush1.msra.mxu0 0.0
    %7632 = vmatprep.subr.mxu0 0.0
    %7633 = vmatpush1.msra.mxu0 0.0
    %7634 = vmatprep.subr.mxu0 0.0
    %7635 = vmatpush1.msra.mxu0 0.0
    %7636 = vmatprep.subr.mxu0 0.0
    %7637 = vmatpush1.msra.mxu0 0.0
    %7638 = vmatprep.subr.mxu0 0.0
    %7639 = vmatpush1.msra.mxu0 0.0
    %7640 = vmatprep.subr.mxu0 0.0
    %7641 = vmatpush1.msra.mxu0 0.0
    %7642 = vmatprep.subr.mxu0 0.0
    %7643 = vmatpush1.msra.mxu0 0.0
    %7644 = vmatprep.subr.mxu0 0.0
    %7645 = vmatpush1.msra.mxu0 0.0
    %7646 = vmatprep.subr.mxu0 0.0
    %7647 = vmatpush1.msra.mxu0 0.0
    %7648 = vmatprep.subr.mxu0 0.0
    %7649 = vmatpush1.msra.mxu0 0.0
    %7650 = vmatprep.subr.mxu0 0.0
    %7651 = vmatpush1.msra.mxu0 0.0
    %7652 = vmatprep.subr.mxu0 0.0
    %7653 = vmatpush1.msra.mxu0 0.0
    %7654 = vmatprep.subr.mxu0 0.0
    %7655 = vmatpush1.msra.mxu0 0.0
    %7656 = vmatprep.subr.mxu0 0.0
    %7657 = vmatpush1.msra.mxu0 0.0
    %7658 = vmatprep.subr.mxu0 0.0
    %7659 = vmatpush1.msra.mxu0 0.0
    %7660 = vmatprep.mubr.f32.mxu0 0.0
    %7661 = vmatmul.mubr.f32.gmra.mrb[0].mxu0 %v7591
    %v7662 = vpop.f32.mrb[0].mxu0
    %v7663 = vadd.f32 0.0, %v7662
    %v7664 = vpop.f32.mrb[0].mxu0
    %7665 = vmatprep.mubr.f32.mxu0 0.0
    %7666 = vmatmul.mubr.f32.gmra.mrb[0].mxu0 %v7594
    %v7667 = vpop.f32.mrb[0].mxu0
    %v7668 = vadd.f32 0.0, %v7667
    %v7669 = vpop.f32.mrb[0].mxu0
    %7670 = vdwg.mxu0
    %v7671 = vadd.f32 %v7227, %v7663
    %v7672 = vadd.f32 %v7228, %v7668
    %v7673 = vld [vmem:[#allocation2 + $0x8b8] sm:$0x1]
    %v7674 = vlaneseq
    %v7675 = vshrl.u32 %v7674, 7
    %v7676 = vsub.s32 0, %v7675
    %v7677 = vrot.slane %v7673, %v7676
    %v7678 = vadd.f32 %v7671, %v7677
    %v7679 = vadd.f32 %v7672, %v7677
    %v7680 = vadd.f32 %v5893, %v7678
    %v7681 = vadd.f32 %v5894, %v7679
    %v7682 = vld [vmem:[#allocation2 + $0x8c0] sm:$0x1]
    %v7683 = vld [vmem:[#allocation2 + $0x8c8] sm:$0x1]
    %v7684 = vsel %vm129, %v7680, 0.0
    %7685 = vadd.xlane.f32.xlu0 %v7684
    %v7686 = vpop.xlane.xlu0 %7685
    %v7687 = vsel %vm129, %v7681, 0.0
    %7688 = vadd.xlane.f32.xlu0 %v7687
    %v7689 = vpop.xlane.xlu0 %7688
    %v7690 = vmul.f32 %v7686, %v136
    %v7691 = vmul.f32 %v7689, %v136
    %v7692 = vsub.f32 %v7680, %v7690
    %v7693 = vsub.f32 %v7681, %v7691
    %v7694 = vmul.f32 %v7692, %v7692
    %v7695 = vmul.f32 %v7693, %v7693
    %v7696 = vsel %vm129, %v7694, 0.0
    %7697 = vadd.xlane.f32.xlu0 %v7696
    %v7698 = vpop.xlane.xlu0 %7697
    %v7699 = vsel %vm129, %v7695, 0.0
    %7700 = vadd.xlane.f32.xlu0 %v7699
    %v7701 = vpop.xlane.xlu0 %7700
    %v7702 = vmul.f32 %v7698, %v136
    %v7703 = vmul.f32 %v7701, %v136
    %v7704 = vadd.f32 %v7702, 1e-05
    %v7705 = vadd.f32 %v7703, 1e-05
    %v7706 = vrsqrt.pop %v7704
    %v7707 = vrsqrt.pop %v7705
    %v7708 = vmul.f32 %v7692, %v7706
    %v7709 = vmul.f32 %v7693, %v7707
    %v7710 = vlaneseq
    %v7711 = vshrl.u32 %v7710, 7
    %v7712 = vsub.s32 0, %v7711
    %v7713 = vrot.slane %v7682, %v7712
    %v7714 = vmul.f32 %v7708, %v7713
    %v7715 = vmul.f32 %v7709, %v7713
    %v7716 = vlaneseq
    %v7717 = vshrl.u32 %v7716, 7
    %v7718 = vsub.s32 0, %v7717
    %v7719 = vrot.slane %v7683, %v7718
    %v7720 = vadd.f32 %v7714, %v7719
    %v7721 = vadd.f32 %v7715, %v7719
    %v7722 = vld [vmem:[#allocation2 + $0x8d0] sm:$0xff]
    %v7723 = vld [vmem:[#allocation2 + $0x8d8] sm:$0xff]
    %v7724 = vld [vmem:[#allocation2 + $0x8e0] sm:$0xff]
    %v7725 = vld [vmem:[#allocation2 + $0x8e8] sm:$0xff]
    %v7726 = vld [vmem:[#allocation2 + $0x8f0] sm:$0x1]
    %v7727 = vlaneseq
    %v7728 = vshrl.u32 %v7727, 7
    %v7729 = vsub.s32 0, %v7728
    %v7730 = vrot.slane %v7726, %v7729
    %v7732 = vsel %vm129, %v7720, 0
    %v7735 = vsel %vm129, %v7721, 0
    %7737 = vmatprep.subr.mxu0 0.0
    %7738 = vmatpush1.msra.mxu0 %v7722
    %7739 = vmatprep.subr.mxu0 0.0
    %7740 = vmatpush1.msra.mxu0 %v7723
    %7741 = vmatprep.subr.mxu0 0.0
    %7742 = vmatpush1.msra.mxu0 %v7724
    %7743 = vmatprep.subr.mxu0 0.0
    %7744 = vmatpush1.msra.mxu0 %v7725
    %7745 = vmatprep.subr.mxu0 0.0
    %7746 = vmatpush1.msra.mxu0 0.0
    %7747 = vmatprep.subr.mxu0 0.0
    %7748 = vmatpush1.msra.mxu0 0.0
    %7749 = vmatprep.subr.mxu0 0.0
    %7750 = vmatpush1.msra.mxu0 0.0
    %7751 = vmatprep.subr.mxu0 0.0
    %7752 = vmatpush1.msra.mxu0 0.0
    %7753 = vmatprep.subr.mxu0 0.0
    %7754 = vmatpush1.msra.mxu0 0.0
    %7755 = vmatprep.subr.mxu0 0.0
    %7756 = vmatpush1.msra.mxu0 0.0
    %7757 = vmatprep.subr.mxu0 0.0
    %7758 = vmatpush1.msra.mxu0 0.0
    %7759 = vmatprep.subr.mxu0 0.0
    %7760 = vmatpush1.msra.mxu0 0.0
    %7761 = vmatprep.subr.mxu0 0.0
    %7762 = vmatpush1.msra.mxu0 0.0
    %7763 = vmatprep.subr.mxu0 0.0
    %7764 = vmatpush1.msra.mxu0 0.0
    %7765 = vmatprep.subr.mxu0 0.0
    %7766 = vmatpush1.msra.mxu0 0.0
    %7767 = vmatprep.subr.mxu0 0.0
    %7768 = vmatpush1.msra.mxu0 0.0
    %7769 = vmatprep.subr.mxu0 0.0
    %7770 = vmatpush1.msra.mxu0 0.0
    %7771 = vmatprep.subr.mxu0 0.0
    %7772 = vmatpush1.msra.mxu0 0.0
    %7773 = vmatprep.subr.mxu0 0.0
    %7774 = vmatpush1.msra.mxu0 0.0
    %7775 = vmatprep.subr.mxu0 0.0
    %7776 = vmatpush1.msra.mxu0 0.0
    %7777 = vmatprep.subr.mxu0 0.0
    %7778 = vmatpush1.msra.mxu0 0.0
    %7779 = vmatprep.subr.mxu0 0.0
    %7780 = vmatpush1.msra.mxu0 0.0
    %7781 = vmatprep.subr.mxu0 0.0
    %7782 = vmatpush1.msra.mxu0 0.0
    %7783 = vmatprep.subr.mxu0 0.0
    %7784 = vmatpush1.msra.mxu0 0.0
    %7785 = vmatprep.subr.mxu0 0.0
    %7786 = vmatpush1.msra.mxu0 0.0
    %7787 = vmatprep.subr.mxu0 0.0
    %7788 = vmatpush1.msra.mxu0 0.0
    %7789 = vmatprep.subr.mxu0 0.0
    %7790 = vmatpush1.msra.mxu0 0.0
    %7791 = vmatprep.subr.mxu0 0.0
    %7792 = vmatpush1.msra.mxu0 0.0
    %7793 = vmatprep.subr.mxu0 0.0
    %7794 = vmatpush1.msra.mxu0 0.0
    %7795 = vmatprep.subr.mxu0 0.0
    %7796 = vmatpush1.msra.mxu0 0.0
    %7797 = vmatprep.subr.mxu0 0.0
    %7798 = vmatpush1.msra.mxu0 0.0
    %7799 = vmatprep.subr.mxu0 0.0
    %7800 = vmatpush1.msra.mxu0 0.0
    %7801 = vmatprep.mubr.f32.mxu0 0.0
    %7802 = vmatmul.mubr.f32.gmra.mrb[0].mxu0 %v7732
    %v7803 = vpop.f32.mrb[0].mxu0
    %v7804 = vadd.f32 %v7730, %v7803
    %v7805 = vpop.f32.mrb[0].mxu0
    %7806 = vmatprep.mubr.f32.mxu0 0.0
    %7807 = vmatmul.mubr.f32.gmra.mrb[0].mxu0 %v7735
    %v7808 = vpop.f32.mrb[0].mxu0
    %v7809 = vadd.f32 %v7730, %v7808
    %v7810 = vpop.f32.mrb[0].mxu0
    %7811 = vdwg.mxu0
    %v7812 = vmul.f32 %v7804, 0.5
    %v7813 = vmul.f32 %v7809, 0.5
    %v7814 = vmul.f32 %v7804, 0.70710677
    %v7815 = vmul.f32 %v7809, 0.70710677
    %v7816 = verf.f32.pop %v7814
    %v7817 = verf.f32.pop %v7815
    %v7818 = vadd.f32 %v7816, 1.0
    %v7819 = vadd.f32 %v7817, 1.0
    %v7820 = vmul.f32 %v7812, %v7818
    %v7821 = vmul.f32 %v7813, %v7819
    %v7822 = vld [vmem:[#allocation2 + $0x8f8] sm:$0xff]
    %v7823 = vld [vmem:[#allocation2 + $0x900] sm:$0xff]
    %v7824 = vld [vmem:[#allocation2 + $0x908] sm:$0xff]
    %v7825 = vld [vmem:[#allocation2 + $0x910] sm:$0xff]
    %v7826 = vld [vmem:[#allocation2 + $0x918] sm:$0xff]
    %v7827 = vld [vmem:[#allocation2 + $0x920] sm:$0xff]
    %v7828 = vld [vmem:[#allocation2 + $0x928] sm:$0xff]
    %v7829 = vld [vmem:[#allocation2 + $0x930] sm:$0xff]
    %v7830 = vld [vmem:[#allocation2 + $0x938] sm:$0x1]
    %v7831 = vlaneseq
    %v7832 = vshrl.u32 %v7831, 7
    %v7833 = vsub.s32 0, %v7832
    %v7834 = vrot.slane %v7830, %v7833
    %v7836 = vsel %vm3944, %v7820, 0
    %v7839 = vsel %vm3944, %v7821, 0
    %7841 = vmatprep.subr.mxu0 0.0
    %7842 = vmatpush1.msra.mxu0 %v7822
    %7843 = vmatprep.subr.mxu0 0.0
    %7844 = vmatpush1.msra.mxu0 %v7823
    %7845 = vmatprep.subr.mxu0 0.0
    %7846 = vmatpush1.msra.mxu0 %v7824
    %7847 = vmatprep.subr.mxu0 0.0
    %7848 = vmatpush1.msra.mxu0 %v7825
    %7849 = vmatprep.subr.mxu0 0.0
    %7850 = vmatpush1.msra.mxu0 %v7826
    %7851 = vmatprep.subr.mxu0 0.0
    %7852 = vmatpush1.msra.mxu0 %v7827
    %7853 = vmatprep.subr.mxu0 0.0
    %7854 = vmatpush1.msra.mxu0 %v7828
    %7855 = vmatprep.subr.mxu0 0.0
    %7856 = vmatpush1.msra.mxu0 %v7829
    %7857 = vmatprep.subr.mxu0 0.0
    %7858 = vmatpush1.msra.mxu0 0.0
    %7859 = vmatprep.subr.mxu0 0.0
    %7860 = vmatpush1.msra.mxu0 0.0
    %7861 = vmatprep.subr.mxu0 0.0
    %7862 = vmatpush1.msra.mxu0 0.0
    %7863 = vmatprep.subr.mxu0 0.0
    %7864 = vmatpush1.msra.mxu0 0.0
    %7865 = vmatprep.subr.mxu0 0.0
    %7866 = vmatpush1.msra.mxu0 0.0
    %7867 = vmatprep.subr.mxu0 0.0
    %7868 = vmatpush1.msra.mxu0 0.0
    %7869 = vmatprep.subr.mxu0 0.0
    %7870 = vmatpush1.msra.mxu0 0.0
    %7871 = vmatprep.subr.mxu0 0.0
    %7872 = vmatpush1.msra.mxu0 0.0
    %7873 = vmatprep.subr.mxu0 0.0
    %7874 = vmatpush1.msra.mxu0 0.0
    %7875 = vmatprep.subr.mxu0 0.0
    %7876 = vmatpush1.msra.mxu0 0.0
    %7877 = vmatprep.subr.mxu0 0.0
    %7878 = vmatpush1.msra.mxu0 0.0
    %7879 = vmatprep.subr.mxu0 0.0
    %7880 = vmatpush1.msra.mxu0 0.0
    %7881 = vmatprep.subr.mxu0 0.0
    %7882 = vmatpush1.msra.mxu0 0.0
    %7883 = vmatprep.subr.mxu0 0.0
    %7884 = vmatpush1.msra.mxu0 0.0
    %7885 = vmatprep.subr.mxu0 0.0
    %7886 = vmatpush1.msra.mxu0 0.0
    %7887 = vmatprep.subr.mxu0 0.0
    %7888 = vmatpush1.msra.mxu0 0.0
    %7889 = vmatprep.subr.mxu0 0.0
    %7890 = vmatpush1.msra.mxu0 0.0
    %7891 = vmatprep.subr.mxu0 0.0
    %7892 = vmatpush1.msra.mxu0 0.0
    %7893 = vmatprep.subr.mxu0 0.0
    %7894 = vmatpush1.msra.mxu0 0.0
    %7895 = vmatprep.subr.mxu0 0.0
    %7896 = vmatpush1.msra.mxu0 0.0
    %7897 = vmatprep.subr.mxu0 0.0
    %7898 = vmatpush1.msra.mxu0 0.0
    %7899 = vmatprep.subr.mxu0 0.0
    %7900 = vmatpush1.msra.mxu0 0.0
    %7901 = vmatprep.subr.mxu0 0.0
    %7902 = vmatpush1.msra.mxu0 0.0
    %7903 = vmatprep.subr.mxu0 0.0
    %7904 = vmatpush1.msra.mxu0 0.0
    %7905 = vmatprep.mubr.f32.mxu0 0.0
    %7906 = vmatmul.mubr.f32.gmra.mrb[0].mxu0 %v7836
    %v7907 = vpop.f32.mrb[0].mxu0
    %v7908 = vadd.f32 %v7834, %v7907
    %v7909 = vpop.f32.mrb[0].mxu0
    %7910 = vmatprep.mubr.f32.mxu0 0.0
    %7911 = vmatmul.mubr.f32.gmra.mrb[0].mxu0 %v7839
    %v7912 = vpop.f32.mrb[0].mxu0
    %v7913 = vadd.f32 %v7834, %v7912
    %v7914 = vpop.f32.mrb[0].mxu0
    %7915 = vdwg.mxu0
    %v7916 = vadd.f32 %v7720, %v7908
    %v7917 = vadd.f32 %v7721, %v7913
    %v7918 = vld [vmem:[#allocation2 + $0x940] sm:$0x1]
    %v7919 = vld [vmem:[#allocation2 + $0x948] sm:$0x1]
    %v7920 = vsel %vm129, %v7916, 0.0
    %7921 = vadd.xlane.f32.xlu0 %v7920
    %v7922 = vpop.xlane.xlu0 %7921
    %v7923 = vsel %vm129, %v7917, 0.0
    %7924 = vadd.xlane.f32.xlu0 %v7923
    %v7925 = vpop.xlane.xlu0 %7924
    %v7926 = vmul.f32 %v7922, %v136
    %v7927 = vmul.f32 %v7925, %v136
    %v7928 = vsub.f32 %v7916, %v7926
    %v7929 = vsub.f32 %v7917, %v7927
    %v7930 = vmul.f32 %v7928, %v7928
    %v7931 = vmul.f32 %v7929, %v7929
    %v7932 = vsel %vm129, %v7930, 0.0
    %7933 = vadd.xlane.f32.xlu0 %v7932
    %v7934 = vpop.xlane.xlu0 %7933
    %v7935 = vsel %vm129, %v7931, 0.0
    %7936 = vadd.xlane.f32.xlu0 %v7935
    %v7937 = vpop.xlane.xlu0 %7936
    %v7938 = vmul.f32 %v7934, %v136
    %v7939 = vmul.f32 %v7937, %v136
    %v7940 = vadd.f32 %v7938, 1e-05
    %v7941 = vadd.f32 %v7939, 1e-05
    %v7942 = vrsqrt.pop %v7940
    %v7943 = vrsqrt.pop %v7941
    %v7944 = vmul.f32 %v7928, %v7942
    %v7945 = vmul.f32 %v7929, %v7943
    %v7946 = vlaneseq
    %v7947 = vshrl.u32 %v7946, 7
    %v7948 = vsub.s32 0, %v7947
    %v7949 = vrot.slane %v7918, %v7948
    %v7950 = vmul.f32 %v7944, %v7949
    %v7951 = vmul.f32 %v7945, %v7949
    %v7952 = vlaneseq
    %v7953 = vshrl.u32 %v7952, 7
    %v7954 = vsub.s32 0, %v7953
    %v7955 = vrot.slane %v7919, %v7954
    %v7956 = vadd.f32 %v7950, %v7955
    %v7957 = vadd.f32 %v7951, %v7955
    %v7958 = vld [vmem:[#allocation2 + $0x950] sm:$0xff]
    %v7959 = vld [vmem:[#allocation2 + $0x958] sm:$0xff]
    %v7960 = vld [vmem:[#allocation2 + $0x960] sm:$0xff]
    %v7961 = vld [vmem:[#allocation2 + $0x968] sm:$0xff]
    %v7963 = vsel %vm129, %v7956, 0
    %v7966 = vsel %vm129, %v7957, 0
    %7968 = vmatprep.subr.mxu0 0.0
    %7969 = vmatpush1.msra.mxu0 %v7958
    %7970 = vmatprep.subr.mxu0 0.0
    %7971 = vmatpush1.msra.mxu0 %v7959
    %7972 = vmatprep.subr.mxu0 0.0
    %7973 = vmatpush1.msra.mxu0 %v7960
    %7974 = vmatprep.subr.mxu0 0.0
    %7975 = vmatpush1.msra.mxu0 %v7961
    %7976 = vmatprep.subr.mxu0 0.0
    %7977 = vmatpush1.msra.mxu0 0.0
    %7978 = vmatprep.subr.mxu0 0.0
    %7979 = vmatpush1.msra.mxu0 0.0
    %7980 = vmatprep.subr.mxu0 0.0
    %7981 = vmatpush1.msra.mxu0 0.0
    %7982 = vmatprep.subr.mxu0 0.0
    %7983 = vmatpush1.msra.mxu0 0.0
    %7984 = vmatprep.subr.mxu0 0.0
    %7985 = vmatpush1.msra.mxu0 0.0
    %7986 = vmatprep.subr.mxu0 0.0
    %7987 = vmatpush1.msra.mxu0 0.0
    %7988 = vmatprep.subr.mxu0 0.0
    %7989 = vmatpush1.msra.mxu0 0.0
    %7990 = vmatprep.subr.mxu0 0.0
    %7991 = vmatpush1.msra.mxu0 0.0
    %7992 = vmatprep.subr.mxu0 0.0
    %7993 = vmatpush1.msra.mxu0 0.0
    %7994 = vmatprep.subr.mxu0 0.0
    %7995 = vmatpush1.msra.mxu0 0.0
    %7996 = vmatprep.subr.mxu0 0.0
    %7997 = vmatpush1.msra.mxu0 0.0
    %7998 = vmatprep.subr.mxu0 0.0
    %7999 = vmatpush1.msra.mxu0 0.0
    %8000 = vmatprep.subr.mxu0 0.0
    %8001 = vmatpush1.msra.mxu0 0.0
    %8002 = vmatprep.subr.mxu0 0.0
    %8003 = vmatpush1.msra.mxu0 0.0
    %8004 = vmatprep.subr.mxu0 0.0
    %8005 = vmatpush1.msra.mxu0 0.0
    %8006 = vmatprep.subr.mxu0 0.0
    %8007 = vmatpush1.msra.mxu0 0.0
    %8008 = vmatprep.subr.mxu0 0.0
    %8009 = vmatpush1.msra.mxu0 0.0
    %8010 = vmatprep.subr.mxu0 0.0
    %8011 = vmatpush1.msra.mxu0 0.0
    %8012 = vmatprep.subr.mxu0 0.0
    %8013 = vmatpush1.msra.mxu0 0.0
    %8014 = vmatprep.subr.mxu0 0.0
    %8015 = vmatpush1.msra.mxu0 0.0
    %8016 = vmatprep.subr.mxu0 0.0
    %8017 = vmatpush1.msra.mxu0 0.0
    %8018 = vmatprep.subr.mxu0 0.0
    %8019 = vmatpush1.msra.mxu0 0.0
    %8020 = vmatprep.subr.mxu0 0.0
    %8021 = vmatpush1.msra.mxu0 0.0
    %8022 = vmatprep.subr.mxu0 0.0
    %8023 = vmatpush1.msra.mxu0 0.0
    %8024 = vmatprep.subr.mxu0 0.0
    %8025 = vmatpush1.msra.mxu0 0.0
    %8026 = vmatprep.subr.mxu0 0.0
    %8027 = vmatpush1.msra.mxu0 0.0
    %8028 = vmatprep.subr.mxu0 0.0
    %8029 = vmatpush1.msra.mxu0 0.0
    %8030 = vmatprep.subr.mxu0 0.0
    %8031 = vmatpush1.msra.mxu0 0.0
    %8032 = vmatprep.mubr.f32.mxu0 0.0
    %8033 = vmatmul.mubr.f32.gmra.mrb[0].mxu0 %v7963
    %v8034 = vpop.f32.mrb[0].mxu0
    %v8035 = vadd.f32 0.0, %v8034
    %v8036 = vpop.f32.mrb[0].mxu0
    %8037 = vmatprep.mubr.f32.mxu0 0.0
    %8038 = vmatmul.mubr.f32.gmra.mrb[0].mxu0 %v7966
    %v8039 = vpop.f32.mrb[0].mxu0
    %v8040 = vadd.f32 0.0, %v8039
    %v8041 = vpop.f32.mrb[0].mxu0
    %8042 = vdwg.mxu0
    %8043 = vst [vmem:[%s2] sm:$0xff] %v8035
    %8044 = vst [vmem:[%s2 + $0x8] sm:$0xff] %v8040
    // Predicated region
    $region14: #{marian_decoder_forward.1} parent=1 // pred_check
      _
    $region15: #{marian_decoder_forward.1} parent=1 // pred_check_branch
      %8046 = sbr.rel (0) target = $region17
    $region16: #{marian_decoder_forward.1} parent=1 // pred_region
      _
    $region17: #{marian_decoder_forward.1} parent=1 // pred_fallthru
      _
    // Predicated region
    $region18: #{marian_decoder_forward.1} parent=1 // pred_check
      _
    $region19: #{marian_decoder_forward.1} parent=1 // pred_check_branch
      %8048 = sbr.rel (0) target = $region21
    $region20: #{marian_decoder_forward.1} parent=1 // pred_region
      _
    $region21: #{marian_decoder_forward.1} parent=1 // pred_fallthru
      _
    %8049 = vsyncpa [#allocation3], 1

</llo_original>
